<compile_context>
chip_gen: v7x
topology: tpu7x:2x2x1
jax: 0.10.0
libtpu: 0.0.40
codegen_flags: <defaults>
</compile_context>

<pallas_src>
import jax
import jax.numpy as jnp
from jax.experimental import pallas as pl
from jax.experimental.pallas import tpu as pltpu


def _round_up(x, m):
    return (x + m - 1) // m * m


# ---------------------------------------------------------------------------
# Fused kernel: q/k/v projection + criss-cross 3D attention + residual.
# One whole batch element per grid step.
# ---------------------------------------------------------------------------
def _cca3d_fused_kernel(x_ref, w_ref, b_ref, mask_ref, gamma_ref, o_ref,
                        q_scr, k_scr, v_scr):
    # x_ref    : (1, C, H, WD)  input, lane-dense (WD = W*D)
    # w_ref    : (rows, C)      packed [q | k | v] projection weights (resident)
    # b_ref    : (rows, 1)      packed projection biases (resident)
    # mask_ref : (WD, WD)       additive criss-cross mask over one slab:
    #                           0 where candidate shares w or d with the query,
    #                           -1e30 elsewhere (resident)
    # gamma_ref: (1, 1)         SMEM scalar
    # o_ref    : (1, C, H, WD)
    # scratch  : q (Cq, H, WD), k (Cq, H, WD), v (C, H, WD) in VMEM
    C = v_scr.shape[0]
    Cq = q_scr.shape[0]
    H = q_scr.shape[1]
    WD = q_scr.shape[2]
    rq = _round_up(Cq, 8)

    w = w_ref[...]                      # (rows, C)
    b = b_ref[...]                      # (rows, 1)

    # ---- fused 1x1x1 q/k/v projection: one MXU matmul per h-slab, into VMEM.
    for h in range(H):
        y = jnp.dot(w, x_ref[0, :, h, :],
                    preferred_element_type=jnp.float32) + b     # (rows, WD)
        q_scr[:, h, :] = y[0:Cq, :]
        k_scr[:, h, :] = y[rq:rq + Cq, :]
        v_scr[:, h, :] = y[2 * rq:2 * rq + C, :]

    gamma = gamma_ref[0, 0]
    neg = jnp.float32(-1e30)
    cross_bias = mask_ref[...]                                   # (WD, WD)
    row_h = jax.lax.broadcasted_iota(jnp.int32, (H, WD), 0)

    # ---- criss-cross attention, one (W, D) slab of queries per iteration.
    # (H is a compile-time constant; for very large H this loop could be moved
    #  onto a grid axis with an H-major layout instead of being unrolled.)
    for h in range(H):
        q_f = q_scr[:, h, :]            # (Cq, WD)
        k_f = k_scr[:, h, :]            # (Cq, WD)
        v_f = v_scr[:, h, :]            # (C,  WD)

        # H-axis energies: e_h[i, p] = sum_e q[e, p] * k[e, i, p]
        e_h = jnp.sum(q_f[:, None, :] * k_scr[...], axis=0)     # (H, WD)
        e_h = jnp.where(row_h == h, neg, e_h)                   # mask self (H)

        # W/D-axis energies as a masked dense slab attention (MXU matmul):
        # e_x[p', p] = sum_e k[e, p'] * q[e, p]; mask keeps only candidates
        # sharing w or d with the query (self counted exactly once, via W).
        e_x = jax.lax.dot_general(
            k_f, q_f, (((0,), (0,)), ((), ())),
            preferred_element_type=jnp.float32)                 # (WD, WD)
        e_x = e_x + cross_bias

        # joint softmax over the concatenated H + W + D candidate set.
        m = jnp.maximum(jnp.max(e_h, axis=0, keepdims=True),
                        jnp.max(e_x, axis=0, keepdims=True))    # (1, WD)
        p_h = jnp.exp(e_h - m)                                  # (H, WD)
        p_x = jnp.exp(e_x - m)                                  # (WD, WD)
        denom = (jnp.sum(p_h, axis=0, keepdims=True)
                 + jnp.sum(p_x, axis=0, keepdims=True))         # (1, WD)
        inv = pl.reciprocal(denom, approx=True)                 # EUP slot
        inv = inv * (2.0 - denom * inv)                         # Newton -> ~f32

        # aggregation: H axis via lane-dense broadcast-reduce, W/D axes via
        # one MXU matmul against the slab values.
        acc = jnp.sum(p_h[None, :, :] * v_scr[...], axis=1)     # (C, WD)
        acc = acc + jnp.dot(v_f, p_x, preferred_element_type=jnp.float32)

        o_ref[0, :, h, :] = gamma * (acc * inv) + x_ref[0, :, h, :]


def criss_cross_attention_3d(x, wq, bq, wk, bk, wv, bv, gamma):
    """x: (B, C, H, W, D) (PyTorch layout). Returns the same layout, float32."""
    B, C, H, W, D = x.shape
    Cq = wq.shape[1]
    WD = W * D
    rq = _round_up(Cq, 8)
    rv = _round_up(C, 8)
    rows = 2 * rq + rv

    # packed, row-padded (sublane-aligned) projection weights [ q | k | v ].
    w_all = jnp.zeros((rows, C), jnp.float32)
    w_all = w_all.at[0:Cq].set(wq.T.astype(jnp.float32))
    w_all = w_all.at[rq:rq + Cq].set(wk.T.astype(jnp.float32))
    w_all = w_all.at[2 * rq:2 * rq + C].set(wv.T.astype(jnp.float32))
    b_all = jnp.zeros((rows, 1), jnp.float32)
    b_all = b_all.at[0:Cq, 0].set(bq.reshape(-1).astype(jnp.float32))
    b_all = b_all.at[rq:rq + Cq, 0].set(bk.reshape(-1).astype(jnp.float32))
    b_all = b_all.at[2 * rq:2 * rq + C, 0].set(bv.reshape(-1).astype(jnp.float32))

    # Additive criss-cross mask over one flattened (W, D) slab.  Candidate
    # p' = (j, l) is a criss-cross neighbour of query p = (w, d) iff l == d
    # (W axis, self included) or j == w and l != d (D axis, self excluded),
    # i.e. exactly once iff it shares w or d with the query.
    pc = jnp.arange(WD)
    same_d = (pc[:, None] % D) == (pc[None, :] % D)
    same_w = (pc[:, None] // D) == (pc[None, :] // D)
    cross_mask = jnp.where(same_d | same_w, 0.0, -1e30).astype(jnp.float32)

    x4 = x.astype(jnp.float32).reshape(B, C, H, WD)   # free row-major reshape
    gamma2 = jnp.asarray(gamma, jnp.float32).reshape(1, 1)

    out4 = pl.pallas_call(
        _cca3d_fused_kernel,
        out_shape=jax.ShapeDtypeStruct((B, C, H, WD), jnp.float32),
        grid=(B,),
        in_specs=[
            pl.BlockSpec((1, C, H, WD), lambda b: (b, 0, 0, 0)),   # x, per batch
            pl.BlockSpec((rows, C), lambda b: (0, 0)),             # weights, resident
            pl.BlockSpec((rows, 1), lambda b: (0, 0)),             # biases, resident
            pl.BlockSpec((WD, WD), lambda b: (0, 0)),              # cc mask, resident
            pl.BlockSpec(memory_space=pltpu.MemorySpace.SMEM),     # gamma scalar
        ],
        out_specs=pl.BlockSpec((1, C, H, WD), lambda b: (b, 0, 0, 0)),
        scratch_shapes=[pltpu.VMEM((Cq, H, WD), jnp.float32),      # q
                        pltpu.VMEM((Cq, H, WD), jnp.float32),      # k
                        pltpu.VMEM((C, H, WD), jnp.float32)],      # v
        compiler_params=pltpu.CompilerParams(
            dimension_semantics=("parallel",),            # megacore shards over b
            vmem_limit_bytes=64 * 1024 * 1024),
    )(x4, w_all, b_all, cross_mask, gamma2)

    return out4.reshape(B, C, H, W, D)


# ---------------------------------------------------------------------------
# Pure-JAX reference mirroring the PyTorch forward (for correctness check).
# ---------------------------------------------------------------------------
def reference_cca3d(x, wq, bq, wk, bk, wv, bv, gamma):
    B, C, H, W, D = x.shape
    x_cl = jnp.transpose(x, (0, 2, 3, 4, 1)).astype(jnp.float32)
    hp = jax.lax.Precision.HIGHEST
    q = jnp.einsum('bhwdc,ce->bhwde', x_cl, wq, precision=hp) + bq
    k = jnp.einsum('bhwdc,ce->bhwde', x_cl, wk, precision=hp) + bk
    v = jnp.einsum('bhwdc,ce->bhwde', x_cl, wv, precision=hp) + bv
    e_h = jnp.einsum('bhwde,biwde->bhwdi', q, k, precision=hp)
    e_w = jnp.einsum('bhwde,bhjde->bhwdj', q, k, precision=hp)
    e_d = jnp.einsum('bhwde,bhwle->bhwdl', q, k, precision=hp)
    neg = jnp.float32(-1e30)
    e_h = jnp.where(jnp.eye(H, dtype=bool)[None, :, None, None, :], neg, e_h)
    e_d = jnp.where(jnp.eye(D, dtype=bool)[None, None, None, :, :], neg, e_d)
    att = jax.nn.softmax(jnp.concatenate([e_h, e_w, e_d], axis=-1), axis=-1)
    a_h, a_w, a_d = att[..., :H], att[..., H:H + W], att[..., H + W:]
    o_h = jnp.einsum('bhwdi,biwdc->bhwdc', a_h, v, precision=hp)
    o_w = jnp.einsum('bhwdj,bhjdc->bhwdc', a_w, v, precision=hp)
    o_d = jnp.einsum('bhwdl,bhwlc->bhwdc', a_d, v, precision=hp)
    out_cl = gamma * (o_h + o_w + o_d) + x_cl
    return jnp.transpose(out_cl, (0, 4, 1, 2, 3))


if __name__ == "__main__":
    B, C, H, W, D = 2, 16, 8, 8, 8
    Cq = C // 8
    key = jax.random.PRNGKey(0)
    kx, kk1, kk2, kk3, kk4, kk5, kk6 = jax.random.split(key, 7)
    x = jax.random.normal(kx, (B, C, H, W, D), jnp.float32)
    wq = 0.2 * jax.random.normal(kk1, (C, Cq), jnp.float32)   # Conv3d(C, C//8, 1) weight^T
    bq = 0.1 * jax.random.normal(kk2, (1, Cq), jnp.float32)
    wk = 0.2 * jax.random.normal(kk3, (C, Cq), jnp.float32)
    bk = 0.1 * jax.random.normal(kk4, (1, Cq), jnp.float32)
    wv = 0.2 * jax.random.normal(kk5, (C, C), jnp.float32)    # Conv3d(C, C, 1) weight^T
    bv = 0.1 * jax.random.normal(kk6, (1, C), jnp.float32)
    # nn.Parameter(torch.zeros(1)) in the module; nonzero here so the attention
    # path is actually exercised by the check.
    gamma = jnp.float32(0.5)

    out = jax.block_until_ready(
        criss_cross_attention_3d(x, wq, bq, wk, bk, wv, bv, gamma))
    ref = reference_cca3d(x, wq, bq, wk, bk, wv, bv, gamma)

    max_err = float(jnp.max(jnp.abs(out - ref)))
    if out.shape == x.shape and max_err < 2e-3:
        print("KERNEL_OK")
    else:
        raise SystemExit(f"mismatch: shape={out.shape}, max_abs_err={max_err}")
</pallas_src>

<mosaic_0001>
module attributes {stable_mosaic.version = 11 : i64} {
  func.func @_cca3d_fused_kernel(%arg0: i32, %arg1: memref<1x16x8x64xf32, #tpu.memory_space<vmem>>, %arg2: memref<32x16xf32, #tpu.memory_space<vmem>>, %arg3: memref<32x1xf32, #tpu.memory_space<vmem>>, %arg4: memref<64x64xf32, #tpu.memory_space<vmem>>, %arg5: memref<1x1xf32, #tpu.memory_space<smem>>, %arg6: memref<1x16x8x64xf32, #tpu.memory_space<vmem>>, %arg7: memref<2x8x64xf32, #tpu.memory_space<vmem>>, %arg8: memref<2x8x64xf32, #tpu.memory_space<vmem>>, %arg9: memref<16x8x64xf32, #tpu.memory_space<vmem>>) attributes {dimension_semantics = [#tpu.dimension_semantics<parallel>], iteration_bounds = array<i64: 2>, scalar_prefetch = 0 : i64, scratch_operands = 3 : i64, tpu.core_type = #tpu.core_type<tc>, window_params = [{transform_indices = @transform_0, window_bounds = array<i64: 1, 16, 8, 64>}, {pipeline_mode = #tpu.pipeline_mode<synchronous>, transform_indices = @transform_1, window_bounds = array<i64: 32, 16>}, {pipeline_mode = #tpu.pipeline_mode<synchronous>, transform_indices = @transform_2, window_bounds = array<i64: 32, 1>}, {pipeline_mode = #tpu.pipeline_mode<synchronous>, transform_indices = @transform_3, window_bounds = array<i64: 64, 64>}, {transform_indices = @transform_4, window_bounds = array<i64: 1, 1>}, {transform_indices = @transform_5, window_bounds = array<i64: 1, 16, 8, 64>}]} {
    %c0 = arith.constant 0 : index
    %c0_0 = arith.constant 0 : index
    %0 = vector.load %arg2[%c0, %c0_0] : memref<32x16xf32, #tpu.memory_space<vmem>>, vector<32x16xf32>
    %c0_1 = arith.constant 0 : index
    %c0_2 = arith.constant 0 : index
    %1 = vector.load %arg3[%c0_1, %c0_2] : memref<32x1xf32, #tpu.memory_space<vmem>>, vector<32x1xf32>
    %c0_3 = arith.constant 0 : index
    %c0_4 = arith.constant 0 : index
    %c0_5 = arith.constant 0 : index
    %c0_6 = arith.constant 0 : index
    %2 = vector.load %arg1[%c0_3, %c0_4, %c0_5, %c0_6] : memref<1x16x8x64xf32, #tpu.memory_space<vmem>>, vector<1x16x1x64xf32>
    %3 = vector.shape_cast %2 : vector<1x16x1x64xf32> to vector<16x64xf32>
    %cst = arith.constant dense<0.000000e+00> : vector<32x64xf32>
    %4 = tpu.matmul %0, %3, %cst {dimension_numbers = #tpu.dot_dimension_numbers<[1], [0], [0], [1], [0, 0, 1, 1], [], []>} : vector<32x16xf32>, vector<16x64xf32>, vector<32x64xf32> -> vector<32x64xf32>
    %5 = vector.broadcast %1 : vector<32x1xf32> to vector<32x64xf32>
    %6 = arith.addf %4, %5 : vector<32x64xf32>
    %7 = vector.extract_strided_slice %6 {offsets = [0, 0], sizes = [2, 64], strides = [1, 1]} : vector<32x64xf32> to vector<2x64xf32>
    %c0_7 = arith.constant 0 : index
    %c0_8 = arith.constant 0 : index
    %c0_9 = arith.constant 0 : index
    %8 = vector.load %arg7[%c0_7, %c0_8, %c0_9] : memref<2x8x64xf32, #tpu.memory_space<vmem>>, vector<2x1x64xf32>
    %9 = vector.shape_cast %8 : vector<2x1x64xf32> to vector<2x64xf32>
    %10 = vector.shape_cast %7 : vector<2x64xf32> to vector<2x1x64xf32>
    tpu.vector_store %arg7[%c0_7, %c0_8, %c0_9], %10 {strides = array<i32>} : memref<2x8x64xf32, #tpu.memory_space<vmem>>, vector<2x1x64xf32>,
    %11 = vector.extract_strided_slice %6 {offsets = [8, 0], sizes = [2, 64], strides = [1, 1]} : vector<32x64xf32> to vector<2x64xf32>
    %c0_10 = arith.constant 0 : index
    %c0_11 = arith.constant 0 : index
    %c0_12 = arith.constant 0 : index
    %12 = vector.load %arg8[%c0_10, %c0_11, %c0_12] : memref<2x8x64xf32, #tpu.memory_space<vmem>>, vector<2x1x64xf32>
    %13 = vector.shape_cast %12 : vector<2x1x64xf32> to vector<2x64xf32>
    %14 = vector.shape_cast %11 : vector<2x64xf32> to vector<2x1x64xf32>
    tpu.vector_store %arg8[%c0_10, %c0_11, %c0_12], %14 {strides = array<i32>} : memref<2x8x64xf32, #tpu.memory_space<vmem>>, vector<2x1x64xf32>,
    %15 = vector.extract_strided_slice %6 {offsets = [16, 0], sizes = [16, 64], strides = [1, 1]} : vector<32x64xf32> to vector<16x64xf32>
    %c0_13 = arith.constant 0 : index
    %c0_14 = arith.constant 0 : index
    %c0_15 = arith.constant 0 : index
    %16 = vector.load %arg9[%c0_13, %c0_14, %c0_15] : memref<16x8x64xf32, #tpu.memory_space<vmem>>, vector<16x1x64xf32>
    %17 = vector.shape_cast %16 : vector<16x1x64xf32> to vector<16x64xf32>
    %18 = vector.shape_cast %15 : vector<16x64xf32> to vector<16x1x64xf32>
    tpu.vector_store %arg9[%c0_13, %c0_14, %c0_15], %18 {strides = array<i32>} : memref<16x8x64xf32, #tpu.memory_space<vmem>>, vector<16x1x64xf32>,
    %c0_16 = arith.constant 0 : index
    %c0_17 = arith.constant 0 : index
    %c1 = arith.constant 1 : index
    %c0_18 = arith.constant 0 : index
    %19 = vector.load %arg1[%c0_16, %c0_17, %c1, %c0_18] : memref<1x16x8x64xf32, #tpu.memory_space<vmem>>, vector<1x16x1x64xf32>
    %20 = vector.shape_cast %19 : vector<1x16x1x64xf32> to vector<16x64xf32>
    %cst_19 = arith.constant dense<0.000000e+00> : vector<32x64xf32>
    %21 = tpu.matmul %0, %20, %cst_19 {dimension_numbers = #tpu.dot_dimension_numbers<[1], [0], [0], [1], [0, 0, 1, 1], [], []>} : vector<32x16xf32>, vector<16x64xf32>, vector<32x64xf32> -> vector<32x64xf32>
    %22 = vector.broadcast %1 : vector<32x1xf32> to vector<32x64xf32>
    %23 = arith.addf %21, %22 : vector<32x64xf32>
    %24 = vector.extract_strided_slice %23 {offsets = [0, 0], sizes = [2, 64], strides = [1, 1]} : vector<32x64xf32> to vector<2x64xf32>
    %c0_20 = arith.constant 0 : index
    %c1_21 = arith.constant 1 : index
    %c0_22 = arith.constant 0 : index
    %25 = vector.load %arg7[%c0_20, %c1_21, %c0_22] : memref<2x8x64xf32, #tpu.memory_space<vmem>>, vector<2x1x64xf32>
    %26 = vector.shape_cast %25 : vector<2x1x64xf32> to vector<2x64xf32>
    %27 = vector.shape_cast %24 : vector<2x64xf32> to vector<2x1x64xf32>
    tpu.vector_store %arg7[%c0_20, %c1_21, %c0_22], %27 {strides = array<i32>} : memref<2x8x64xf32, #tpu.memory_space<vmem>>, vector<2x1x64xf32>,
    %28 = vector.extract_strided_slice %23 {offsets = [8, 0], sizes = [2, 64], strides = [1, 1]} : vector<32x64xf32> to vector<2x64xf32>
    %c0_23 = arith.constant 0 : index
    %c1_24 = arith.constant 1 : index
    %c0_25 = arith.constant 0 : index
    %29 = vector.load %arg8[%c0_23, %c1_24, %c0_25] : memref<2x8x64xf32, #tpu.memory_space<vmem>>, vector<2x1x64xf32>
    %30 = vector.shape_cast %29 : vector<2x1x64xf32> to vector<2x64xf32>
    %31 = vector.shape_cast %28 : vector<2x64xf32> to vector<2x1x64xf32>
    tpu.vector_store %arg8[%c0_23, %c1_24, %c0_25], %31 {strides = array<i32>} : memref<2x8x64xf32, #tpu.memory_space<vmem>>, vector<2x1x64xf32>,
    %32 = vector.extract_strided_slice %23 {offsets = [16, 0], sizes = [16, 64], strides = [1, 1]} : vector<32x64xf32> to vector<16x64xf32>
    %c0_26 = arith.constant 0 : index
    %c1_27 = arith.constant 1 : index
    %c0_28 = arith.constant 0 : index
    %33 = vector.load %arg9[%c0_26, %c1_27, %c0_28] : memref<16x8x64xf32, #tpu.memory_space<vmem>>, vector<16x1x64xf32>
    %34 = vector.shape_cast %33 : vector<16x1x64xf32> to vector<16x64xf32>
    %35 = vector.shape_cast %32 : vector<16x64xf32> to vector<16x1x64xf32>
    tpu.vector_store %arg9[%c0_26, %c1_27, %c0_28], %35 {strides = array<i32>} : memref<16x8x64xf32, #tpu.memory_space<vmem>>, vector<16x1x64xf32>,
    %c0_29 = arith.constant 0 : index
    %c0_30 = arith.constant 0 : index
    %c2 = arith.constant 2 : index
    %c0_31 = arith.constant 0 : index
    %36 = vector.load %arg1[%c0_29, %c0_30, %c2, %c0_31] : memref<1x16x8x64xf32, #tpu.memory_space<vmem>>, vector<1x16x1x64xf32>
    %37 = vector.shape_cast %36 : vector<1x16x1x64xf32> to vector<16x64xf32>
    %cst_32 = arith.constant dense<0.000000e+00> : vector<32x64xf32>
    %38 = tpu.matmul %0, %37, %cst_32 {dimension_numbers = #tpu.dot_dimension_numbers<[1], [0], [0], [1], [0, 0, 1, 1], [], []>} : vector<32x16xf32>, vector<16x64xf32>, vector<32x64xf32> -> vector<32x64xf32>
    %39 = vector.broadcast %1 : vector<32x1xf32> to vector<32x64xf32>
    %40 = arith.addf %38, %39 : vector<32x64xf32>
    %41 = vector.extract_strided_slice %40 {offsets = [0, 0], sizes = [2, 64], strides = [1, 1]} : vector<32x64xf32> to vector<2x64xf32>
    %c0_33 = arith.constant 0 : index
    %c2_34 = arith.constant 2 : index
    %c0_35 = arith.constant 0 : index
    %42 = vector.load %arg7[%c0_33, %c2_34, %c0_35] : memref<2x8x64xf32, #tpu.memory_space<vmem>>, vector<2x1x64xf32>
    %43 = vector.shape_cast %42 : vector<2x1x64xf32> to vector<2x64xf32>
    %44 = vector.shape_cast %41 : vector<2x64xf32> to vector<2x1x64xf32>
    tpu.vector_store %arg7[%c0_33, %c2_34, %c0_35], %44 {strides = array<i32>} : memref<2x8x64xf32, #tpu.memory_space<vmem>>, vector<2x1x64xf32>,
    %45 = vector.extract_strided_slice %40 {offsets = [8, 0], sizes = [2, 64], strides = [1, 1]} : vector<32x64xf32> to vector<2x64xf32>
    %c0_36 = arith.constant 0 : index
    %c2_37 = arith.constant 2 : index
    %c0_38 = arith.constant 0 : index
    %46 = vector.load %arg8[%c0_36, %c2_37, %c0_38] : memref<2x8x64xf32, #tpu.memory_space<vmem>>, vector<2x1x64xf32>
    %47 = vector.shape_cast %46 : vector<2x1x64xf32> to vector<2x64xf32>
    %48 = vector.shape_cast %45 : vector<2x64xf32> to vector<2x1x64xf32>
    tpu.vector_store %arg8[%c0_36, %c2_37, %c0_38], %48 {strides = array<i32>} : memref<2x8x64xf32, #tpu.memory_space<vmem>>, vector<2x1x64xf32>,
    %49 = vector.extract_strided_slice %40 {offsets = [16, 0], sizes = [16, 64], strides = [1, 1]} : vector<32x64xf32> to vector<16x64xf32>
    %c0_39 = arith.constant 0 : index
    %c2_40 = arith.constant 2 : index
    %c0_41 = arith.constant 0 : index
    %50 = vector.load %arg9[%c0_39, %c2_40, %c0_41] : memref<16x8x64xf32, #tpu.memory_space<vmem>>, vector<16x1x64xf32>
    %51 = vector.shape_cast %50 : vector<16x1x64xf32> to vector<16x64xf32>
    %52 = vector.shape_cast %49 : vector<16x64xf32> to vector<16x1x64xf32>
    tpu.vector_store %arg9[%c0_39, %c2_40, %c0_41], %52 {strides = array<i32>} : memref<16x8x64xf32, #tpu.memory_space<vmem>>, vector<16x1x64xf32>,
    %c0_42 = arith.constant 0 : index
    %c0_43 = arith.constant 0 : index
    %c3 = arith.constant 3 : index
    %c0_44 = arith.constant 0 : index
    %53 = vector.load %arg1[%c0_42, %c0_43, %c3, %c0_44] : memref<1x16x8x64xf32, #tpu.memory_space<vmem>>, vector<1x16x1x64xf32>
    %54 = vector.shape_cast %53 : vector<1x16x1x64xf32> to vector<16x64xf32>
    %cst_45 = arith.constant dense<0.000000e+00> : vector<32x64xf32>
    %55 = tpu.matmul %0, %54, %cst_45 {dimension_numbers = #tpu.dot_dimension_numbers<[1], [0], [0], [1], [0, 0, 1, 1], [], []>} : vector<32x16xf32>, vector<16x64xf32>, vector<32x64xf32> -> vector<32x64xf32>
    %56 = vector.broadcast %1 : vector<32x1xf32> to vector<32x64xf32>
    %57 = arith.addf %55, %56 : vector<32x64xf32>
    %58 = vector.extract_strided_slice %57 {offsets = [0, 0], sizes = [2, 64], strides = [1, 1]} : vector<32x64xf32> to vector<2x64xf32>
    %c0_46 = arith.constant 0 : index
    %c3_47 = arith.constant 3 : index
    %c0_48 = arith.constant 0 : index
    %59 = vector.load %arg7[%c0_46, %c3_47, %c0_48] : memref<2x8x64xf32, #tpu.memory_space<vmem>>, vector<2x1x64xf32>
    %60 = vector.shape_cast %59 : vector<2x1x64xf32> to vector<2x64xf32>
    %61 = vector.shape_cast %58 : vector<2x64xf32> to vector<2x1x64xf32>
    tpu.vector_store %arg7[%c0_46, %c3_47, %c0_48], %61 {strides = array<i32>} : memref<2x8x64xf32, #tpu.memory_space<vmem>>, vector<2x1x64xf32>,
    %62 = vector.extract_strided_slice %57 {offsets = [8, 0], sizes = [2, 64], strides = [1, 1]} : vector<32x64xf32> to vector<2x64xf32>
    %c0_49 = arith.constant 0 : index
    %c3_50 = arith.constant 3 : index
    %c0_51 = arith.constant 0 : index
    %63 = vector.load %arg8[%c0_49, %c3_50, %c0_51] : memref<2x8x64xf32, #tpu.memory_space<vmem>>, vector<2x1x64xf32>
    %64 = vector.shape_cast %63 : vector<2x1x64xf32> to vector<2x64xf32>
    %65 = vector.shape_cast %62 : vector<2x64xf32> to vector<2x1x64xf32>
    tpu.vector_store %arg8[%c0_49, %c3_50, %c0_51], %65 {strides = array<i32>} : memref<2x8x64xf32, #tpu.memory_space<vmem>>, vector<2x1x64xf32>,
    %66 = vector.extract_strided_slice %57 {offsets = [16, 0], sizes = [16, 64], strides = [1, 1]} : vector<32x64xf32> to vector<16x64xf32>
    %c0_52 = arith.constant 0 : index
    %c3_53 = arith.constant 3 : index
    %c0_54 = arith.constant 0 : index
    %67 = vector.load %arg9[%c0_52, %c3_53, %c0_54] : memref<16x8x64xf32, #tpu.memory_space<vmem>>, vector<16x1x64xf32>
    %68 = vector.shape_cast %67 : vector<16x1x64xf32> to vector<16x64xf32>
    %69 = vector.shape_cast %66 : vector<16x64xf32> to vector<16x1x64xf32>
    tpu.vector_store %arg9[%c0_52, %c3_53, %c0_54], %69 {strides = array<i32>} : memref<16x8x64xf32, #tpu.memory_space<vmem>>, vector<16x1x64xf32>,
    %c0_55 = arith.constant 0 : index
    %c0_56 = arith.constant 0 : index
    %c4 = arith.constant 4 : index
    %c0_57 = arith.constant 0 : index
    %70 = vector.load %arg1[%c0_55, %c0_56, %c4, %c0_57] : memref<1x16x8x64xf32, #tpu.memory_space<vmem>>, vector<1x16x1x64xf32>
    %71 = vector.shape_cast %70 : vector<1x16x1x64xf32> to vector<16x64xf32>
    %cst_58 = arith.constant dense<0.000000e+00> : vector<32x64xf32>
    %72 = tpu.matmul %0, %71, %cst_58 {dimension_numbers = #tpu.dot_dimension_numbers<[1], [0], [0], [1], [0, 0, 1, 1], [], []>} : vector<32x16xf32>, vector<16x64xf32>, vector<32x64xf32> -> vector<32x64xf32>
    %73 = vector.broadcast %1 : vector<32x1xf32> to vector<32x64xf32>
    %74 = arith.addf %72, %73 : vector<32x64xf32>
    %75 = vector.extract_strided_slice %74 {offsets = [0, 0], sizes = [2, 64], strides = [1, 1]} : vector<32x64xf32> to vector<2x64xf32>
    %c0_59 = arith.constant 0 : index
    %c4_60 = arith.constant 4 : index
    %c0_61 = arith.constant 0 : index
    %76 = vector.load %arg7[%c0_59, %c4_60, %c0_61] : memref<2x8x64xf32, #tpu.memory_space<vmem>>, vector<2x1x64xf32>
    %77 = vector.shape_cast %76 : vector<2x1x64xf32> to vector<2x64xf32>
    %78 = vector.shape_cast %75 : vector<2x64xf32> to vector<2x1x64xf32>
    tpu.vector_store %arg7[%c0_59, %c4_60, %c0_61], %78 {strides = array<i32>} : memref<2x8x64xf32, #tpu.memory_space<vmem>>, vector<2x1x64xf32>,
    %79 = vector.extract_strided_slice %74 {offsets = [8, 0], sizes = [2, 64], strides = [1, 1]} : vector<32x64xf32> to vector<2x64xf32>
    %c0_62 = arith.constant 0 : index
    %c4_63 = arith.constant 4 : index
    %c0_64 = arith.constant 0 : index
    %80 = vector.load %arg8[%c0_62, %c4_63, %c0_64] : memref<2x8x64xf32, #tpu.memory_space<vmem>>, vector<2x1x64xf32>
    %81 = vector.shape_cast %80 : vector<2x1x64xf32> to vector<2x64xf32>
    %82 = vector.shape_cast %79 : vector<2x64xf32> to vector<2x1x64xf32>
    tpu.vector_store %arg8[%c0_62, %c4_63, %c0_64], %82 {strides = array<i32>} : memref<2x8x64xf32, #tpu.memory_space<vmem>>, vector<2x1x64xf32>,
    %83 = vector.extract_strided_slice %74 {offsets = [16, 0], sizes = [16, 64], strides = [1, 1]} : vector<32x64xf32> to vector<16x64xf32>
    %c0_65 = arith.constant 0 : index
    %c4_66 = arith.constant 4 : index
    %c0_67 = arith.constant 0 : index
    %84 = vector.load %arg9[%c0_65, %c4_66, %c0_67] : memref<16x8x64xf32, #tpu.memory_space<vmem>>, vector<16x1x64xf32>
    %85 = vector.shape_cast %84 : vector<16x1x64xf32> to vector<16x64xf32>
    %86 = vector.shape_cast %83 : vector<16x64xf32> to vector<16x1x64xf32>
    tpu.vector_store %arg9[%c0_65, %c4_66, %c0_67], %86 {strides = array<i32>} : memref<16x8x64xf32, #tpu.memory_space<vmem>>, vector<16x1x64xf32>,
    %c0_68 = arith.constant 0 : index
    %c0_69 = arith.constant 0 : index
    %c5 = arith.constant 5 : index
    %c0_70 = arith.constant 0 : index
    %87 = vector.load %arg1[%c0_68, %c0_69, %c5, %c0_70] : memref<1x16x8x64xf32, #tpu.memory_space<vmem>>, vector<1x16x1x64xf32>
    %88 = vector.shape_cast %87 : vector<1x16x1x64xf32> to vector<16x64xf32>
    %cst_71 = arith.constant dense<0.000000e+00> : vector<32x64xf32>
    %89 = tpu.matmul %0, %88, %cst_71 {dimension_numbers = #tpu.dot_dimension_numbers<[1], [0], [0], [1], [0, 0, 1, 1], [], []>} : vector<32x16xf32>, vector<16x64xf32>, vector<32x64xf32> -> vector<32x64xf32>
    %90 = vector.broadcast %1 : vector<32x1xf32> to vector<32x64xf32>
    %91 = arith.addf %89, %90 : vector<32x64xf32>
    %92 = vector.extract_strided_slice %91 {offsets = [0, 0], sizes = [2, 64], strides = [1, 1]} : vector<32x64xf32> to vector<2x64xf32>
    %c0_72 = arith.constant 0 : index
    %c5_73 = arith.constant 5 : index
    %c0_74 = arith.constant 0 : index
    %93 = vector.load %arg7[%c0_72, %c5_73, %c0_74] : memref<2x8x64xf32, #tpu.memory_space<vmem>>, vector<2x1x64xf32>
    %94 = vector.shape_cast %93 : vector<2x1x64xf32> to vector<2x64xf32>
    %95 = vector.shape_cast %92 : vector<2x64xf32> to vector<2x1x64xf32>
    tpu.vector_store %arg7[%c0_72, %c5_73, %c0_74], %95 {strides = array<i32>} : memref<2x8x64xf32, #tpu.memory_space<vmem>>, vector<2x1x64xf32>,
    %96 = vector.extract_strided_slice %91 {offsets = [8, 0], sizes = [2, 64], strides = [1, 1]} : vector<32x64xf32> to vector<2x64xf32>
    %c0_75 = arith.constant 0 : index
    %c5_76 = arith.constant 5 : index
    %c0_77 = arith.constant 0 : index
    %97 = vector.load %arg8[%c0_75, %c5_76, %c0_77] : memref<2x8x64xf32, #tpu.memory_space<vmem>>, vector<2x1x64xf32>
    %98 = vector.shape_cast %97 : vector<2x1x64xf32> to vector<2x64xf32>
    %99 = vector.shape_cast %96 : vector<2x64xf32> to vector<2x1x64xf32>
    tpu.vector_store %arg8[%c0_75, %c5_76, %c0_77], %99 {strides = array<i32>} : memref<2x8x64xf32, #tpu.memory_space<vmem>>, vector<2x1x64xf32>,
    %100 = vector.extract_strided_slice %91 {offsets = [16, 0], sizes = [16, 64], strides = [1, 1]} : vector<32x64xf32> to vector<16x64xf32>
    %c0_78 = arith.constant 0 : index
    %c5_79 = arith.constant 5 : index
    %c0_80 = arith.constant 0 : index
    %101 = vector.load %arg9[%c0_78, %c5_79, %c0_80] : memref<16x8x64xf32, #tpu.memory_space<vmem>>, vector<16x1x64xf32>
    %102 = vector.shape_cast %101 : vector<16x1x64xf32> to vector<16x64xf32>
    %103 = vector.shape_cast %100 : vector<16x64xf32> to vector<16x1x64xf32>
    tpu.vector_store %arg9[%c0_78, %c5_79, %c0_80], %103 {strides = array<i32>} : memref<16x8x64xf32, #tpu.memory_space<vmem>>, vector<16x1x64xf32>,
    %c0_81 = arith.constant 0 : index
    %c0_82 = arith.constant 0 : index
    %c6 = arith.constant 6 : index
    %c0_83 = arith.constant 0 : index
    %104 = vector.load %arg1[%c0_81, %c0_82, %c6, %c0_83] : memref<1x16x8x64xf32, #tpu.memory_space<vmem>>, vector<1x16x1x64xf32>
    %105 = vector.shape_cast %104 : vector<1x16x1x64xf32> to vector<16x64xf32>
    %cst_84 = arith.constant dense<0.000000e+00> : vector<32x64xf32>
    %106 = tpu.matmul %0, %105, %cst_84 {dimension_numbers = #tpu.dot_dimension_numbers<[1], [0], [0], [1], [0, 0, 1, 1], [], []>} : vector<32x16xf32>, vector<16x64xf32>, vector<32x64xf32> -> vector<32x64xf32>
    %107 = vector.broadcast %1 : vector<32x1xf32> to vector<32x64xf32>
    %108 = arith.addf %106, %107 : vector<32x64xf32>
    %109 = vector.extract_strided_slice %108 {offsets = [0, 0], sizes = [2, 64], strides = [1, 1]} : vector<32x64xf32> to vector<2x64xf32>
    %c0_85 = arith.constant 0 : index
    %c6_86 = arith.constant 6 : index
    %c0_87 = arith.constant 0 : index
    %110 = vector.load %arg7[%c0_85, %c6_86, %c0_87] : memref<2x8x64xf32, #tpu.memory_space<vmem>>, vector<2x1x64xf32>
    %111 = vector.shape_cast %110 : vector<2x1x64xf32> to vector<2x64xf32>
    %112 = vector.shape_cast %109 : vector<2x64xf32> to vector<2x1x64xf32>
    tpu.vector_store %arg7[%c0_85, %c6_86, %c0_87], %112 {strides = array<i32>} : memref<2x8x64xf32, #tpu.memory_space<vmem>>, vector<2x1x64xf32>,
    %113 = vector.extract_strided_slice %108 {offsets = [8, 0], sizes = [2, 64], strides = [1, 1]} : vector<32x64xf32> to vector<2x64xf32>
    %c0_88 = arith.constant 0 : index
    %c6_89 = arith.constant 6 : index
    %c0_90 = arith.constant 0 : index
    %114 = vector.load %arg8[%c0_88, %c6_89, %c0_90] : memref<2x8x64xf32, #tpu.memory_space<vmem>>, vector<2x1x64xf32>
    %115 = vector.shape_cast %114 : vector<2x1x64xf32> to vector<2x64xf32>
    %116 = vector.shape_cast %113 : vector<2x64xf32> to vector<2x1x64xf32>
    tpu.vector_store %arg8[%c0_88, %c6_89, %c0_90], %116 {strides = array<i32>} : memref<2x8x64xf32, #tpu.memory_space<vmem>>, vector<2x1x64xf32>,
    %117 = vector.extract_strided_slice %108 {offsets = [16, 0], sizes = [16, 64], strides = [1, 1]} : vector<32x64xf32> to vector<16x64xf32>
    %c0_91 = arith.constant 0 : index
    %c6_92 = arith.constant 6 : index
    %c0_93 = arith.constant 0 : index
    %118 = vector.load %arg9[%c0_91, %c6_92, %c0_93] : memref<16x8x64xf32, #tpu.memory_space<vmem>>, vector<16x1x64xf32>
    %119 = vector.shape_cast %118 : vector<16x1x64xf32> to vector<16x64xf32>
    %120 = vector.shape_cast %117 : vector<16x64xf32> to vector<16x1x64xf32>
    tpu.vector_store %arg9[%c0_91, %c6_92, %c0_93], %120 {strides = array<i32>} : memref<16x8x64xf32, #tpu.memory_space<vmem>>, vector<16x1x64xf32>,
    %c0_94 = arith.constant 0 : index
    %c0_95 = arith.constant 0 : index
    %c7 = arith.constant 7 : index
    %c0_96 = arith.constant 0 : index
    %121 = vector.load %arg1[%c0_94, %c0_95, %c7, %c0_96] : memref<1x16x8x64xf32, #tpu.memory_space<vmem>>, vector<1x16x1x64xf32>
    %122 = vector.shape_cast %121 : vector<1x16x1x64xf32> to vector<16x64xf32>
    %cst_97 = arith.constant dense<0.000000e+00> : vector<32x64xf32>
    %123 = tpu.matmul %0, %122, %cst_97 {dimension_numbers = #tpu.dot_dimension_numbers<[1], [0], [0], [1], [0, 0, 1, 1], [], []>} : vector<32x16xf32>, vector<16x64xf32>, vector<32x64xf32> -> vector<32x64xf32>
    %124 = vector.broadcast %1 : vector<32x1xf32> to vector<32x64xf32>
    %125 = arith.addf %123, %124 : vector<32x64xf32>
    %126 = vector.extract_strided_slice %125 {offsets = [0, 0], sizes = [2, 64], strides = [1, 1]} : vector<32x64xf32> to vector<2x64xf32>
    %c0_98 = arith.constant 0 : index
    %c7_99 = arith.constant 7 : index
    %c0_100 = arith.constant 0 : index
    %127 = vector.load %arg7[%c0_98, %c7_99, %c0_100] : memref<2x8x64xf32, #tpu.memory_space<vmem>>, vector<2x1x64xf32>
    %128 = vector.shape_cast %127 : vector<2x1x64xf32> to vector<2x64xf32>
    %129 = vector.shape_cast %126 : vector<2x64xf32> to vector<2x1x64xf32>
    tpu.vector_store %arg7[%c0_98, %c7_99, %c0_100], %129 {strides = array<i32>} : memref<2x8x64xf32, #tpu.memory_space<vmem>>, vector<2x1x64xf32>,
    %130 = vector.extract_strided_slice %125 {offsets = [8, 0], sizes = [2, 64], strides = [1, 1]} : vector<32x64xf32> to vector<2x64xf32>
    %c0_101 = arith.constant 0 : index
    %c7_102 = arith.constant 7 : index
    %c0_103 = arith.constant 0 : index
    %131 = vector.load %arg8[%c0_101, %c7_102, %c0_103] : memref<2x8x64xf32, #tpu.memory_space<vmem>>, vector<2x1x64xf32>
    %132 = vector.shape_cast %131 : vector<2x1x64xf32> to vector<2x64xf32>
    %133 = vector.shape_cast %130 : vector<2x64xf32> to vector<2x1x64xf32>
    tpu.vector_store %arg8[%c0_101, %c7_102, %c0_103], %133 {strides = array<i32>} : memref<2x8x64xf32, #tpu.memory_space<vmem>>, vector<2x1x64xf32>,
    %134 = vector.extract_strided_slice %125 {offsets = [16, 0], sizes = [16, 64], strides = [1, 1]} : vector<32x64xf32> to vector<16x64xf32>
    %c0_104 = arith.constant 0 : index
    %c7_105 = arith.constant 7 : index
    %c0_106 = arith.constant 0 : index
    %135 = vector.load %arg9[%c0_104, %c7_105, %c0_106] : memref<16x8x64xf32, #tpu.memory_space<vmem>>, vector<16x1x64xf32>
    %136 = vector.shape_cast %135 : vector<16x1x64xf32> to vector<16x64xf32>
    %137 = vector.shape_cast %134 : vector<16x64xf32> to vector<16x1x64xf32>
    tpu.vector_store %arg9[%c0_104, %c7_105, %c0_106], %137 {strides = array<i32>} : memref<16x8x64xf32, #tpu.memory_space<vmem>>, vector<16x1x64xf32>,
    %c0_107 = arith.constant 0 : index
    %c0_108 = arith.constant 0 : index
    %138 = memref.load %arg5[%c0_107, %c0_108] : memref<1x1xf32, #tpu.memory_space<smem>>
    %c0_109 = arith.constant 0 : index
    %c0_110 = arith.constant 0 : index
    %139 = vector.load %arg4[%c0_109, %c0_110] : memref<64x64xf32, #tpu.memory_space<vmem>>, vector<64x64xf32>
    %140 = tpu.iota {dimensions = array<i32: 0>} : vector<8x64xi32>
    %c0_111 = arith.constant 0 : index
    %c0_112 = arith.constant 0 : index
    %c0_113 = arith.constant 0 : index
    %141 = vector.load %arg7[%c0_111, %c0_112, %c0_113] : memref<2x8x64xf32, #tpu.memory_space<vmem>>, vector<2x1x64xf32>
    %142 = vector.shape_cast %141 : vector<2x1x64xf32> to vector<2x64xf32>
    %c0_114 = arith.constant 0 : index
    %c0_115 = arith.constant 0 : index
    %c0_116 = arith.constant 0 : index
    %143 = vector.load %arg8[%c0_114, %c0_115, %c0_116] : memref<2x8x64xf32, #tpu.memory_space<vmem>>, vector<2x1x64xf32>
    %144 = vector.shape_cast %143 : vector<2x1x64xf32> to vector<2x64xf32>
    %c0_117 = arith.constant 0 : index
    %c0_118 = arith.constant 0 : index
    %c0_119 = arith.constant 0 : index
    %145 = vector.load %arg9[%c0_117, %c0_118, %c0_119] : memref<16x8x64xf32, #tpu.memory_space<vmem>>, vector<16x1x64xf32>
    %146 = vector.shape_cast %145 : vector<16x1x64xf32> to vector<16x64xf32>
    %147 = vector.shape_cast %142 : vector<2x64xf32> to vector<2x1x64xf32>
    %c0_120 = arith.constant 0 : index
    %c0_121 = arith.constant 0 : index
    %c0_122 = arith.constant 0 : index
    %148 = vector.load %arg8[%c0_120, %c0_121, %c0_122] : memref<2x8x64xf32, #tpu.memory_space<vmem>>, vector<2x8x64xf32>
    %149 = vector.broadcast %147 : vector<2x1x64xf32> to vector<2x8x64xf32>
    %150 = arith.mulf %149, %148 : vector<2x8x64xf32>
    %cst_123 = arith.constant dense<0.000000e+00> : vector<8x64xf32>
    %151 = vector.multi_reduction <add>, %150, %cst_123 [0] : vector<2x8x64xf32> to vector<8x64xf32>
    %c0_i32 = arith.constant 0 : i32
    %152 = vector.broadcast %c0_i32 : i32 to vector<8x64xi32>
    %153 = arith.cmpi eq, %140, %152 : vector<8x64xi32>
    %cst_124 = arith.constant -1.000000e+30 : f32
    %154 = vector.broadcast %cst_124 : f32 to vector<8x64xf32>
    %155 = arith.select %153, %154, %151 : vector<8x64xi1>, vector<8x64xf32>
    %cst_125 = arith.constant dense<0.000000e+00> : vector<64x64xf32>
    %156 = tpu.matmul %144, %142, %cst_125 {dimension_numbers = #tpu.dot_dimension_numbers<[0], [0], [1], [1], [0, 1, 1, 1], [], []>} : vector<2x64xf32>, vector<2x64xf32>, vector<64x64xf32> -> vector<64x64xf32>
    %157 = arith.addf %156, %139 : vector<64x64xf32>
    %cst_126 = arith.constant dense<0xFF800000> : vector<64xf32>
    %158 = vector.multi_reduction <maximumf>, %155, %cst_126 [0] : vector<8x64xf32> to vector<64xf32>
    %159 = vector.shape_cast %158 : vector<64xf32> to vector<1x64xf32>
    %cst_127 = arith.constant dense<0xFF800000> : vector<64xf32>
    %160 = vector.multi_reduction <maximumf>, %157, %cst_127 [0] : vector<64x64xf32> to vector<64xf32>
    %161 = vector.shape_cast %160 : vector<64xf32> to vector<1x64xf32>
    %162 = arith.maximumf %159, %161 : vector<1x64xf32>
    %163 = vector.broadcast %162 : vector<1x64xf32> to vector<8x64xf32>
    %164 = arith.subf %155, %163 : vector<8x64xf32>
    %165 = math.exp %164 : vector<8x64xf32>
    %166 = vector.broadcast %162 : vector<1x64xf32> to vector<64x64xf32>
    %167 = arith.subf %157, %166 : vector<64x64xf32>
    %168 = math.exp %167 : vector<64x64xf32>
    %cst_128 = arith.constant dense<0.000000e+00> : vector<64xf32>
    %169 = vector.multi_reduction <add>, %165, %cst_128 [0] : vector<8x64xf32> to vector<64xf32>
    %170 = vector.shape_cast %169 : vector<64xf32> to vector<1x64xf32>
    %cst_129 = arith.constant dense<0.000000e+00> : vector<64xf32>
    %171 = vector.multi_reduction <add>, %168, %cst_129 [0] : vector<64x64xf32> to vector<64xf32>
    %172 = vector.shape_cast %171 : vector<64xf32> to vector<1x64xf32>
    %173 = arith.addf %170, %172 : vector<1x64xf32>
    %174 = tpu.reciprocal %173 {approx = true} : vector<1x64xf32> -> vector<1x64xf32>
    %175 = arith.mulf %173, %174 : vector<1x64xf32>
    %cst_130 = arith.constant 2.000000e+00 : f32
    %176 = vector.broadcast %cst_130 : f32 to vector<1x64xf32>
    %177 = arith.subf %176, %175 : vector<1x64xf32>
    %178 = arith.mulf %174, %177 : vector<1x64xf32>
    %179 = vector.shape_cast %165 : vector<8x64xf32> to vector<1x8x64xf32>
    %c0_131 = arith.constant 0 : index
    %c0_132 = arith.constant 0 : index
    %c0_133 = arith.constant 0 : index
    %180 = vector.load %arg9[%c0_131, %c0_132, %c0_133] : memref<16x8x64xf32, #tpu.memory_space<vmem>>, vector<16x8x64xf32>
    %181 = vector.broadcast %179 : vector<1x8x64xf32> to vector<16x8x64xf32>
    %182 = arith.mulf %181, %180 : vector<16x8x64xf32>
    %cst_134 = arith.constant dense<0.000000e+00> : vector<16x64xf32>
    %183 = vector.multi_reduction <add>, %182, %cst_134 [1] : vector<16x8x64xf32> to vector<16x64xf32>
    %cst_135 = arith.constant dense<0.000000e+00> : vector<16x64xf32>
    %184 = tpu.matmul %146, %168, %cst_135 {dimension_numbers = #tpu.dot_dimension_numbers<[1], [0], [0], [1], [0, 0, 1, 1], [], []>} : vector<16x64xf32>, vector<64x64xf32>, vector<16x64xf32> -> vector<16x64xf32>
    %185 = arith.addf %183, %184 : vector<16x64xf32>
    %186 = vector.broadcast %178 : vector<1x64xf32> to vector<16x64xf32>
    %187 = arith.mulf %185, %186 : vector<16x64xf32>
    %188 = vector.broadcast %138 : f32 to vector<16x64xf32>
    %189 = arith.mulf %188, %187 : vector<16x64xf32>
    %c0_136 = arith.constant 0 : index
    %c0_137 = arith.constant 0 : index
    %c0_138 = arith.constant 0 : index
    %c0_139 = arith.constant 0 : index
    %190 = vector.load %arg1[%c0_136, %c0_137, %c0_138, %c0_139] : memref<1x16x8x64xf32, #tpu.memory_space<vmem>>, vector<1x16x1x64xf32>
    %191 = vector.shape_cast %190 : vector<1x16x1x64xf32> to vector<16x64xf32>
    %192 = arith.addf %189, %191 : vector<16x64xf32>
    %c0_140 = arith.constant 0 : index
    %c0_141 = arith.constant 0 : index
    %c0_142 = arith.constant 0 : index
    %c0_143 = arith.constant 0 : index
    %193 = vector.load %arg6[%c0_140, %c0_141, %c0_142, %c0_143] : memref<1x16x8x64xf32, #tpu.memory_space<vmem>>, vector<1x16x1x64xf32>
    %194 = vector.shape_cast %193 : vector<1x16x1x64xf32> to vector<16x64xf32>
    %195 = vector.shape_cast %192 : vector<16x64xf32> to vector<1x16x1x64xf32>
    tpu.vector_store %arg6[%c0_140, %c0_141, %c0_142, %c0_143], %195 {strides = array<i32>} : memref<1x16x8x64xf32, #tpu.memory_space<vmem>>, vector<1x16x1x64xf32>,
    %c0_144 = arith.constant 0 : index
    %c1_145 = arith.constant 1 : index
    %c0_146 = arith.constant 0 : index
    %196 = vector.load %arg7[%c0_144, %c1_145, %c0_146] : memref<2x8x64xf32, #tpu.memory_space<vmem>>, vector<2x1x64xf32>
    %197 = vector.shape_cast %196 : vector<2x1x64xf32> to vector<2x64xf32>
    %c0_147 = arith.constant 0 : index
    %c1_148 = arith.constant 1 : index
    %c0_149 = arith.constant 0 : index
    %198 = vector.load %arg8[%c0_147, %c1_148, %c0_149] : memref<2x8x64xf32, #tpu.memory_space<vmem>>, vector<2x1x64xf32>
    %199 = vector.shape_cast %198 : vector<2x1x64xf32> to vector<2x64xf32>
    %c0_150 = arith.constant 0 : index
    %c1_151 = arith.constant 1 : index
    %c0_152 = arith.constant 0 : index
    %200 = vector.load %arg9[%c0_150, %c1_151, %c0_152] : memref<16x8x64xf32, #tpu.memory_space<vmem>>, vector<16x1x64xf32>
    %201 = vector.shape_cast %200 : vector<16x1x64xf32> to vector<16x64xf32>
    %202 = vector.shape_cast %197 : vector<2x64xf32> to vector<2x1x64xf32>
    %c0_153 = arith.constant 0 : index
    %c0_154 = arith.constant 0 : index
    %c0_155 = arith.constant 0 : index
    %203 = vector.load %arg8[%c0_153, %c0_154, %c0_155] : memref<2x8x64xf32, #tpu.memory_space<vmem>>, vector<2x8x64xf32>
    %204 = vector.broadcast %202 : vector<2x1x64xf32> to vector<2x8x64xf32>
    %205 = arith.mulf %204, %203 : vector<2x8x64xf32>
    %cst_156 = arith.constant dense<0.000000e+00> : vector<8x64xf32>
    %206 = vector.multi_reduction <add>, %205, %cst_156 [0] : vector<2x8x64xf32> to vector<8x64xf32>
    %c1_i32 = arith.constant 1 : i32
    %207 = vector.broadcast %c1_i32 : i32 to vector<8x64xi32>
    %208 = arith.cmpi eq, %140, %207 : vector<8x64xi32>
    %cst_157 = arith.constant -1.000000e+30 : f32
    %209 = vector.broadcast %cst_157 : f32 to vector<8x64xf32>
    %210 = arith.select %208, %209, %206 : vector<8x64xi1>, vector<8x64xf32>
    %cst_158 = arith.constant dense<0.000000e+00> : vector<64x64xf32>
    %211 = tpu.matmul %199, %197, %cst_158 {dimension_numbers = #tpu.dot_dimension_numbers<[0], [0], [1], [1], [0, 1, 1, 1], [], []>} : vector<2x64xf32>, vector<2x64xf32>, vector<64x64xf32> -> vector<64x64xf32>
    %212 = arith.addf %211, %139 : vector<64x64xf32>
    %cst_159 = arith.constant dense<0xFF800000> : vector<64xf32>
    %213 = vector.multi_reduction <maximumf>, %210, %cst_159 [0] : vector<8x64xf32> to vector<64xf32>
    %214 = vector.shape_cast %213 : vector<64xf32> to vector<1x64xf32>
    %cst_160 = arith.constant dense<0xFF800000> : vector<64xf32>
    %215 = vector.multi_reduction <maximumf>, %212, %cst_160 [0] : vector<64x64xf32> to vector<64xf32>
    %216 = vector.shape_cast %215 : vector<64xf32> to vector<1x64xf32>
    %217 = arith.maximumf %214, %216 : vector<1x64xf32>
    %218 = vector.broadcast %217 : vector<1x64xf32> to vector<8x64xf32>
    %219 = arith.subf %210, %218 : vector<8x64xf32>
    %220 = math.exp %219 : vector<8x64xf32>
    %221 = vector.broadcast %217 : vector<1x64xf32> to vector<64x64xf32>
    %222 = arith.subf %212, %221 : vector<64x64xf32>
    %223 = math.exp %222 : vector<64x64xf32>
    %cst_161 = arith.constant dense<0.000000e+00> : vector<64xf32>
    %224 = vector.multi_reduction <add>, %220, %cst_161 [0] : vector<8x64xf32> to vector<64xf32>
    %225 = vector.shape_cast %224 : vector<64xf32> to vector<1x64xf32>
    %cst_162 = arith.constant dense<0.000000e+00> : vector<64xf32>
    %226 = vector.multi_reduction <add>, %223, %cst_162 [0] : vector<64x64xf32> to vector<64xf32>
    %227 = vector.shape_cast %226 : vector<64xf32> to vector<1x64xf32>
    %228 = arith.addf %225, %227 : vector<1x64xf32>
    %229 = tpu.reciprocal %228 {approx = true} : vector<1x64xf32> -> vector<1x64xf32>
    %230 = arith.mulf %228, %229 : vector<1x64xf32>
    %cst_163 = arith.constant 2.000000e+00 : f32
    %231 = vector.broadcast %cst_163 : f32 to vector<1x64xf32>
    %232 = arith.subf %231, %230 : vector<1x64xf32>
    %233 = arith.mulf %229, %232 : vector<1x64xf32>
    %234 = vector.shape_cast %220 : vector<8x64xf32> to vector<1x8x64xf32>
    %c0_164 = arith.constant 0 : index
    %c0_165 = arith.constant 0 : index
    %c0_166 = arith.constant 0 : index
    %235 = vector.load %arg9[%c0_164, %c0_165, %c0_166] : memref<16x8x64xf32, #tpu.memory_space<vmem>>, vector<16x8x64xf32>
    %236 = vector.broadcast %234 : vector<1x8x64xf32> to vector<16x8x64xf32>
    %237 = arith.mulf %236, %235 : vector<16x8x64xf32>
    %cst_167 = arith.constant dense<0.000000e+00> : vector<16x64xf32>
    %238 = vector.multi_reduction <add>, %237, %cst_167 [1] : vector<16x8x64xf32> to vector<16x64xf32>
    %cst_168 = arith.constant dense<0.000000e+00> : vector<16x64xf32>
    %239 = tpu.matmul %201, %223, %cst_168 {dimension_numbers = #tpu.dot_dimension_numbers<[1], [0], [0], [1], [0, 0, 1, 1], [], []>} : vector<16x64xf32>, vector<64x64xf32>, vector<16x64xf32> -> vector<16x64xf32>
    %240 = arith.addf %238, %239 : vector<16x64xf32>
    %241 = vector.broadcast %233 : vector<1x64xf32> to vector<16x64xf32>
    %242 = arith.mulf %240, %241 : vector<16x64xf32>
    %243 = vector.broadcast %138 : f32 to vector<16x64xf32>
    %244 = arith.mulf %243, %242 : vector<16x64xf32>
    %c0_169 = arith.constant 0 : index
    %c0_170 = arith.constant 0 : index
    %c1_171 = arith.constant 1 : index
    %c0_172 = arith.constant 0 : index
    %245 = vector.load %arg1[%c0_169, %c0_170, %c1_171, %c0_172] : memref<1x16x8x64xf32, #tpu.memory_space<vmem>>, vector<1x16x1x64xf32>
    %246 = vector.shape_cast %245 : vector<1x16x1x64xf32> to vector<16x64xf32>
    %247 = arith.addf %244, %246 : vector<16x64xf32>
    %c0_173 = arith.constant 0 : index
    %c0_174 = arith.constant 0 : index
    %c1_175 = arith.constant 1 : index
    %c0_176 = arith.constant 0 : index
    %248 = vector.load %arg6[%c0_173, %c0_174, %c1_175, %c0_176] : memref<1x16x8x64xf32, #tpu.memory_space<vmem>>, vector<1x16x1x64xf32>
    %249 = vector.shape_cast %248 : vector<1x16x1x64xf32> to vector<16x64xf32>
    %250 = vector.shape_cast %247 : vector<16x64xf32> to vector<1x16x1x64xf32>
    tpu.vector_store %arg6[%c0_173, %c0_174, %c1_175, %c0_176], %250 {strides = array<i32>} : memref<1x16x8x64xf32, #tpu.memory_space<vmem>>, vector<1x16x1x64xf32>,
    %c0_177 = arith.constant 0 : index
    %c2_178 = arith.constant 2 : index
    %c0_179 = arith.constant 0 : index
    %251 = vector.load %arg7[%c0_177, %c2_178, %c0_179] : memref<2x8x64xf32, #tpu.memory_space<vmem>>, vector<2x1x64xf32>
    %252 = vector.shape_cast %251 : vector<2x1x64xf32> to vector<2x64xf32>
    %c0_180 = arith.constant 0 : index
    %c2_181 = arith.constant 2 : index
    %c0_182 = arith.constant 0 : index
    %253 = vector.load %arg8[%c0_180, %c2_181, %c0_182] : memref<2x8x64xf32, #tpu.memory_space<vmem>>, vector<2x1x64xf32>
    %254 = vector.shape_cast %253 : vector<2x1x64xf32> to vector<2x64xf32>
    %c0_183 = arith.constant 0 : index
    %c2_184 = arith.constant 2 : index
    %c0_185 = arith.constant 0 : index
    %255 = vector.load %arg9[%c0_183, %c2_184, %c0_185] : memref<16x8x64xf32, #tpu.memory_space<vmem>>, vector<16x1x64xf32>
    %256 = vector.shape_cast %255 : vector<16x1x64xf32> to vector<16x64xf32>
    %257 = vector.shape_cast %252 : vector<2x64xf32> to vector<2x1x64xf32>
    %c0_186 = arith.constant 0 : index
    %c0_187 = arith.constant 0 : index
    %c0_188 = arith.constant 0 : index
    %258 = vector.load %arg8[%c0_186, %c0_187, %c0_188] : memref<2x8x64xf32, #tpu.memory_space<vmem>>, vector<2x8x64xf32>
    %259 = vector.broadcast %257 : vector<2x1x64xf32> to vector<2x8x64xf32>
    %260 = arith.mulf %259, %258 : vector<2x8x64xf32>
    %cst_189 = arith.constant dense<0.000000e+00> : vector<8x64xf32>
    %261 = vector.multi_reduction <add>, %260, %cst_189 [0] : vector<2x8x64xf32> to vector<8x64xf32>
    %c2_i32 = arith.constant 2 : i32
    %262 = vector.broadcast %c2_i32 : i32 to vector<8x64xi32>
    %263 = arith.cmpi eq, %140, %262 : vector<8x64xi32>
    %cst_190 = arith.constant -1.000000e+30 : f32
    %264 = vector.broadcast %cst_190 : f32 to vector<8x64xf32>
    %265 = arith.select %263, %264, %261 : vector<8x64xi1>, vector<8x64xf32>
    %cst_191 = arith.constant dense<0.000000e+00> : vector<64x64xf32>
    %266 = tpu.matmul %254, %252, %cst_191 {dimension_numbers = #tpu.dot_dimension_numbers<[0], [0], [1], [1], [0, 1, 1, 1], [], []>} : vector<2x64xf32>, vector<2x64xf32>, vector<64x64xf32> -> vector<64x64xf32>
    %267 = arith.addf %266, %139 : vector<64x64xf32>
    %cst_192 = arith.constant dense<0xFF800000> : vector<64xf32>
    %268 = vector.multi_reduction <maximumf>, %265, %cst_192 [0] : vector<8x64xf32> to vector<64xf32>
    %269 = vector.shape_cast %268 : vector<64xf32> to vector<1x64xf32>
    %cst_193 = arith.constant dense<0xFF800000> : vector<64xf32>
    %270 = vector.multi_reduction <maximumf>, %267, %cst_193 [0] : vector<64x64xf32> to vector<64xf32>
    %271 = vector.shape_cast %270 : vector<64xf32> to vector<1x64xf32>
    %272 = arith.maximumf %269, %271 : vector<1x64xf32>
    %273 = vector.broadcast %272 : vector<1x64xf32> to vector<8x64xf32>
    %274 = arith.subf %265, %273 : vector<8x64xf32>
    %275 = math.exp %274 : vector<8x64xf32>
    %276 = vector.broadcast %272 : vector<1x64xf32> to vector<64x64xf32>
    %277 = arith.subf %267, %276 : vector<64x64xf32>
    %278 = math.exp %277 : vector<64x64xf32>
    %cst_194 = arith.constant dense<0.000000e+00> : vector<64xf32>
    %279 = vector.multi_reduction <add>, %275, %cst_194 [0] : vector<8x64xf32> to vector<64xf32>
    %280 = vector.shape_cast %279 : vector<64xf32> to vector<1x64xf32>
    %cst_195 = arith.constant dense<0.000000e+00> : vector<64xf32>
    %281 = vector.multi_reduction <add>, %278, %cst_195 [0] : vector<64x64xf32> to vector<64xf32>
    %282 = vector.shape_cast %281 : vector<64xf32> to vector<1x64xf32>
    %283 = arith.addf %280, %282 : vector<1x64xf32>
    %284 = tpu.reciprocal %283 {approx = true} : vector<1x64xf32> -> vector<1x64xf32>
    %285 = arith.mulf %283, %284 : vector<1x64xf32>
    %cst_196 = arith.constant 2.000000e+00 : f32
    %286 = vector.broadcast %cst_196 : f32 to vector<1x64xf32>
    %287 = arith.subf %286, %285 : vector<1x64xf32>
    %288 = arith.mulf %284, %287 : vector<1x64xf32>
    %289 = vector.shape_cast %275 : vector<8x64xf32> to vector<1x8x64xf32>
    %c0_197 = arith.constant 0 : index
    %c0_198 = arith.constant 0 : index
    %c0_199 = arith.constant 0 : index
    %290 = vector.load %arg9[%c0_197, %c0_198, %c0_199] : memref<16x8x64xf32, #tpu.memory_space<vmem>>, vector<16x8x64xf32>
    %291 = vector.broadcast %289 : vector<1x8x64xf32> to vector<16x8x64xf32>
    %292 = arith.mulf %291, %290 : vector<16x8x64xf32>
    %cst_200 = arith.constant dense<0.000000e+00> : vector<16x64xf32>
    %293 = vector.multi_reduction <add>, %292, %cst_200 [1] : vector<16x8x64xf32> to vector<16x64xf32>
    %cst_201 = arith.constant dense<0.000000e+00> : vector<16x64xf32>
    %294 = tpu.matmul %256, %278, %cst_201 {dimension_numbers = #tpu.dot_dimension_numbers<[1], [0], [0], [1], [0, 0, 1, 1], [], []>} : vector<16x64xf32>, vector<64x64xf32>, vector<16x64xf32> -> vector<16x64xf32>
    %295 = arith.addf %293, %294 : vector<16x64xf32>
    %296 = vector.broadcast %288 : vector<1x64xf32> to vector<16x64xf32>
    %297 = arith.mulf %295, %296 : vector<16x64xf32>
    %298 = vector.broadcast %138 : f32 to vector<16x64xf32>
    %299 = arith.mulf %298, %297 : vector<16x64xf32>
    %c0_202 = arith.constant 0 : index
    %c0_203 = arith.constant 0 : index
    %c2_204 = arith.constant 2 : index
    %c0_205 = arith.constant 0 : index
    %300 = vector.load %arg1[%c0_202, %c0_203, %c2_204, %c0_205] : memref<1x16x8x64xf32, #tpu.memory_space<vmem>>, vector<1x16x1x64xf32>
    %301 = vector.shape_cast %300 : vector<1x16x1x64xf32> to vector<16x64xf32>
    %302 = arith.addf %299, %301 : vector<16x64xf32>
    %c0_206 = arith.constant 0 : index
    %c0_207 = arith.constant 0 : index
    %c2_208 = arith.constant 2 : index
    %c0_209 = arith.constant 0 : index
    %303 = vector.load %arg6[%c0_206, %c0_207, %c2_208, %c0_209] : memref<1x16x8x64xf32, #tpu.memory_space<vmem>>, vector<1x16x1x64xf32>
    %304 = vector.shape_cast %303 : vector<1x16x1x64xf32> to vector<16x64xf32>
    %305 = vector.shape_cast %302 : vector<16x64xf32> to vector<1x16x1x64xf32>
    tpu.vector_store %arg6[%c0_206, %c0_207, %c2_208, %c0_209], %305 {strides = array<i32>} : memref<1x16x8x64xf32, #tpu.memory_space<vmem>>, vector<1x16x1x64xf32>,
    %c0_210 = arith.constant 0 : index
    %c3_211 = arith.constant 3 : index
    %c0_212 = arith.constant 0 : index
    %306 = vector.load %arg7[%c0_210, %c3_211, %c0_212] : memref<2x8x64xf32, #tpu.memory_space<vmem>>, vector<2x1x64xf32>
    %307 = vector.shape_cast %306 : vector<2x1x64xf32> to vector<2x64xf32>
    %c0_213 = arith.constant 0 : index
    %c3_214 = arith.constant 3 : index
    %c0_215 = arith.constant 0 : index
    %308 = vector.load %arg8[%c0_213, %c3_214, %c0_215] : memref<2x8x64xf32, #tpu.memory_space<vmem>>, vector<2x1x64xf32>
    %309 = vector.shape_cast %308 : vector<2x1x64xf32> to vector<2x64xf32>
    %c0_216 = arith.constant 0 : index
    %c3_217 = arith.constant 3 : index
    %c0_218 = arith.constant 0 : index
    %310 = vector.load %arg9[%c0_216, %c3_217, %c0_218] : memref<16x8x64xf32, #tpu.memory_space<vmem>>, vector<16x1x64xf32>
    %311 = vector.shape_cast %310 : vector<16x1x64xf32> to vector<16x64xf32>
    %312 = vector.shape_cast %307 : vector<2x64xf32> to vector<2x1x64xf32>
    %c0_219 = arith.constant 0 : index
    %c0_220 = arith.constant 0 : index
    %c0_221 = arith.constant 0 : index
    %313 = vector.load %arg8[%c0_219, %c0_220, %c0_221] : memref<2x8x64xf32, #tpu.memory_space<vmem>>, vector<2x8x64xf32>
    %314 = vector.broadcast %312 : vector<2x1x64xf32> to vector<2x8x64xf32>
    %315 = arith.mulf %314, %313 : vector<2x8x64xf32>
    %cst_222 = arith.constant dense<0.000000e+00> : vector<8x64xf32>
    %316 = vector.multi_reduction <add>, %315, %cst_222 [0] : vector<2x8x64xf32> to vector<8x64xf32>
    %c3_i32 = arith.constant 3 : i32
    %317 = vector.broadcast %c3_i32 : i32 to vector<8x64xi32>
    %318 = arith.cmpi eq, %140, %317 : vector<8x64xi32>
    %cst_223 = arith.constant -1.000000e+30 : f32
    %319 = vector.broadcast %cst_223 : f32 to vector<8x64xf32>
    %320 = arith.select %318, %319, %316 : vector<8x64xi1>, vector<8x64xf32>
    %cst_224 = arith.constant dense<0.000000e+00> : vector<64x64xf32>
    %321 = tpu.matmul %309, %307, %cst_224 {dimension_numbers = #tpu.dot_dimension_numbers<[0], [0], [1], [1], [0, 1, 1, 1], [], []>} : vector<2x64xf32>, vector<2x64xf32>, vector<64x64xf32> -> vector<64x64xf32>
    %322 = arith.addf %321, %139 : vector<64x64xf32>
    %cst_225 = arith.constant dense<0xFF800000> : vector<64xf32>
    %323 = vector.multi_reduction <maximumf>, %320, %cst_225 [0] : vector<8x64xf32> to vector<64xf32>
    %324 = vector.shape_cast %323 : vector<64xf32> to vector<1x64xf32>
    %cst_226 = arith.constant dense<0xFF800000> : vector<64xf32>
    %325 = vector.multi_reduction <maximumf>, %322, %cst_226 [0] : vector<64x64xf32> to vector<64xf32>
    %326 = vector.shape_cast %325 : vector<64xf32> to vector<1x64xf32>
    %327 = arith.maximumf %324, %326 : vector<1x64xf32>
    %328 = vector.broadcast %327 : vector<1x64xf32> to vector<8x64xf32>
    %329 = arith.subf %320, %328 : vector<8x64xf32>
    %330 = math.exp %329 : vector<8x64xf32>
    %331 = vector.broadcast %327 : vector<1x64xf32> to vector<64x64xf32>
    %332 = arith.subf %322, %331 : vector<64x64xf32>
    %333 = math.exp %332 : vector<64x64xf32>
    %cst_227 = arith.constant dense<0.000000e+00> : vector<64xf32>
    %334 = vector.multi_reduction <add>, %330, %cst_227 [0] : vector<8x64xf32> to vector<64xf32>
    %335 = vector.shape_cast %334 : vector<64xf32> to vector<1x64xf32>
    %cst_228 = arith.constant dense<0.000000e+00> : vector<64xf32>
    %336 = vector.multi_reduction <add>, %333, %cst_228 [0] : vector<64x64xf32> to vector<64xf32>
    %337 = vector.shape_cast %336 : vector<64xf32> to vector<1x64xf32>
    %338 = arith.addf %335, %337 : vector<1x64xf32>
    %339 = tpu.reciprocal %338 {approx = true} : vector<1x64xf32> -> vector<1x64xf32>
    %340 = arith.mulf %338, %339 : vector<1x64xf32>
    %cst_229 = arith.constant 2.000000e+00 : f32
    %341 = vector.broadcast %cst_229 : f32 to vector<1x64xf32>
    %342 = arith.subf %341, %340 : vector<1x64xf32>
    %343 = arith.mulf %339, %342 : vector<1x64xf32>
    %344 = vector.shape_cast %330 : vector<8x64xf32> to vector<1x8x64xf32>
    %c0_230 = arith.constant 0 : index
    %c0_231 = arith.constant 0 : index
    %c0_232 = arith.constant 0 : index
    %345 = vector.load %arg9[%c0_230, %c0_231, %c0_232] : memref<16x8x64xf32, #tpu.memory_space<vmem>>, vector<16x8x64xf32>
    %346 = vector.broadcast %344 : vector<1x8x64xf32> to vector<16x8x64xf32>
    %347 = arith.mulf %346, %345 : vector<16x8x64xf32>
    %cst_233 = arith.constant dense<0.000000e+00> : vector<16x64xf32>
    %348 = vector.multi_reduction <add>, %347, %cst_233 [1] : vector<16x8x64xf32> to vector<16x64xf32>
    %cst_234 = arith.constant dense<0.000000e+00> : vector<16x64xf32>
    %349 = tpu.matmul %311, %333, %cst_234 {dimension_numbers = #tpu.dot_dimension_numbers<[1], [0], [0], [1], [0, 0, 1, 1], [], []>} : vector<16x64xf32>, vector<64x64xf32>, vector<16x64xf32> -> vector<16x64xf32>
    %350 = arith.addf %348, %349 : vector<16x64xf32>
    %351 = vector.broadcast %343 : vector<1x64xf32> to vector<16x64xf32>
    %352 = arith.mulf %350, %351 : vector<16x64xf32>
    %353 = vector.broadcast %138 : f32 to vector<16x64xf32>
    %354 = arith.mulf %353, %352 : vector<16x64xf32>
    %c0_235 = arith.constant 0 : index
    %c0_236 = arith.constant 0 : index
    %c3_237 = arith.constant 3 : index
    %c0_238 = arith.constant 0 : index
    %355 = vector.load %arg1[%c0_235, %c0_236, %c3_237, %c0_238] : memref<1x16x8x64xf32, #tpu.memory_space<vmem>>, vector<1x16x1x64xf32>
    %356 = vector.shape_cast %355 : vector<1x16x1x64xf32> to vector<16x64xf32>
    %357 = arith.addf %354, %356 : vector<16x64xf32>
    %c0_239 = arith.constant 0 : index
    %c0_240 = arith.constant 0 : index
    %c3_241 = arith.constant 3 : index
    %c0_242 = arith.constant 0 : index
    %358 = vector.load %arg6[%c0_239, %c0_240, %c3_241, %c0_242] : memref<1x16x8x64xf32, #tpu.memory_space<vmem>>, vector<1x16x1x64xf32>
    %359 = vector.shape_cast %358 : vector<1x16x1x64xf32> to vector<16x64xf32>
    %360 = vector.shape_cast %357 : vector<16x64xf32> to vector<1x16x1x64xf32>
    tpu.vector_store %arg6[%c0_239, %c0_240, %c3_241, %c0_242], %360 {strides = array<i32>} : memref<1x16x8x64xf32, #tpu.memory_space<vmem>>, vector<1x16x1x64xf32>,
    %c0_243 = arith.constant 0 : index
    %c4_244 = arith.constant 4 : index
    %c0_245 = arith.constant 0 : index
    %361 = vector.load %arg7[%c0_243, %c4_244, %c0_245] : memref<2x8x64xf32, #tpu.memory_space<vmem>>, vector<2x1x64xf32>
    %362 = vector.shape_cast %361 : vector<2x1x64xf32> to vector<2x64xf32>
    %c0_246 = arith.constant 0 : index
    %c4_247 = arith.constant 4 : index
    %c0_248 = arith.constant 0 : index
    %363 = vector.load %arg8[%c0_246, %c4_247, %c0_248] : memref<2x8x64xf32, #tpu.memory_space<vmem>>, vector<2x1x64xf32>
    %364 = vector.shape_cast %363 : vector<2x1x64xf32> to vector<2x64xf32>
    %c0_249 = arith.constant 0 : index
    %c4_250 = arith.constant 4 : index
    %c0_251 = arith.constant 0 : index
    %365 = vector.load %arg9[%c0_249, %c4_250, %c0_251] : memref<16x8x64xf32, #tpu.memory_space<vmem>>, vector<16x1x64xf32>
    %366 = vector.shape_cast %365 : vector<16x1x64xf32> to vector<16x64xf32>
    %367 = vector.shape_cast %362 : vector<2x64xf32> to vector<2x1x64xf32>
    %c0_252 = arith.constant 0 : index
    %c0_253 = arith.constant 0 : index
    %c0_254 = arith.constant 0 : index
    %368 = vector.load %arg8[%c0_252, %c0_253, %c0_254] : memref<2x8x64xf32, #tpu.memory_space<vmem>>, vector<2x8x64xf32>
    %369 = vector.broadcast %367 : vector<2x1x64xf32> to vector<2x8x64xf32>
    %370 = arith.mulf %369, %368 : vector<2x8x64xf32>
    %cst_255 = arith.constant dense<0.000000e+00> : vector<8x64xf32>
    %371 = vector.multi_reduction <add>, %370, %cst_255 [0] : vector<2x8x64xf32> to vector<8x64xf32>
    %c4_i32 = arith.constant 4 : i32
    %372 = vector.broadcast %c4_i32 : i32 to vector<8x64xi32>
    %373 = arith.cmpi eq, %140, %372 : vector<8x64xi32>
    %cst_256 = arith.constant -1.000000e+30 : f32
    %374 = vector.broadcast %cst_256 : f32 to vector<8x64xf32>
    %375 = arith.select %373, %374, %371 : vector<8x64xi1>, vector<8x64xf32>
    %cst_257 = arith.constant dense<0.000000e+00> : vector<64x64xf32>
    %376 = tpu.matmul %364, %362, %cst_257 {dimension_numbers = #tpu.dot_dimension_numbers<[0], [0], [1], [1], [0, 1, 1, 1], [], []>} : vector<2x64xf32>, vector<2x64xf32>, vector<64x64xf32> -> vector<64x64xf32>
    %377 = arith.addf %376, %139 : vector<64x64xf32>
    %cst_258 = arith.constant dense<0xFF800000> : vector<64xf32>
    %378 = vector.multi_reduction <maximumf>, %375, %cst_258 [0] : vector<8x64xf32> to vector<64xf32>
    %379 = vector.shape_cast %378 : vector<64xf32> to vector<1x64xf32>
    %cst_259 = arith.constant dense<0xFF800000> : vector<64xf32>
    %380 = vector.multi_reduction <maximumf>, %377, %cst_259 [0] : vector<64x64xf32> to vector<64xf32>
    %381 = vector.shape_cast %380 : vector<64xf32> to vector<1x64xf32>
    %382 = arith.maximumf %379, %381 : vector<1x64xf32>
    %383 = vector.broadcast %382 : vector<1x64xf32> to vector<8x64xf32>
    %384 = arith.subf %375, %383 : vector<8x64xf32>
    %385 = math.exp %384 : vector<8x64xf32>
    %386 = vector.broadcast %382 : vector<1x64xf32> to vector<64x64xf32>
    %387 = arith.subf %377, %386 : vector<64x64xf32>
    %388 = math.exp %387 : vector<64x64xf32>
    %cst_260 = arith.constant dense<0.000000e+00> : vector<64xf32>
    %389 = vector.multi_reduction <add>, %385, %cst_260 [0] : vector<8x64xf32> to vector<64xf32>
    %390 = vector.shape_cast %389 : vector<64xf32> to vector<1x64xf32>
    %cst_261 = arith.constant dense<0.000000e+00> : vector<64xf32>
    %391 = vector.multi_reduction <add>, %388, %cst_261 [0] : vector<64x64xf32> to vector<64xf32>
    %392 = vector.shape_cast %391 : vector<64xf32> to vector<1x64xf32>
    %393 = arith.addf %390, %392 : vector<1x64xf32>
    %394 = tpu.reciprocal %393 {approx = true} : vector<1x64xf32> -> vector<1x64xf32>
    %395 = arith.mulf %393, %394 : vector<1x64xf32>
    %cst_262 = arith.constant 2.000000e+00 : f32
    %396 = vector.broadcast %cst_262 : f32 to vector<1x64xf32>
    %397 = arith.subf %396, %395 : vector<1x64xf32>
    %398 = arith.mulf %394, %397 : vector<1x64xf32>
    %399 = vector.shape_cast %385 : vector<8x64xf32> to vector<1x8x64xf32>
    %c0_263 = arith.constant 0 : index
    %c0_264 = arith.constant 0 : index
    %c0_265 = arith.constant 0 : index
    %400 = vector.load %arg9[%c0_263, %c0_264, %c0_265] : memref<16x8x64xf32, #tpu.memory_space<vmem>>, vector<16x8x64xf32>
    %401 = vector.broadcast %399 : vector<1x8x64xf32> to vector<16x8x64xf32>
    %402 = arith.mulf %401, %400 : vector<16x8x64xf32>
    %cst_266 = arith.constant dense<0.000000e+00> : vector<16x64xf32>
    %403 = vector.multi_reduction <add>, %402, %cst_266 [1] : vector<16x8x64xf32> to vector<16x64xf32>
    %cst_267 = arith.constant dense<0.000000e+00> : vector<16x64xf32>
    %404 = tpu.matmul %366, %388, %cst_267 {dimension_numbers = #tpu.dot_dimension_numbers<[1], [0], [0], [1], [0, 0, 1, 1], [], []>} : vector<16x64xf32>, vector<64x64xf32>, vector<16x64xf32> -> vector<16x64xf32>
    %405 = arith.addf %403, %404 : vector<16x64xf32>
    %406 = vector.broadcast %398 : vector<1x64xf32> to vector<16x64xf32>
    %407 = arith.mulf %405, %406 : vector<16x64xf32>
    %408 = vector.broadcast %138 : f32 to vector<16x64xf32>
    %409 = arith.mulf %408, %407 : vector<16x64xf32>
    %c0_268 = arith.constant 0 : index
    %c0_269 = arith.constant 0 : index
    %c4_270 = arith.constant 4 : index
    %c0_271 = arith.constant 0 : index
    %410 = vector.load %arg1[%c0_268, %c0_269, %c4_270, %c0_271] : memref<1x16x8x64xf32, #tpu.memory_space<vmem>>, vector<1x16x1x64xf32>
    %411 = vector.shape_cast %410 : vector<1x16x1x64xf32> to vector<16x64xf32>
    %412 = arith.addf %409, %411 : vector<16x64xf32>
    %c0_272 = arith.constant 0 : index
    %c0_273 = arith.constant 0 : index
    %c4_274 = arith.constant 4 : index
    %c0_275 = arith.constant 0 : index
    %413 = vector.load %arg6[%c0_272, %c0_273, %c4_274, %c0_275] : memref<1x16x8x64xf32, #tpu.memory_space<vmem>>, vector<1x16x1x64xf32>
    %414 = vector.shape_cast %413 : vector<1x16x1x64xf32> to vector<16x64xf32>
    %415 = vector.shape_cast %412 : vector<16x64xf32> to vector<1x16x1x64xf32>
    tpu.vector_store %arg6[%c0_272, %c0_273, %c4_274, %c0_275], %415 {strides = array<i32>} : memref<1x16x8x64xf32, #tpu.memory_space<vmem>>, vector<1x16x1x64xf32>,
    %c0_276 = arith.constant 0 : index
    %c5_277 = arith.constant 5 : index
    %c0_278 = arith.constant 0 : index
    %416 = vector.load %arg7[%c0_276, %c5_277, %c0_278] : memref<2x8x64xf32, #tpu.memory_space<vmem>>, vector<2x1x64xf32>
    %417 = vector.shape_cast %416 : vector<2x1x64xf32> to vector<2x64xf32>
    %c0_279 = arith.constant 0 : index
    %c5_280 = arith.constant 5 : index
    %c0_281 = arith.constant 0 : index
    %418 = vector.load %arg8[%c0_279, %c5_280, %c0_281] : memref<2x8x64xf32, #tpu.memory_space<vmem>>, vector<2x1x64xf32>
    %419 = vector.shape_cast %418 : vector<2x1x64xf32> to vector<2x64xf32>
    %c0_282 = arith.constant 0 : index
    %c5_283 = arith.constant 5 : index
    %c0_284 = arith.constant 0 : index
    %420 = vector.load %arg9[%c0_282, %c5_283, %c0_284] : memref<16x8x64xf32, #tpu.memory_space<vmem>>, vector<16x1x64xf32>
    %421 = vector.shape_cast %420 : vector<16x1x64xf32> to vector<16x64xf32>
    %422 = vector.shape_cast %417 : vector<2x64xf32> to vector<2x1x64xf32>
    %c0_285 = arith.constant 0 : index
    %c0_286 = arith.constant 0 : index
    %c0_287 = arith.constant 0 : index
    %423 = vector.load %arg8[%c0_285, %c0_286, %c0_287] : memref<2x8x64xf32, #tpu.memory_space<vmem>>, vector<2x8x64xf32>
    %424 = vector.broadcast %422 : vector<2x1x64xf32> to vector<2x8x64xf32>
    %425 = arith.mulf %424, %423 : vector<2x8x64xf32>
    %cst_288 = arith.constant dense<0.000000e+00> : vector<8x64xf32>
    %426 = vector.multi_reduction <add>, %425, %cst_288 [0] : vector<2x8x64xf32> to vector<8x64xf32>
    %c5_i32 = arith.constant 5 : i32
    %427 = vector.broadcast %c5_i32 : i32 to vector<8x64xi32>
    %428 = arith.cmpi eq, %140, %427 : vector<8x64xi32>
    %cst_289 = arith.constant -1.000000e+30 : f32
    %429 = vector.broadcast %cst_289 : f32 to vector<8x64xf32>
    %430 = arith.select %428, %429, %426 : vector<8x64xi1>, vector<8x64xf32>
    %cst_290 = arith.constant dense<0.000000e+00> : vector<64x64xf32>
    %431 = tpu.matmul %419, %417, %cst_290 {dimension_numbers = #tpu.dot_dimension_numbers<[0], [0], [1], [1], [0, 1, 1, 1], [], []>} : vector<2x64xf32>, vector<2x64xf32>, vector<64x64xf32> -> vector<64x64xf32>
    %432 = arith.addf %431, %139 : vector<64x64xf32>
    %cst_291 = arith.constant dense<0xFF800000> : vector<64xf32>
    %433 = vector.multi_reduction <maximumf>, %430, %cst_291 [0] : vector<8x64xf32> to vector<64xf32>
    %434 = vector.shape_cast %433 : vector<64xf32> to vector<1x64xf32>
    %cst_292 = arith.constant dense<0xFF800000> : vector<64xf32>
    %435 = vector.multi_reduction <maximumf>, %432, %cst_292 [0] : vector<64x64xf32> to vector<64xf32>
    %436 = vector.shape_cast %435 : vector<64xf32> to vector<1x64xf32>
    %437 = arith.maximumf %434, %436 : vector<1x64xf32>
    %438 = vector.broadcast %437 : vector<1x64xf32> to vector<8x64xf32>
    %439 = arith.subf %430, %438 : vector<8x64xf32>
    %440 = math.exp %439 : vector<8x64xf32>
    %441 = vector.broadcast %437 : vector<1x64xf32> to vector<64x64xf32>
    %442 = arith.subf %432, %441 : vector<64x64xf32>
    %443 = math.exp %442 : vector<64x64xf32>
    %cst_293 = arith.constant dense<0.000000e+00> : vector<64xf32>
    %444 = vector.multi_reduction <add>, %440, %cst_293 [0] : vector<8x64xf32> to vector<64xf32>
    %445 = vector.shape_cast %444 : vector<64xf32> to vector<1x64xf32>
    %cst_294 = arith.constant dense<0.000000e+00> : vector<64xf32>
    %446 = vector.multi_reduction <add>, %443, %cst_294 [0] : vector<64x64xf32> to vector<64xf32>
    %447 = vector.shape_cast %446 : vector<64xf32> to vector<1x64xf32>
    %448 = arith.addf %445, %447 : vector<1x64xf32>
    %449 = tpu.reciprocal %448 {approx = true} : vector<1x64xf32> -> vector<1x64xf32>
    %450 = arith.mulf %448, %449 : vector<1x64xf32>
    %cst_295 = arith.constant 2.000000e+00 : f32
    %451 = vector.broadcast %cst_295 : f32 to vector<1x64xf32>
    %452 = arith.subf %451, %450 : vector<1x64xf32>
    %453 = arith.mulf %449, %452 : vector<1x64xf32>
    %454 = vector.shape_cast %440 : vector<8x64xf32> to vector<1x8x64xf32>
    %c0_296 = arith.constant 0 : index
    %c0_297 = arith.constant 0 : index
    %c0_298 = arith.constant 0 : index
    %455 = vector.load %arg9[%c0_296, %c0_297, %c0_298] : memref<16x8x64xf32, #tpu.memory_space<vmem>>, vector<16x8x64xf32>
    %456 = vector.broadcast %454 : vector<1x8x64xf32> to vector<16x8x64xf32>
    %457 = arith.mulf %456, %455 : vector<16x8x64xf32>
    %cst_299 = arith.constant dense<0.000000e+00> : vector<16x64xf32>
    %458 = vector.multi_reduction <add>, %457, %cst_299 [1] : vector<16x8x64xf32> to vector<16x64xf32>
    %cst_300 = arith.constant dense<0.000000e+00> : vector<16x64xf32>
    %459 = tpu.matmul %421, %443, %cst_300 {dimension_numbers = #tpu.dot_dimension_numbers<[1], [0], [0], [1], [0, 0, 1, 1], [], []>} : vector<16x64xf32>, vector<64x64xf32>, vector<16x64xf32> -> vector<16x64xf32>
    %460 = arith.addf %458, %459 : vector<16x64xf32>
    %461 = vector.broadcast %453 : vector<1x64xf32> to vector<16x64xf32>
    %462 = arith.mulf %460, %461 : vector<16x64xf32>
    %463 = vector.broadcast %138 : f32 to vector<16x64xf32>
    %464 = arith.mulf %463, %462 : vector<16x64xf32>
    %c0_301 = arith.constant 0 : index
    %c0_302 = arith.constant 0 : index
    %c5_303 = arith.constant 5 : index
    %c0_304 = arith.constant 0 : index
    %465 = vector.load %arg1[%c0_301, %c0_302, %c5_303, %c0_304] : memref<1x16x8x64xf32, #tpu.memory_space<vmem>>, vector<1x16x1x64xf32>
    %466 = vector.shape_cast %465 : vector<1x16x1x64xf32> to vector<16x64xf32>
    %467 = arith.addf %464, %466 : vector<16x64xf32>
    %c0_305 = arith.constant 0 : index
    %c0_306 = arith.constant 0 : index
    %c5_307 = arith.constant 5 : index
    %c0_308 = arith.constant 0 : index
    %468 = vector.load %arg6[%c0_305, %c0_306, %c5_307, %c0_308] : memref<1x16x8x64xf32, #tpu.memory_space<vmem>>, vector<1x16x1x64xf32>
    %469 = vector.shape_cast %468 : vector<1x16x1x64xf32> to vector<16x64xf32>
    %470 = vector.shape_cast %467 : vector<16x64xf32> to vector<1x16x1x64xf32>
    tpu.vector_store %arg6[%c0_305, %c0_306, %c5_307, %c0_308], %470 {strides = array<i32>} : memref<1x16x8x64xf32, #tpu.memory_space<vmem>>, vector<1x16x1x64xf32>,
    %c0_309 = arith.constant 0 : index
    %c6_310 = arith.constant 6 : index
    %c0_311 = arith.constant 0 : index
    %471 = vector.load %arg7[%c0_309, %c6_310, %c0_311] : memref<2x8x64xf32, #tpu.memory_space<vmem>>, vector<2x1x64xf32>
    %472 = vector.shape_cast %471 : vector<2x1x64xf32> to vector<2x64xf32>
    %c0_312 = arith.constant 0 : index
    %c6_313 = arith.constant 6 : index
    %c0_314 = arith.constant 0 : index
    %473 = vector.load %arg8[%c0_312, %c6_313, %c0_314] : memref<2x8x64xf32, #tpu.memory_space<vmem>>, vector<2x1x64xf32>
    %474 = vector.shape_cast %473 : vector<2x1x64xf32> to vector<2x64xf32>
    %c0_315 = arith.constant 0 : index
    %c6_316 = arith.constant 6 : index
    %c0_317 = arith.constant 0 : index
    %475 = vector.load %arg9[%c0_315, %c6_316, %c0_317] : memref<16x8x64xf32, #tpu.memory_space<vmem>>, vector<16x1x64xf32>
    %476 = vector.shape_cast %475 : vector<16x1x64xf32> to vector<16x64xf32>
    %477 = vector.shape_cast %472 : vector<2x64xf32> to vector<2x1x64xf32>
    %c0_318 = arith.constant 0 : index
    %c0_319 = arith.constant 0 : index
    %c0_320 = arith.constant 0 : index
    %478 = vector.load %arg8[%c0_318, %c0_319, %c0_320] : memref<2x8x64xf32, #tpu.memory_space<vmem>>, vector<2x8x64xf32>
    %479 = vector.broadcast %477 : vector<2x1x64xf32> to vector<2x8x64xf32>
    %480 = arith.mulf %479, %478 : vector<2x8x64xf32>
    %cst_321 = arith.constant dense<0.000000e+00> : vector<8x64xf32>
    %481 = vector.multi_reduction <add>, %480, %cst_321 [0] : vector<2x8x64xf32> to vector<8x64xf32>
    %c6_i32 = arith.constant 6 : i32
    %482 = vector.broadcast %c6_i32 : i32 to vector<8x64xi32>
    %483 = arith.cmpi eq, %140, %482 : vector<8x64xi32>
    %cst_322 = arith.constant -1.000000e+30 : f32
    %484 = vector.broadcast %cst_322 : f32 to vector<8x64xf32>
    %485 = arith.select %483, %484, %481 : vector<8x64xi1>, vector<8x64xf32>
    %cst_323 = arith.constant dense<0.000000e+00> : vector<64x64xf32>
    %486 = tpu.matmul %474, %472, %cst_323 {dimension_numbers = #tpu.dot_dimension_numbers<[0], [0], [1], [1], [0, 1, 1, 1], [], []>} : vector<2x64xf32>, vector<2x64xf32>, vector<64x64xf32> -> vector<64x64xf32>
    %487 = arith.addf %486, %139 : vector<64x64xf32>
    %cst_324 = arith.constant dense<0xFF800000> : vector<64xf32>
    %488 = vector.multi_reduction <maximumf>, %485, %cst_324 [0] : vector<8x64xf32> to vector<64xf32>
    %489 = vector.shape_cast %488 : vector<64xf32> to vector<1x64xf32>
    %cst_325 = arith.constant dense<0xFF800000> : vector<64xf32>
    %490 = vector.multi_reduction <maximumf>, %487, %cst_325 [0] : vector<64x64xf32> to vector<64xf32>
    %491 = vector.shape_cast %490 : vector<64xf32> to vector<1x64xf32>
    %492 = arith.maximumf %489, %491 : vector<1x64xf32>
    %493 = vector.broadcast %492 : vector<1x64xf32> to vector<8x64xf32>
    %494 = arith.subf %485, %493 : vector<8x64xf32>
    %495 = math.exp %494 : vector<8x64xf32>
    %496 = vector.broadcast %492 : vector<1x64xf32> to vector<64x64xf32>
    %497 = arith.subf %487, %496 : vector<64x64xf32>
    %498 = math.exp %497 : vector<64x64xf32>
    %cst_326 = arith.constant dense<0.000000e+00> : vector<64xf32>
    %499 = vector.multi_reduction <add>, %495, %cst_326 [0] : vector<8x64xf32> to vector<64xf32>
    %500 = vector.shape_cast %499 : vector<64xf32> to vector<1x64xf32>
    %cst_327 = arith.constant dense<0.000000e+00> : vector<64xf32>
    %501 = vector.multi_reduction <add>, %498, %cst_327 [0] : vector<64x64xf32> to vector<64xf32>
    %502 = vector.shape_cast %501 : vector<64xf32> to vector<1x64xf32>
    %503 = arith.addf %500, %502 : vector<1x64xf32>
    %504 = tpu.reciprocal %503 {approx = true} : vector<1x64xf32> -> vector<1x64xf32>
    %505 = arith.mulf %503, %504 : vector<1x64xf32>
    %cst_328 = arith.constant 2.000000e+00 : f32
    %506 = vector.broadcast %cst_328 : f32 to vector<1x64xf32>
    %507 = arith.subf %506, %505 : vector<1x64xf32>
    %508 = arith.mulf %504, %507 : vector<1x64xf32>
    %509 = vector.shape_cast %495 : vector<8x64xf32> to vector<1x8x64xf32>
    %c0_329 = arith.constant 0 : index
    %c0_330 = arith.constant 0 : index
    %c0_331 = arith.constant 0 : index
    %510 = vector.load %arg9[%c0_329, %c0_330, %c0_331] : memref<16x8x64xf32, #tpu.memory_space<vmem>>, vector<16x8x64xf32>
    %511 = vector.broadcast %509 : vector<1x8x64xf32> to vector<16x8x64xf32>
    %512 = arith.mulf %511, %510 : vector<16x8x64xf32>
    %cst_332 = arith.constant dense<0.000000e+00> : vector<16x64xf32>
    %513 = vector.multi_reduction <add>, %512, %cst_332 [1] : vector<16x8x64xf32> to vector<16x64xf32>
    %cst_333 = arith.constant dense<0.000000e+00> : vector<16x64xf32>
    %514 = tpu.matmul %476, %498, %cst_333 {dimension_numbers = #tpu.dot_dimension_numbers<[1], [0], [0], [1], [0, 0, 1, 1], [], []>} : vector<16x64xf32>, vector<64x64xf32>, vector<16x64xf32> -> vector<16x64xf32>
    %515 = arith.addf %513, %514 : vector<16x64xf32>
    %516 = vector.broadcast %508 : vector<1x64xf32> to vector<16x64xf32>
    %517 = arith.mulf %515, %516 : vector<16x64xf32>
    %518 = vector.broadcast %138 : f32 to vector<16x64xf32>
    %519 = arith.mulf %518, %517 : vector<16x64xf32>
    %c0_334 = arith.constant 0 : index
    %c0_335 = arith.constant 0 : index
    %c6_336 = arith.constant 6 : index
    %c0_337 = arith.constant 0 : index
    %520 = vector.load %arg1[%c0_334, %c0_335, %c6_336, %c0_337] : memref<1x16x8x64xf32, #tpu.memory_space<vmem>>, vector<1x16x1x64xf32>
    %521 = vector.shape_cast %520 : vector<1x16x1x64xf32> to vector<16x64xf32>
    %522 = arith.addf %519, %521 : vector<16x64xf32>
    %c0_338 = arith.constant 0 : index
    %c0_339 = arith.constant 0 : index
    %c6_340 = arith.constant 6 : index
    %c0_341 = arith.constant 0 : index
    %523 = vector.load %arg6[%c0_338, %c0_339, %c6_340, %c0_341] : memref<1x16x8x64xf32, #tpu.memory_space<vmem>>, vector<1x16x1x64xf32>
    %524 = vector.shape_cast %523 : vector<1x16x1x64xf32> to vector<16x64xf32>
    %525 = vector.shape_cast %522 : vector<16x64xf32> to vector<1x16x1x64xf32>
    tpu.vector_store %arg6[%c0_338, %c0_339, %c6_340, %c0_341], %525 {strides = array<i32>} : memref<1x16x8x64xf32, #tpu.memory_space<vmem>>, vector<1x16x1x64xf32>,
    %c0_342 = arith.constant 0 : index
    %c7_343 = arith.constant 7 : index
    %c0_344 = arith.constant 0 : index
    %526 = vector.load %arg7[%c0_342, %c7_343, %c0_344] : memref<2x8x64xf32, #tpu.memory_space<vmem>>, vector<2x1x64xf32>
    %527 = vector.shape_cast %526 : vector<2x1x64xf32> to vector<2x64xf32>
    %c0_345 = arith.constant 0 : index
    %c7_346 = arith.constant 7 : index
    %c0_347 = arith.constant 0 : index
    %528 = vector.load %arg8[%c0_345, %c7_346, %c0_347] : memref<2x8x64xf32, #tpu.memory_space<vmem>>, vector<2x1x64xf32>
    %529 = vector.shape_cast %528 : vector<2x1x64xf32> to vector<2x64xf32>
    %c0_348 = arith.constant 0 : index
    %c7_349 = arith.constant 7 : index
    %c0_350 = arith.constant 0 : index
    %530 = vector.load %arg9[%c0_348, %c7_349, %c0_350] : memref<16x8x64xf32, #tpu.memory_space<vmem>>, vector<16x1x64xf32>
    %531 = vector.shape_cast %530 : vector<16x1x64xf32> to vector<16x64xf32>
    %532 = vector.shape_cast %527 : vector<2x64xf32> to vector<2x1x64xf32>
    %c0_351 = arith.constant 0 : index
    %c0_352 = arith.constant 0 : index
    %c0_353 = arith.constant 0 : index
    %533 = vector.load %arg8[%c0_351, %c0_352, %c0_353] : memref<2x8x64xf32, #tpu.memory_space<vmem>>, vector<2x8x64xf32>
    %534 = vector.broadcast %532 : vector<2x1x64xf32> to vector<2x8x64xf32>
    %535 = arith.mulf %534, %533 : vector<2x8x64xf32>
    %cst_354 = arith.constant dense<0.000000e+00> : vector<8x64xf32>
    %536 = vector.multi_reduction <add>, %535, %cst_354 [0] : vector<2x8x64xf32> to vector<8x64xf32>
    %c7_i32 = arith.constant 7 : i32
    %537 = vector.broadcast %c7_i32 : i32 to vector<8x64xi32>
    %538 = arith.cmpi eq, %140, %537 : vector<8x64xi32>
    %cst_355 = arith.constant -1.000000e+30 : f32
    %539 = vector.broadcast %cst_355 : f32 to vector<8x64xf32>
    %540 = arith.select %538, %539, %536 : vector<8x64xi1>, vector<8x64xf32>
    %cst_356 = arith.constant dense<0.000000e+00> : vector<64x64xf32>
    %541 = tpu.matmul %529, %527, %cst_356 {dimension_numbers = #tpu.dot_dimension_numbers<[0], [0], [1], [1], [0, 1, 1, 1], [], []>} : vector<2x64xf32>, vector<2x64xf32>, vector<64x64xf32> -> vector<64x64xf32>
    %542 = arith.addf %541, %139 : vector<64x64xf32>
    %cst_357 = arith.constant dense<0xFF800000> : vector<64xf32>
    %543 = vector.multi_reduction <maximumf>, %540, %cst_357 [0] : vector<8x64xf32> to vector<64xf32>
    %544 = vector.shape_cast %543 : vector<64xf32> to vector<1x64xf32>
    %cst_358 = arith.constant dense<0xFF800000> : vector<64xf32>
    %545 = vector.multi_reduction <maximumf>, %542, %cst_358 [0] : vector<64x64xf32> to vector<64xf32>
    %546 = vector.shape_cast %545 : vector<64xf32> to vector<1x64xf32>
    %547 = arith.maximumf %544, %546 : vector<1x64xf32>
    %548 = vector.broadcast %547 : vector<1x64xf32> to vector<8x64xf32>
    %549 = arith.subf %540, %548 : vector<8x64xf32>
    %550 = math.exp %549 : vector<8x64xf32>
    %551 = vector.broadcast %547 : vector<1x64xf32> to vector<64x64xf32>
    %552 = arith.subf %542, %551 : vector<64x64xf32>
    %553 = math.exp %552 : vector<64x64xf32>
    %cst_359 = arith.constant dense<0.000000e+00> : vector<64xf32>
    %554 = vector.multi_reduction <add>, %550, %cst_359 [0] : vector<8x64xf32> to vector<64xf32>
    %555 = vector.shape_cast %554 : vector<64xf32> to vector<1x64xf32>
    %cst_360 = arith.constant dense<0.000000e+00> : vector<64xf32>
    %556 = vector.multi_reduction <add>, %553, %cst_360 [0] : vector<64x64xf32> to vector<64xf32>
    %557 = vector.shape_cast %556 : vector<64xf32> to vector<1x64xf32>
    %558 = arith.addf %555, %557 : vector<1x64xf32>
    %559 = tpu.reciprocal %558 {approx = true} : vector<1x64xf32> -> vector<1x64xf32>
    %560 = arith.mulf %558, %559 : vector<1x64xf32>
    %cst_361 = arith.constant 2.000000e+00 : f32
    %561 = vector.broadcast %cst_361 : f32 to vector<1x64xf32>
    %562 = arith.subf %561, %560 : vector<1x64xf32>
    %563 = arith.mulf %559, %562 : vector<1x64xf32>
    %564 = vector.shape_cast %550 : vector<8x64xf32> to vector<1x8x64xf32>
    %c0_362 = arith.constant 0 : index
    %c0_363 = arith.constant 0 : index
    %c0_364 = arith.constant 0 : index
    %565 = vector.load %arg9[%c0_362, %c0_363, %c0_364] : memref<16x8x64xf32, #tpu.memory_space<vmem>>, vector<16x8x64xf32>
    %566 = vector.broadcast %564 : vector<1x8x64xf32> to vector<16x8x64xf32>
    %567 = arith.mulf %566, %565 : vector<16x8x64xf32>
    %cst_365 = arith.constant dense<0.000000e+00> : vector<16x64xf32>
    %568 = vector.multi_reduction <add>, %567, %cst_365 [1] : vector<16x8x64xf32> to vector<16x64xf32>
    %cst_366 = arith.constant dense<0.000000e+00> : vector<16x64xf32>
    %569 = tpu.matmul %531, %553, %cst_366 {dimension_numbers = #tpu.dot_dimension_numbers<[1], [0], [0], [1], [0, 0, 1, 1], [], []>} : vector<16x64xf32>, vector<64x64xf32>, vector<16x64xf32> -> vector<16x64xf32>
    %570 = arith.addf %568, %569 : vector<16x64xf32>
    %571 = vector.broadcast %563 : vector<1x64xf32> to vector<16x64xf32>
    %572 = arith.mulf %570, %571 : vector<16x64xf32>
    %573 = vector.broadcast %138 : f32 to vector<16x64xf32>
    %574 = arith.mulf %573, %572 : vector<16x64xf32>
    %c0_367 = arith.constant 0 : index
    %c0_368 = arith.constant 0 : index
    %c7_369 = arith.constant 7 : index
    %c0_370 = arith.constant 0 : index
    %575 = vector.load %arg1[%c0_367, %c0_368, %c7_369, %c0_370] : memref<1x16x8x64xf32, #tpu.memory_space<vmem>>, vector<1x16x1x64xf32>
    %576 = vector.shape_cast %575 : vector<1x16x1x64xf32> to vector<16x64xf32>
    %577 = arith.addf %574, %576 : vector<16x64xf32>
    %c0_371 = arith.constant 0 : index
    %c0_372 = arith.constant 0 : index
    %c7_373 = arith.constant 7 : index
    %c0_374 = arith.constant 0 : index
    %578 = vector.load %arg6[%c0_371, %c0_372, %c7_373, %c0_374] : memref<1x16x8x64xf32, #tpu.memory_space<vmem>>, vector<1x16x1x64xf32>
    %579 = vector.shape_cast %578 : vector<1x16x1x64xf32> to vector<16x64xf32>
    %580 = vector.shape_cast %577 : vector<16x64xf32> to vector<1x16x1x64xf32>
    tpu.vector_store %arg6[%c0_371, %c0_372, %c7_373, %c0_374], %580 {strides = array<i32>} : memref<1x16x8x64xf32, #tpu.memory_space<vmem>>, vector<1x16x1x64xf32>,
    return
  }
  func.func @transform_0(%arg0: i32) -> (i32, i32, i32, i32) {
    %c0_i32 = arith.constant 0 : i32
    %c0_i32_0 = arith.constant 0 : i32
    %c0_i32_1 = arith.constant 0 : i32
    %c0_i32_2 = arith.constant 0 : i32
    return %arg0, %c0_i32, %c0_i32_0, %c0_i32_1 : i32, i32, i32, i32
  }
  func.func @transform_1(%arg0: i32) -> (i32, i32) {
    %c0_i32 = arith.constant 0 : i32
    %c0_i32_0 = arith.constant 0 : i32
    %c0_i32_1 = arith.constant 0 : i32
    return %c0_i32, %c0_i32_0 : i32, i32
  }
  func.func @transform_2(%arg0: i32) -> (i32, i32) {
    %c0_i32 = arith.constant 0 : i32
    %c0_i32_0 = arith.constant 0 : i32
    %c0_i32_1 = arith.constant 0 : i32
    return %c0_i32, %c0_i32_0 : i32, i32
  }
  func.func @transform_3(%arg0: i32) -> (i32, i32) {
    %c0_i32 = arith.constant 0 : i32
    %c0_i32_0 = arith.constant 0 : i32
    %c0_i32_1 = arith.constant 0 : i32
    return %c0_i32, %c0_i32_0 : i32, i32
  }
  func.func @transform_4(%arg0: i32) -> (i32, i32) {
    %c0_i32 = arith.constant 0 : i32
    %c0_i32_0 = arith.constant 0 : i32
    %c0_i32_1 = arith.constant 0 : i32
    return %c0_i32, %c0_i32_0 : i32, i32
  }
  func.func @transform_5(%arg0: i32) -> (i32, i32, i32, i32) {
    %c0_i32 = arith.constant 0 : i32
    %c0_i32_0 = arith.constant 0 : i32
    %c0_i32_1 = arith.constant 0 : i32
    %c0_i32_2 = arith.constant 0 : i32
    return %arg0, %c0_i32, %c0_i32_0, %c0_i32_1 : i32, i32, i32, i32
  }
}

</mosaic_0001>

<llo_original>
// kernel: tpu_custom_call.1
$region0: #{tpu_custom_call.1}
  #allocation0 [shape = 'u32[]', space=smem, size = 0x4, offset = 0x4, fixed_abs, tag = 'smem constant byte address 0x4 - core index']
  #allocation1 [shape = 'u32[144,128]{1,0:T(1,128)}', space=vmem, size = 0x12000, scoped, tag = 'internal scratch']
  #allocation2 [shape = 'f32[2,8,64]{2,1,0:T(8,128)}', space=vmem, size = 0x2000, scoped, tag = 'scratch operand']
  #allocation3 [shape = 'f32[2,8,64]{2,1,0:T(8,128)}', space=vmem, size = 0x2000, scoped, tag = 'scratch operand']
  #allocation4 [shape = 'f32[16,8,64]{2,1,0:T(8,128)}', space=vmem, size = 0x10000, scoped, tag = 'scratch operand']
  #allocation5 [shape = 'f32[1,1]{1,0:T(1,128)S(6)}', space=smem, size = 0x200, scoped, tag = 'scoped memory for tpu_custom_call.1']
  %s0 = inlined_call_operand.hbm [shape: f32[2,16,8,64], index: 0, kind: input, shape index: {}]
  %s1 = inlined_call_operand.hbm [shape: f32[32,16], index: 1, kind: input, shape index: {}]
  %s2 = inlined_call_operand.hbm [shape: f32[32,1], index: 2, kind: input, shape index: {}]
  %s3 = inlined_call_operand.hbm [shape: f32[64,64], index: 3, kind: input, shape index: {}]
  %s4 = inlined_call_operand.<no memory space> [shape: f32[1,1], index: 4, kind: input, shape index: {}]
  %s5 = inlined_call_operand.hbm [shape: f32[2,16,8,64], index: 5, kind: output, shape index: {}]
  %s6 = sld [smem:[#allocation0]]
  $region69: #{tpu_custom_call.1} parent=0
    _
  %s8 = ssub.s32 1, %s6
  %s9 = scalar_select 0, %s8, %s6
  %10 = sst [smem:[#allocation5]] %s4
  $region1: #{tpu_custom_call.1} parent=0
    #allocation6 [shape = 'u8[131072]{0}', space=vmem, size = 0x20000, scoped, tag = 'input window, operand 0']
    #allocation7 [shape = 's32[2]{0}', space=sflag, size = 0x8, scoped, tag = 'scoped memory for tpu_custom_call.1']
    #allocation8 [shape = 's32[2]{0}', space=sflag, size = 0x8, scoped, tag = 'scoped memory for tpu_custom_call.1']
    #allocation9 [shape = 'u8[16384]{0}', space=vmem, size = 0x4000, scoped, tag = 'input window, operand 1, single buffered']
    #allocation10 [shape = 's32[1]{0}', space=sflag, size = 0x4, scoped, tag = 'scoped memory for tpu_custom_call.1']
    #allocation11 [shape = 'u8[16384]{0}', space=vmem, size = 0x4000, scoped, tag = 'input window, operand 2, single buffered']
    #allocation12 [shape = 'u8[32768]{0}', space=vmem, size = 0x8000, scoped, tag = 'input window, operand 3, single buffered']
    #allocation13 [shape = 's32[1]{0}', space=sflag, size = 0x4, scoped, tag = 'scoped memory for tpu_custom_call.1']
    #allocation14 [shape = 'u8[131072]{0}', space=vmem, size = 0x20000, scoped, tag = 'output window, operand 0']
    %11 = vsyncpa [#allocation7], 0
    %s12 = scalar_lea.sflag [#allocation7], 1
    %13 = vsyncpa %s12, 0
    %14 = vsyncpa [#allocation10], 0
    %15 = vsyncpa [#allocation13], 0
    %16 = vsyncpa [#allocation8], 0
    %s17 = scalar_lea.sflag [#allocation8], 1
    %18 = vsyncpa %s17, 0
    loop: start=0, step=1, limit=4
    $region2: #{tpu_custom_call.1} parent=1 // loop_pre_header
      _
    $region3: #{tpu_custom_call.1} parent=1 // loop_header
      %s20 = sphi 0, %s24
      %p21 = scmp.ge.s32.totalorder %s20, 4
      %s30 = sphi 0, %s32
      %s33 = sphi 0, %s30
      %s34 = sphi 0, %s33
      %s50 = sphi 0, %s34
      %s54 = sphi 0, %s54
      %s56 = sphi 0, %s54
      %s57 = sphi 0, %s56
      %s71 = sphi 0, %s57
      %s75 = sphi 0, %s75
      %s77 = sphi 0, %s75
      %s78 = sphi 0, %s77
      %s92 = sphi 0, %s78
      %s96 = sphi 0, %s96
      %s98 = sphi 0, %s96
      %s99 = sphi 0, %s98
      %s113 = sphi 0, %s99
      %s117 = sphi 0, %s117
      %s119 = sphi 0, %s117
      %s120 = sphi 0, %s119
      %s134 = sphi 0, %s120
      %s140 = sphi 0, %s142
      %s143 = sphi 0, %s140
      %s144 = sphi 0, %s143
      %s160 = sphi 0, %s144
    $region4: #{tpu_custom_call.1} parent=1 // loop_header_branch
      %23 = sbr.rel (%p21) target = $region8
    $region5: #{tpu_custom_call.1} parent=1 // loop_body
      %s25 = ssub.s32 %s20, 1
      %s26 = ssub.s32 %s20, 2
      %s27 = sadd.s32 %s20, 1
      %s28 = ssub.s32 %s20, %s27
      %p29 = scmp.eq.s32.totalorder %s28, 0
      %s31 = sadd.s32 %s30, 1
      %s32 = scalar_select %p29, %s30, %s31
      %p35 = pneg %p29
      %p36 = scmp.eq.s32.totalorder %s20, 1
      %p37 = por %p35, %p36
      %p38 = scmp.ne.s32.totalorder %s30, %s33
      %p39 = scmp.eq.s32.totalorder %s20, 0
      %p40 = por %p38, %p39
      %p41 = scmp.ne.s32.totalorder %s30, %s33
      %p42 = scmp.eq.s32.totalorder %s25, 1
      %p43 = por %p41, %p42
      %p44 = scmp.ne.s32.totalorder %s33, %s34
      %p45 = scmp.eq.s32.totalorder %s25, 0
      %p46 = por %p44, %p45
      %p47 = scmp.ne.s32.totalorder %s33, %s34
      %p48 = scmp.eq.s32.totalorder %s26, 1
      %p49 = por %p47, %p48
      %p51 = scmp.ne.s32.totalorder %s34, %s50
      %p52 = scmp.eq.s32.totalorder %s26, 0
      %p53 = por %p51, %p52
      %s55 = sadd.s32 %s54, 1
      %p58 = scmp.eq.s32.totalorder %s20, 1
      %p59 = scmp.ne.s32.totalorder %s54, %s56
      %p60 = scmp.eq.s32.totalorder %s20, 0
      %p61 = por %p59, %p60
      %p62 = scmp.ne.s32.totalorder %s54, %s56
      %p63 = scmp.eq.s32.totalorder %s25, 1
      %p64 = por %p62, %p63
      %p65 = scmp.ne.s32.totalorder %s56, %s57
      %p66 = scmp.eq.s32.totalorder %s25, 0
      %p67 = por %p65, %p66
      %p68 = scmp.ne.s32.totalorder %s56, %s57
      %p69 = scmp.eq.s32.totalorder %s26, 1
      %p70 = por %p68, %p69
      %p72 = scmp.ne.s32.totalorder %s57, %s71
      %p73 = scmp.eq.s32.totalorder %s26, 0
      %p74 = por %p72, %p73
      %s76 = sadd.s32 %s75, 1
      %p79 = scmp.eq.s32.totalorder %s20, 1
      %p80 = scmp.ne.s32.totalorder %s75, %s77
      %p81 = scmp.eq.s32.totalorder %s20, 0
      %p82 = por %p80, %p81
      %p83 = scmp.ne.s32.totalorder %s75, %s77
      %p84 = scmp.eq.s32.totalorder %s25, 1
      %p85 = por %p83, %p84
      %p86 = scmp.ne.s32.totalorder %s77, %s78
      %p87 = scmp.eq.s32.totalorder %s25, 0
      %p88 = por %p86, %p87
      %p89 = scmp.ne.s32.totalorder %s77, %s78
      %p90 = scmp.eq.s32.totalorder %s26, 1
      %p91 = por %p89, %p90
      %p93 = scmp.ne.s32.totalorder %s78, %s92
      %p94 = scmp.eq.s32.totalorder %s26, 0
      %p95 = por %p93, %p94
      %s97 = sadd.s32 %s96, 1
      %p100 = scmp.eq.s32.totalorder %s20, 1
      %p101 = scmp.ne.s32.totalorder %s96, %s98
      %p102 = scmp.eq.s32.totalorder %s20, 0
      %p103 = por %p101, %p102
      %p104 = scmp.ne.s32.totalorder %s96, %s98
      %p105 = scmp.eq.s32.totalorder %s25, 1
      %p106 = por %p104, %p105
      %p107 = scmp.ne.s32.totalorder %s98, %s99
      %p108 = scmp.eq.s32.totalorder %s25, 0
      %p109 = por %p107, %p108
      %p110 = scmp.ne.s32.totalorder %s98, %s99
      %p111 = scmp.eq.s32.totalorder %s26, 1
      %p112 = por %p110, %p111
      %p114 = scmp.ne.s32.totalorder %s99, %s113
      %p115 = scmp.eq.s32.totalorder %s26, 0
      %p116 = por %p114, %p115
      %s118 = sadd.s32 %s117, 1
      %p121 = scmp.eq.s32.totalorder %s20, 1
      %p122 = scmp.ne.s32.totalorder %s117, %s119
      %p123 = scmp.eq.s32.totalorder %s20, 0
      %p124 = por %p122, %p123
      %p125 = scmp.ne.s32.totalorder %s117, %s119
      %p126 = scmp.eq.s32.totalorder %s25, 1
      %p127 = por %p125, %p126
      %p128 = scmp.ne.s32.totalorder %s119, %s120
      %p129 = scmp.eq.s32.totalorder %s25, 0
      %p130 = por %p128, %p129
      %p131 = scmp.ne.s32.totalorder %s119, %s120
      %p132 = scmp.eq.s32.totalorder %s26, 1
      %p133 = por %p131, %p132
      %p135 = scmp.ne.s32.totalorder %s120, %s134
      %p136 = scmp.eq.s32.totalorder %s26, 0
      %p137 = por %p135, %p136
      %s138 = ssub.s32 %s20, %s27
      %p139 = scmp.eq.s32.totalorder %s138, 0
      %s141 = sadd.s32 %s140, 1
      %s142 = scalar_select %p139, %s140, %s141
      %p145 = pneg %p139
      %p146 = scmp.eq.s32.totalorder %s20, 1
      %p147 = por %p145, %p146
      %p148 = scmp.ne.s32.totalorder %s140, %s143
      %p149 = scmp.eq.s32.totalorder %s20, 0
      %p150 = por %p148, %p149
      %p151 = scmp.ne.s32.totalorder %s140, %s143
      %p152 = scmp.eq.s32.totalorder %s25, 1
      %p153 = por %p151, %p152
      %p154 = scmp.ne.s32.totalorder %s143, %s144
      %p155 = scmp.eq.s32.totalorder %s25, 0
      %p156 = por %p154, %p155
      %p157 = scmp.ne.s32.totalorder %s143, %s144
      %p158 = scmp.eq.s32.totalorder %s26, 1
      %p159 = por %p157, %p158
      %p161 = scmp.ne.s32.totalorder %s144, %s160
      %p162 = scmp.eq.s32.totalorder %s26, 0
      %p163 = por %p161, %p162
      %p164 = scmp.le.s32.totalorder 1, %s20
      %p165 = scmp.lt.s32.totalorder %s20, 3
      %p166 = pnand %p164, %p165
      %p167 = pneg %p166
      // Predicated region
      $region9: #{tpu_custom_call.1} parent=5 // pred_check
        _
      $region10: #{tpu_custom_call.1} parent=5 // pred_check_branch
        %169 = sbr.rel (%p166) target = $region12
      $region11: #{tpu_custom_call.1} parent=5 // pred_region
        %s170 = ssub.s32 %s20, 1
        // Predicated region
        $region13: #{tpu_custom_call.1} parent=11 // pred_check
          %p171 = pneg %p67
        $region14: #{tpu_custom_call.1} parent=11 // pred_check_branch
          %173 = sbr.rel (%p171) target = $region16
        $region15: #{tpu_custom_call.1} parent=11 // pred_region
          %s175 = ssub.s32 512, 512
          %176 = vsyncadd [#allocation10], %s175
          %s177 = sshll.u32 [#allocation9], 4
          %s178 = int_to_ptr.vmem [resolvable:$true] %s177
          %183 = dma.hbm_to_vmem [thread:$0]  %s1, 512, %s178, [#allocation10], 128, 128, 8
        $region16: #{tpu_custom_call.1} parent=11 // pred_fallthru
          _
        // Predicated region
        $region17: #{tpu_custom_call.1} parent=11 // pred_check
          %p184 = pneg %p88
        $region18: #{tpu_custom_call.1} parent=11 // pred_check_branch
          %186 = sbr.rel (%p184) target = $region20
        $region19: #{tpu_custom_call.1} parent=11 // pred_region
          %s188 = ssub.s32 512, 512
          %189 = vsyncadd [#allocation10], %s188
          %s190 = sshll.u32 [#allocation11], 4
          %s191 = int_to_ptr.vmem [resolvable:$true] %s190
          %196 = dma.hbm_to_vmem [thread:$0]  %s2, 512, %s191, [#allocation10], 128, 128, 8
        $region20: #{tpu_custom_call.1} parent=11 // pred_fallthru
          _
        // Predicated region
        $region21: #{tpu_custom_call.1} parent=11 // pred_check
          %p197 = pneg %p109
        $region22: #{tpu_custom_call.1} parent=11 // pred_check_branch
          %199 = sbr.rel (%p197) target = $region24
        $region23: #{tpu_custom_call.1} parent=11 // pred_region
          %s201 = ssub.s32 1024, 1024
          %202 = vsyncadd [#allocation13], %s201
          %s203 = sshll.u32 [#allocation12], 4
          %s204 = int_to_ptr.vmem [resolvable:$true] %s203
          %209 = dma.hbm_to_vmem [thread:$0]  %s3, 1024, %s204, [#allocation13], 128, 128, 8
        $region24: #{tpu_custom_call.1} parent=11 // pred_fallthru
          _
        // Predicated region
        $region25: #{tpu_custom_call.1} parent=11 // pred_check
          %p210 = pneg %p130
        $region26: #{tpu_custom_call.1} parent=11 // pred_check_branch
          %212 = sbr.rel (%p210) target = $region28
        $region27: #{tpu_custom_call.1} parent=11 // pred_region
          _
        $region28: #{tpu_custom_call.1} parent=11 // pred_fallthru
          _
      $region12: #{tpu_custom_call.1} parent=5 // pred_fallthru
        _
      %p213 = scmp.lt.s32.totalorder %s20, 2
      // Predicated region
      $region29: #{tpu_custom_call.1} parent=5 // pred_check
        %p214 = pneg %p213
      $region30: #{tpu_custom_call.1} parent=5 // pred_check_branch
        %216 = sbr.rel (%p214) target = $region32
      $region31: #{tpu_custom_call.1} parent=5 // pred_region
        // Predicated region
        $region33: #{tpu_custom_call.1} parent=31 // pred_check
          %p217 = pneg %p40
        $region34: #{tpu_custom_call.1} parent=31 // pred_check_branch
          %219 = sbr.rel (%p217) target = $region36
        $region35: #{tpu_custom_call.1} parent=31 // pred_region
          %s220 = sand.u32 %s30, 1
          %s221 = scalar_lea.sflag [#allocation7], %s220
          %s222 = sand.u32 %s30, 1
          %s223 = smul.addr %s222, 128
          %s224 = scalar_lea.vmem [#allocation6], %s223
          %s226 = ssub.s32 2048, 2048
          %227 = vsyncadd %s221, %s226
          %s228 = smul.addr %s20, 16
          %s229 = smul.addr %s228, 128
          %s230 = scalar_lea.hbm %s0, %s229
          %s231 = sshll.u32 %s224, 4
          %s232 = int_to_ptr.vmem [resolvable:$true] %s231
          %237 = dma.hbm_to_vmem [thread:$0]  %s230, 2048, %s232, %s221, 128, 128, 8
        $region36: #{tpu_custom_call.1} parent=31 // pred_fallthru
          _
      $region32: #{tpu_custom_call.1} parent=5 // pred_fallthru
        _
      %p238 = scmp.le.s32.totalorder 1, %s20
      %p239 = scmp.lt.s32.totalorder %s20, 3
      %p240 = pnand %p238, %p239
      %p241 = pneg %p240
      // Predicated region
      $region37: #{tpu_custom_call.1} parent=5 // pred_check
        _
      $region38: #{tpu_custom_call.1} parent=5 // pred_check_branch
        %243 = sbr.rel (%p240) target = $region40
      $region39: #{tpu_custom_call.1} parent=5 // pred_region
        %s244 = ssub.s32 %s20, 1
        %s245 = sand.u32 %s33, 1
        %s246 = scalar_lea.sflag [#allocation7], %s245
        %s247 = sand.u32 %s33, 1
        %s248 = smul.addr %s247, 128
        %s249 = scalar_lea.vmem [#allocation6], %s248
        // Predicated region
        $region41: #{tpu_custom_call.1} parent=39 // pred_check
          %p250 = pneg %p46
        $region42: #{tpu_custom_call.1} parent=39 // pred_check_branch
          %252 = sbr.rel (%p250) target = $region44
        $region43: #{tpu_custom_call.1} parent=39 // pred_region
          %253 = dma.done %s246, 2048
        $region44: #{tpu_custom_call.1} parent=39 // pred_fallthru
          _
        // Predicated region
        $region45: #{tpu_custom_call.1} parent=39 // pred_check
          %p254 = pneg %p67
        $region46: #{tpu_custom_call.1} parent=39 // pred_check_branch
          %256 = sbr.rel (%p254) target = $region48
        $region47: #{tpu_custom_call.1} parent=39 // pred_region
          %257 = dma.done [#allocation10], 512
        $region48: #{tpu_custom_call.1} parent=39 // pred_fallthru
          _
        // Predicated region
        $region49: #{tpu_custom_call.1} parent=39 // pred_check
          %p258 = pneg %p88
        $region50: #{tpu_custom_call.1} parent=39 // pred_check_branch
          %260 = sbr.rel (%p258) target = $region52
        $region51: #{tpu_custom_call.1} parent=39 // pred_region
          %261 = dma.done [#allocation10], 512
        $region52: #{tpu_custom_call.1} parent=39 // pred_fallthru
          _
        // Predicated region
        $region53: #{tpu_custom_call.1} parent=39 // pred_check
          %p262 = pneg %p109
        $region54: #{tpu_custom_call.1} parent=39 // pred_check_branch
          %264 = sbr.rel (%p262) target = $region56
        $region55: #{tpu_custom_call.1} parent=39 // pred_region
          %265 = dma.done [#allocation13], 1024
        $region56: #{tpu_custom_call.1} parent=39 // pred_fallthru
          _
        %s266 = sand.u32 %s33, 1
        %s267 = scalar_lea.sflag [#allocation7], %s266
        %s268 = sand.u32 %s33, 1
        %s269 = smul.addr %s268, 128
        %s270 = scalar_lea.vmem [#allocation6], %s269
        %p271 = pneg %p46
        %p272 = pneg %p43
        %p273 = pneg %p67
        %p274 = pneg %p64
        %p275 = pneg %p88
        %p276 = pneg %p85
        %p277 = pneg %p109
        %p278 = pneg %p106
        %p279 = pneg %p130
        %p280 = pneg %p127
        %p281 = pneg %p156
        %p282 = pneg %p153
        %s283 = sand.u32 %s143, 1
        %s284 = scalar_lea.sflag [#allocation8], %s283
        %s285 = sand.u32 %s143, 1
        %s286 = smul.addr %s285, 128
        %s287 = scalar_lea.vmem [#allocation14], %s286
        %v288 = vld [vmem:[#allocation9] sm:$0xff]
        %v289 = vld [vmem:[#allocation9 + $0x8] sm:$0xff]
        %v290 = vld [vmem:[#allocation9 + $0x10] sm:$0xff]
        %v291 = vld [vmem:[#allocation9 + $0x18] sm:$0xff]
        %v292 = vld [vmem:[#allocation11] sm:$0xff]
        %v293 = vld [vmem:[#allocation11 + $0x8] sm:$0xff]
        %v294 = vld [vmem:[#allocation11 + $0x10] sm:$0xff]
        %v295 = vld [vmem:[#allocation11 + $0x18] sm:$0xff]
        %v296 = vld [vmem:[%s249] sm:$0x1]
        %v297 = vld [vmem:[%s249 + $0x8] sm:$0x1]
        %v298 = vld [vmem:[%s249 + $0x10] sm:$0x1]
        %v299 = vld [vmem:[%s249 + $0x18] sm:$0x1]
        %v300 = vld [vmem:[%s249 + $0x20] sm:$0x1]
        %v301 = vld [vmem:[%s249 + $0x28] sm:$0x1]
        %v302 = vld [vmem:[%s249 + $0x30] sm:$0x1]
        %v303 = vld [vmem:[%s249 + $0x38] sm:$0x1]
        %v304 = vld [vmem:[%s249 + $0x40] sm:$0x1]
        %v305 = vld [vmem:[%s249 + $0x48] sm:$0x1]
        %v306 = vld [vmem:[%s249 + $0x50] sm:$0x1]
        %v307 = vld [vmem:[%s249 + $0x58] sm:$0x1]
        %v308 = vld [vmem:[%s249 + $0x60] sm:$0x1]
        %v309 = vld [vmem:[%s249 + $0x68] sm:$0x1]
        %v310 = vld [vmem:[%s249 + $0x70] sm:$0x1]
        %v311 = vld [vmem:[%s249 + $0x78] sm:$0x1]
        %313 = vset.pattern.permute.xlu0 0
        %314 = vperm.xlu0 %313, %v292
        %v315 = vpop.permute.xlu0 %314
        %318 = vset.pattern.permute.xlu0 0
        %319 = vperm.xlu0 %318, %v293
        %v320 = vpop.permute.xlu0 %319
        %323 = vset.pattern.permute.xlu0 0
        %324 = vperm.xlu0 %323, %v294
        %v325 = vpop.permute.xlu0 %324
        %328 = vset.pattern.permute.xlu0 0
        %329 = vperm.xlu0 %328, %v295
        %v330 = vpop.permute.xlu0 %329
        %v348 = vrot.slane %v297, 7
        %vm349 = vcmask 1041409
        %v350 = vsel %vm349, %v348, %v296
        %v351 = vrot.slane %v298, 6
        %vm352 = vcmask 1042434
        %v353 = vsel %vm352, %v351, %v350
        %v354 = vrot.slane %v299, 5
        %vm355 = vcmask 1043459
        %v356 = vsel %vm355, %v354, %v353
        %v357 = vrot.slane %v300, 4
        %vm358 = vcmask 1044484
        %v359 = vsel %vm358, %v357, %v356
        %v360 = vrot.slane %v301, 3
        %vm361 = vcmask 1045509
        %v362 = vsel %vm361, %v360, %v359
        %v363 = vrot.slane %v302, 2
        %vm364 = vcmask 1046534
        %v365 = vsel %vm364, %v363, %v362
        %v366 = vrot.slane %v303, 1
        %vm367 = vcmask 1047559
        %v368 = vsel %vm367, %v366, %v365
        %v369 = vrot.slane %v305, 7
        %v370 = vsel %vm349, %v369, %v304
        %v371 = vrot.slane %v306, 6
        %v372 = vsel %vm352, %v371, %v370
        %v373 = vrot.slane %v307, 5
        %v374 = vsel %vm355, %v373, %v372
        %v375 = vrot.slane %v308, 4
        %v376 = vsel %vm358, %v375, %v374
        %v377 = vrot.slane %v309, 3
        %v378 = vsel %vm361, %v377, %v376
        %v379 = vrot.slane %v310, 2
        %v380 = vsel %vm364, %v379, %v378
        %v381 = vrot.slane %v311, 1
        %v382 = vsel %vm367, %v381, %v380
        %vm385 = vcmask 130048
        %v387 = vsel %vm385, %v288, 0
        %v390 = vsel %vm385, %v289, 0
        %v393 = vsel %vm385, %v290, 0
        %v396 = vsel %vm385, %v291, 0
        %398 = vmatprep.subr.mxu0 0.0
        %399 = vmatpush1.msra.mxu0 %v368
        %400 = vmatprep.subr.mxu0 0.0
        %401 = vmatpush1.msra.mxu0 %v382
        %402 = vmatprep.subr.mxu0 0.0
        %403 = vmatpush1.msra.mxu0 0.0
        %404 = vmatprep.subr.mxu0 0.0
        %405 = vmatpush1.msra.mxu0 0.0
        %406 = vmatprep.subr.mxu0 0.0
        %407 = vmatpush1.msra.mxu0 0.0
        %408 = vmatprep.subr.mxu0 0.0
        %409 = vmatpush1.msra.mxu0 0.0
        %410 = vmatprep.subr.mxu0 0.0
        %411 = vmatpush1.msra.mxu0 0.0
        %412 = vmatprep.subr.mxu0 0.0
        %413 = vmatpush1.msra.mxu0 0.0
        %414 = vmatprep.subr.mxu0 0.0
        %415 = vmatpush1.msra.mxu0 0.0
        %416 = vmatprep.subr.mxu0 0.0
        %417 = vmatpush1.msra.mxu0 0.0
        %418 = vmatprep.subr.mxu0 0.0
        %419 = vmatpush1.msra.mxu0 0.0
        %420 = vmatprep.subr.mxu0 0.0
        %421 = vmatpush1.msra.mxu0 0.0
        %422 = vmatprep.subr.mxu0 0.0
        %423 = vmatpush1.msra.mxu0 0.0
        %424 = vmatprep.subr.mxu0 0.0
        %425 = vmatpush1.msra.mxu0 0.0
        %426 = vmatprep.subr.mxu0 0.0
        %427 = vmatpush1.msra.mxu0 0.0
        %428 = vmatprep.subr.mxu0 0.0
        %429 = vmatpush1.msra.mxu0 0.0
        %430 = vmatprep.subr.mxu0 0.0
        %431 = vmatpush1.msra.mxu0 0.0
        %432 = vmatprep.subr.mxu0 0.0
        %433 = vmatpush1.msra.mxu0 0.0
        %434 = vmatprep.subr.mxu0 0.0
        %435 = vmatpush1.msra.mxu0 0.0
        %436 = vmatprep.subr.mxu0 0.0
        %437 = vmatpush1.msra.mxu0 0.0
        %438 = vmatprep.subr.mxu0 0.0
        %439 = vmatpush1.msra.mxu0 0.0
        %440 = vmatprep.subr.mxu0 0.0
        %441 = vmatpush1.msra.mxu0 0.0
        %442 = vmatprep.subr.mxu0 0.0
        %443 = vmatpush1.msra.mxu0 0.0
        %444 = vmatprep.subr.mxu0 0.0
        %445 = vmatpush1.msra.mxu0 0.0
        %446 = vmatprep.subr.mxu0 0.0
        %447 = vmatpush1.msra.mxu0 0.0
        %448 = vmatprep.subr.mxu0 0.0
        %449 = vmatpush1.msra.mxu0 0.0
        %450 = vmatprep.subr.mxu0 0.0
        %451 = vmatpush1.msra.mxu0 0.0
        %452 = vmatprep.subr.mxu0 0.0
        %453 = vmatpush1.msra.mxu0 0.0
        %454 = vmatprep.subr.mxu0 0.0
        %455 = vmatpush1.msra.mxu0 0.0
        %456 = vmatprep.subr.mxu0 0.0
        %457 = vmatpush1.msra.mxu0 0.0
        %458 = vmatprep.subr.mxu0 0.0
        %459 = vmatpush1.msra.mxu0 0.0
        %460 = vmatprep.subr.mxu0 0.0
        %461 = vmatpush1.msra.mxu0 0.0
        %462 = vmatprep.mubr.f32.mxu0 0.0
        %463 = vmatmul.mubr.f32.gmra.mrb[0].mxu0 %v387
        %v464 = vpop.f32.mrb[0].mxu0
        %v465 = vadd.f32 %v315, %v464
        %v466 = vpop.f32.mrb[0].mxu0
        %467 = vmatprep.mubr.f32.mxu0 0.0
        %468 = vmatmul.mubr.f32.gmra.mrb[0].mxu0 %v390
        %v469 = vpop.f32.mrb[0].mxu0
        %v470 = vadd.f32 %v320, %v469
        %v471 = vpop.f32.mrb[0].mxu0
        %472 = vmatprep.mubr.f32.mxu0 0.0
        %473 = vmatmul.mubr.f32.gmra.mrb[0].mxu0 %v393
        %v474 = vpop.f32.mrb[0].mxu0
        %v475 = vadd.f32 %v325, %v474
        %v476 = vpop.f32.mrb[0].mxu0
        %477 = vmatprep.mubr.f32.mxu0 0.0
        %478 = vmatmul.mubr.f32.gmra.mrb[0].mxu0 %v396
        %v479 = vpop.f32.mrb[0].mxu0
        %v480 = vadd.f32 %v330, %v479
        %v481 = vpop.f32.mrb[0].mxu0
        %482 = vdwg.mxu0
        %v485 = vunpack.c.l.s4 1966171168
        %v486 = vunpack.c.0.s8 %v485
        %v487 = vlaneseq
        %v488 = vshrl.u32 %v487, 7
        %v489 = vsub.s32 %v486, %v488
        %v490 = vrot.slane %v465, %v489
        %v491 = vcombine.high %v490, %v490
        %v493 = vunpack.c.l.s4 1966171168
        %v494 = vunpack.c.0.s8 %v493
        %v495 = vlaneseq
        %v496 = vshrl.u32 %v495, 7
        %v497 = vsub.s32 %v494, %v496
        %v498 = vrot.slane %v490, %v497
        %v500 = vunpack.c.l.s4 1966171168
        %v501 = vunpack.c.0.s8 %v500
        %v502 = vlaneseq
        %v503 = vshrl.u32 %v502, 7
        %v504 = vsub.s32 %v501, %v503
        %v505 = vrot.slane %v491, %v504
        %vm508 = vcmask 516096
        %509 = vst.msk [vmem:[#allocation2] sm:$0x1] %vm508, %v498
        %510 = vst.msk [vmem:[#allocation2 + $0x8] sm:$0x1] %vm508, %v505
        %v513 = vunpack.c.l.s4 1966171168
        %v514 = vunpack.c.0.s8 %v513
        %v515 = vlaneseq
        %v516 = vshrl.u32 %v515, 7
        %v517 = vsub.s32 %v514, %v516
        %v518 = vrot.slane %v470, %v517
        %v519 = vcombine.high %v518, %v518
        %v521 = vunpack.c.l.s4 1966171168
        %v522 = vunpack.c.0.s8 %v521
        %v523 = vlaneseq
        %v524 = vshrl.u32 %v523, 7
        %v525 = vsub.s32 %v522, %v524
        %v526 = vrot.slane %v518, %v525
        %v528 = vunpack.c.l.s4 1966171168
        %v529 = vunpack.c.0.s8 %v528
        %v530 = vlaneseq
        %v531 = vshrl.u32 %v530, 7
        %v532 = vsub.s32 %v529, %v531
        %v533 = vrot.slane %v519, %v532
        %536 = vst.msk [vmem:[#allocation3] sm:$0x1] %vm508, %v526
        %537 = vst.msk [vmem:[#allocation3 + $0x8] sm:$0x1] %vm508, %v533
        %v540 = vcombine.high %v475, %v475
        %v542 = vunpack.c.l.s4 1966171168
        %v543 = vunpack.c.0.s8 %v542
        %v544 = vlaneseq
        %v545 = vshrl.u32 %v544, 7
        %v546 = vsub.s32 %v543, %v545
        %v547 = vrot.slane %v475, %v546
        %v549 = vunpack.c.l.s4 1966171168
        %v550 = vunpack.c.0.s8 %v549
        %v551 = vlaneseq
        %v552 = vshrl.u32 %v551, 7
        %v553 = vsub.s32 %v550, %v552
        %v554 = vrot.slane %v540, %v553
        %v555 = vcombine.high %v547, %v547
        %v556 = vcombine.high %v554, %v554
        %v558 = vunpack.c.l.s4 1966171168
        %v559 = vunpack.c.0.s8 %v558
        %v560 = vlaneseq
        %v561 = vshrl.u32 %v560, 7
        %v562 = vsub.s32 %v559, %v561
        %v563 = vrot.slane %v547, %v562
        %v565 = vunpack.c.l.s4 1966171168
        %v566 = vunpack.c.0.s8 %v565
        %v567 = vlaneseq
        %v568 = vshrl.u32 %v567, 7
        %v569 = vsub.s32 %v566, %v568
        %v570 = vrot.slane %v554, %v569
        %v572 = vunpack.c.l.s4 1966171168
        %v573 = vunpack.c.0.s8 %v572
        %v574 = vlaneseq
        %v575 = vshrl.u32 %v574, 7
        %v576 = vsub.s32 %v573, %v575
        %v577 = vrot.slane %v555, %v576
        %v579 = vunpack.c.l.s4 1966171168
        %v580 = vunpack.c.0.s8 %v579
        %v581 = vlaneseq
        %v582 = vshrl.u32 %v581, 7
        %v583 = vsub.s32 %v580, %v582
        %v584 = vrot.slane %v556, %v583
        %v585 = vcombine.high %v563, %v563
        %v586 = vcombine.high %v570, %v570
        %v587 = vcombine.high %v577, %v577
        %v588 = vcombine.high %v584, %v584
        %v589 = vcombine.high %v480, %v480
        %v591 = vunpack.c.l.s4 1966171168
        %v592 = vunpack.c.0.s8 %v591
        %v593 = vlaneseq
        %v594 = vshrl.u32 %v593, 7
        %v595 = vsub.s32 %v592, %v594
        %v596 = vrot.slane %v480, %v595
        %v598 = vunpack.c.l.s4 1966171168
        %v599 = vunpack.c.0.s8 %v598
        %v600 = vlaneseq
        %v601 = vshrl.u32 %v600, 7
        %v602 = vsub.s32 %v599, %v601
        %v603 = vrot.slane %v589, %v602
        %v604 = vcombine.high %v596, %v596
        %v605 = vcombine.high %v603, %v603
        %v607 = vunpack.c.l.s4 1966171168
        %v608 = vunpack.c.0.s8 %v607
        %v609 = vlaneseq
        %v610 = vshrl.u32 %v609, 7
        %v611 = vsub.s32 %v608, %v610
        %v612 = vrot.slane %v596, %v611
        %v614 = vunpack.c.l.s4 1966171168
        %v615 = vunpack.c.0.s8 %v614
        %v616 = vlaneseq
        %v617 = vshrl.u32 %v616, 7
        %v618 = vsub.s32 %v615, %v617
        %v619 = vrot.slane %v603, %v618
        %v621 = vunpack.c.l.s4 1966171168
        %v622 = vunpack.c.0.s8 %v621
        %v623 = vlaneseq
        %v624 = vshrl.u32 %v623, 7
        %v625 = vsub.s32 %v622, %v624
        %v626 = vrot.slane %v604, %v625
        %v628 = vunpack.c.l.s4 1966171168
        %v629 = vunpack.c.0.s8 %v628
        %v630 = vlaneseq
        %v631 = vshrl.u32 %v630, 7
        %v632 = vsub.s32 %v629, %v631
        %v633 = vrot.slane %v605, %v632
        %v634 = vcombine.high %v612, %v612
        %v635 = vcombine.high %v619, %v619
        %v636 = vcombine.high %v626, %v626
        %v637 = vcombine.high %v633, %v633
        %654 = vst.msk [vmem:[#allocation4] sm:$0x1] %vm508, %v563
        %655 = vst.msk [vmem:[#allocation4 + $0x8] sm:$0x1] %vm508, %v577
        %656 = vst.msk [vmem:[#allocation4 + $0x10] sm:$0x1] %vm508, %v585
        %657 = vst.msk [vmem:[#allocation4 + $0x18] sm:$0x1] %vm508, %v587
        %658 = vst.msk [vmem:[#allocation4 + $0x20] sm:$0x1] %vm508, %v570
        %659 = vst.msk [vmem:[#allocation4 + $0x28] sm:$0x1] %vm508, %v584
        %660 = vst.msk [vmem:[#allocation4 + $0x30] sm:$0x1] %vm508, %v586
        %661 = vst.msk [vmem:[#allocation4 + $0x38] sm:$0x1] %vm508, %v588
        %662 = vst.msk [vmem:[#allocation4 + $0x40] sm:$0x1] %vm508, %v612
        %663 = vst.msk [vmem:[#allocation4 + $0x48] sm:$0x1] %vm508, %v626
        %664 = vst.msk [vmem:[#allocation4 + $0x50] sm:$0x1] %vm508, %v634
        %665 = vst.msk [vmem:[#allocation4 + $0x58] sm:$0x1] %vm508, %v636
        %666 = vst.msk [vmem:[#allocation4 + $0x60] sm:$0x1] %vm508, %v619
        %667 = vst.msk [vmem:[#allocation4 + $0x68] sm:$0x1] %vm508, %v633
        %668 = vst.msk [vmem:[#allocation4 + $0x70] sm:$0x1] %vm508, %v635
        %669 = vst.msk [vmem:[#allocation4 + $0x78] sm:$0x1] %vm508, %v637
        %v670 = vld [vmem:[%s249 + $0x1] sm:$0x1]
        %v671 = vld [vmem:[%s249 + $0x9] sm:$0x1]
        %v672 = vld [vmem:[%s249 + $0x11] sm:$0x1]
        %v673 = vld [vmem:[%s249 + $0x19] sm:$0x1]
        %v674 = vld [vmem:[%s249 + $0x21] sm:$0x1]
        %v675 = vld [vmem:[%s249 + $0x29] sm:$0x1]
        %v676 = vld [vmem:[%s249 + $0x31] sm:$0x1]
        %v677 = vld [vmem:[%s249 + $0x39] sm:$0x1]
        %v678 = vld [vmem:[%s249 + $0x41] sm:$0x1]
        %v679 = vld [vmem:[%s249 + $0x49] sm:$0x1]
        %v680 = vld [vmem:[%s249 + $0x51] sm:$0x1]
        %v681 = vld [vmem:[%s249 + $0x59] sm:$0x1]
        %v682 = vld [vmem:[%s249 + $0x61] sm:$0x1]
        %v683 = vld [vmem:[%s249 + $0x69] sm:$0x1]
        %v684 = vld [vmem:[%s249 + $0x71] sm:$0x1]
        %v685 = vld [vmem:[%s249 + $0x79] sm:$0x1]
        %v702 = vrot.slane %v671, 7
        %v703 = vsel %vm349, %v702, %v670
        %v704 = vrot.slane %v672, 6
        %v705 = vsel %vm352, %v704, %v703
        %v706 = vrot.slane %v673, 5
        %v707 = vsel %vm355, %v706, %v705
        %v708 = vrot.slane %v674, 4
        %v709 = vsel %vm358, %v708, %v707
        %v710 = vrot.slane %v675, 3
        %v711 = vsel %vm361, %v710, %v709
        %v712 = vrot.slane %v676, 2
        %v713 = vsel %vm364, %v712, %v711
        %v714 = vrot.slane %v677, 1
        %v715 = vsel %vm367, %v714, %v713
        %v716 = vrot.slane %v679, 7
        %v717 = vsel %vm349, %v716, %v678
        %v718 = vrot.slane %v680, 6
        %v719 = vsel %vm352, %v718, %v717
        %v720 = vrot.slane %v681, 5
        %v721 = vsel %vm355, %v720, %v719
        %v722 = vrot.slane %v682, 4
        %v723 = vsel %vm358, %v722, %v721
        %v724 = vrot.slane %v683, 3
        %v725 = vsel %vm361, %v724, %v723
        %v726 = vrot.slane %v684, 2
        %v727 = vsel %vm364, %v726, %v725
        %v728 = vrot.slane %v685, 1
        %v729 = vsel %vm367, %v728, %v727
        %732 = vmatprep.subr.mxu0 0.0
        %733 = vmatpush1.msra.mxu0 %v715
        %734 = vmatprep.subr.mxu0 0.0
        %735 = vmatpush1.msra.mxu0 %v729
        %736 = vmatprep.subr.mxu0 0.0
        %737 = vmatpush1.msra.mxu0 0.0
        %738 = vmatprep.subr.mxu0 0.0
        %739 = vmatpush1.msra.mxu0 0.0
        %740 = vmatprep.subr.mxu0 0.0
        %741 = vmatpush1.msra.mxu0 0.0
        %742 = vmatprep.subr.mxu0 0.0
        %743 = vmatpush1.msra.mxu0 0.0
        %744 = vmatprep.subr.mxu0 0.0
        %745 = vmatpush1.msra.mxu0 0.0
        %746 = vmatprep.subr.mxu0 0.0
        %747 = vmatpush1.msra.mxu0 0.0
        %748 = vmatprep.subr.mxu0 0.0
        %749 = vmatpush1.msra.mxu0 0.0
        %750 = vmatprep.subr.mxu0 0.0
        %751 = vmatpush1.msra.mxu0 0.0
        %752 = vmatprep.subr.mxu0 0.0
        %753 = vmatpush1.msra.mxu0 0.0
        %754 = vmatprep.subr.mxu0 0.0
        %755 = vmatpush1.msra.mxu0 0.0
        %756 = vmatprep.subr.mxu0 0.0
        %757 = vmatpush1.msra.mxu0 0.0
        %758 = vmatprep.subr.mxu0 0.0
        %759 = vmatpush1.msra.mxu0 0.0
        %760 = vmatprep.subr.mxu0 0.0
        %761 = vmatpush1.msra.mxu0 0.0
        %762 = vmatprep.subr.mxu0 0.0
        %763 = vmatpush1.msra.mxu0 0.0
        %764 = vmatprep.subr.mxu0 0.0
        %765 = vmatpush1.msra.mxu0 0.0
        %766 = vmatprep.subr.mxu0 0.0
        %767 = vmatpush1.msra.mxu0 0.0
        %768 = vmatprep.subr.mxu0 0.0
        %769 = vmatpush1.msra.mxu0 0.0
        %770 = vmatprep.subr.mxu0 0.0
        %771 = vmatpush1.msra.mxu0 0.0
        %772 = vmatprep.subr.mxu0 0.0
        %773 = vmatpush1.msra.mxu0 0.0
        %774 = vmatprep.subr.mxu0 0.0
        %775 = vmatpush1.msra.mxu0 0.0
        %776 = vmatprep.subr.mxu0 0.0
        %777 = vmatpush1.msra.mxu0 0.0
        %778 = vmatprep.subr.mxu0 0.0
        %779 = vmatpush1.msra.mxu0 0.0
        %780 = vmatprep.subr.mxu0 0.0
        %781 = vmatpush1.msra.mxu0 0.0
        %782 = vmatprep.subr.mxu0 0.0
        %783 = vmatpush1.msra.mxu0 0.0
        %784 = vmatprep.subr.mxu0 0.0
        %785 = vmatpush1.msra.mxu0 0.0
        %786 = vmatprep.subr.mxu0 0.0
        %787 = vmatpush1.msra.mxu0 0.0
        %788 = vmatprep.subr.mxu0 0.0
        %789 = vmatpush1.msra.mxu0 0.0
        %790 = vmatprep.subr.mxu0 0.0
        %791 = vmatpush1.msra.mxu0 0.0
        %792 = vmatprep.subr.mxu0 0.0
        %793 = vmatpush1.msra.mxu0 0.0
        %794 = vmatprep.subr.mxu0 0.0
        %795 = vmatpush1.msra.mxu0 0.0
        %796 = vmatprep.mubr.f32.mxu0 0.0
        %797 = vmatmul.mubr.f32.gmra.mrb[0].mxu0 %v387
        %v798 = vpop.f32.mrb[0].mxu0
        %v799 = vadd.f32 %v315, %v798
        %v800 = vpop.f32.mrb[0].mxu0
        %801 = vmatprep.mubr.f32.mxu0 0.0
        %802 = vmatmul.mubr.f32.gmra.mrb[0].mxu0 %v390
        %v803 = vpop.f32.mrb[0].mxu0
        %v804 = vadd.f32 %v320, %v803
        %v805 = vpop.f32.mrb[0].mxu0
        %806 = vmatprep.mubr.f32.mxu0 0.0
        %807 = vmatmul.mubr.f32.gmra.mrb[0].mxu0 %v393
        %v808 = vpop.f32.mrb[0].mxu0
        %v809 = vadd.f32 %v325, %v808
        %v810 = vpop.f32.mrb[0].mxu0
        %811 = vmatprep.mubr.f32.mxu0 0.0
        %812 = vmatmul.mubr.f32.gmra.mrb[0].mxu0 %v396
        %v813 = vpop.f32.mrb[0].mxu0
        %v814 = vadd.f32 %v330, %v813
        %v815 = vpop.f32.mrb[0].mxu0
        %816 = vdwg.mxu0
        %v819 = vunpack.c.l.s4 1966171168
        %v820 = vunpack.c.0.s8 %v819
        %v821 = vlaneseq
        %v822 = vshrl.u32 %v821, 7
        %v823 = vsub.s32 %v820, %v822
        %v824 = vrot.slane %v799, %v823
        %v825 = vcombine.high %v824, %v824
        %v827 = vunpack.c.l.s4 1966171168
        %v828 = vunpack.c.0.s8 %v827
        %v829 = vlaneseq
        %v830 = vshrl.u32 %v829, 7
        %v831 = vsub.s32 %v828, %v830
        %v832 = vrot.slane %v824, %v831
        %v834 = vunpack.c.l.s4 1966171168
        %v835 = vunpack.c.0.s8 %v834
        %v836 = vlaneseq
        %v837 = vshrl.u32 %v836, 7
        %v838 = vsub.s32 %v835, %v837
        %v839 = vrot.slane %v825, %v838
        %842 = vst.msk [vmem:[#allocation2 + $0x1] sm:$0x1] %vm508, %v832
        %843 = vst.msk [vmem:[#allocation2 + $0x9] sm:$0x1] %vm508, %v839
        %v846 = vunpack.c.l.s4 1966171168
        %v847 = vunpack.c.0.s8 %v846
        %v848 = vlaneseq
        %v849 = vshrl.u32 %v848, 7
        %v850 = vsub.s32 %v847, %v849
        %v851 = vrot.slane %v804, %v850
        %v852 = vcombine.high %v851, %v851
        %v854 = vunpack.c.l.s4 1966171168
        %v855 = vunpack.c.0.s8 %v854
        %v856 = vlaneseq
        %v857 = vshrl.u32 %v856, 7
        %v858 = vsub.s32 %v855, %v857
        %v859 = vrot.slane %v851, %v858
        %v861 = vunpack.c.l.s4 1966171168
        %v862 = vunpack.c.0.s8 %v861
        %v863 = vlaneseq
        %v864 = vshrl.u32 %v863, 7
        %v865 = vsub.s32 %v862, %v864
        %v866 = vrot.slane %v852, %v865
        %869 = vst.msk [vmem:[#allocation3 + $0x1] sm:$0x1] %vm508, %v859
        %870 = vst.msk [vmem:[#allocation3 + $0x9] sm:$0x1] %vm508, %v866
        %v873 = vcombine.high %v809, %v809
        %v875 = vunpack.c.l.s4 1966171168
        %v876 = vunpack.c.0.s8 %v875
        %v877 = vlaneseq
        %v878 = vshrl.u32 %v877, 7
        %v879 = vsub.s32 %v876, %v878
        %v880 = vrot.slane %v809, %v879
        %v882 = vunpack.c.l.s4 1966171168
        %v883 = vunpack.c.0.s8 %v882
        %v884 = vlaneseq
        %v885 = vshrl.u32 %v884, 7
        %v886 = vsub.s32 %v883, %v885
        %v887 = vrot.slane %v873, %v886
        %v888 = vcombine.high %v880, %v880
        %v889 = vcombine.high %v887, %v887
        %v891 = vunpack.c.l.s4 1966171168
        %v892 = vunpack.c.0.s8 %v891
        %v893 = vlaneseq
        %v894 = vshrl.u32 %v893, 7
        %v895 = vsub.s32 %v892, %v894
        %v896 = vrot.slane %v880, %v895
        %v898 = vunpack.c.l.s4 1966171168
        %v899 = vunpack.c.0.s8 %v898
        %v900 = vlaneseq
        %v901 = vshrl.u32 %v900, 7
        %v902 = vsub.s32 %v899, %v901
        %v903 = vrot.slane %v887, %v902
        %v905 = vunpack.c.l.s4 1966171168
        %v906 = vunpack.c.0.s8 %v905
        %v907 = vlaneseq
        %v908 = vshrl.u32 %v907, 7
        %v909 = vsub.s32 %v906, %v908
        %v910 = vrot.slane %v888, %v909
        %v912 = vunpack.c.l.s4 1966171168
        %v913 = vunpack.c.0.s8 %v912
        %v914 = vlaneseq
        %v915 = vshrl.u32 %v914, 7
        %v916 = vsub.s32 %v913, %v915
        %v917 = vrot.slane %v889, %v916
        %v918 = vcombine.high %v896, %v896
        %v919 = vcombine.high %v903, %v903
        %v920 = vcombine.high %v910, %v910
        %v921 = vcombine.high %v917, %v917
        %v922 = vcombine.high %v814, %v814
        %v924 = vunpack.c.l.s4 1966171168
        %v925 = vunpack.c.0.s8 %v924
        %v926 = vlaneseq
        %v927 = vshrl.u32 %v926, 7
        %v928 = vsub.s32 %v925, %v927
        %v929 = vrot.slane %v814, %v928
        %v931 = vunpack.c.l.s4 1966171168
        %v932 = vunpack.c.0.s8 %v931
        %v933 = vlaneseq
        %v934 = vshrl.u32 %v933, 7
        %v935 = vsub.s32 %v932, %v934
        %v936 = vrot.slane %v922, %v935
        %v937 = vcombine.high %v929, %v929
        %v938 = vcombine.high %v936, %v936
        %v940 = vunpack.c.l.s4 1966171168
        %v941 = vunpack.c.0.s8 %v940
        %v942 = vlaneseq
        %v943 = vshrl.u32 %v942, 7
        %v944 = vsub.s32 %v941, %v943
        %v945 = vrot.slane %v929, %v944
        %v947 = vunpack.c.l.s4 1966171168
        %v948 = vunpack.c.0.s8 %v947
        %v949 = vlaneseq
        %v950 = vshrl.u32 %v949, 7
        %v951 = vsub.s32 %v948, %v950
        %v952 = vrot.slane %v936, %v951
        %v954 = vunpack.c.l.s4 1966171168
        %v955 = vunpack.c.0.s8 %v954
        %v956 = vlaneseq
        %v957 = vshrl.u32 %v956, 7
        %v958 = vsub.s32 %v955, %v957
        %v959 = vrot.slane %v937, %v958
        %v961 = vunpack.c.l.s4 1966171168
        %v962 = vunpack.c.0.s8 %v961
        %v963 = vlaneseq
        %v964 = vshrl.u32 %v963, 7
        %v965 = vsub.s32 %v962, %v964
        %v966 = vrot.slane %v938, %v965
        %v967 = vcombine.high %v945, %v945
        %v968 = vcombine.high %v952, %v952
        %v969 = vcombine.high %v959, %v959
        %v970 = vcombine.high %v966, %v966
        %987 = vst.msk [vmem:[#allocation4 + $0x1] sm:$0x1] %vm508, %v896
        %988 = vst.msk [vmem:[#allocation4 + $0x9] sm:$0x1] %vm508, %v910
        %989 = vst.msk [vmem:[#allocation4 + $0x11] sm:$0x1] %vm508, %v918
        %990 = vst.msk [vmem:[#allocation4 + $0x19] sm:$0x1] %vm508, %v920
        %991 = vst.msk [vmem:[#allocation4 + $0x21] sm:$0x1] %vm508, %v903
        %992 = vst.msk [vmem:[#allocation4 + $0x29] sm:$0x1] %vm508, %v917
        %993 = vst.msk [vmem:[#allocation4 + $0x31] sm:$0x1] %vm508, %v919
        %994 = vst.msk [vmem:[#allocation4 + $0x39] sm:$0x1] %vm508, %v921
        %995 = vst.msk [vmem:[#allocation4 + $0x41] sm:$0x1] %vm508, %v945
        %996 = vst.msk [vmem:[#allocation4 + $0x49] sm:$0x1] %vm508, %v959
        %997 = vst.msk [vmem:[#allocation4 + $0x51] sm:$0x1] %vm508, %v967
        %998 = vst.msk [vmem:[#allocation4 + $0x59] sm:$0x1] %vm508, %v969
        %999 = vst.msk [vmem:[#allocation4 + $0x61] sm:$0x1] %vm508, %v952
        %1000 = vst.msk [vmem:[#allocation4 + $0x69] sm:$0x1] %vm508, %v966
        %1001 = vst.msk [vmem:[#allocation4 + $0x71] sm:$0x1] %vm508, %v968
        %1002 = vst.msk [vmem:[#allocation4 + $0x79] sm:$0x1] %vm508, %v970
        %v1003 = vld [vmem:[%s249 + $0x2] sm:$0x1]
        %v1004 = vld [vmem:[%s249 + $0xa] sm:$0x1]
        %v1005 = vld [vmem:[%s249 + $0x12] sm:$0x1]
        %v1006 = vld [vmem:[%s249 + $0x1a] sm:$0x1]
        %v1007 = vld [vmem:[%s249 + $0x22] sm:$0x1]
        %v1008 = vld [vmem:[%s249 + $0x2a] sm:$0x1]
        %v1009 = vld [vmem:[%s249 + $0x32] sm:$0x1]
        %v1010 = vld [vmem:[%s249 + $0x3a] sm:$0x1]
        %v1011 = vld [vmem:[%s249 + $0x42] sm:$0x1]
        %v1012 = vld [vmem:[%s249 + $0x4a] sm:$0x1]
        %v1013 = vld [vmem:[%s249 + $0x52] sm:$0x1]
        %v1014 = vld [vmem:[%s249 + $0x5a] sm:$0x1]
        %v1015 = vld [vmem:[%s249 + $0x62] sm:$0x1]
        %v1016 = vld [vmem:[%s249 + $0x6a] sm:$0x1]
        %v1017 = vld [vmem:[%s249 + $0x72] sm:$0x1]
        %v1018 = vld [vmem:[%s249 + $0x7a] sm:$0x1]
        %v1035 = vrot.slane %v1004, 7
        %v1036 = vsel %vm349, %v1035, %v1003
        %v1037 = vrot.slane %v1005, 6
        %v1038 = vsel %vm352, %v1037, %v1036
        %v1039 = vrot.slane %v1006, 5
        %v1040 = vsel %vm355, %v1039, %v1038
        %v1041 = vrot.slane %v1007, 4
        %v1042 = vsel %vm358, %v1041, %v1040
        %v1043 = vrot.slane %v1008, 3
        %v1044 = vsel %vm361, %v1043, %v1042
        %v1045 = vrot.slane %v1009, 2
        %v1046 = vsel %vm364, %v1045, %v1044
        %v1047 = vrot.slane %v1010, 1
        %v1048 = vsel %vm367, %v1047, %v1046
        %v1049 = vrot.slane %v1012, 7
        %v1050 = vsel %vm349, %v1049, %v1011
        %v1051 = vrot.slane %v1013, 6
        %v1052 = vsel %vm352, %v1051, %v1050
        %v1053 = vrot.slane %v1014, 5
        %v1054 = vsel %vm355, %v1053, %v1052
        %v1055 = vrot.slane %v1015, 4
        %v1056 = vsel %vm358, %v1055, %v1054
        %v1057 = vrot.slane %v1016, 3
        %v1058 = vsel %vm361, %v1057, %v1056
        %v1059 = vrot.slane %v1017, 2
        %v1060 = vsel %vm364, %v1059, %v1058
        %v1061 = vrot.slane %v1018, 1
        %v1062 = vsel %vm367, %v1061, %v1060
        %1065 = vmatprep.subr.mxu0 0.0
        %1066 = vmatpush1.msra.mxu0 %v1048
        %1067 = vmatprep.subr.mxu0 0.0
        %1068 = vmatpush1.msra.mxu0 %v1062
        %1069 = vmatprep.subr.mxu0 0.0
        %1070 = vmatpush1.msra.mxu0 0.0
        %1071 = vmatprep.subr.mxu0 0.0
        %1072 = vmatpush1.msra.mxu0 0.0
        %1073 = vmatprep.subr.mxu0 0.0
        %1074 = vmatpush1.msra.mxu0 0.0
        %1075 = vmatprep.subr.mxu0 0.0
        %1076 = vmatpush1.msra.mxu0 0.0
        %1077 = vmatprep.subr.mxu0 0.0
        %1078 = vmatpush1.msra.mxu0 0.0
        %1079 = vmatprep.subr.mxu0 0.0
        %1080 = vmatpush1.msra.mxu0 0.0
        %1081 = vmatprep.subr.mxu0 0.0
        %1082 = vmatpush1.msra.mxu0 0.0
        %1083 = vmatprep.subr.mxu0 0.0
        %1084 = vmatpush1.msra.mxu0 0.0
        %1085 = vmatprep.subr.mxu0 0.0
        %1086 = vmatpush1.msra.mxu0 0.0
        %1087 = vmatprep.subr.mxu0 0.0
        %1088 = vmatpush1.msra.mxu0 0.0
        %1089 = vmatprep.subr.mxu0 0.0
        %1090 = vmatpush1.msra.mxu0 0.0
        %1091 = vmatprep.subr.mxu0 0.0
        %1092 = vmatpush1.msra.mxu0 0.0
        %1093 = vmatprep.subr.mxu0 0.0
        %1094 = vmatpush1.msra.mxu0 0.0
        %1095 = vmatprep.subr.mxu0 0.0
        %1096 = vmatpush1.msra.mxu0 0.0
        %1097 = vmatprep.subr.mxu0 0.0
        %1098 = vmatpush1.msra.mxu0 0.0
        %1099 = vmatprep.subr.mxu0 0.0
        %1100 = vmatpush1.msra.mxu0 0.0
        %1101 = vmatprep.subr.mxu0 0.0
        %1102 = vmatpush1.msra.mxu0 0.0
        %1103 = vmatprep.subr.mxu0 0.0
        %1104 = vmatpush1.msra.mxu0 0.0
        %1105 = vmatprep.subr.mxu0 0.0
        %1106 = vmatpush1.msra.mxu0 0.0
        %1107 = vmatprep.subr.mxu0 0.0
        %1108 = vmatpush1.msra.mxu0 0.0
        %1109 = vmatprep.subr.mxu0 0.0
        %1110 = vmatpush1.msra.mxu0 0.0
        %1111 = vmatprep.subr.mxu0 0.0
        %1112 = vmatpush1.msra.mxu0 0.0
        %1113 = vmatprep.subr.mxu0 0.0
        %1114 = vmatpush1.msra.mxu0 0.0
        %1115 = vmatprep.subr.mxu0 0.0
        %1116 = vmatpush1.msra.mxu0 0.0
        %1117 = vmatprep.subr.mxu0 0.0
        %1118 = vmatpush1.msra.mxu0 0.0
        %1119 = vmatprep.subr.mxu0 0.0
        %1120 = vmatpush1.msra.mxu0 0.0
        %1121 = vmatprep.subr.mxu0 0.0
        %1122 = vmatpush1.msra.mxu0 0.0
        %1123 = vmatprep.subr.mxu0 0.0
        %1124 = vmatpush1.msra.mxu0 0.0
        %1125 = vmatprep.subr.mxu0 0.0
        %1126 = vmatpush1.msra.mxu0 0.0
        %1127 = vmatprep.subr.mxu0 0.0
        %1128 = vmatpush1.msra.mxu0 0.0
        %1129 = vmatprep.mubr.f32.mxu0 0.0
        %1130 = vmatmul.mubr.f32.gmra.mrb[0].mxu0 %v387
        %v1131 = vpop.f32.mrb[0].mxu0
        %v1132 = vadd.f32 %v315, %v1131
        %v1133 = vpop.f32.mrb[0].mxu0
        %1134 = vmatprep.mubr.f32.mxu0 0.0
        %1135 = vmatmul.mubr.f32.gmra.mrb[0].mxu0 %v390
        %v1136 = vpop.f32.mrb[0].mxu0
        %v1137 = vadd.f32 %v320, %v1136
        %v1138 = vpop.f32.mrb[0].mxu0
        %1139 = vmatprep.mubr.f32.mxu0 0.0
        %1140 = vmatmul.mubr.f32.gmra.mrb[0].mxu0 %v393
        %v1141 = vpop.f32.mrb[0].mxu0
        %v1142 = vadd.f32 %v325, %v1141
        %v1143 = vpop.f32.mrb[0].mxu0
        %1144 = vmatprep.mubr.f32.mxu0 0.0
        %1145 = vmatmul.mubr.f32.gmra.mrb[0].mxu0 %v396
        %v1146 = vpop.f32.mrb[0].mxu0
        %v1147 = vadd.f32 %v330, %v1146
        %v1148 = vpop.f32.mrb[0].mxu0
        %1149 = vdwg.mxu0
        %v1152 = vunpack.c.l.s4 1966171168
        %v1153 = vunpack.c.0.s8 %v1152
        %v1154 = vlaneseq
        %v1155 = vshrl.u32 %v1154, 7
        %v1156 = vsub.s32 %v1153, %v1155
        %v1157 = vrot.slane %v1132, %v1156
        %v1158 = vcombine.high %v1157, %v1157
        %v1160 = vunpack.c.l.s4 1966171168
        %v1161 = vunpack.c.0.s8 %v1160
        %v1162 = vlaneseq
        %v1163 = vshrl.u32 %v1162, 7
        %v1164 = vsub.s32 %v1161, %v1163
        %v1165 = vrot.slane %v1157, %v1164
        %v1167 = vunpack.c.l.s4 1966171168
        %v1168 = vunpack.c.0.s8 %v1167
        %v1169 = vlaneseq
        %v1170 = vshrl.u32 %v1169, 7
        %v1171 = vsub.s32 %v1168, %v1170
        %v1172 = vrot.slane %v1158, %v1171
        %1175 = vst.msk [vmem:[#allocation2 + $0x2] sm:$0x1] %vm508, %v1165
        %1176 = vst.msk [vmem:[#allocation2 + $0xa] sm:$0x1] %vm508, %v1172
        %v1179 = vunpack.c.l.s4 1966171168
        %v1180 = vunpack.c.0.s8 %v1179
        %v1181 = vlaneseq
        %v1182 = vshrl.u32 %v1181, 7
        %v1183 = vsub.s32 %v1180, %v1182
        %v1184 = vrot.slane %v1137, %v1183
        %v1185 = vcombine.high %v1184, %v1184
        %v1187 = vunpack.c.l.s4 1966171168
        %v1188 = vunpack.c.0.s8 %v1187
        %v1189 = vlaneseq
        %v1190 = vshrl.u32 %v1189, 7
        %v1191 = vsub.s32 %v1188, %v1190
        %v1192 = vrot.slane %v1184, %v1191
        %v1194 = vunpack.c.l.s4 1966171168
        %v1195 = vunpack.c.0.s8 %v1194
        %v1196 = vlaneseq
        %v1197 = vshrl.u32 %v1196, 7
        %v1198 = vsub.s32 %v1195, %v1197
        %v1199 = vrot.slane %v1185, %v1198
        %1202 = vst.msk [vmem:[#allocation3 + $0x2] sm:$0x1] %vm508, %v1192
        %1203 = vst.msk [vmem:[#allocation3 + $0xa] sm:$0x1] %vm508, %v1199
        %v1206 = vcombine.high %v1142, %v1142
        %v1208 = vunpack.c.l.s4 1966171168
        %v1209 = vunpack.c.0.s8 %v1208
        %v1210 = vlaneseq
        %v1211 = vshrl.u32 %v1210, 7
        %v1212 = vsub.s32 %v1209, %v1211
        %v1213 = vrot.slane %v1142, %v1212
        %v1215 = vunpack.c.l.s4 1966171168
        %v1216 = vunpack.c.0.s8 %v1215
        %v1217 = vlaneseq
        %v1218 = vshrl.u32 %v1217, 7
        %v1219 = vsub.s32 %v1216, %v1218
        %v1220 = vrot.slane %v1206, %v1219
        %v1221 = vcombine.high %v1213, %v1213
        %v1222 = vcombine.high %v1220, %v1220
        %v1224 = vunpack.c.l.s4 1966171168
        %v1225 = vunpack.c.0.s8 %v1224
        %v1226 = vlaneseq
        %v1227 = vshrl.u32 %v1226, 7
        %v1228 = vsub.s32 %v1225, %v1227
        %v1229 = vrot.slane %v1213, %v1228
        %v1231 = vunpack.c.l.s4 1966171168
        %v1232 = vunpack.c.0.s8 %v1231
        %v1233 = vlaneseq
        %v1234 = vshrl.u32 %v1233, 7
        %v1235 = vsub.s32 %v1232, %v1234
        %v1236 = vrot.slane %v1220, %v1235
        %v1238 = vunpack.c.l.s4 1966171168
        %v1239 = vunpack.c.0.s8 %v1238
        %v1240 = vlaneseq
        %v1241 = vshrl.u32 %v1240, 7
        %v1242 = vsub.s32 %v1239, %v1241
        %v1243 = vrot.slane %v1221, %v1242
        %v1245 = vunpack.c.l.s4 1966171168
        %v1246 = vunpack.c.0.s8 %v1245
        %v1247 = vlaneseq
        %v1248 = vshrl.u32 %v1247, 7
        %v1249 = vsub.s32 %v1246, %v1248
        %v1250 = vrot.slane %v1222, %v1249
        %v1251 = vcombine.high %v1229, %v1229
        %v1252 = vcombine.high %v1236, %v1236
        %v1253 = vcombine.high %v1243, %v1243
        %v1254 = vcombine.high %v1250, %v1250
        %v1255 = vcombine.high %v1147, %v1147
        %v1257 = vunpack.c.l.s4 1966171168
        %v1258 = vunpack.c.0.s8 %v1257
        %v1259 = vlaneseq
        %v1260 = vshrl.u32 %v1259, 7
        %v1261 = vsub.s32 %v1258, %v1260
        %v1262 = vrot.slane %v1147, %v1261
        %v1264 = vunpack.c.l.s4 1966171168
        %v1265 = vunpack.c.0.s8 %v1264
        %v1266 = vlaneseq
        %v1267 = vshrl.u32 %v1266, 7
        %v1268 = vsub.s32 %v1265, %v1267
        %v1269 = vrot.slane %v1255, %v1268
        %v1270 = vcombine.high %v1262, %v1262
        %v1271 = vcombine.high %v1269, %v1269
        %v1273 = vunpack.c.l.s4 1966171168
        %v1274 = vunpack.c.0.s8 %v1273
        %v1275 = vlaneseq
        %v1276 = vshrl.u32 %v1275, 7
        %v1277 = vsub.s32 %v1274, %v1276
        %v1278 = vrot.slane %v1262, %v1277
        %v1280 = vunpack.c.l.s4 1966171168
        %v1281 = vunpack.c.0.s8 %v1280
        %v1282 = vlaneseq
        %v1283 = vshrl.u32 %v1282, 7
        %v1284 = vsub.s32 %v1281, %v1283
        %v1285 = vrot.slane %v1269, %v1284
        %v1287 = vunpack.c.l.s4 1966171168
        %v1288 = vunpack.c.0.s8 %v1287
        %v1289 = vlaneseq
        %v1290 = vshrl.u32 %v1289, 7
        %v1291 = vsub.s32 %v1288, %v1290
        %v1292 = vrot.slane %v1270, %v1291
        %v1294 = vunpack.c.l.s4 1966171168
        %v1295 = vunpack.c.0.s8 %v1294
        %v1296 = vlaneseq
        %v1297 = vshrl.u32 %v1296, 7
        %v1298 = vsub.s32 %v1295, %v1297
        %v1299 = vrot.slane %v1271, %v1298
        %v1300 = vcombine.high %v1278, %v1278
        %v1301 = vcombine.high %v1285, %v1285
        %v1302 = vcombine.high %v1292, %v1292
        %v1303 = vcombine.high %v1299, %v1299
        %1320 = vst.msk [vmem:[#allocation4 + $0x2] sm:$0x1] %vm508, %v1229
        %1321 = vst.msk [vmem:[#allocation4 + $0xa] sm:$0x1] %vm508, %v1243
        %1322 = vst.msk [vmem:[#allocation4 + $0x12] sm:$0x1] %vm508, %v1251
        %1323 = vst.msk [vmem:[#allocation4 + $0x1a] sm:$0x1] %vm508, %v1253
        %1324 = vst.msk [vmem:[#allocation4 + $0x22] sm:$0x1] %vm508, %v1236
        %1325 = vst.msk [vmem:[#allocation4 + $0x2a] sm:$0x1] %vm508, %v1250
        %1326 = vst.msk [vmem:[#allocation4 + $0x32] sm:$0x1] %vm508, %v1252
        %1327 = vst.msk [vmem:[#allocation4 + $0x3a] sm:$0x1] %vm508, %v1254
        %1328 = vst.msk [vmem:[#allocation4 + $0x42] sm:$0x1] %vm508, %v1278
        %1329 = vst.msk [vmem:[#allocation4 + $0x4a] sm:$0x1] %vm508, %v1292
        %1330 = vst.msk [vmem:[#allocation4 + $0x52] sm:$0x1] %vm508, %v1300
        %1331 = vst.msk [vmem:[#allocation4 + $0x5a] sm:$0x1] %vm508, %v1302
        %1332 = vst.msk [vmem:[#allocation4 + $0x62] sm:$0x1] %vm508, %v1285
        %1333 = vst.msk [vmem:[#allocation4 + $0x6a] sm:$0x1] %vm508, %v1299
        %1334 = vst.msk [vmem:[#allocation4 + $0x72] sm:$0x1] %vm508, %v1301
        %1335 = vst.msk [vmem:[#allocation4 + $0x7a] sm:$0x1] %vm508, %v1303
        %v1336 = vld [vmem:[%s249 + $0x3] sm:$0x1]
        %v1337 = vld [vmem:[%s249 + $0xb] sm:$0x1]
        %v1338 = vld [vmem:[%s249 + $0x13] sm:$0x1]
        %v1339 = vld [vmem:[%s249 + $0x1b] sm:$0x1]
        %v1340 = vld [vmem:[%s249 + $0x23] sm:$0x1]
        %v1341 = vld [vmem:[%s249 + $0x2b] sm:$0x1]
        %v1342 = vld [vmem:[%s249 + $0x33] sm:$0x1]
        %v1343 = vld [vmem:[%s249 + $0x3b] sm:$0x1]
        %v1344 = vld [vmem:[%s249 + $0x43] sm:$0x1]
        %v1345 = vld [vmem:[%s249 + $0x4b] sm:$0x1]
        %v1346 = vld [vmem:[%s249 + $0x53] sm:$0x1]
        %v1347 = vld [vmem:[%s249 + $0x5b] sm:$0x1]
        %v1348 = vld [vmem:[%s249 + $0x63] sm:$0x1]
        %v1349 = vld [vmem:[%s249 + $0x6b] sm:$0x1]
        %v1350 = vld [vmem:[%s249 + $0x73] sm:$0x1]
        %v1351 = vld [vmem:[%s249 + $0x7b] sm:$0x1]
        %v1368 = vrot.slane %v1337, 7
        %v1369 = vsel %vm349, %v1368, %v1336
        %v1370 = vrot.slane %v1338, 6
        %v1371 = vsel %vm352, %v1370, %v1369
        %v1372 = vrot.slane %v1339, 5
        %v1373 = vsel %vm355, %v1372, %v1371
        %v1374 = vrot.slane %v1340, 4
        %v1375 = vsel %vm358, %v1374, %v1373
        %v1376 = vrot.slane %v1341, 3
        %v1377 = vsel %vm361, %v1376, %v1375
        %v1378 = vrot.slane %v1342, 2
        %v1379 = vsel %vm364, %v1378, %v1377
        %v1380 = vrot.slane %v1343, 1
        %v1381 = vsel %vm367, %v1380, %v1379
        %v1382 = vrot.slane %v1345, 7
        %v1383 = vsel %vm349, %v1382, %v1344
        %v1384 = vrot.slane %v1346, 6
        %v1385 = vsel %vm352, %v1384, %v1383
        %v1386 = vrot.slane %v1347, 5
        %v1387 = vsel %vm355, %v1386, %v1385
        %v1388 = vrot.slane %v1348, 4
        %v1389 = vsel %vm358, %v1388, %v1387
        %v1390 = vrot.slane %v1349, 3
        %v1391 = vsel %vm361, %v1390, %v1389
        %v1392 = vrot.slane %v1350, 2
        %v1393 = vsel %vm364, %v1392, %v1391
        %v1394 = vrot.slane %v1351, 1
        %v1395 = vsel %vm367, %v1394, %v1393
        %1398 = vmatprep.subr.mxu0 0.0
        %1399 = vmatpush1.msra.mxu0 %v1381
        %1400 = vmatprep.subr.mxu0 0.0
        %1401 = vmatpush1.msra.mxu0 %v1395
        %1402 = vmatprep.subr.mxu0 0.0
        %1403 = vmatpush1.msra.mxu0 0.0
        %1404 = vmatprep.subr.mxu0 0.0
        %1405 = vmatpush1.msra.mxu0 0.0
        %1406 = vmatprep.subr.mxu0 0.0
        %1407 = vmatpush1.msra.mxu0 0.0
        %1408 = vmatprep.subr.mxu0 0.0
        %1409 = vmatpush1.msra.mxu0 0.0
        %1410 = vmatprep.subr.mxu0 0.0
        %1411 = vmatpush1.msra.mxu0 0.0
        %1412 = vmatprep.subr.mxu0 0.0
        %1413 = vmatpush1.msra.mxu0 0.0
        %1414 = vmatprep.subr.mxu0 0.0
        %1415 = vmatpush1.msra.mxu0 0.0
        %1416 = vmatprep.subr.mxu0 0.0
        %1417 = vmatpush1.msra.mxu0 0.0
        %1418 = vmatprep.subr.mxu0 0.0
        %1419 = vmatpush1.msra.mxu0 0.0
        %1420 = vmatprep.subr.mxu0 0.0
        %1421 = vmatpush1.msra.mxu0 0.0
        %1422 = vmatprep.subr.mxu0 0.0
        %1423 = vmatpush1.msra.mxu0 0.0
        %1424 = vmatprep.subr.mxu0 0.0
        %1425 = vmatpush1.msra.mxu0 0.0
        %1426 = vmatprep.subr.mxu0 0.0
        %1427 = vmatpush1.msra.mxu0 0.0
        %1428 = vmatprep.subr.mxu0 0.0
        %1429 = vmatpush1.msra.mxu0 0.0
        %1430 = vmatprep.subr.mxu0 0.0
        %1431 = vmatpush1.msra.mxu0 0.0
        %1432 = vmatprep.subr.mxu0 0.0
        %1433 = vmatpush1.msra.mxu0 0.0
        %1434 = vmatprep.subr.mxu0 0.0
        %1435 = vmatpush1.msra.mxu0 0.0
        %1436 = vmatprep.subr.mxu0 0.0
        %1437 = vmatpush1.msra.mxu0 0.0
        %1438 = vmatprep.subr.mxu0 0.0
        %1439 = vmatpush1.msra.mxu0 0.0
        %1440 = vmatprep.subr.mxu0 0.0
        %1441 = vmatpush1.msra.mxu0 0.0
        %1442 = vmatprep.subr.mxu0 0.0
        %1443 = vmatpush1.msra.mxu0 0.0
        %1444 = vmatprep.subr.mxu0 0.0
        %1445 = vmatpush1.msra.mxu0 0.0
        %1446 = vmatprep.subr.mxu0 0.0
        %1447 = vmatpush1.msra.mxu0 0.0
        %1448 = vmatprep.subr.mxu0 0.0
        %1449 = vmatpush1.msra.mxu0 0.0
        %1450 = vmatprep.subr.mxu0 0.0
        %1451 = vmatpush1.msra.mxu0 0.0
        %1452 = vmatprep.subr.mxu0 0.0
        %1453 = vmatpush1.msra.mxu0 0.0
        %1454 = vmatprep.subr.mxu0 0.0
        %1455 = vmatpush1.msra.mxu0 0.0
        %1456 = vmatprep.subr.mxu0 0.0
        %1457 = vmatpush1.msra.mxu0 0.0
        %1458 = vmatprep.subr.mxu0 0.0
        %1459 = vmatpush1.msra.mxu0 0.0
        %1460 = vmatprep.subr.mxu0 0.0
        %1461 = vmatpush1.msra.mxu0 0.0
        %1462 = vmatprep.mubr.f32.mxu0 0.0
        %1463 = vmatmul.mubr.f32.gmra.mrb[0].mxu0 %v387
        %v1464 = vpop.f32.mrb[0].mxu0
        %v1465 = vadd.f32 %v315, %v1464
        %v1466 = vpop.f32.mrb[0].mxu0
        %1467 = vmatprep.mubr.f32.mxu0 0.0
        %1468 = vmatmul.mubr.f32.gmra.mrb[0].mxu0 %v390
        %v1469 = vpop.f32.mrb[0].mxu0
        %v1470 = vadd.f32 %v320, %v1469
        %v1471 = vpop.f32.mrb[0].mxu0
        %1472 = vmatprep.mubr.f32.mxu0 0.0
        %1473 = vmatmul.mubr.f32.gmra.mrb[0].mxu0 %v393
        %v1474 = vpop.f32.mrb[0].mxu0
        %v1475 = vadd.f32 %v325, %v1474
        %v1476 = vpop.f32.mrb[0].mxu0
        %1477 = vmatprep.mubr.f32.mxu0 0.0
        %1478 = vmatmul.mubr.f32.gmra.mrb[0].mxu0 %v396
        %v1479 = vpop.f32.mrb[0].mxu0
        %v1480 = vadd.f32 %v330, %v1479
        %v1481 = vpop.f32.mrb[0].mxu0
        %1482 = vdwg.mxu0
        %v1485 = vunpack.c.l.s4 1966171168
        %v1486 = vunpack.c.0.s8 %v1485
        %v1487 = vlaneseq
        %v1488 = vshrl.u32 %v1487, 7
        %v1489 = vsub.s32 %v1486, %v1488
        %v1490 = vrot.slane %v1465, %v1489
        %v1491 = vcombine.high %v1490, %v1490
        %v1493 = vunpack.c.l.s4 1966171168
        %v1494 = vunpack.c.0.s8 %v1493
        %v1495 = vlaneseq
        %v1496 = vshrl.u32 %v1495, 7
        %v1497 = vsub.s32 %v1494, %v1496
        %v1498 = vrot.slane %v1490, %v1497
        %v1500 = vunpack.c.l.s4 1966171168
        %v1501 = vunpack.c.0.s8 %v1500
        %v1502 = vlaneseq
        %v1503 = vshrl.u32 %v1502, 7
        %v1504 = vsub.s32 %v1501, %v1503
        %v1505 = vrot.slane %v1491, %v1504
        %1508 = vst.msk [vmem:[#allocation2 + $0x3] sm:$0x1] %vm508, %v1498
        %1509 = vst.msk [vmem:[#allocation2 + $0xb] sm:$0x1] %vm508, %v1505
        %v1512 = vunpack.c.l.s4 1966171168
        %v1513 = vunpack.c.0.s8 %v1512
        %v1514 = vlaneseq
        %v1515 = vshrl.u32 %v1514, 7
        %v1516 = vsub.s32 %v1513, %v1515
        %v1517 = vrot.slane %v1470, %v1516
        %v1518 = vcombine.high %v1517, %v1517
        %v1520 = vunpack.c.l.s4 1966171168
        %v1521 = vunpack.c.0.s8 %v1520
        %v1522 = vlaneseq
        %v1523 = vshrl.u32 %v1522, 7
        %v1524 = vsub.s32 %v1521, %v1523
        %v1525 = vrot.slane %v1517, %v1524
        %v1527 = vunpack.c.l.s4 1966171168
        %v1528 = vunpack.c.0.s8 %v1527
        %v1529 = vlaneseq
        %v1530 = vshrl.u32 %v1529, 7
        %v1531 = vsub.s32 %v1528, %v1530
        %v1532 = vrot.slane %v1518, %v1531
        %1535 = vst.msk [vmem:[#allocation3 + $0x3] sm:$0x1] %vm508, %v1525
        %1536 = vst.msk [vmem:[#allocation3 + $0xb] sm:$0x1] %vm508, %v1532
        %v1539 = vcombine.high %v1475, %v1475
        %v1541 = vunpack.c.l.s4 1966171168
        %v1542 = vunpack.c.0.s8 %v1541
        %v1543 = vlaneseq
        %v1544 = vshrl.u32 %v1543, 7
        %v1545 = vsub.s32 %v1542, %v1544
        %v1546 = vrot.slane %v1475, %v1545
        %v1548 = vunpack.c.l.s4 1966171168
        %v1549 = vunpack.c.0.s8 %v1548
        %v1550 = vlaneseq
        %v1551 = vshrl.u32 %v1550, 7
        %v1552 = vsub.s32 %v1549, %v1551
        %v1553 = vrot.slane %v1539, %v1552
        %v1554 = vcombine.high %v1546, %v1546
        %v1555 = vcombine.high %v1553, %v1553
        %v1557 = vunpack.c.l.s4 1966171168
        %v1558 = vunpack.c.0.s8 %v1557
        %v1559 = vlaneseq
        %v1560 = vshrl.u32 %v1559, 7
        %v1561 = vsub.s32 %v1558, %v1560
        %v1562 = vrot.slane %v1546, %v1561
        %v1564 = vunpack.c.l.s4 1966171168
        %v1565 = vunpack.c.0.s8 %v1564
        %v1566 = vlaneseq
        %v1567 = vshrl.u32 %v1566, 7
        %v1568 = vsub.s32 %v1565, %v1567
        %v1569 = vrot.slane %v1553, %v1568
        %v1571 = vunpack.c.l.s4 1966171168
        %v1572 = vunpack.c.0.s8 %v1571
        %v1573 = vlaneseq
        %v1574 = vshrl.u32 %v1573, 7
        %v1575 = vsub.s32 %v1572, %v1574
        %v1576 = vrot.slane %v1554, %v1575
        %v1578 = vunpack.c.l.s4 1966171168
        %v1579 = vunpack.c.0.s8 %v1578
        %v1580 = vlaneseq
        %v1581 = vshrl.u32 %v1580, 7
        %v1582 = vsub.s32 %v1579, %v1581
        %v1583 = vrot.slane %v1555, %v1582
        %v1584 = vcombine.high %v1562, %v1562
        %v1585 = vcombine.high %v1569, %v1569
        %v1586 = vcombine.high %v1576, %v1576
        %v1587 = vcombine.high %v1583, %v1583
        %v1588 = vcombine.high %v1480, %v1480
        %v1590 = vunpack.c.l.s4 1966171168
        %v1591 = vunpack.c.0.s8 %v1590
        %v1592 = vlaneseq
        %v1593 = vshrl.u32 %v1592, 7
        %v1594 = vsub.s32 %v1591, %v1593
        %v1595 = vrot.slane %v1480, %v1594
        %v1597 = vunpack.c.l.s4 1966171168
        %v1598 = vunpack.c.0.s8 %v1597
        %v1599 = vlaneseq
        %v1600 = vshrl.u32 %v1599, 7
        %v1601 = vsub.s32 %v1598, %v1600
        %v1602 = vrot.slane %v1588, %v1601
        %v1603 = vcombine.high %v1595, %v1595
        %v1604 = vcombine.high %v1602, %v1602
        %v1606 = vunpack.c.l.s4 1966171168
        %v1607 = vunpack.c.0.s8 %v1606
        %v1608 = vlaneseq
        %v1609 = vshrl.u32 %v1608, 7
        %v1610 = vsub.s32 %v1607, %v1609
        %v1611 = vrot.slane %v1595, %v1610
        %v1613 = vunpack.c.l.s4 1966171168
        %v1614 = vunpack.c.0.s8 %v1613
        %v1615 = vlaneseq
        %v1616 = vshrl.u32 %v1615, 7
        %v1617 = vsub.s32 %v1614, %v1616
        %v1618 = vrot.slane %v1602, %v1617
        %v1620 = vunpack.c.l.s4 1966171168
        %v1621 = vunpack.c.0.s8 %v1620
        %v1622 = vlaneseq
        %v1623 = vshrl.u32 %v1622, 7
        %v1624 = vsub.s32 %v1621, %v1623
        %v1625 = vrot.slane %v1603, %v1624
        %v1627 = vunpack.c.l.s4 1966171168
        %v1628 = vunpack.c.0.s8 %v1627
        %v1629 = vlaneseq
        %v1630 = vshrl.u32 %v1629, 7
        %v1631 = vsub.s32 %v1628, %v1630
        %v1632 = vrot.slane %v1604, %v1631
        %v1633 = vcombine.high %v1611, %v1611
        %v1634 = vcombine.high %v1618, %v1618
        %v1635 = vcombine.high %v1625, %v1625
        %v1636 = vcombine.high %v1632, %v1632
        %1653 = vst.msk [vmem:[#allocation4 + $0x3] sm:$0x1] %vm508, %v1562
        %1654 = vst.msk [vmem:[#allocation4 + $0xb] sm:$0x1] %vm508, %v1576
        %1655 = vst.msk [vmem:[#allocation4 + $0x13] sm:$0x1] %vm508, %v1584
        %1656 = vst.msk [vmem:[#allocation4 + $0x1b] sm:$0x1] %vm508, %v1586
        %1657 = vst.msk [vmem:[#allocation4 + $0x23] sm:$0x1] %vm508, %v1569
        %1658 = vst.msk [vmem:[#allocation4 + $0x2b] sm:$0x1] %vm508, %v1583
        %1659 = vst.msk [vmem:[#allocation4 + $0x33] sm:$0x1] %vm508, %v1585
        %1660 = vst.msk [vmem:[#allocation4 + $0x3b] sm:$0x1] %vm508, %v1587
        %1661 = vst.msk [vmem:[#allocation4 + $0x43] sm:$0x1] %vm508, %v1611
        %1662 = vst.msk [vmem:[#allocation4 + $0x4b] sm:$0x1] %vm508, %v1625
        %1663 = vst.msk [vmem:[#allocation4 + $0x53] sm:$0x1] %vm508, %v1633
        %1664 = vst.msk [vmem:[#allocation4 + $0x5b] sm:$0x1] %vm508, %v1635
        %1665 = vst.msk [vmem:[#allocation4 + $0x63] sm:$0x1] %vm508, %v1618
        %1666 = vst.msk [vmem:[#allocation4 + $0x6b] sm:$0x1] %vm508, %v1632
        %1667 = vst.msk [vmem:[#allocation4 + $0x73] sm:$0x1] %vm508, %v1634
        %1668 = vst.msk [vmem:[#allocation4 + $0x7b] sm:$0x1] %vm508, %v1636
        %v1669 = vld [vmem:[%s249 + $0x4] sm:$0x1]
        %v1670 = vld [vmem:[%s249 + $0xc] sm:$0x1]
        %v1671 = vld [vmem:[%s249 + $0x14] sm:$0x1]
        %v1672 = vld [vmem:[%s249 + $0x1c] sm:$0x1]
        %v1673 = vld [vmem:[%s249 + $0x24] sm:$0x1]
        %v1674 = vld [vmem:[%s249 + $0x2c] sm:$0x1]
        %v1675 = vld [vmem:[%s249 + $0x34] sm:$0x1]
        %v1676 = vld [vmem:[%s249 + $0x3c] sm:$0x1]
        %v1677 = vld [vmem:[%s249 + $0x44] sm:$0x1]
        %v1678 = vld [vmem:[%s249 + $0x4c] sm:$0x1]
        %v1679 = vld [vmem:[%s249 + $0x54] sm:$0x1]
        %v1680 = vld [vmem:[%s249 + $0x5c] sm:$0x1]
        %v1681 = vld [vmem:[%s249 + $0x64] sm:$0x1]
        %v1682 = vld [vmem:[%s249 + $0x6c] sm:$0x1]
        %v1683 = vld [vmem:[%s249 + $0x74] sm:$0x1]
        %v1684 = vld [vmem:[%s249 + $0x7c] sm:$0x1]
        %v1701 = vrot.slane %v1670, 7
        %v1702 = vsel %vm349, %v1701, %v1669
        %v1703 = vrot.slane %v1671, 6
        %v1704 = vsel %vm352, %v1703, %v1702
        %v1705 = vrot.slane %v1672, 5
        %v1706 = vsel %vm355, %v1705, %v1704
        %v1707 = vrot.slane %v1673, 4
        %v1708 = vsel %vm358, %v1707, %v1706
        %v1709 = vrot.slane %v1674, 3
        %v1710 = vsel %vm361, %v1709, %v1708
        %v1711 = vrot.slane %v1675, 2
        %v1712 = vsel %vm364, %v1711, %v1710
        %v1713 = vrot.slane %v1676, 1
        %v1714 = vsel %vm367, %v1713, %v1712
        %v1715 = vrot.slane %v1678, 7
        %v1716 = vsel %vm349, %v1715, %v1677
        %v1717 = vrot.slane %v1679, 6
        %v1718 = vsel %vm352, %v1717, %v1716
        %v1719 = vrot.slane %v1680, 5
        %v1720 = vsel %vm355, %v1719, %v1718
        %v1721 = vrot.slane %v1681, 4
        %v1722 = vsel %vm358, %v1721, %v1720
        %v1723 = vrot.slane %v1682, 3
        %v1724 = vsel %vm361, %v1723, %v1722
        %v1725 = vrot.slane %v1683, 2
        %v1726 = vsel %vm364, %v1725, %v1724
        %v1727 = vrot.slane %v1684, 1
        %v1728 = vsel %vm367, %v1727, %v1726
        %1731 = vmatprep.subr.mxu0 0.0
        %1732 = vmatpush1.msra.mxu0 %v1714
        %1733 = vmatprep.subr.mxu0 0.0
        %1734 = vmatpush1.msra.mxu0 %v1728
        %1735 = vmatprep.subr.mxu0 0.0
        %1736 = vmatpush1.msra.mxu0 0.0
        %1737 = vmatprep.subr.mxu0 0.0
        %1738 = vmatpush1.msra.mxu0 0.0
        %1739 = vmatprep.subr.mxu0 0.0
        %1740 = vmatpush1.msra.mxu0 0.0
        %1741 = vmatprep.subr.mxu0 0.0
        %1742 = vmatpush1.msra.mxu0 0.0
        %1743 = vmatprep.subr.mxu0 0.0
        %1744 = vmatpush1.msra.mxu0 0.0
        %1745 = vmatprep.subr.mxu0 0.0
        %1746 = vmatpush1.msra.mxu0 0.0
        %1747 = vmatprep.subr.mxu0 0.0
        %1748 = vmatpush1.msra.mxu0 0.0
        %1749 = vmatprep.subr.mxu0 0.0
        %1750 = vmatpush1.msra.mxu0 0.0
        %1751 = vmatprep.subr.mxu0 0.0
        %1752 = vmatpush1.msra.mxu0 0.0
        %1753 = vmatprep.subr.mxu0 0.0
        %1754 = vmatpush1.msra.mxu0 0.0
        %1755 = vmatprep.subr.mxu0 0.0
        %1756 = vmatpush1.msra.mxu0 0.0
        %1757 = vmatprep.subr.mxu0 0.0
        %1758 = vmatpush1.msra.mxu0 0.0
        %1759 = vmatprep.subr.mxu0 0.0
        %1760 = vmatpush1.msra.mxu0 0.0
        %1761 = vmatprep.subr.mxu0 0.0
        %1762 = vmatpush1.msra.mxu0 0.0
        %1763 = vmatprep.subr.mxu0 0.0
        %1764 = vmatpush1.msra.mxu0 0.0
        %1765 = vmatprep.subr.mxu0 0.0
        %1766 = vmatpush1.msra.mxu0 0.0
        %1767 = vmatprep.subr.mxu0 0.0
        %1768 = vmatpush1.msra.mxu0 0.0
        %1769 = vmatprep.subr.mxu0 0.0
        %1770 = vmatpush1.msra.mxu0 0.0
        %1771 = vmatprep.subr.mxu0 0.0
        %1772 = vmatpush1.msra.mxu0 0.0
        %1773 = vmatprep.subr.mxu0 0.0
        %1774 = vmatpush1.msra.mxu0 0.0
        %1775 = vmatprep.subr.mxu0 0.0
        %1776 = vmatpush1.msra.mxu0 0.0
        %1777 = vmatprep.subr.mxu0 0.0
        %1778 = vmatpush1.msra.mxu0 0.0
        %1779 = vmatprep.subr.mxu0 0.0
        %1780 = vmatpush1.msra.mxu0 0.0
        %1781 = vmatprep.subr.mxu0 0.0
        %1782 = vmatpush1.msra.mxu0 0.0
        %1783 = vmatprep.subr.mxu0 0.0
        %1784 = vmatpush1.msra.mxu0 0.0
        %1785 = vmatprep.subr.mxu0 0.0
        %1786 = vmatpush1.msra.mxu0 0.0
        %1787 = vmatprep.subr.mxu0 0.0
        %1788 = vmatpush1.msra.mxu0 0.0
        %1789 = vmatprep.subr.mxu0 0.0
        %1790 = vmatpush1.msra.mxu0 0.0
        %1791 = vmatprep.subr.mxu0 0.0
        %1792 = vmatpush1.msra.mxu0 0.0
        %1793 = vmatprep.subr.mxu0 0.0
        %1794 = vmatpush1.msra.mxu0 0.0
        %1795 = vmatprep.mubr.f32.mxu0 0.0
        %1796 = vmatmul.mubr.f32.gmra.mrb[0].mxu0 %v387
        %v1797 = vpop.f32.mrb[0].mxu0
        %v1798 = vadd.f32 %v315, %v1797
        %v1799 = vpop.f32.mrb[0].mxu0
        %1800 = vmatprep.mubr.f32.mxu0 0.0
        %1801 = vmatmul.mubr.f32.gmra.mrb[0].mxu0 %v390
        %v1802 = vpop.f32.mrb[0].mxu0
        %v1803 = vadd.f32 %v320, %v1802
        %v1804 = vpop.f32.mrb[0].mxu0
        %1805 = vmatprep.mubr.f32.mxu0 0.0
        %1806 = vmatmul.mubr.f32.gmra.mrb[0].mxu0 %v393
        %v1807 = vpop.f32.mrb[0].mxu0
        %v1808 = vadd.f32 %v325, %v1807
        %v1809 = vpop.f32.mrb[0].mxu0
        %1810 = vmatprep.mubr.f32.mxu0 0.0
        %1811 = vmatmul.mubr.f32.gmra.mrb[0].mxu0 %v396
        %v1812 = vpop.f32.mrb[0].mxu0
        %v1813 = vadd.f32 %v330, %v1812
        %v1814 = vpop.f32.mrb[0].mxu0
        %1815 = vdwg.mxu0
        %v1818 = vunpack.c.l.s4 1966171168
        %v1819 = vunpack.c.0.s8 %v1818
        %v1820 = vlaneseq
        %v1821 = vshrl.u32 %v1820, 7
        %v1822 = vsub.s32 %v1819, %v1821
        %v1823 = vrot.slane %v1798, %v1822
        %v1824 = vcombine.high %v1823, %v1823
        %v1826 = vunpack.c.l.s4 1966171168
        %v1827 = vunpack.c.0.s8 %v1826
        %v1828 = vlaneseq
        %v1829 = vshrl.u32 %v1828, 7
        %v1830 = vsub.s32 %v1827, %v1829
        %v1831 = vrot.slane %v1823, %v1830
        %v1833 = vunpack.c.l.s4 1966171168
        %v1834 = vunpack.c.0.s8 %v1833
        %v1835 = vlaneseq
        %v1836 = vshrl.u32 %v1835, 7
        %v1837 = vsub.s32 %v1834, %v1836
        %v1838 = vrot.slane %v1824, %v1837
        %1841 = vst.msk [vmem:[#allocation2 + $0x4] sm:$0x1] %vm508, %v1831
        %1842 = vst.msk [vmem:[#allocation2 + $0xc] sm:$0x1] %vm508, %v1838
        %v1845 = vunpack.c.l.s4 1966171168
        %v1846 = vunpack.c.0.s8 %v1845
        %v1847 = vlaneseq
        %v1848 = vshrl.u32 %v1847, 7
        %v1849 = vsub.s32 %v1846, %v1848
        %v1850 = vrot.slane %v1803, %v1849
        %v1851 = vcombine.high %v1850, %v1850
        %v1853 = vunpack.c.l.s4 1966171168
        %v1854 = vunpack.c.0.s8 %v1853
        %v1855 = vlaneseq
        %v1856 = vshrl.u32 %v1855, 7
        %v1857 = vsub.s32 %v1854, %v1856
        %v1858 = vrot.slane %v1850, %v1857
        %v1860 = vunpack.c.l.s4 1966171168
        %v1861 = vunpack.c.0.s8 %v1860
        %v1862 = vlaneseq
        %v1863 = vshrl.u32 %v1862, 7
        %v1864 = vsub.s32 %v1861, %v1863
        %v1865 = vrot.slane %v1851, %v1864
        %1868 = vst.msk [vmem:[#allocation3 + $0x4] sm:$0x1] %vm508, %v1858
        %1869 = vst.msk [vmem:[#allocation3 + $0xc] sm:$0x1] %vm508, %v1865
        %v1872 = vcombine.high %v1808, %v1808
        %v1874 = vunpack.c.l.s4 1966171168
        %v1875 = vunpack.c.0.s8 %v1874
        %v1876 = vlaneseq
        %v1877 = vshrl.u32 %v1876, 7
        %v1878 = vsub.s32 %v1875, %v1877
        %v1879 = vrot.slane %v1808, %v1878
        %v1881 = vunpack.c.l.s4 1966171168
        %v1882 = vunpack.c.0.s8 %v1881
        %v1883 = vlaneseq
        %v1884 = vshrl.u32 %v1883, 7
        %v1885 = vsub.s32 %v1882, %v1884
        %v1886 = vrot.slane %v1872, %v1885
        %v1887 = vcombine.high %v1879, %v1879
        %v1888 = vcombine.high %v1886, %v1886
        %v1890 = vunpack.c.l.s4 1966171168
        %v1891 = vunpack.c.0.s8 %v1890
        %v1892 = vlaneseq
        %v1893 = vshrl.u32 %v1892, 7
        %v1894 = vsub.s32 %v1891, %v1893
        %v1895 = vrot.slane %v1879, %v1894
        %v1897 = vunpack.c.l.s4 1966171168
        %v1898 = vunpack.c.0.s8 %v1897
        %v1899 = vlaneseq
        %v1900 = vshrl.u32 %v1899, 7
        %v1901 = vsub.s32 %v1898, %v1900
        %v1902 = vrot.slane %v1886, %v1901
        %v1904 = vunpack.c.l.s4 1966171168
        %v1905 = vunpack.c.0.s8 %v1904
        %v1906 = vlaneseq
        %v1907 = vshrl.u32 %v1906, 7
        %v1908 = vsub.s32 %v1905, %v1907
        %v1909 = vrot.slane %v1887, %v1908
        %v1911 = vunpack.c.l.s4 1966171168
        %v1912 = vunpack.c.0.s8 %v1911
        %v1913 = vlaneseq
        %v1914 = vshrl.u32 %v1913, 7
        %v1915 = vsub.s32 %v1912, %v1914
        %v1916 = vrot.slane %v1888, %v1915
        %v1917 = vcombine.high %v1895, %v1895
        %v1918 = vcombine.high %v1902, %v1902
        %v1919 = vcombine.high %v1909, %v1909
        %v1920 = vcombine.high %v1916, %v1916
        %v1921 = vcombine.high %v1813, %v1813
        %v1923 = vunpack.c.l.s4 1966171168
        %v1924 = vunpack.c.0.s8 %v1923
        %v1925 = vlaneseq
        %v1926 = vshrl.u32 %v1925, 7
        %v1927 = vsub.s32 %v1924, %v1926
        %v1928 = vrot.slane %v1813, %v1927
        %v1930 = vunpack.c.l.s4 1966171168
        %v1931 = vunpack.c.0.s8 %v1930
        %v1932 = vlaneseq
        %v1933 = vshrl.u32 %v1932, 7
        %v1934 = vsub.s32 %v1931, %v1933
        %v1935 = vrot.slane %v1921, %v1934
        %v1936 = vcombine.high %v1928, %v1928
        %v1937 = vcombine.high %v1935, %v1935
        %v1939 = vunpack.c.l.s4 1966171168
        %v1940 = vunpack.c.0.s8 %v1939
        %v1941 = vlaneseq
        %v1942 = vshrl.u32 %v1941, 7
        %v1943 = vsub.s32 %v1940, %v1942
        %v1944 = vrot.slane %v1928, %v1943
        %v1946 = vunpack.c.l.s4 1966171168
        %v1947 = vunpack.c.0.s8 %v1946
        %v1948 = vlaneseq
        %v1949 = vshrl.u32 %v1948, 7
        %v1950 = vsub.s32 %v1947, %v1949
        %v1951 = vrot.slane %v1935, %v1950
        %v1953 = vunpack.c.l.s4 1966171168
        %v1954 = vunpack.c.0.s8 %v1953
        %v1955 = vlaneseq
        %v1956 = vshrl.u32 %v1955, 7
        %v1957 = vsub.s32 %v1954, %v1956
        %v1958 = vrot.slane %v1936, %v1957
        %v1960 = vunpack.c.l.s4 1966171168
        %v1961 = vunpack.c.0.s8 %v1960
        %v1962 = vlaneseq
        %v1963 = vshrl.u32 %v1962, 7
        %v1964 = vsub.s32 %v1961, %v1963
        %v1965 = vrot.slane %v1937, %v1964
        %v1966 = vcombine.high %v1944, %v1944
        %v1967 = vcombine.high %v1951, %v1951
        %v1968 = vcombine.high %v1958, %v1958
        %v1969 = vcombine.high %v1965, %v1965
        %1986 = vst.msk [vmem:[#allocation4 + $0x4] sm:$0x1] %vm508, %v1895
        %1987 = vst.msk [vmem:[#allocation4 + $0xc] sm:$0x1] %vm508, %v1909
        %1988 = vst.msk [vmem:[#allocation4 + $0x14] sm:$0x1] %vm508, %v1917
        %1989 = vst.msk [vmem:[#allocation4 + $0x1c] sm:$0x1] %vm508, %v1919
        %1990 = vst.msk [vmem:[#allocation4 + $0x24] sm:$0x1] %vm508, %v1902
        %1991 = vst.msk [vmem:[#allocation4 + $0x2c] sm:$0x1] %vm508, %v1916
        %1992 = vst.msk [vmem:[#allocation4 + $0x34] sm:$0x1] %vm508, %v1918
        %1993 = vst.msk [vmem:[#allocation4 + $0x3c] sm:$0x1] %vm508, %v1920
        %1994 = vst.msk [vmem:[#allocation4 + $0x44] sm:$0x1] %vm508, %v1944
        %1995 = vst.msk [vmem:[#allocation4 + $0x4c] sm:$0x1] %vm508, %v1958
        %1996 = vst.msk [vmem:[#allocation4 + $0x54] sm:$0x1] %vm508, %v1966
        %1997 = vst.msk [vmem:[#allocation4 + $0x5c] sm:$0x1] %vm508, %v1968
        %1998 = vst.msk [vmem:[#allocation4 + $0x64] sm:$0x1] %vm508, %v1951
        %1999 = vst.msk [vmem:[#allocation4 + $0x6c] sm:$0x1] %vm508, %v1965
        %2000 = vst.msk [vmem:[#allocation4 + $0x74] sm:$0x1] %vm508, %v1967
        %2001 = vst.msk [vmem:[#allocation4 + $0x7c] sm:$0x1] %vm508, %v1969
        %v2002 = vld [vmem:[%s249 + $0x5] sm:$0x1]
        %v2003 = vld [vmem:[%s249 + $0xd] sm:$0x1]
        %v2004 = vld [vmem:[%s249 + $0x15] sm:$0x1]
        %v2005 = vld [vmem:[%s249 + $0x1d] sm:$0x1]
        %v2006 = vld [vmem:[%s249 + $0x25] sm:$0x1]
        %v2007 = vld [vmem:[%s249 + $0x2d] sm:$0x1]
        %v2008 = vld [vmem:[%s249 + $0x35] sm:$0x1]
        %v2009 = vld [vmem:[%s249 + $0x3d] sm:$0x1]
        %v2010 = vld [vmem:[%s249 + $0x45] sm:$0x1]
        %v2011 = vld [vmem:[%s249 + $0x4d] sm:$0x1]
        %v2012 = vld [vmem:[%s249 + $0x55] sm:$0x1]
        %v2013 = vld [vmem:[%s249 + $0x5d] sm:$0x1]
        %v2014 = vld [vmem:[%s249 + $0x65] sm:$0x1]
        %v2015 = vld [vmem:[%s249 + $0x6d] sm:$0x1]
        %v2016 = vld [vmem:[%s249 + $0x75] sm:$0x1]
        %v2017 = vld [vmem:[%s249 + $0x7d] sm:$0x1]
        %v2034 = vrot.slane %v2003, 7
        %v2035 = vsel %vm349, %v2034, %v2002
        %v2036 = vrot.slane %v2004, 6
        %v2037 = vsel %vm352, %v2036, %v2035
        %v2038 = vrot.slane %v2005, 5
        %v2039 = vsel %vm355, %v2038, %v2037
        %v2040 = vrot.slane %v2006, 4
        %v2041 = vsel %vm358, %v2040, %v2039
        %v2042 = vrot.slane %v2007, 3
        %v2043 = vsel %vm361, %v2042, %v2041
        %v2044 = vrot.slane %v2008, 2
        %v2045 = vsel %vm364, %v2044, %v2043
        %v2046 = vrot.slane %v2009, 1
        %v2047 = vsel %vm367, %v2046, %v2045
        %v2048 = vrot.slane %v2011, 7
        %v2049 = vsel %vm349, %v2048, %v2010
        %v2050 = vrot.slane %v2012, 6
        %v2051 = vsel %vm352, %v2050, %v2049
        %v2052 = vrot.slane %v2013, 5
        %v2053 = vsel %vm355, %v2052, %v2051
        %v2054 = vrot.slane %v2014, 4
        %v2055 = vsel %vm358, %v2054, %v2053
        %v2056 = vrot.slane %v2015, 3
        %v2057 = vsel %vm361, %v2056, %v2055
        %v2058 = vrot.slane %v2016, 2
        %v2059 = vsel %vm364, %v2058, %v2057
        %v2060 = vrot.slane %v2017, 1
        %v2061 = vsel %vm367, %v2060, %v2059
        %2064 = vmatprep.subr.mxu0 0.0
        %2065 = vmatpush1.msra.mxu0 %v2047
        %2066 = vmatprep.subr.mxu0 0.0
        %2067 = vmatpush1.msra.mxu0 %v2061
        %2068 = vmatprep.subr.mxu0 0.0
        %2069 = vmatpush1.msra.mxu0 0.0
        %2070 = vmatprep.subr.mxu0 0.0
        %2071 = vmatpush1.msra.mxu0 0.0
        %2072 = vmatprep.subr.mxu0 0.0
        %2073 = vmatpush1.msra.mxu0 0.0
        %2074 = vmatprep.subr.mxu0 0.0
        %2075 = vmatpush1.msra.mxu0 0.0
        %2076 = vmatprep.subr.mxu0 0.0
        %2077 = vmatpush1.msra.mxu0 0.0
        %2078 = vmatprep.subr.mxu0 0.0
        %2079 = vmatpush1.msra.mxu0 0.0
        %2080 = vmatprep.subr.mxu0 0.0
        %2081 = vmatpush1.msra.mxu0 0.0
        %2082 = vmatprep.subr.mxu0 0.0
        %2083 = vmatpush1.msra.mxu0 0.0
        %2084 = vmatprep.subr.mxu0 0.0
        %2085 = vmatpush1.msra.mxu0 0.0
        %2086 = vmatprep.subr.mxu0 0.0
        %2087 = vmatpush1.msra.mxu0 0.0
        %2088 = vmatprep.subr.mxu0 0.0
        %2089 = vmatpush1.msra.mxu0 0.0
        %2090 = vmatprep.subr.mxu0 0.0
        %2091 = vmatpush1.msra.mxu0 0.0
        %2092 = vmatprep.subr.mxu0 0.0
        %2093 = vmatpush1.msra.mxu0 0.0
        %2094 = vmatprep.subr.mxu0 0.0
        %2095 = vmatpush1.msra.mxu0 0.0
        %2096 = vmatprep.subr.mxu0 0.0
        %2097 = vmatpush1.msra.mxu0 0.0
        %2098 = vmatprep.subr.mxu0 0.0
        %2099 = vmatpush1.msra.mxu0 0.0
        %2100 = vmatprep.subr.mxu0 0.0
        %2101 = vmatpush1.msra.mxu0 0.0
        %2102 = vmatprep.subr.mxu0 0.0
        %2103 = vmatpush1.msra.mxu0 0.0
        %2104 = vmatprep.subr.mxu0 0.0
        %2105 = vmatpush1.msra.mxu0 0.0
        %2106 = vmatprep.subr.mxu0 0.0
        %2107 = vmatpush1.msra.mxu0 0.0
        %2108 = vmatprep.subr.mxu0 0.0
        %2109 = vmatpush1.msra.mxu0 0.0
        %2110 = vmatprep.subr.mxu0 0.0
        %2111 = vmatpush1.msra.mxu0 0.0
        %2112 = vmatprep.subr.mxu0 0.0
        %2113 = vmatpush1.msra.mxu0 0.0
        %2114 = vmatprep.subr.mxu0 0.0
        %2115 = vmatpush1.msra.mxu0 0.0
        %2116 = vmatprep.subr.mxu0 0.0
        %2117 = vmatpush1.msra.mxu0 0.0
        %2118 = vmatprep.subr.mxu0 0.0
        %2119 = vmatpush1.msra.mxu0 0.0
        %2120 = vmatprep.subr.mxu0 0.0
        %2121 = vmatpush1.msra.mxu0 0.0
        %2122 = vmatprep.subr.mxu0 0.0
        %2123 = vmatpush1.msra.mxu0 0.0
        %2124 = vmatprep.subr.mxu0 0.0
        %2125 = vmatpush1.msra.mxu0 0.0
        %2126 = vmatprep.subr.mxu0 0.0
        %2127 = vmatpush1.msra.mxu0 0.0
        %2128 = vmatprep.mubr.f32.mxu0 0.0
        %2129 = vmatmul.mubr.f32.gmra.mrb[0].mxu0 %v387
        %v2130 = vpop.f32.mrb[0].mxu0
        %v2131 = vadd.f32 %v315, %v2130
        %v2132 = vpop.f32.mrb[0].mxu0
        %2133 = vmatprep.mubr.f32.mxu0 0.0
        %2134 = vmatmul.mubr.f32.gmra.mrb[0].mxu0 %v390
        %v2135 = vpop.f32.mrb[0].mxu0
        %v2136 = vadd.f32 %v320, %v2135
        %v2137 = vpop.f32.mrb[0].mxu0
        %2138 = vmatprep.mubr.f32.mxu0 0.0
        %2139 = vmatmul.mubr.f32.gmra.mrb[0].mxu0 %v393
        %v2140 = vpop.f32.mrb[0].mxu0
        %v2141 = vadd.f32 %v325, %v2140
        %v2142 = vpop.f32.mrb[0].mxu0
        %2143 = vmatprep.mubr.f32.mxu0 0.0
        %2144 = vmatmul.mubr.f32.gmra.mrb[0].mxu0 %v396
        %v2145 = vpop.f32.mrb[0].mxu0
        %v2146 = vadd.f32 %v330, %v2145
        %v2147 = vpop.f32.mrb[0].mxu0
        %2148 = vdwg.mxu0
        %v2151 = vunpack.c.l.s4 1966171168
        %v2152 = vunpack.c.0.s8 %v2151
        %v2153 = vlaneseq
        %v2154 = vshrl.u32 %v2153, 7
        %v2155 = vsub.s32 %v2152, %v2154
        %v2156 = vrot.slane %v2131, %v2155
        %v2157 = vcombine.high %v2156, %v2156
        %v2159 = vunpack.c.l.s4 1966171168
        %v2160 = vunpack.c.0.s8 %v2159
        %v2161 = vlaneseq
        %v2162 = vshrl.u32 %v2161, 7
        %v2163 = vsub.s32 %v2160, %v2162
        %v2164 = vrot.slane %v2156, %v2163
        %v2166 = vunpack.c.l.s4 1966171168
        %v2167 = vunpack.c.0.s8 %v2166
        %v2168 = vlaneseq
        %v2169 = vshrl.u32 %v2168, 7
        %v2170 = vsub.s32 %v2167, %v2169
        %v2171 = vrot.slane %v2157, %v2170
        %2174 = vst.msk [vmem:[#allocation2 + $0x5] sm:$0x1] %vm508, %v2164
        %2175 = vst.msk [vmem:[#allocation2 + $0xd] sm:$0x1] %vm508, %v2171
        %v2178 = vunpack.c.l.s4 1966171168
        %v2179 = vunpack.c.0.s8 %v2178
        %v2180 = vlaneseq
        %v2181 = vshrl.u32 %v2180, 7
        %v2182 = vsub.s32 %v2179, %v2181
        %v2183 = vrot.slane %v2136, %v2182
        %v2184 = vcombine.high %v2183, %v2183
        %v2186 = vunpack.c.l.s4 1966171168
        %v2187 = vunpack.c.0.s8 %v2186
        %v2188 = vlaneseq
        %v2189 = vshrl.u32 %v2188, 7
        %v2190 = vsub.s32 %v2187, %v2189
        %v2191 = vrot.slane %v2183, %v2190
        %v2193 = vunpack.c.l.s4 1966171168
        %v2194 = vunpack.c.0.s8 %v2193
        %v2195 = vlaneseq
        %v2196 = vshrl.u32 %v2195, 7
        %v2197 = vsub.s32 %v2194, %v2196
        %v2198 = vrot.slane %v2184, %v2197
        %2201 = vst.msk [vmem:[#allocation3 + $0x5] sm:$0x1] %vm508, %v2191
        %2202 = vst.msk [vmem:[#allocation3 + $0xd] sm:$0x1] %vm508, %v2198
        %v2205 = vcombine.high %v2141, %v2141
        %v2207 = vunpack.c.l.s4 1966171168
        %v2208 = vunpack.c.0.s8 %v2207
        %v2209 = vlaneseq
        %v2210 = vshrl.u32 %v2209, 7
        %v2211 = vsub.s32 %v2208, %v2210
        %v2212 = vrot.slane %v2141, %v2211
        %v2214 = vunpack.c.l.s4 1966171168
        %v2215 = vunpack.c.0.s8 %v2214
        %v2216 = vlaneseq
        %v2217 = vshrl.u32 %v2216, 7
        %v2218 = vsub.s32 %v2215, %v2217
        %v2219 = vrot.slane %v2205, %v2218
        %v2220 = vcombine.high %v2212, %v2212
        %v2221 = vcombine.high %v2219, %v2219
        %v2223 = vunpack.c.l.s4 1966171168
        %v2224 = vunpack.c.0.s8 %v2223
        %v2225 = vlaneseq
        %v2226 = vshrl.u32 %v2225, 7
        %v2227 = vsub.s32 %v2224, %v2226
        %v2228 = vrot.slane %v2212, %v2227
        %v2230 = vunpack.c.l.s4 1966171168
        %v2231 = vunpack.c.0.s8 %v2230
        %v2232 = vlaneseq
        %v2233 = vshrl.u32 %v2232, 7
        %v2234 = vsub.s32 %v2231, %v2233
        %v2235 = vrot.slane %v2219, %v2234
        %v2237 = vunpack.c.l.s4 1966171168
        %v2238 = vunpack.c.0.s8 %v2237
        %v2239 = vlaneseq
        %v2240 = vshrl.u32 %v2239, 7
        %v2241 = vsub.s32 %v2238, %v2240
        %v2242 = vrot.slane %v2220, %v2241
        %v2244 = vunpack.c.l.s4 1966171168
        %v2245 = vunpack.c.0.s8 %v2244
        %v2246 = vlaneseq
        %v2247 = vshrl.u32 %v2246, 7
        %v2248 = vsub.s32 %v2245, %v2247
        %v2249 = vrot.slane %v2221, %v2248
        %v2250 = vcombine.high %v2228, %v2228
        %v2251 = vcombine.high %v2235, %v2235
        %v2252 = vcombine.high %v2242, %v2242
        %v2253 = vcombine.high %v2249, %v2249
        %v2254 = vcombine.high %v2146, %v2146
        %v2256 = vunpack.c.l.s4 1966171168
        %v2257 = vunpack.c.0.s8 %v2256
        %v2258 = vlaneseq
        %v2259 = vshrl.u32 %v2258, 7
        %v2260 = vsub.s32 %v2257, %v2259
        %v2261 = vrot.slane %v2146, %v2260
        %v2263 = vunpack.c.l.s4 1966171168
        %v2264 = vunpack.c.0.s8 %v2263
        %v2265 = vlaneseq
        %v2266 = vshrl.u32 %v2265, 7
        %v2267 = vsub.s32 %v2264, %v2266
        %v2268 = vrot.slane %v2254, %v2267
        %v2269 = vcombine.high %v2261, %v2261
        %v2270 = vcombine.high %v2268, %v2268
        %v2272 = vunpack.c.l.s4 1966171168
        %v2273 = vunpack.c.0.s8 %v2272
        %v2274 = vlaneseq
        %v2275 = vshrl.u32 %v2274, 7
        %v2276 = vsub.s32 %v2273, %v2275
        %v2277 = vrot.slane %v2261, %v2276
        %v2279 = vunpack.c.l.s4 1966171168
        %v2280 = vunpack.c.0.s8 %v2279
        %v2281 = vlaneseq
        %v2282 = vshrl.u32 %v2281, 7
        %v2283 = vsub.s32 %v2280, %v2282
        %v2284 = vrot.slane %v2268, %v2283
        %v2286 = vunpack.c.l.s4 1966171168
        %v2287 = vunpack.c.0.s8 %v2286
        %v2288 = vlaneseq
        %v2289 = vshrl.u32 %v2288, 7
        %v2290 = vsub.s32 %v2287, %v2289
        %v2291 = vrot.slane %v2269, %v2290
        %v2293 = vunpack.c.l.s4 1966171168
        %v2294 = vunpack.c.0.s8 %v2293
        %v2295 = vlaneseq
        %v2296 = vshrl.u32 %v2295, 7
        %v2297 = vsub.s32 %v2294, %v2296
        %v2298 = vrot.slane %v2270, %v2297
        %v2299 = vcombine.high %v2277, %v2277
        %v2300 = vcombine.high %v2284, %v2284
        %v2301 = vcombine.high %v2291, %v2291
        %v2302 = vcombine.high %v2298, %v2298
        %2319 = vst.msk [vmem:[#allocation4 + $0x5] sm:$0x1] %vm508, %v2228
        %2320 = vst.msk [vmem:[#allocation4 + $0xd] sm:$0x1] %vm508, %v2242
        %2321 = vst.msk [vmem:[#allocation4 + $0x15] sm:$0x1] %vm508, %v2250
        %2322 = vst.msk [vmem:[#allocation4 + $0x1d] sm:$0x1] %vm508, %v2252
        %2323 = vst.msk [vmem:[#allocation4 + $0x25] sm:$0x1] %vm508, %v2235
        %2324 = vst.msk [vmem:[#allocation4 + $0x2d] sm:$0x1] %vm508, %v2249
        %2325 = vst.msk [vmem:[#allocation4 + $0x35] sm:$0x1] %vm508, %v2251
        %2326 = vst.msk [vmem:[#allocation4 + $0x3d] sm:$0x1] %vm508, %v2253
        %2327 = vst.msk [vmem:[#allocation4 + $0x45] sm:$0x1] %vm508, %v2277
        %2328 = vst.msk [vmem:[#allocation4 + $0x4d] sm:$0x1] %vm508, %v2291
        %2329 = vst.msk [vmem:[#allocation4 + $0x55] sm:$0x1] %vm508, %v2299
        %2330 = vst.msk [vmem:[#allocation4 + $0x5d] sm:$0x1] %vm508, %v2301
        %2331 = vst.msk [vmem:[#allocation4 + $0x65] sm:$0x1] %vm508, %v2284
        %2332 = vst.msk [vmem:[#allocation4 + $0x6d] sm:$0x1] %vm508, %v2298
        %2333 = vst.msk [vmem:[#allocation4 + $0x75] sm:$0x1] %vm508, %v2300
        %2334 = vst.msk [vmem:[#allocation4 + $0x7d] sm:$0x1] %vm508, %v2302
        %v2335 = vld [vmem:[%s249 + $0x6] sm:$0x1]
        %v2336 = vld [vmem:[%s249 + $0xe] sm:$0x1]
        %v2337 = vld [vmem:[%s249 + $0x16] sm:$0x1]
        %v2338 = vld [vmem:[%s249 + $0x1e] sm:$0x1]
        %v2339 = vld [vmem:[%s249 + $0x26] sm:$0x1]
        %v2340 = vld [vmem:[%s249 + $0x2e] sm:$0x1]
        %v2341 = vld [vmem:[%s249 + $0x36] sm:$0x1]
        %v2342 = vld [vmem:[%s249 + $0x3e] sm:$0x1]
        %v2343 = vld [vmem:[%s249 + $0x46] sm:$0x1]
        %v2344 = vld [vmem:[%s249 + $0x4e] sm:$0x1]
        %v2345 = vld [vmem:[%s249 + $0x56] sm:$0x1]
        %v2346 = vld [vmem:[%s249 + $0x5e] sm:$0x1]
        %v2347 = vld [vmem:[%s249 + $0x66] sm:$0x1]
        %v2348 = vld [vmem:[%s249 + $0x6e] sm:$0x1]
        %v2349 = vld [vmem:[%s249 + $0x76] sm:$0x1]
        %v2350 = vld [vmem:[%s249 + $0x7e] sm:$0x1]
        %v2367 = vrot.slane %v2336, 7
        %v2368 = vsel %vm349, %v2367, %v2335
        %v2369 = vrot.slane %v2337, 6
        %v2370 = vsel %vm352, %v2369, %v2368
        %v2371 = vrot.slane %v2338, 5
        %v2372 = vsel %vm355, %v2371, %v2370
        %v2373 = vrot.slane %v2339, 4
        %v2374 = vsel %vm358, %v2373, %v2372
        %v2375 = vrot.slane %v2340, 3
        %v2376 = vsel %vm361, %v2375, %v2374
        %v2377 = vrot.slane %v2341, 2
        %v2378 = vsel %vm364, %v2377, %v2376
        %v2379 = vrot.slane %v2342, 1
        %v2380 = vsel %vm367, %v2379, %v2378
        %v2381 = vrot.slane %v2344, 7
        %v2382 = vsel %vm349, %v2381, %v2343
        %v2383 = vrot.slane %v2345, 6
        %v2384 = vsel %vm352, %v2383, %v2382
        %v2385 = vrot.slane %v2346, 5
        %v2386 = vsel %vm355, %v2385, %v2384
        %v2387 = vrot.slane %v2347, 4
        %v2388 = vsel %vm358, %v2387, %v2386
        %v2389 = vrot.slane %v2348, 3
        %v2390 = vsel %vm361, %v2389, %v2388
        %v2391 = vrot.slane %v2349, 2
        %v2392 = vsel %vm364, %v2391, %v2390
        %v2393 = vrot.slane %v2350, 1
        %v2394 = vsel %vm367, %v2393, %v2392
        %2397 = vmatprep.subr.mxu0 0.0
        %2398 = vmatpush1.msra.mxu0 %v2380
        %2399 = vmatprep.subr.mxu0 0.0
        %2400 = vmatpush1.msra.mxu0 %v2394
        %2401 = vmatprep.subr.mxu0 0.0
        %2402 = vmatpush1.msra.mxu0 0.0
        %2403 = vmatprep.subr.mxu0 0.0
        %2404 = vmatpush1.msra.mxu0 0.0
        %2405 = vmatprep.subr.mxu0 0.0
        %2406 = vmatpush1.msra.mxu0 0.0
        %2407 = vmatprep.subr.mxu0 0.0
        %2408 = vmatpush1.msra.mxu0 0.0
        %2409 = vmatprep.subr.mxu0 0.0
        %2410 = vmatpush1.msra.mxu0 0.0
        %2411 = vmatprep.subr.mxu0 0.0
        %2412 = vmatpush1.msra.mxu0 0.0
        %2413 = vmatprep.subr.mxu0 0.0
        %2414 = vmatpush1.msra.mxu0 0.0
        %2415 = vmatprep.subr.mxu0 0.0
        %2416 = vmatpush1.msra.mxu0 0.0
        %2417 = vmatprep.subr.mxu0 0.0
        %2418 = vmatpush1.msra.mxu0 0.0
        %2419 = vmatprep.subr.mxu0 0.0
        %2420 = vmatpush1.msra.mxu0 0.0
        %2421 = vmatprep.subr.mxu0 0.0
        %2422 = vmatpush1.msra.mxu0 0.0
        %2423 = vmatprep.subr.mxu0 0.0
        %2424 = vmatpush1.msra.mxu0 0.0
        %2425 = vmatprep.subr.mxu0 0.0
        %2426 = vmatpush1.msra.mxu0 0.0
        %2427 = vmatprep.subr.mxu0 0.0
        %2428 = vmatpush1.msra.mxu0 0.0
        %2429 = vmatprep.subr.mxu0 0.0
        %2430 = vmatpush1.msra.mxu0 0.0
        %2431 = vmatprep.subr.mxu0 0.0
        %2432 = vmatpush1.msra.mxu0 0.0
        %2433 = vmatprep.subr.mxu0 0.0
        %2434 = vmatpush1.msra.mxu0 0.0
        %2435 = vmatprep.subr.mxu0 0.0
        %2436 = vmatpush1.msra.mxu0 0.0
        %2437 = vmatprep.subr.mxu0 0.0
        %2438 = vmatpush1.msra.mxu0 0.0
        %2439 = vmatprep.subr.mxu0 0.0
        %2440 = vmatpush1.msra.mxu0 0.0
        %2441 = vmatprep.subr.mxu0 0.0
        %2442 = vmatpush1.msra.mxu0 0.0
        %2443 = vmatprep.subr.mxu0 0.0
        %2444 = vmatpush1.msra.mxu0 0.0
        %2445 = vmatprep.subr.mxu0 0.0
        %2446 = vmatpush1.msra.mxu0 0.0
        %2447 = vmatprep.subr.mxu0 0.0
        %2448 = vmatpush1.msra.mxu0 0.0
        %2449 = vmatprep.subr.mxu0 0.0
        %2450 = vmatpush1.msra.mxu0 0.0
        %2451 = vmatprep.subr.mxu0 0.0
        %2452 = vmatpush1.msra.mxu0 0.0
        %2453 = vmatprep.subr.mxu0 0.0
        %2454 = vmatpush1.msra.mxu0 0.0
        %2455 = vmatprep.subr.mxu0 0.0
        %2456 = vmatpush1.msra.mxu0 0.0
        %2457 = vmatprep.subr.mxu0 0.0
        %2458 = vmatpush1.msra.mxu0 0.0
        %2459 = vmatprep.subr.mxu0 0.0
        %2460 = vmatpush1.msra.mxu0 0.0
        %2461 = vmatprep.mubr.f32.mxu0 0.0
        %2462 = vmatmul.mubr.f32.gmra.mrb[0].mxu0 %v387
        %v2463 = vpop.f32.mrb[0].mxu0
        %v2464 = vadd.f32 %v315, %v2463
        %v2465 = vpop.f32.mrb[0].mxu0
        %2466 = vmatprep.mubr.f32.mxu0 0.0
        %2467 = vmatmul.mubr.f32.gmra.mrb[0].mxu0 %v390
        %v2468 = vpop.f32.mrb[0].mxu0
        %v2469 = vadd.f32 %v320, %v2468
        %v2470 = vpop.f32.mrb[0].mxu0
        %2471 = vmatprep.mubr.f32.mxu0 0.0
        %2472 = vmatmul.mubr.f32.gmra.mrb[0].mxu0 %v393
        %v2473 = vpop.f32.mrb[0].mxu0
        %v2474 = vadd.f32 %v325, %v2473
        %v2475 = vpop.f32.mrb[0].mxu0
        %2476 = vmatprep.mubr.f32.mxu0 0.0
        %2477 = vmatmul.mubr.f32.gmra.mrb[0].mxu0 %v396
        %v2478 = vpop.f32.mrb[0].mxu0
        %v2479 = vadd.f32 %v330, %v2478
        %v2480 = vpop.f32.mrb[0].mxu0
        %2481 = vdwg.mxu0
        %v2484 = vunpack.c.l.s4 1966171168
        %v2485 = vunpack.c.0.s8 %v2484
        %v2486 = vlaneseq
        %v2487 = vshrl.u32 %v2486, 7
        %v2488 = vsub.s32 %v2485, %v2487
        %v2489 = vrot.slane %v2464, %v2488
        %v2490 = vcombine.high %v2489, %v2489
        %v2492 = vunpack.c.l.s4 1966171168
        %v2493 = vunpack.c.0.s8 %v2492
        %v2494 = vlaneseq
        %v2495 = vshrl.u32 %v2494, 7
        %v2496 = vsub.s32 %v2493, %v2495
        %v2497 = vrot.slane %v2489, %v2496
        %v2499 = vunpack.c.l.s4 1966171168
        %v2500 = vunpack.c.0.s8 %v2499
        %v2501 = vlaneseq
        %v2502 = vshrl.u32 %v2501, 7
        %v2503 = vsub.s32 %v2500, %v2502
        %v2504 = vrot.slane %v2490, %v2503
        %2507 = vst.msk [vmem:[#allocation2 + $0x6] sm:$0x1] %vm508, %v2497
        %2508 = vst.msk [vmem:[#allocation2 + $0xe] sm:$0x1] %vm508, %v2504
        %v2511 = vunpack.c.l.s4 1966171168
        %v2512 = vunpack.c.0.s8 %v2511
        %v2513 = vlaneseq
        %v2514 = vshrl.u32 %v2513, 7
        %v2515 = vsub.s32 %v2512, %v2514
        %v2516 = vrot.slane %v2469, %v2515
        %v2517 = vcombine.high %v2516, %v2516
        %v2519 = vunpack.c.l.s4 1966171168
        %v2520 = vunpack.c.0.s8 %v2519
        %v2521 = vlaneseq
        %v2522 = vshrl.u32 %v2521, 7
        %v2523 = vsub.s32 %v2520, %v2522
        %v2524 = vrot.slane %v2516, %v2523
        %v2526 = vunpack.c.l.s4 1966171168
        %v2527 = vunpack.c.0.s8 %v2526
        %v2528 = vlaneseq
        %v2529 = vshrl.u32 %v2528, 7
        %v2530 = vsub.s32 %v2527, %v2529
        %v2531 = vrot.slane %v2517, %v2530
        %2534 = vst.msk [vmem:[#allocation3 + $0x6] sm:$0x1] %vm508, %v2524
        %2535 = vst.msk [vmem:[#allocation3 + $0xe] sm:$0x1] %vm508, %v2531
        %v2538 = vcombine.high %v2474, %v2474
        %v2540 = vunpack.c.l.s4 1966171168
        %v2541 = vunpack.c.0.s8 %v2540
        %v2542 = vlaneseq
        %v2543 = vshrl.u32 %v2542, 7
        %v2544 = vsub.s32 %v2541, %v2543
        %v2545 = vrot.slane %v2474, %v2544
        %v2547 = vunpack.c.l.s4 1966171168
        %v2548 = vunpack.c.0.s8 %v2547
        %v2549 = vlaneseq
        %v2550 = vshrl.u32 %v2549, 7
        %v2551 = vsub.s32 %v2548, %v2550
        %v2552 = vrot.slane %v2538, %v2551
        %v2553 = vcombine.high %v2545, %v2545
        %v2554 = vcombine.high %v2552, %v2552
        %v2556 = vunpack.c.l.s4 1966171168
        %v2557 = vunpack.c.0.s8 %v2556
        %v2558 = vlaneseq
        %v2559 = vshrl.u32 %v2558, 7
        %v2560 = vsub.s32 %v2557, %v2559
        %v2561 = vrot.slane %v2545, %v2560
        %v2563 = vunpack.c.l.s4 1966171168
        %v2564 = vunpack.c.0.s8 %v2563
        %v2565 = vlaneseq
        %v2566 = vshrl.u32 %v2565, 7
        %v2567 = vsub.s32 %v2564, %v2566
        %v2568 = vrot.slane %v2552, %v2567
        %v2570 = vunpack.c.l.s4 1966171168
        %v2571 = vunpack.c.0.s8 %v2570
        %v2572 = vlaneseq
        %v2573 = vshrl.u32 %v2572, 7
        %v2574 = vsub.s32 %v2571, %v2573
        %v2575 = vrot.slane %v2553, %v2574
        %v2577 = vunpack.c.l.s4 1966171168
        %v2578 = vunpack.c.0.s8 %v2577
        %v2579 = vlaneseq
        %v2580 = vshrl.u32 %v2579, 7
        %v2581 = vsub.s32 %v2578, %v2580
        %v2582 = vrot.slane %v2554, %v2581
        %v2583 = vcombine.high %v2561, %v2561
        %v2584 = vcombine.high %v2568, %v2568
        %v2585 = vcombine.high %v2575, %v2575
        %v2586 = vcombine.high %v2582, %v2582
        %v2587 = vcombine.high %v2479, %v2479
        %v2589 = vunpack.c.l.s4 1966171168
        %v2590 = vunpack.c.0.s8 %v2589
        %v2591 = vlaneseq
        %v2592 = vshrl.u32 %v2591, 7
        %v2593 = vsub.s32 %v2590, %v2592
        %v2594 = vrot.slane %v2479, %v2593
        %v2596 = vunpack.c.l.s4 1966171168
        %v2597 = vunpack.c.0.s8 %v2596
        %v2598 = vlaneseq
        %v2599 = vshrl.u32 %v2598, 7
        %v2600 = vsub.s32 %v2597, %v2599
        %v2601 = vrot.slane %v2587, %v2600
        %v2602 = vcombine.high %v2594, %v2594
        %v2603 = vcombine.high %v2601, %v2601
        %v2605 = vunpack.c.l.s4 1966171168
        %v2606 = vunpack.c.0.s8 %v2605
        %v2607 = vlaneseq
        %v2608 = vshrl.u32 %v2607, 7
        %v2609 = vsub.s32 %v2606, %v2608
        %v2610 = vrot.slane %v2594, %v2609
        %v2612 = vunpack.c.l.s4 1966171168
        %v2613 = vunpack.c.0.s8 %v2612
        %v2614 = vlaneseq
        %v2615 = vshrl.u32 %v2614, 7
        %v2616 = vsub.s32 %v2613, %v2615
        %v2617 = vrot.slane %v2601, %v2616
        %v2619 = vunpack.c.l.s4 1966171168
        %v2620 = vunpack.c.0.s8 %v2619
        %v2621 = vlaneseq
        %v2622 = vshrl.u32 %v2621, 7
        %v2623 = vsub.s32 %v2620, %v2622
        %v2624 = vrot.slane %v2602, %v2623
        %v2626 = vunpack.c.l.s4 1966171168
        %v2627 = vunpack.c.0.s8 %v2626
        %v2628 = vlaneseq
        %v2629 = vshrl.u32 %v2628, 7
        %v2630 = vsub.s32 %v2627, %v2629
        %v2631 = vrot.slane %v2603, %v2630
        %v2632 = vcombine.high %v2610, %v2610
        %v2633 = vcombine.high %v2617, %v2617
        %v2634 = vcombine.high %v2624, %v2624
        %v2635 = vcombine.high %v2631, %v2631
        %2652 = vst.msk [vmem:[#allocation4 + $0x6] sm:$0x1] %vm508, %v2561
        %2653 = vst.msk [vmem:[#allocation4 + $0xe] sm:$0x1] %vm508, %v2575
        %2654 = vst.msk [vmem:[#allocation4 + $0x16] sm:$0x1] %vm508, %v2583
        %2655 = vst.msk [vmem:[#allocation4 + $0x1e] sm:$0x1] %vm508, %v2585
        %2656 = vst.msk [vmem:[#allocation4 + $0x26] sm:$0x1] %vm508, %v2568
        %2657 = vst.msk [vmem:[#allocation4 + $0x2e] sm:$0x1] %vm508, %v2582
        %2658 = vst.msk [vmem:[#allocation4 + $0x36] sm:$0x1] %vm508, %v2584
        %2659 = vst.msk [vmem:[#allocation4 + $0x3e] sm:$0x1] %vm508, %v2586
        %2660 = vst.msk [vmem:[#allocation4 + $0x46] sm:$0x1] %vm508, %v2610
        %2661 = vst.msk [vmem:[#allocation4 + $0x4e] sm:$0x1] %vm508, %v2624
        %2662 = vst.msk [vmem:[#allocation4 + $0x56] sm:$0x1] %vm508, %v2632
        %2663 = vst.msk [vmem:[#allocation4 + $0x5e] sm:$0x1] %vm508, %v2634
        %2664 = vst.msk [vmem:[#allocation4 + $0x66] sm:$0x1] %vm508, %v2617
        %2665 = vst.msk [vmem:[#allocation4 + $0x6e] sm:$0x1] %vm508, %v2631
        %2666 = vst.msk [vmem:[#allocation4 + $0x76] sm:$0x1] %vm508, %v2633
        %2667 = vst.msk [vmem:[#allocation4 + $0x7e] sm:$0x1] %vm508, %v2635
        %v2668 = vld [vmem:[%s249 + $0x7] sm:$0x1]
        %v2669 = vld [vmem:[%s249 + $0xf] sm:$0x1]
        %v2670 = vld [vmem:[%s249 + $0x17] sm:$0x1]
        %v2671 = vld [vmem:[%s249 + $0x1f] sm:$0x1]
        %v2672 = vld [vmem:[%s249 + $0x27] sm:$0x1]
        %v2673 = vld [vmem:[%s249 + $0x2f] sm:$0x1]
        %v2674 = vld [vmem:[%s249 + $0x37] sm:$0x1]
        %v2675 = vld [vmem:[%s249 + $0x3f] sm:$0x1]
        %v2676 = vld [vmem:[%s249 + $0x47] sm:$0x1]
        %v2677 = vld [vmem:[%s249 + $0x4f] sm:$0x1]
        %v2678 = vld [vmem:[%s249 + $0x57] sm:$0x1]
        %v2679 = vld [vmem:[%s249 + $0x5f] sm:$0x1]
        %v2680 = vld [vmem:[%s249 + $0x67] sm:$0x1]
        %v2681 = vld [vmem:[%s249 + $0x6f] sm:$0x1]
        %v2682 = vld [vmem:[%s249 + $0x77] sm:$0x1]
        %v2683 = vld [vmem:[%s249 + $0x7f] sm:$0x1]
        %v2700 = vrot.slane %v2669, 7
        %v2701 = vsel %vm349, %v2700, %v2668
        %v2702 = vrot.slane %v2670, 6
        %v2703 = vsel %vm352, %v2702, %v2701
        %v2704 = vrot.slane %v2671, 5
        %v2705 = vsel %vm355, %v2704, %v2703
        %v2706 = vrot.slane %v2672, 4
        %v2707 = vsel %vm358, %v2706, %v2705
        %v2708 = vrot.slane %v2673, 3
        %v2709 = vsel %vm361, %v2708, %v2707
        %v2710 = vrot.slane %v2674, 2
        %v2711 = vsel %vm364, %v2710, %v2709
        %v2712 = vrot.slane %v2675, 1
        %v2713 = vsel %vm367, %v2712, %v2711
        %v2714 = vrot.slane %v2677, 7
        %v2715 = vsel %vm349, %v2714, %v2676
        %v2716 = vrot.slane %v2678, 6
        %v2717 = vsel %vm352, %v2716, %v2715
        %v2718 = vrot.slane %v2679, 5
        %v2719 = vsel %vm355, %v2718, %v2717
        %v2720 = vrot.slane %v2680, 4
        %v2721 = vsel %vm358, %v2720, %v2719
        %v2722 = vrot.slane %v2681, 3
        %v2723 = vsel %vm361, %v2722, %v2721
        %v2724 = vrot.slane %v2682, 2
        %v2725 = vsel %vm364, %v2724, %v2723
        %v2726 = vrot.slane %v2683, 1
        %v2727 = vsel %vm367, %v2726, %v2725
        %2730 = vmatprep.subr.mxu0 0.0
        %2731 = vmatpush1.msra.mxu0 %v2713
        %2732 = vmatprep.subr.mxu0 0.0
        %2733 = vmatpush1.msra.mxu0 %v2727
        %2734 = vmatprep.subr.mxu0 0.0
        %2735 = vmatpush1.msra.mxu0 0.0
        %2736 = vmatprep.subr.mxu0 0.0
        %2737 = vmatpush1.msra.mxu0 0.0
        %2738 = vmatprep.subr.mxu0 0.0
        %2739 = vmatpush1.msra.mxu0 0.0
        %2740 = vmatprep.subr.mxu0 0.0
        %2741 = vmatpush1.msra.mxu0 0.0
        %2742 = vmatprep.subr.mxu0 0.0
        %2743 = vmatpush1.msra.mxu0 0.0
        %2744 = vmatprep.subr.mxu0 0.0
        %2745 = vmatpush1.msra.mxu0 0.0
        %2746 = vmatprep.subr.mxu0 0.0
        %2747 = vmatpush1.msra.mxu0 0.0
        %2748 = vmatprep.subr.mxu0 0.0
        %2749 = vmatpush1.msra.mxu0 0.0
        %2750 = vmatprep.subr.mxu0 0.0
        %2751 = vmatpush1.msra.mxu0 0.0
        %2752 = vmatprep.subr.mxu0 0.0
        %2753 = vmatpush1.msra.mxu0 0.0
        %2754 = vmatprep.subr.mxu0 0.0
        %2755 = vmatpush1.msra.mxu0 0.0
        %2756 = vmatprep.subr.mxu0 0.0
        %2757 = vmatpush1.msra.mxu0 0.0
        %2758 = vmatprep.subr.mxu0 0.0
        %2759 = vmatpush1.msra.mxu0 0.0
        %2760 = vmatprep.subr.mxu0 0.0
        %2761 = vmatpush1.msra.mxu0 0.0
        %2762 = vmatprep.subr.mxu0 0.0
        %2763 = vmatpush1.msra.mxu0 0.0
        %2764 = vmatprep.subr.mxu0 0.0
        %2765 = vmatpush1.msra.mxu0 0.0
        %2766 = vmatprep.subr.mxu0 0.0
        %2767 = vmatpush1.msra.mxu0 0.0
        %2768 = vmatprep.subr.mxu0 0.0
        %2769 = vmatpush1.msra.mxu0 0.0
        %2770 = vmatprep.subr.mxu0 0.0
        %2771 = vmatpush1.msra.mxu0 0.0
        %2772 = vmatprep.subr.mxu0 0.0
        %2773 = vmatpush1.msra.mxu0 0.0
        %2774 = vmatprep.subr.mxu0 0.0
        %2775 = vmatpush1.msra.mxu0 0.0
        %2776 = vmatprep.subr.mxu0 0.0
        %2777 = vmatpush1.msra.mxu0 0.0
        %2778 = vmatprep.subr.mxu0 0.0
        %2779 = vmatpush1.msra.mxu0 0.0
        %2780 = vmatprep.subr.mxu0 0.0
        %2781 = vmatpush1.msra.mxu0 0.0
        %2782 = vmatprep.subr.mxu0 0.0
        %2783 = vmatpush1.msra.mxu0 0.0
        %2784 = vmatprep.subr.mxu0 0.0
        %2785 = vmatpush1.msra.mxu0 0.0
        %2786 = vmatprep.subr.mxu0 0.0
        %2787 = vmatpush1.msra.mxu0 0.0
        %2788 = vmatprep.subr.mxu0 0.0
        %2789 = vmatpush1.msra.mxu0 0.0
        %2790 = vmatprep.subr.mxu0 0.0
        %2791 = vmatpush1.msra.mxu0 0.0
        %2792 = vmatprep.subr.mxu0 0.0
        %2793 = vmatpush1.msra.mxu0 0.0
        %2794 = vmatprep.mubr.f32.mxu0 0.0
        %2795 = vmatmul.mubr.f32.gmra.mrb[0].mxu0 %v387
        %v2796 = vpop.f32.mrb[0].mxu0
        %v2797 = vadd.f32 %v315, %v2796
        %v2798 = vpop.f32.mrb[0].mxu0
        %2799 = vmatprep.mubr.f32.mxu0 0.0
        %2800 = vmatmul.mubr.f32.gmra.mrb[0].mxu0 %v390
        %v2801 = vpop.f32.mrb[0].mxu0
        %v2802 = vadd.f32 %v320, %v2801
        %v2803 = vpop.f32.mrb[0].mxu0
        %2804 = vmatprep.mubr.f32.mxu0 0.0
        %2805 = vmatmul.mubr.f32.gmra.mrb[0].mxu0 %v393
        %v2806 = vpop.f32.mrb[0].mxu0
        %v2807 = vadd.f32 %v325, %v2806
        %v2808 = vpop.f32.mrb[0].mxu0
        %2809 = vmatprep.mubr.f32.mxu0 0.0
        %2810 = vmatmul.mubr.f32.gmra.mrb[0].mxu0 %v396
        %v2811 = vpop.f32.mrb[0].mxu0
        %v2812 = vadd.f32 %v330, %v2811
        %v2813 = vpop.f32.mrb[0].mxu0
        %2814 = vdwg.mxu0
        %v2817 = vunpack.c.l.s4 1966171168
        %v2818 = vunpack.c.0.s8 %v2817
        %v2819 = vlaneseq
        %v2820 = vshrl.u32 %v2819, 7
        %v2821 = vsub.s32 %v2818, %v2820
        %v2822 = vrot.slane %v2797, %v2821
        %v2823 = vcombine.high %v2822, %v2822
        %v2825 = vunpack.c.l.s4 1966171168
        %v2826 = vunpack.c.0.s8 %v2825
        %v2827 = vlaneseq
        %v2828 = vshrl.u32 %v2827, 7
        %v2829 = vsub.s32 %v2826, %v2828
        %v2830 = vrot.slane %v2822, %v2829
        %v2832 = vunpack.c.l.s4 1966171168
        %v2833 = vunpack.c.0.s8 %v2832
        %v2834 = vlaneseq
        %v2835 = vshrl.u32 %v2834, 7
        %v2836 = vsub.s32 %v2833, %v2835
        %v2837 = vrot.slane %v2823, %v2836
        %2840 = vst.msk [vmem:[#allocation2 + $0x7] sm:$0x1] %vm508, %v2830
        %2841 = vst.msk [vmem:[#allocation2 + $0xf] sm:$0x1] %vm508, %v2837
        %v2844 = vunpack.c.l.s4 1966171168
        %v2845 = vunpack.c.0.s8 %v2844
        %v2846 = vlaneseq
        %v2847 = vshrl.u32 %v2846, 7
        %v2848 = vsub.s32 %v2845, %v2847
        %v2849 = vrot.slane %v2802, %v2848
        %v2850 = vcombine.high %v2849, %v2849
        %v2852 = vunpack.c.l.s4 1966171168
        %v2853 = vunpack.c.0.s8 %v2852
        %v2854 = vlaneseq
        %v2855 = vshrl.u32 %v2854, 7
        %v2856 = vsub.s32 %v2853, %v2855
        %v2857 = vrot.slane %v2849, %v2856
        %v2859 = vunpack.c.l.s4 1966171168
        %v2860 = vunpack.c.0.s8 %v2859
        %v2861 = vlaneseq
        %v2862 = vshrl.u32 %v2861, 7
        %v2863 = vsub.s32 %v2860, %v2862
        %v2864 = vrot.slane %v2850, %v2863
        %2867 = vst.msk [vmem:[#allocation3 + $0x7] sm:$0x1] %vm508, %v2857
        %2868 = vst.msk [vmem:[#allocation3 + $0xf] sm:$0x1] %vm508, %v2864
        %v2871 = vcombine.high %v2807, %v2807
        %v2873 = vunpack.c.l.s4 1966171168
        %v2874 = vunpack.c.0.s8 %v2873
        %v2875 = vlaneseq
        %v2876 = vshrl.u32 %v2875, 7
        %v2877 = vsub.s32 %v2874, %v2876
        %v2878 = vrot.slane %v2807, %v2877
        %v2880 = vunpack.c.l.s4 1966171168
        %v2881 = vunpack.c.0.s8 %v2880
        %v2882 = vlaneseq
        %v2883 = vshrl.u32 %v2882, 7
        %v2884 = vsub.s32 %v2881, %v2883
        %v2885 = vrot.slane %v2871, %v2884
        %v2886 = vcombine.high %v2878, %v2878
        %v2887 = vcombine.high %v2885, %v2885
        %v2889 = vunpack.c.l.s4 1966171168
        %v2890 = vunpack.c.0.s8 %v2889
        %v2891 = vlaneseq
        %v2892 = vshrl.u32 %v2891, 7
        %v2893 = vsub.s32 %v2890, %v2892
        %v2894 = vrot.slane %v2878, %v2893
        %v2896 = vunpack.c.l.s4 1966171168
        %v2897 = vunpack.c.0.s8 %v2896
        %v2898 = vlaneseq
        %v2899 = vshrl.u32 %v2898, 7
        %v2900 = vsub.s32 %v2897, %v2899
        %v2901 = vrot.slane %v2885, %v2900
        %v2903 = vunpack.c.l.s4 1966171168
        %v2904 = vunpack.c.0.s8 %v2903
        %v2905 = vlaneseq
        %v2906 = vshrl.u32 %v2905, 7
        %v2907 = vsub.s32 %v2904, %v2906
        %v2908 = vrot.slane %v2886, %v2907
        %v2910 = vunpack.c.l.s4 1966171168
        %v2911 = vunpack.c.0.s8 %v2910
        %v2912 = vlaneseq
        %v2913 = vshrl.u32 %v2912, 7
        %v2914 = vsub.s32 %v2911, %v2913
        %v2915 = vrot.slane %v2887, %v2914
        %v2916 = vcombine.high %v2894, %v2894
        %v2917 = vcombine.high %v2901, %v2901
        %v2918 = vcombine.high %v2908, %v2908
        %v2919 = vcombine.high %v2915, %v2915
        %v2920 = vcombine.high %v2812, %v2812
        %v2922 = vunpack.c.l.s4 1966171168
        %v2923 = vunpack.c.0.s8 %v2922
        %v2924 = vlaneseq
        %v2925 = vshrl.u32 %v2924, 7
        %v2926 = vsub.s32 %v2923, %v2925
        %v2927 = vrot.slane %v2812, %v2926
        %v2929 = vunpack.c.l.s4 1966171168
        %v2930 = vunpack.c.0.s8 %v2929
        %v2931 = vlaneseq
        %v2932 = vshrl.u32 %v2931, 7
        %v2933 = vsub.s32 %v2930, %v2932
        %v2934 = vrot.slane %v2920, %v2933
        %v2935 = vcombine.high %v2927, %v2927
        %v2936 = vcombine.high %v2934, %v2934
        %v2938 = vunpack.c.l.s4 1966171168
        %v2939 = vunpack.c.0.s8 %v2938
        %v2940 = vlaneseq
        %v2941 = vshrl.u32 %v2940, 7
        %v2942 = vsub.s32 %v2939, %v2941
        %v2943 = vrot.slane %v2927, %v2942
        %v2945 = vunpack.c.l.s4 1966171168
        %v2946 = vunpack.c.0.s8 %v2945
        %v2947 = vlaneseq
        %v2948 = vshrl.u32 %v2947, 7
        %v2949 = vsub.s32 %v2946, %v2948
        %v2950 = vrot.slane %v2934, %v2949
        %v2952 = vunpack.c.l.s4 1966171168
        %v2953 = vunpack.c.0.s8 %v2952
        %v2954 = vlaneseq
        %v2955 = vshrl.u32 %v2954, 7
        %v2956 = vsub.s32 %v2953, %v2955
        %v2957 = vrot.slane %v2935, %v2956
        %v2959 = vunpack.c.l.s4 1966171168
        %v2960 = vunpack.c.0.s8 %v2959
        %v2961 = vlaneseq
        %v2962 = vshrl.u32 %v2961, 7
        %v2963 = vsub.s32 %v2960, %v2962
        %v2964 = vrot.slane %v2936, %v2963
        %v2965 = vcombine.high %v2943, %v2943
        %v2966 = vcombine.high %v2950, %v2950
        %v2967 = vcombine.high %v2957, %v2957
        %v2968 = vcombine.high %v2964, %v2964
        %2985 = vst.msk [vmem:[#allocation4 + $0x7] sm:$0x1] %vm508, %v2894
        %2986 = vst.msk [vmem:[#allocation4 + $0xf] sm:$0x1] %vm508, %v2908
        %2987 = vst.msk [vmem:[#allocation4 + $0x17] sm:$0x1] %vm508, %v2916
        %2988 = vst.msk [vmem:[#allocation4 + $0x1f] sm:$0x1] %vm508, %v2918
        %2989 = vst.msk [vmem:[#allocation4 + $0x27] sm:$0x1] %vm508, %v2901
        %2990 = vst.msk [vmem:[#allocation4 + $0x2f] sm:$0x1] %vm508, %v2915
        %2991 = vst.msk [vmem:[#allocation4 + $0x37] sm:$0x1] %vm508, %v2917
        %2992 = vst.msk [vmem:[#allocation4 + $0x3f] sm:$0x1] %vm508, %v2919
        %2993 = vst.msk [vmem:[#allocation4 + $0x47] sm:$0x1] %vm508, %v2943
        %2994 = vst.msk [vmem:[#allocation4 + $0x4f] sm:$0x1] %vm508, %v2957
        %2995 = vst.msk [vmem:[#allocation4 + $0x57] sm:$0x1] %vm508, %v2965
        %2996 = vst.msk [vmem:[#allocation4 + $0x5f] sm:$0x1] %vm508, %v2967
        %2997 = vst.msk [vmem:[#allocation4 + $0x67] sm:$0x1] %vm508, %v2950
        %2998 = vst.msk [vmem:[#allocation4 + $0x6f] sm:$0x1] %vm508, %v2964
        %2999 = vst.msk [vmem:[#allocation4 + $0x77] sm:$0x1] %vm508, %v2966
        %3000 = vst.msk [vmem:[#allocation4 + $0x7f] sm:$0x1] %vm508, %v2968
        %s3001 = sld [smem:[#allocation5]]
        %v3002 = vld [vmem:[#allocation12] sm:$0xff]
        %v3003 = vld [vmem:[#allocation12 + $0x8] sm:$0xff]
        %v3004 = vld [vmem:[#allocation12 + $0x10] sm:$0xff]
        %v3005 = vld [vmem:[#allocation12 + $0x18] sm:$0xff]
        %v3006 = vld [vmem:[#allocation12 + $0x20] sm:$0xff]
        %v3007 = vld [vmem:[#allocation12 + $0x28] sm:$0xff]
        %v3008 = vld [vmem:[#allocation12 + $0x30] sm:$0xff]
        %v3009 = vld [vmem:[#allocation12 + $0x38] sm:$0xff]
        %v3010 = vlaneseq
        %v3011 = vshrl.u32 %v3010, 7
        %v3012 = vld [vmem:[#allocation2] sm:$0x1]
        %v3013 = vld [vmem:[#allocation2 + $0x8] sm:$0x1]
        %v3014 = vld [vmem:[#allocation3] sm:$0x1]
        %v3015 = vld [vmem:[#allocation3 + $0x8] sm:$0x1]
        %v3016 = vld [vmem:[#allocation4] sm:$0x1]
        %v3017 = vld [vmem:[#allocation4 + $0x8] sm:$0x1]
        %v3018 = vld [vmem:[#allocation4 + $0x10] sm:$0x1]
        %v3019 = vld [vmem:[#allocation4 + $0x18] sm:$0x1]
        %v3020 = vld [vmem:[#allocation4 + $0x20] sm:$0x1]
        %v3021 = vld [vmem:[#allocation4 + $0x28] sm:$0x1]
        %v3022 = vld [vmem:[#allocation4 + $0x30] sm:$0x1]
        %v3023 = vld [vmem:[#allocation4 + $0x38] sm:$0x1]
        %v3024 = vld [vmem:[#allocation4 + $0x40] sm:$0x1]
        %v3025 = vld [vmem:[#allocation4 + $0x48] sm:$0x1]
        %v3026 = vld [vmem:[#allocation4 + $0x50] sm:$0x1]
        %v3027 = vld [vmem:[#allocation4 + $0x58] sm:$0x1]
        %v3028 = vld [vmem:[#allocation4 + $0x60] sm:$0x1]
        %v3029 = vld [vmem:[#allocation4 + $0x68] sm:$0x1]
        %v3030 = vld [vmem:[#allocation4 + $0x70] sm:$0x1]
        %v3031 = vld [vmem:[#allocation4 + $0x78] sm:$0x1]
        %v3032 = vld [vmem:[#allocation3] sm:$0xff]
        %v3033 = vld [vmem:[#allocation3 + $0x8] sm:$0xff]
        %v3034 = vlaneseq
        %v3035 = vshrl.u32 %v3034, 7
        %v3036 = vsub.s32 0, %v3035
        %v3037 = vrot.slane %v3012, %v3036
        %v3038 = vlaneseq
        %v3039 = vshrl.u32 %v3038, 7
        %v3040 = vsub.s32 0, %v3039
        %v3041 = vrot.slane %v3013, %v3040
        %v3042 = vmul.f32 %v3037, %v3032
        %v3043 = vmul.f32 %v3041, %v3033
        %vm3044 = vcmask 523264
        %v3045 = vsel %vm3044, %v3042, 0.0
        %v3046 = vsel %vm3044, %v3043, 0.0
        %v3047 = vadd.f32 %v3045, %v3046
        %vm3048 = vcmp.eq.s32.totalorder %v3011, 0
        %v3049 = vsel %vm3048, -1e+30, %v3047
        %v3052 = vrot.slane %v3015, 7
        %v3053 = vsel %vm349, %v3052, %v3014
        %3055 = vxpose.xlu0.b32.start [1/16] %v3053, 128
        %3056 = vxpose.xlu0.b32.cont [2/16] 0.0, 128
        %3057 = vxpose.xlu0.b32.cont [3/16] 0.0, 128
        %3058 = vxpose.xlu0.b32.cont [4/16] 0.0, 128
        %3059 = vxpose.xlu0.b32.cont [5/16] 0.0, 128
        %3060 = vxpose.xlu0.b32.cont [6/16] 0.0, 128
        %3061 = vxpose.xlu0.b32.cont [7/16] 0.0, 128
        %3062 = vxpose.xlu0.b32.cont [8/16] 0.0, 128
        %3063 = vxpose.xlu0.b32.cont [9/16] 0.0, 128
        %3064 = vxpose.xlu0.b32.cont [10/16] 0.0, 128
        %3065 = vxpose.xlu0.b32.cont [11/16] 0.0, 128
        %3066 = vxpose.xlu0.b32.cont [12/16] 0.0, 128
        %3067 = vxpose.xlu0.b32.cont [13/16] 0.0, 128
        %3068 = vxpose.xlu0.b32.cont [14/16] 0.0, 128
        %3069 = vxpose.xlu0.b32.cont [15/16] 0.0, 128
        %3070 = vxpose.xlu0.b32.end [16/16] 0.0, 128
        %v3071 = vpop.trf.xlu0
        %v3072 = vpop.trf.xlu0
        %v3073 = vpop.trf.xlu0
        %v3074 = vpop.trf.xlu0
        %v3075 = vpop.trf.xlu0
        %v3076 = vpop.trf.xlu0
        %v3077 = vpop.trf.xlu0
        %v3078 = vpop.trf.xlu0
        %v3079 = vpop.trf.xlu0
        %v3080 = vpop.trf.xlu0
        %v3081 = vpop.trf.xlu0
        %v3082 = vpop.trf.xlu0
        %v3083 = vpop.trf.xlu0
        %v3084 = vpop.trf.xlu0
        %v3085 = vpop.trf.xlu0
        %v3086 = vpop.trf.xlu0
        %v3089 = vrot.slane %v3013, 7
        %v3090 = vsel %vm349, %v3089, %v3012
        %vm3091 = vcmask 15360
        %v3093 = vsel %vm3091, %v3071, 0
        %v3096 = vsel %vm3091, %v3072, 0
        %v3099 = vsel %vm3091, %v3073, 0
        %v3102 = vsel %vm3091, %v3074, 0
        %v3105 = vsel %vm3091, %v3075, 0
        %v3108 = vsel %vm3091, %v3076, 0
        %v3111 = vsel %vm3091, %v3077, 0
        %v3114 = vsel %vm3091, %v3078, 0
        %vm3116 = vcmask 1041408
        %v3117 = vsel %vm3116, %v3090, 0
        %3119 = vmatprep.subr.mxu0 0.0
        %3120 = vmatpush1.msra.mxu0 %v3117
        %3121 = vmatprep.subr.mxu0 0.0
        %3122 = vmatpush1.msra.mxu0 0.0
        %3123 = vmatprep.subr.mxu0 0.0
        %3124 = vmatpush1.msra.mxu0 0.0
        %3125 = vmatprep.subr.mxu0 0.0
        %3126 = vmatpush1.msra.mxu0 0.0
        %3127 = vmatprep.subr.mxu0 0.0
        %3128 = vmatpush1.msra.mxu0 0.0
        %3129 = vmatprep.subr.mxu0 0.0
        %3130 = vmatpush1.msra.mxu0 0.0
        %3131 = vmatprep.subr.mxu0 0.0
        %3132 = vmatpush1.msra.mxu0 0.0
        %3133 = vmatprep.subr.mxu0 0.0
        %3134 = vmatpush1.msra.mxu0 0.0
        %3135 = vmatprep.subr.mxu0 0.0
        %3136 = vmatpush1.msra.mxu0 0.0
        %3137 = vmatprep.subr.mxu0 0.0
        %3138 = vmatpush1.msra.mxu0 0.0
        %3139 = vmatprep.subr.mxu0 0.0
        %3140 = vmatpush1.msra.mxu0 0.0
        %3141 = vmatprep.subr.mxu0 0.0
        %3142 = vmatpush1.msra.mxu0 0.0
        %3143 = vmatprep.subr.mxu0 0.0
        %3144 = vmatpush1.msra.mxu0 0.0
        %3145 = vmatprep.subr.mxu0 0.0
        %3146 = vmatpush1.msra.mxu0 0.0
        %3147 = vmatprep.subr.mxu0 0.0
        %3148 = vmatpush1.msra.mxu0 0.0
        %3149 = vmatprep.subr.mxu0 0.0
        %3150 = vmatpush1.msra.mxu0 0.0
        %3151 = vmatprep.subr.mxu0 0.0
        %3152 = vmatpush1.msra.mxu0 0.0
        %3153 = vmatprep.subr.mxu0 0.0
        %3154 = vmatpush1.msra.mxu0 0.0
        %3155 = vmatprep.subr.mxu0 0.0
        %3156 = vmatpush1.msra.mxu0 0.0
        %3157 = vmatprep.subr.mxu0 0.0
        %3158 = vmatpush1.msra.mxu0 0.0
        %3159 = vmatprep.subr.mxu0 0.0
        %3160 = vmatpush1.msra.mxu0 0.0
        %3161 = vmatprep.subr.mxu0 0.0
        %3162 = vmatpush1.msra.mxu0 0.0
        %3163 = vmatprep.subr.mxu0 0.0
        %3164 = vmatpush1.msra.mxu0 0.0
        %3165 = vmatprep.subr.mxu0 0.0
        %3166 = vmatpush1.msra.mxu0 0.0
        %3167 = vmatprep.subr.mxu0 0.0
        %3168 = vmatpush1.msra.mxu0 0.0
        %3169 = vmatprep.subr.mxu0 0.0
        %3170 = vmatpush1.msra.mxu0 0.0
        %3171 = vmatprep.subr.mxu0 0.0
        %3172 = vmatpush1.msra.mxu0 0.0
        %3173 = vmatprep.subr.mxu0 0.0
        %3174 = vmatpush1.msra.mxu0 0.0
        %3175 = vmatprep.subr.mxu0 0.0
        %3176 = vmatpush1.msra.mxu0 0.0
        %3177 = vmatprep.subr.mxu0 0.0
        %3178 = vmatpush1.msra.mxu0 0.0
        %3179 = vmatprep.subr.mxu0 0.0
        %3180 = vmatpush1.msra.mxu0 0.0
        %3181 = vmatprep.subr.mxu0 0.0
        %3182 = vmatpush1.msra.mxu0 0.0
        %3183 = vmatprep.mubr.f32.mxu0 0.0
        %3184 = vmatmul.mubr.f32.gmra.mrb[0].mxu0 %v3093
        %v3185 = vpop.f32.mrb[0].mxu0
        %v3186 = vadd.f32 %v3002, %v3185
        %v3187 = vpop.f32.mrb[0].mxu0
        %3188 = vmatprep.mubr.f32.mxu0 0.0
        %3189 = vmatmul.mubr.f32.gmra.mrb[0].mxu0 %v3096
        %v3190 = vpop.f32.mrb[0].mxu0
        %v3191 = vadd.f32 %v3003, %v3190
        %v3192 = vpop.f32.mrb[0].mxu0
        %3193 = vmatprep.mubr.f32.mxu0 0.0
        %3194 = vmatmul.mubr.f32.gmra.mrb[0].mxu0 %v3099
        %v3195 = vpop.f32.mrb[0].mxu0
        %v3196 = vadd.f32 %v3004, %v3195
        %v3197 = vpop.f32.mrb[0].mxu0
        %3198 = vmatprep.mubr.f32.mxu0 0.0
        %3199 = vmatmul.mubr.f32.gmra.mrb[0].mxu0 %v3102
        %v3200 = vpop.f32.mrb[0].mxu0
        %v3201 = vadd.f32 %v3005, %v3200
        %v3202 = vpop.f32.mrb[0].mxu0
        %3203 = vmatprep.mubr.f32.mxu0 0.0
        %3204 = vmatmul.mubr.f32.gmra.mrb[0].mxu0 %v3105
        %v3205 = vpop.f32.mrb[0].mxu0
        %v3206 = vadd.f32 %v3006, %v3205
        %v3207 = vpop.f32.mrb[0].mxu0
        %3208 = vmatprep.mubr.f32.mxu0 0.0
        %3209 = vmatmul.mubr.f32.gmra.mrb[0].mxu0 %v3108
        %v3210 = vpop.f32.mrb[0].mxu0
        %v3211 = vadd.f32 %v3007, %v3210
        %v3212 = vpop.f32.mrb[0].mxu0
        %3213 = vmatprep.mubr.f32.mxu0 0.0
        %3214 = vmatmul.mubr.f32.gmra.mrb[0].mxu0 %v3111
        %v3215 = vpop.f32.mrb[0].mxu0
        %v3216 = vadd.f32 %v3008, %v3215
        %v3217 = vpop.f32.mrb[0].mxu0
        %3218 = vmatprep.mubr.f32.mxu0 0.0
        %3219 = vmatmul.mubr.f32.gmra.mrb[0].mxu0 %v3114
        %v3220 = vpop.f32.mrb[0].mxu0
        %v3221 = vadd.f32 %v3009, %v3220
        %v3222 = vpop.f32.mrb[0].mxu0
        %3223 = vdwg.mxu0
        %v3224 = vsel %vm3044, %v3049, -inf
        %v3225 = vrot.slane %v3224, 4
        %v3226 = vmax.f32 %v3224, %v3225
        %v3227 = vrot.slane %v3226, 2
        %v3228 = vmax.f32 %v3226, %v3227
        %v3229 = vrot.slane %v3228, 1
        %v3230 = vmax.f32 %v3228, %v3229
        %v3231 = vsel %vm3044, %v3186, -inf
        %v3232 = vsel %vm3044, %v3191, -inf
        %v3233 = vsel %vm3044, %v3196, -inf
        %v3234 = vsel %vm3044, %v3201, -inf
        %v3235 = vsel %vm3044, %v3206, -inf
        %v3236 = vmax.f32 %v3231, %v3235
        %v3237 = vsel %vm3044, %v3211, -inf
        %v3238 = vmax.f32 %v3232, %v3237
        %v3239 = vsel %vm3044, %v3216, -inf
        %v3240 = vmax.f32 %v3233, %v3239
        %v3241 = vsel %vm3044, %v3221, -inf
        %v3242 = vmax.f32 %v3234, %v3241
        %v3243 = vmax.f32 %v3236, %v3238
        %v3244 = vmax.f32 %v3240, %v3242
        %v3245 = vmax.f32 %v3243, %v3244
        %v3246 = vrot.slane %v3245, 4
        %v3247 = vmax.f32 %v3245, %v3246
        %v3248 = vrot.slane %v3247, 2
        %v3249 = vmax.f32 %v3247, %v3248
        %v3250 = vrot.slane %v3249, 1
        %v3251 = vmax.f32 %v3249, %v3250
        %v3252 = vmax.f32 %v3230, %v3251
        %v3253 = vsub.f32 %v3049, %v3252
        %v3254 = vmul.f32 %v3253, 1.442695
        %v3255 = vpow.pop %v3254
        %v3256 = vsub.f32 %v3186, %v3252
        %v3257 = vsub.f32 %v3191, %v3252
        %v3258 = vsub.f32 %v3196, %v3252
        %v3259 = vsub.f32 %v3201, %v3252
        %v3260 = vsub.f32 %v3206, %v3252
        %v3261 = vsub.f32 %v3211, %v3252
        %v3262 = vsub.f32 %v3216, %v3252
        %v3263 = vsub.f32 %v3221, %v3252
        %v3264 = vmul.f32 %v3256, 1.442695
        %v3265 = vpow.pop %v3264
        %v3266 = vmul.f32 %v3257, 1.442695
        %v3267 = vpow.pop %v3266
        %v3268 = vmul.f32 %v3258, 1.442695
        %v3269 = vpow.pop %v3268
        %v3270 = vmul.f32 %v3259, 1.442695
        %v3271 = vpow.pop %v3270
        %v3272 = vmul.f32 %v3260, 1.442695
        %v3273 = vpow.pop %v3272
        %v3274 = vmul.f32 %v3261, 1.442695
        %v3275 = vpow.pop %v3274
        %v3276 = vmul.f32 %v3262, 1.442695
        %v3277 = vpow.pop %v3276
        %v3278 = vmul.f32 %v3263, 1.442695
        %v3279 = vpow.pop %v3278
        %v3280 = vsel %vm3044, %v3255, 0.0
        %v3281 = vrot.slane %v3280, 4
        %v3282 = vadd.f32 %v3280, %v3281
        %v3283 = vrot.slane %v3282, 2
        %v3284 = vadd.f32 %v3282, %v3283
        %v3285 = vrot.slane %v3284, 1
        %v3286 = vadd.f32 %v3284, %v3285
        %v3287 = vsel %vm3044, %v3265, 0.0
        %v3288 = vsel %vm3044, %v3267, 0.0
        %v3289 = vadd.f32 %v3287, %v3288
        %v3290 = vsel %vm3044, %v3269, 0.0
        %v3291 = vadd.f32 %v3289, %v3290
        %v3292 = vsel %vm3044, %v3271, 0.0
        %v3293 = vadd.f32 %v3291, %v3292
        %v3294 = vsel %vm3044, %v3273, 0.0
        %v3295 = vadd.f32 %v3293, %v3294
        %v3296 = vsel %vm3044, %v3275, 0.0
        %v3297 = vadd.f32 %v3295, %v3296
        %v3298 = vsel %vm3044, %v3277, 0.0
        %v3299 = vadd.f32 %v3297, %v3298
        %v3300 = vsel %vm3044, %v3279, 0.0
        %v3301 = vadd.f32 %v3299, %v3300
        %v3302 = vrot.slane %v3301, 4
        %v3303 = vadd.f32 %v3301, %v3302
        %v3304 = vrot.slane %v3303, 2
        %v3305 = vadd.f32 %v3303, %v3304
        %v3306 = vrot.slane %v3305, 1
        %v3307 = vadd.f32 %v3305, %v3306
        %v3308 = vadd.f32 %v3286, %v3307
        %v3309 = vrcp.pop %v3308
        %v3310 = vmul.f32 %v3308, %v3309
        %v3311 = vsub.f32 2.0, %v3310
        %v3312 = vmul.f32 %v3309, %v3311
        %v3313 = vld [vmem:[#allocation4] sm:$0xff]
        %v3314 = vld [vmem:[#allocation4 + $0x8] sm:$0xff]
        %v3315 = vld [vmem:[#allocation4 + $0x10] sm:$0xff]
        %v3316 = vld [vmem:[#allocation4 + $0x18] sm:$0xff]
        %v3317 = vld [vmem:[#allocation4 + $0x20] sm:$0xff]
        %v3318 = vld [vmem:[#allocation4 + $0x28] sm:$0xff]
        %v3319 = vld [vmem:[#allocation4 + $0x30] sm:$0xff]
        %v3320 = vld [vmem:[#allocation4 + $0x38] sm:$0xff]
        %v3321 = vld [vmem:[#allocation4 + $0x40] sm:$0xff]
        %v3322 = vld [vmem:[#allocation4 + $0x48] sm:$0xff]
        %v3323 = vld [vmem:[#allocation4 + $0x50] sm:$0xff]
        %v3324 = vld [vmem:[#allocation4 + $0x58] sm:$0xff]
        %v3325 = vld [vmem:[#allocation4 + $0x60] sm:$0xff]
        %v3326 = vld [vmem:[#allocation4 + $0x68] sm:$0xff]
        %v3327 = vld [vmem:[#allocation4 + $0x70] sm:$0xff]
        %v3328 = vld [vmem:[#allocation4 + $0x78] sm:$0xff]
        %v3329 = vmul.f32 %v3255, %v3313
        %v3330 = vmul.f32 %v3255, %v3314
        %v3331 = vmul.f32 %v3255, %v3315
        %v3332 = vmul.f32 %v3255, %v3316
        %v3333 = vmul.f32 %v3255, %v3317
        %v3334 = vmul.f32 %v3255, %v3318
        %v3335 = vmul.f32 %v3255, %v3319
        %v3336 = vmul.f32 %v3255, %v3320
        %v3337 = vmul.f32 %v3255, %v3321
        %v3338 = vmul.f32 %v3255, %v3322
        %v3339 = vmul.f32 %v3255, %v3323
        %v3340 = vmul.f32 %v3255, %v3324
        %v3341 = vmul.f32 %v3255, %v3325
        %v3342 = vmul.f32 %v3255, %v3326
        %v3343 = vmul.f32 %v3255, %v3327
        %v3344 = vmul.f32 %v3255, %v3328
        %v3345 = vsel %vm3044, %v3329, 0.0
        %v3346 = vrot.slane %v3345, 4
        %v3347 = vadd.f32 %v3345, %v3346
        %v3348 = vrot.slane %v3347, 2
        %v3349 = vadd.f32 %v3347, %v3348
        %v3350 = vrot.slane %v3349, 1
        %v3351 = vadd.f32 %v3349, %v3350
        %v3352 = vsel %vm3044, %v3330, 0.0
        %v3353 = vrot.slane %v3352, 4
        %v3354 = vadd.f32 %v3352, %v3353
        %v3355 = vrot.slane %v3354, 2
        %v3356 = vadd.f32 %v3354, %v3355
        %v3357 = vrot.slane %v3356, 1
        %v3358 = vadd.f32 %v3356, %v3357
        %v3359 = vsel %vm3044, %v3331, 0.0
        %v3360 = vrot.slane %v3359, 4
        %v3361 = vadd.f32 %v3359, %v3360
        %v3362 = vrot.slane %v3361, 2
        %v3363 = vadd.f32 %v3361, %v3362
        %v3364 = vrot.slane %v3363, 1
        %v3365 = vadd.f32 %v3363, %v3364
        %v3366 = vsel %vm3044, %v3332, 0.0
        %v3367 = vrot.slane %v3366, 4
        %v3368 = vadd.f32 %v3366, %v3367
        %v3369 = vrot.slane %v3368, 2
        %v3370 = vadd.f32 %v3368, %v3369
        %v3371 = vrot.slane %v3370, 1
        %v3372 = vadd.f32 %v3370, %v3371
        %v3373 = vsel %vm3044, %v3333, 0.0
        %v3374 = vrot.slane %v3373, 4
        %v3375 = vadd.f32 %v3373, %v3374
        %v3376 = vrot.slane %v3375, 2
        %v3377 = vadd.f32 %v3375, %v3376
        %v3378 = vrot.slane %v3377, 1
        %v3379 = vadd.f32 %v3377, %v3378
        %v3380 = vsel %vm3044, %v3334, 0.0
        %v3381 = vrot.slane %v3380, 4
        %v3382 = vadd.f32 %v3380, %v3381
        %v3383 = vrot.slane %v3382, 2
        %v3384 = vadd.f32 %v3382, %v3383
        %v3385 = vrot.slane %v3384, 1
        %v3386 = vadd.f32 %v3384, %v3385
        %v3387 = vsel %vm3044, %v3335, 0.0
        %v3388 = vrot.slane %v3387, 4
        %v3389 = vadd.f32 %v3387, %v3388
        %v3390 = vrot.slane %v3389, 2
        %v3391 = vadd.f32 %v3389, %v3390
        %v3392 = vrot.slane %v3391, 1
        %v3393 = vadd.f32 %v3391, %v3392
        %v3394 = vsel %vm3044, %v3336, 0.0
        %v3395 = vrot.slane %v3394, 4
        %v3396 = vadd.f32 %v3394, %v3395
        %v3397 = vrot.slane %v3396, 2
        %v3398 = vadd.f32 %v3396, %v3397
        %v3399 = vrot.slane %v3398, 1
        %v3400 = vadd.f32 %v3398, %v3399
        %v3401 = vsel %vm3044, %v3337, 0.0
        %v3402 = vrot.slane %v3401, 4
        %v3403 = vadd.f32 %v3401, %v3402
        %v3404 = vrot.slane %v3403, 2
        %v3405 = vadd.f32 %v3403, %v3404
        %v3406 = vrot.slane %v3405, 1
        %v3407 = vadd.f32 %v3405, %v3406
        %v3408 = vsel %vm3044, %v3338, 0.0
        %v3409 = vrot.slane %v3408, 4
        %v3410 = vadd.f32 %v3408, %v3409
        %v3411 = vrot.slane %v3410, 2
        %v3412 = vadd.f32 %v3410, %v3411
        %v3413 = vrot.slane %v3412, 1
        %v3414 = vadd.f32 %v3412, %v3413
        %v3415 = vsel %vm3044, %v3339, 0.0
        %v3416 = vrot.slane %v3415, 4
        %v3417 = vadd.f32 %v3415, %v3416
        %v3418 = vrot.slane %v3417, 2
        %v3419 = vadd.f32 %v3417, %v3418
        %v3420 = vrot.slane %v3419, 1
        %v3421 = vadd.f32 %v3419, %v3420
        %v3422 = vsel %vm3044, %v3340, 0.0
        %v3423 = vrot.slane %v3422, 4
        %v3424 = vadd.f32 %v3422, %v3423
        %v3425 = vrot.slane %v3424, 2
        %v3426 = vadd.f32 %v3424, %v3425
        %v3427 = vrot.slane %v3426, 1
        %v3428 = vadd.f32 %v3426, %v3427
        %v3429 = vsel %vm3044, %v3341, 0.0
        %v3430 = vrot.slane %v3429, 4
        %v3431 = vadd.f32 %v3429, %v3430
        %v3432 = vrot.slane %v3431, 2
        %v3433 = vadd.f32 %v3431, %v3432
        %v3434 = vrot.slane %v3433, 1
        %v3435 = vadd.f32 %v3433, %v3434
        %v3436 = vsel %vm3044, %v3342, 0.0
        %v3437 = vrot.slane %v3436, 4
        %v3438 = vadd.f32 %v3436, %v3437
        %v3439 = vrot.slane %v3438, 2
        %v3440 = vadd.f32 %v3438, %v3439
        %v3441 = vrot.slane %v3440, 1
        %v3442 = vadd.f32 %v3440, %v3441
        %v3443 = vsel %vm3044, %v3343, 0.0
        %v3444 = vrot.slane %v3443, 4
        %v3445 = vadd.f32 %v3443, %v3444
        %v3446 = vrot.slane %v3445, 2
        %v3447 = vadd.f32 %v3445, %v3446
        %v3448 = vrot.slane %v3447, 1
        %v3449 = vadd.f32 %v3447, %v3448
        %v3450 = vsel %vm3044, %v3344, 0.0
        %v3451 = vrot.slane %v3450, 4
        %v3452 = vadd.f32 %v3450, %v3451
        %v3453 = vrot.slane %v3452, 2
        %v3454 = vadd.f32 %v3452, %v3453
        %v3455 = vrot.slane %v3454, 1
        %v3456 = vadd.f32 %v3454, %v3455
        %v3473 = vrot.slane %v3017, 7
        %v3474 = vsel %vm349, %v3473, %v3016
        %v3475 = vrot.slane %v3018, 6
        %v3476 = vsel %vm352, %v3475, %v3474
        %v3477 = vrot.slane %v3019, 5
        %v3478 = vsel %vm355, %v3477, %v3476
        %v3479 = vrot.slane %v3020, 4
        %v3480 = vsel %vm358, %v3479, %v3478
        %v3481 = vrot.slane %v3021, 3
        %v3482 = vsel %vm361, %v3481, %v3480
        %v3483 = vrot.slane %v3022, 2
        %v3484 = vsel %vm364, %v3483, %v3482
        %v3485 = vrot.slane %v3023, 1
        %v3486 = vsel %vm367, %v3485, %v3484
        %v3487 = vrot.slane %v3025, 7
        %v3488 = vsel %vm349, %v3487, %v3024
        %v3489 = vrot.slane %v3026, 6
        %v3490 = vsel %vm352, %v3489, %v3488
        %v3491 = vrot.slane %v3027, 5
        %v3492 = vsel %vm355, %v3491, %v3490
        %v3493 = vrot.slane %v3028, 4
        %v3494 = vsel %vm358, %v3493, %v3492
        %v3495 = vrot.slane %v3029, 3
        %v3496 = vsel %vm361, %v3495, %v3494
        %v3497 = vrot.slane %v3030, 2
        %v3498 = vsel %vm364, %v3497, %v3496
        %v3499 = vrot.slane %v3031, 1
        %v3500 = vsel %vm367, %v3499, %v3498
        %v3501 = vsel %vm3044, %v3486, 0
        %v3503 = vsel %vm3044, %v3500, 0
        %3505 = vmatprep.subr.mxu0 0.0
        %3506 = vmatpush1.msra.mxu0 %v3265
        %3507 = vmatprep.subr.mxu0 0.0
        %3508 = vmatpush1.msra.mxu0 %v3267
        %3509 = vmatprep.subr.mxu0 0.0
        %3510 = vmatpush1.msra.mxu0 %v3269
        %3511 = vmatprep.subr.mxu0 0.0
        %3512 = vmatpush1.msra.mxu0 %v3271
        %3513 = vmatprep.subr.mxu0 0.0
        %3514 = vmatpush1.msra.mxu0 %v3273
        %3515 = vmatprep.subr.mxu0 0.0
        %3516 = vmatpush1.msra.mxu0 %v3275
        %3517 = vmatprep.subr.mxu0 0.0
        %3518 = vmatpush1.msra.mxu0 %v3277
        %3519 = vmatprep.subr.mxu0 0.0
        %3520 = vmatpush1.msra.mxu0 %v3279
        %3521 = vmatprep.subr.mxu0 0.0
        %3522 = vmatpush1.msra.mxu0 0.0
        %3523 = vmatprep.subr.mxu0 0.0
        %3524 = vmatpush1.msra.mxu0 0.0
        %3525 = vmatprep.subr.mxu0 0.0
        %3526 = vmatpush1.msra.mxu0 0.0
        %3527 = vmatprep.subr.mxu0 0.0
        %3528 = vmatpush1.msra.mxu0 0.0
        %3529 = vmatprep.subr.mxu0 0.0
        %3530 = vmatpush1.msra.mxu0 0.0
        %3531 = vmatprep.subr.mxu0 0.0
        %3532 = vmatpush1.msra.mxu0 0.0
        %3533 = vmatprep.subr.mxu0 0.0
        %3534 = vmatpush1.msra.mxu0 0.0
        %3535 = vmatprep.subr.mxu0 0.0
        %3536 = vmatpush1.msra.mxu0 0.0
        %3537 = vmatprep.subr.mxu0 0.0
        %3538 = vmatpush1.msra.mxu0 0.0
        %3539 = vmatprep.subr.mxu0 0.0
        %3540 = vmatpush1.msra.mxu0 0.0
        %3541 = vmatprep.subr.mxu0 0.0
        %3542 = vmatpush1.msra.mxu0 0.0
        %3543 = vmatprep.subr.mxu0 0.0
        %3544 = vmatpush1.msra.mxu0 0.0
        %3545 = vmatprep.subr.mxu0 0.0
        %3546 = vmatpush1.msra.mxu0 0.0
        %3547 = vmatprep.subr.mxu0 0.0
        %3548 = vmatpush1.msra.mxu0 0.0
        %3549 = vmatprep.subr.mxu0 0.0
        %3550 = vmatpush1.msra.mxu0 0.0
        %3551 = vmatprep.subr.mxu0 0.0
        %3552 = vmatpush1.msra.mxu0 0.0
        %3553 = vmatprep.subr.mxu0 0.0
        %3554 = vmatpush1.msra.mxu0 0.0
        %3555 = vmatprep.subr.mxu0 0.0
        %3556 = vmatpush1.msra.mxu0 0.0
        %3557 = vmatprep.subr.mxu0 0.0
        %3558 = vmatpush1.msra.mxu0 0.0
        %3559 = vmatprep.subr.mxu0 0.0
        %3560 = vmatpush1.msra.mxu0 0.0
        %3561 = vmatprep.subr.mxu0 0.0
        %3562 = vmatpush1.msra.mxu0 0.0
        %3563 = vmatprep.subr.mxu0 0.0
        %3564 = vmatpush1.msra.mxu0 0.0
        %3565 = vmatprep.subr.mxu0 0.0
        %3566 = vmatpush1.msra.mxu0 0.0
        %3567 = vmatprep.subr.mxu0 0.0
        %3568 = vmatpush1.msra.mxu0 0.0
        %3569 = vmatprep.mubr.f32.mxu0 0.0
        %3570 = vmatmul.mubr.f32.gmra.mrb[0].mxu0 %v3501
        %v3571 = vpop.f32.mrb[0].mxu0
        %v3572 = vadd.f32 0.0, %v3571
        %v3573 = vpop.f32.mrb[0].mxu0
        %3574 = vmatprep.mubr.f32.mxu0 0.0
        %3575 = vmatmul.mubr.f32.gmra.mrb[0].mxu0 %v3503
        %v3576 = vpop.f32.mrb[0].mxu0
        %v3577 = vadd.f32 0.0, %v3576
        %v3578 = vpop.f32.mrb[0].mxu0
        %3579 = vdwg.mxu0
        %v3582 = vrot.slane %v3572, 1
        %v3583 = vrot.slane %v3572, 2
        %v3584 = vrot.slane %v3572, 3
        %v3585 = vrot.slane %v3572, 4
        %v3586 = vrot.slane %v3572, 5
        %v3587 = vrot.slane %v3572, 6
        %v3588 = vrot.slane %v3572, 7
        %v3589 = vrot.slane %v3577, 1
        %v3590 = vrot.slane %v3577, 2
        %v3591 = vrot.slane %v3577, 3
        %v3592 = vrot.slane %v3577, 4
        %v3593 = vrot.slane %v3577, 5
        %v3594 = vrot.slane %v3577, 6
        %v3595 = vrot.slane %v3577, 7
        %v3612 = vadd.f32 %v3351, %v3572
        %v3613 = vadd.f32 %v3358, %v3582
        %v3614 = vadd.f32 %v3365, %v3583
        %v3615 = vadd.f32 %v3372, %v3584
        %v3616 = vadd.f32 %v3379, %v3585
        %v3617 = vadd.f32 %v3386, %v3586
        %v3618 = vadd.f32 %v3393, %v3587
        %v3619 = vadd.f32 %v3400, %v3588
        %v3620 = vadd.f32 %v3407, %v3577
        %v3621 = vadd.f32 %v3414, %v3589
        %v3622 = vadd.f32 %v3421, %v3590
        %v3623 = vadd.f32 %v3428, %v3591
        %v3624 = vadd.f32 %v3435, %v3592
        %v3625 = vadd.f32 %v3442, %v3593
        %v3626 = vadd.f32 %v3449, %v3594
        %v3627 = vadd.f32 %v3456, %v3595
        %v3628 = vmul.f32 %v3612, %v3312
        %v3629 = vmul.f32 %v3613, %v3312
        %v3630 = vmul.f32 %v3614, %v3312
        %v3631 = vmul.f32 %v3615, %v3312
        %v3632 = vmul.f32 %v3616, %v3312
        %v3633 = vmul.f32 %v3617, %v3312
        %v3634 = vmul.f32 %v3618, %v3312
        %v3635 = vmul.f32 %v3619, %v3312
        %v3636 = vmul.f32 %v3620, %v3312
        %v3637 = vmul.f32 %v3621, %v3312
        %v3638 = vmul.f32 %v3622, %v3312
        %v3639 = vmul.f32 %v3623, %v3312
        %v3640 = vmul.f32 %v3624, %v3312
        %v3641 = vmul.f32 %v3625, %v3312
        %v3642 = vmul.f32 %v3626, %v3312
        %v3643 = vmul.f32 %v3627, %v3312
        %v3644 = vstv %s3001
        %v3645 = vmul.f32 %v3644, %v3628
        %v3646 = vmul.f32 %v3644, %v3629
        %v3647 = vmul.f32 %v3644, %v3630
        %v3648 = vmul.f32 %v3644, %v3631
        %v3649 = vmul.f32 %v3644, %v3632
        %v3650 = vmul.f32 %v3644, %v3633
        %v3651 = vmul.f32 %v3644, %v3634
        %v3652 = vmul.f32 %v3644, %v3635
        %v3653 = vmul.f32 %v3644, %v3636
        %v3654 = vmul.f32 %v3644, %v3637
        %v3655 = vmul.f32 %v3644, %v3638
        %v3656 = vmul.f32 %v3644, %v3639
        %v3657 = vmul.f32 %v3644, %v3640
        %v3658 = vmul.f32 %v3644, %v3641
        %v3659 = vmul.f32 %v3644, %v3642
        %v3660 = vmul.f32 %v3644, %v3643
        %v3661 = vld [vmem:[%s249] sm:$0x1]
        %v3662 = vld [vmem:[%s249 + $0x8] sm:$0x1]
        %v3663 = vld [vmem:[%s249 + $0x10] sm:$0x1]
        %v3664 = vld [vmem:[%s249 + $0x18] sm:$0x1]
        %v3665 = vld [vmem:[%s249 + $0x20] sm:$0x1]
        %v3666 = vld [vmem:[%s249 + $0x28] sm:$0x1]
        %v3667 = vld [vmem:[%s249 + $0x30] sm:$0x1]
        %v3668 = vld [vmem:[%s249 + $0x38] sm:$0x1]
        %v3669 = vld [vmem:[%s249 + $0x40] sm:$0x1]
        %v3670 = vld [vmem:[%s249 + $0x48] sm:$0x1]
        %v3671 = vld [vmem:[%s249 + $0x50] sm:$0x1]
        %v3672 = vld [vmem:[%s249 + $0x58] sm:$0x1]
        %v3673 = vld [vmem:[%s249 + $0x60] sm:$0x1]
        %v3674 = vld [vmem:[%s249 + $0x68] sm:$0x1]
        %v3675 = vld [vmem:[%s249 + $0x70] sm:$0x1]
        %v3676 = vld [vmem:[%s249 + $0x78] sm:$0x1]
        %v3677 = vadd.f32 %v3645, %v3661
        %v3678 = vadd.f32 %v3646, %v3662
        %v3679 = vadd.f32 %v3647, %v3663
        %v3680 = vadd.f32 %v3648, %v3664
        %v3681 = vadd.f32 %v3649, %v3665
        %v3682 = vadd.f32 %v3650, %v3666
        %v3683 = vadd.f32 %v3651, %v3667
        %v3684 = vadd.f32 %v3652, %v3668
        %v3685 = vadd.f32 %v3653, %v3669
        %v3686 = vadd.f32 %v3654, %v3670
        %v3687 = vadd.f32 %v3655, %v3671
        %v3688 = vadd.f32 %v3656, %v3672
        %v3689 = vadd.f32 %v3657, %v3673
        %v3690 = vadd.f32 %v3658, %v3674
        %v3691 = vadd.f32 %v3659, %v3675
        %v3692 = vadd.f32 %v3660, %v3676
        %3693 = vst.msk [vmem:[%s287] sm:$0x1] %vm508, %v3677
        %3694 = vst.msk [vmem:[%s287 + $0x8] sm:$0x1] %vm508, %v3678
        %3695 = vst.msk [vmem:[%s287 + $0x10] sm:$0x1] %vm508, %v3679
        %3696 = vst.msk [vmem:[%s287 + $0x18] sm:$0x1] %vm508, %v3680
        %3697 = vst.msk [vmem:[%s287 + $0x20] sm:$0x1] %vm508, %v3681
        %3698 = vst.msk [vmem:[%s287 + $0x28] sm:$0x1] %vm508, %v3682
        %3699 = vst.msk [vmem:[%s287 + $0x30] sm:$0x1] %vm508, %v3683
        %3700 = vst.msk [vmem:[%s287 + $0x38] sm:$0x1] %vm508, %v3684
        %3701 = vst.msk [vmem:[%s287 + $0x40] sm:$0x1] %vm508, %v3685
        %3702 = vst.msk [vmem:[%s287 + $0x48] sm:$0x1] %vm508, %v3686
        %3703 = vst.msk [vmem:[%s287 + $0x50] sm:$0x1] %vm508, %v3687
        %3704 = vst.msk [vmem:[%s287 + $0x58] sm:$0x1] %vm508, %v3688
        %3705 = vst.msk [vmem:[%s287 + $0x60] sm:$0x1] %vm508, %v3689
        %3706 = vst.msk [vmem:[%s287 + $0x68] sm:$0x1] %vm508, %v3690
        %3707 = vst.msk [vmem:[%s287 + $0x70] sm:$0x1] %vm508, %v3691
        %3708 = vst.msk [vmem:[%s287 + $0x78] sm:$0x1] %vm508, %v3692
        %v3709 = vld [vmem:[#allocation2 + $0x1] sm:$0x1]
        %v3710 = vld [vmem:[#allocation2 + $0x9] sm:$0x1]
        %v3711 = vld [vmem:[#allocation3 + $0x1] sm:$0x1]
        %v3712 = vld [vmem:[#allocation3 + $0x9] sm:$0x1]
        %v3713 = vld [vmem:[#allocation4 + $0x1] sm:$0x1]
        %v3714 = vld [vmem:[#allocation4 + $0x9] sm:$0x1]
        %v3715 = vld [vmem:[#allocation4 + $0x11] sm:$0x1]
        %v3716 = vld [vmem:[#allocation4 + $0x19] sm:$0x1]
        %v3717 = vld [vmem:[#allocation4 + $0x21] sm:$0x1]
        %v3718 = vld [vmem:[#allocation4 + $0x29] sm:$0x1]
        %v3719 = vld [vmem:[#allocation4 + $0x31] sm:$0x1]
        %v3720 = vld [vmem:[#allocation4 + $0x39] sm:$0x1]
        %v3721 = vld [vmem:[#allocation4 + $0x41] sm:$0x1]
        %v3722 = vld [vmem:[#allocation4 + $0x49] sm:$0x1]
        %v3723 = vld [vmem:[#allocation4 + $0x51] sm:$0x1]
        %v3724 = vld [vmem:[#allocation4 + $0x59] sm:$0x1]
        %v3725 = vld [vmem:[#allocation4 + $0x61] sm:$0x1]
        %v3726 = vld [vmem:[#allocation4 + $0x69] sm:$0x1]
        %v3727 = vld [vmem:[#allocation4 + $0x71] sm:$0x1]
        %v3728 = vld [vmem:[#allocation4 + $0x79] sm:$0x1]
        %v3729 = vld [vmem:[#allocation3] sm:$0xff]
        %v3730 = vld [vmem:[#allocation3 + $0x8] sm:$0xff]
        %v3731 = vlaneseq
        %v3732 = vshrl.u32 %v3731, 7
        %v3733 = vsub.s32 0, %v3732
        %v3734 = vrot.slane %v3709, %v3733
        %v3735 = vlaneseq
        %v3736 = vshrl.u32 %v3735, 7
        %v3737 = vsub.s32 0, %v3736
        %v3738 = vrot.slane %v3710, %v3737
        %v3739 = vmul.f32 %v3734, %v3729
        %v3740 = vmul.f32 %v3738, %v3730
        %v3741 = vsel %vm3044, %v3739, 0.0
        %v3742 = vsel %vm3044, %v3740, 0.0
        %v3743 = vadd.f32 %v3741, %v3742
        %vm3744 = vcmp.eq.s32.totalorder %v3011, 1
        %v3745 = vsel %vm3744, -1e+30, %v3743
        %v3748 = vrot.slane %v3712, 7
        %v3749 = vsel %vm349, %v3748, %v3711
        %3751 = vxpose.xlu0.b32.start [1/16] %v3749, 128
        %3752 = vxpose.xlu0.b32.cont [2/16] 0.0, 128
        %3753 = vxpose.xlu0.b32.cont [3/16] 0.0, 128
        %3754 = vxpose.xlu0.b32.cont [4/16] 0.0, 128
        %3755 = vxpose.xlu0.b32.cont [5/16] 0.0, 128
        %3756 = vxpose.xlu0.b32.cont [6/16] 0.0, 128
        %3757 = vxpose.xlu0.b32.cont [7/16] 0.0, 128
        %3758 = vxpose.xlu0.b32.cont [8/16] 0.0, 128
        %3759 = vxpose.xlu0.b32.cont [9/16] 0.0, 128
        %3760 = vxpose.xlu0.b32.cont [10/16] 0.0, 128
        %3761 = vxpose.xlu0.b32.cont [11/16] 0.0, 128
        %3762 = vxpose.xlu0.b32.cont [12/16] 0.0, 128
        %3763 = vxpose.xlu0.b32.cont [13/16] 0.0, 128
        %3764 = vxpose.xlu0.b32.cont [14/16] 0.0, 128
        %3765 = vxpose.xlu0.b32.cont [15/16] 0.0, 128
        %3766 = vxpose.xlu0.b32.end [16/16] 0.0, 128
        %v3767 = vpop.trf.xlu0
        %v3768 = vpop.trf.xlu0
        %v3769 = vpop.trf.xlu0
        %v3770 = vpop.trf.xlu0
        %v3771 = vpop.trf.xlu0
        %v3772 = vpop.trf.xlu0
        %v3773 = vpop.trf.xlu0
        %v3774 = vpop.trf.xlu0
        %v3775 = vpop.trf.xlu0
        %v3776 = vpop.trf.xlu0
        %v3777 = vpop.trf.xlu0
        %v3778 = vpop.trf.xlu0
        %v3779 = vpop.trf.xlu0
        %v3780 = vpop.trf.xlu0
        %v3781 = vpop.trf.xlu0
        %v3782 = vpop.trf.xlu0
        %v3785 = vrot.slane %v3710, 7
        %v3786 = vsel %vm349, %v3785, %v3709
        %v3788 = vsel %vm3091, %v3767, 0
        %v3791 = vsel %vm3091, %v3768, 0
        %v3794 = vsel %vm3091, %v3769, 0
        %v3797 = vsel %vm3091, %v3770, 0
        %v3800 = vsel %vm3091, %v3771, 0
        %v3803 = vsel %vm3091, %v3772, 0
        %v3806 = vsel %vm3091, %v3773, 0
        %v3809 = vsel %vm3091, %v3774, 0
        %v3811 = vsel %vm3116, %v3786, 0
        %3813 = vmatprep.subr.mxu0 0.0
        %3814 = vmatpush1.msra.mxu0 %v3811
        %3815 = vmatprep.subr.mxu0 0.0
        %3816 = vmatpush1.msra.mxu0 0.0
        %3817 = vmatprep.subr.mxu0 0.0
        %3818 = vmatpush1.msra.mxu0 0.0
        %3819 = vmatprep.subr.mxu0 0.0
        %3820 = vmatpush1.msra.mxu0 0.0
        %3821 = vmatprep.subr.mxu0 0.0
        %3822 = vmatpush1.msra.mxu0 0.0
        %3823 = vmatprep.subr.mxu0 0.0
        %3824 = vmatpush1.msra.mxu0 0.0
        %3825 = vmatprep.subr.mxu0 0.0
        %3826 = vmatpush1.msra.mxu0 0.0
        %3827 = vmatprep.subr.mxu0 0.0
        %3828 = vmatpush1.msra.mxu0 0.0
        %3829 = vmatprep.subr.mxu0 0.0
        %3830 = vmatpush1.msra.mxu0 0.0
        %3831 = vmatprep.subr.mxu0 0.0
        %3832 = vmatpush1.msra.mxu0 0.0
        %3833 = vmatprep.subr.mxu0 0.0
        %3834 = vmatpush1.msra.mxu0 0.0
        %3835 = vmatprep.subr.mxu0 0.0
        %3836 = vmatpush1.msra.mxu0 0.0
        %3837 = vmatprep.subr.mxu0 0.0
        %3838 = vmatpush1.msra.mxu0 0.0
        %3839 = vmatprep.subr.mxu0 0.0
        %3840 = vmatpush1.msra.mxu0 0.0
        %3841 = vmatprep.subr.mxu0 0.0
        %3842 = vmatpush1.msra.mxu0 0.0
        %3843 = vmatprep.subr.mxu0 0.0
        %3844 = vmatpush1.msra.mxu0 0.0
        %3845 = vmatprep.subr.mxu0 0.0
        %3846 = vmatpush1.msra.mxu0 0.0
        %3847 = vmatprep.subr.mxu0 0.0
        %3848 = vmatpush1.msra.mxu0 0.0
        %3849 = vmatprep.subr.mxu0 0.0
        %3850 = vmatpush1.msra.mxu0 0.0
        %3851 = vmatprep.subr.mxu0 0.0
        %3852 = vmatpush1.msra.mxu0 0.0
        %3853 = vmatprep.subr.mxu0 0.0
        %3854 = vmatpush1.msra.mxu0 0.0
        %3855 = vmatprep.subr.mxu0 0.0
        %3856 = vmatpush1.msra.mxu0 0.0
        %3857 = vmatprep.subr.mxu0 0.0
        %3858 = vmatpush1.msra.mxu0 0.0
        %3859 = vmatprep.subr.mxu0 0.0
        %3860 = vmatpush1.msra.mxu0 0.0
        %3861 = vmatprep.subr.mxu0 0.0
        %3862 = vmatpush1.msra.mxu0 0.0
        %3863 = vmatprep.subr.mxu0 0.0
        %3864 = vmatpush1.msra.mxu0 0.0
        %3865 = vmatprep.subr.mxu0 0.0
        %3866 = vmatpush1.msra.mxu0 0.0
        %3867 = vmatprep.subr.mxu0 0.0
        %3868 = vmatpush1.msra.mxu0 0.0
        %3869 = vmatprep.subr.mxu0 0.0
        %3870 = vmatpush1.msra.mxu0 0.0
        %3871 = vmatprep.subr.mxu0 0.0
        %3872 = vmatpush1.msra.mxu0 0.0
        %3873 = vmatprep.subr.mxu0 0.0
        %3874 = vmatpush1.msra.mxu0 0.0
        %3875 = vmatprep.subr.mxu0 0.0
        %3876 = vmatpush1.msra.mxu0 0.0
        %3877 = vmatprep.mubr.f32.mxu0 0.0
        %3878 = vmatmul.mubr.f32.gmra.mrb[0].mxu0 %v3788
        %v3879 = vpop.f32.mrb[0].mxu0
        %v3880 = vadd.f32 %v3002, %v3879
        %v3881 = vpop.f32.mrb[0].mxu0
        %3882 = vmatprep.mubr.f32.mxu0 0.0
        %3883 = vmatmul.mubr.f32.gmra.mrb[0].mxu0 %v3791
        %v3884 = vpop.f32.mrb[0].mxu0
        %v3885 = vadd.f32 %v3003, %v3884
        %v3886 = vpop.f32.mrb[0].mxu0
        %3887 = vmatprep.mubr.f32.mxu0 0.0
        %3888 = vmatmul.mubr.f32.gmra.mrb[0].mxu0 %v3794
        %v3889 = vpop.f32.mrb[0].mxu0
        %v3890 = vadd.f32 %v3004, %v3889
        %v3891 = vpop.f32.mrb[0].mxu0
        %3892 = vmatprep.mubr.f32.mxu0 0.0
        %3893 = vmatmul.mubr.f32.gmra.mrb[0].mxu0 %v3797
        %v3894 = vpop.f32.mrb[0].mxu0
        %v3895 = vadd.f32 %v3005, %v3894
        %v3896 = vpop.f32.mrb[0].mxu0
        %3897 = vmatprep.mubr.f32.mxu0 0.0
        %3898 = vmatmul.mubr.f32.gmra.mrb[0].mxu0 %v3800
        %v3899 = vpop.f32.mrb[0].mxu0
        %v3900 = vadd.f32 %v3006, %v3899
        %v3901 = vpop.f32.mrb[0].mxu0
        %3902 = vmatprep.mubr.f32.mxu0 0.0
        %3903 = vmatmul.mubr.f32.gmra.mrb[0].mxu0 %v3803
        %v3904 = vpop.f32.mrb[0].mxu0
        %v3905 = vadd.f32 %v3007, %v3904
        %v3906 = vpop.f32.mrb[0].mxu0
        %3907 = vmatprep.mubr.f32.mxu0 0.0
        %3908 = vmatmul.mubr.f32.gmra.mrb[0].mxu0 %v3806
        %v3909 = vpop.f32.mrb[0].mxu0
        %v3910 = vadd.f32 %v3008, %v3909
        %v3911 = vpop.f32.mrb[0].mxu0
        %3912 = vmatprep.mubr.f32.mxu0 0.0
        %3913 = vmatmul.mubr.f32.gmra.mrb[0].mxu0 %v3809
        %v3914 = vpop.f32.mrb[0].mxu0
        %v3915 = vadd.f32 %v3009, %v3914
        %v3916 = vpop.f32.mrb[0].mxu0
        %3917 = vdwg.mxu0
        %v3918 = vsel %vm3044, %v3745, -inf
        %v3919 = vrot.slane %v3918, 4
        %v3920 = vmax.f32 %v3918, %v3919
        %v3921 = vrot.slane %v3920, 2
        %v3922 = vmax.f32 %v3920, %v3921
        %v3923 = vrot.slane %v3922, 1
        %v3924 = vmax.f32 %v3922, %v3923
        %v3925 = vsel %vm3044, %v3880, -inf
        %v3926 = vsel %vm3044, %v3885, -inf
        %v3927 = vsel %vm3044, %v3890, -inf
        %v3928 = vsel %vm3044, %v3895, -inf
        %v3929 = vsel %vm3044, %v3900, -inf
        %v3930 = vmax.f32 %v3925, %v3929
        %v3931 = vsel %vm3044, %v3905, -inf
        %v3932 = vmax.f32 %v3926, %v3931
        %v3933 = vsel %vm3044, %v3910, -inf
        %v3934 = vmax.f32 %v3927, %v3933
        %v3935 = vsel %vm3044, %v3915, -inf
        %v3936 = vmax.f32 %v3928, %v3935
        %v3937 = vmax.f32 %v3930, %v3932
        %v3938 = vmax.f32 %v3934, %v3936
        %v3939 = vmax.f32 %v3937, %v3938
        %v3940 = vrot.slane %v3939, 4
        %v3941 = vmax.f32 %v3939, %v3940
        %v3942 = vrot.slane %v3941, 2
        %v3943 = vmax.f32 %v3941, %v3942
        %v3944 = vrot.slane %v3943, 1
        %v3945 = vmax.f32 %v3943, %v3944
        %v3946 = vmax.f32 %v3924, %v3945
        %v3947 = vsub.f32 %v3745, %v3946
        %v3948 = vmul.f32 %v3947, 1.442695
        %v3949 = vpow.pop %v3948
        %v3950 = vsub.f32 %v3880, %v3946
        %v3951 = vsub.f32 %v3885, %v3946
        %v3952 = vsub.f32 %v3890, %v3946
        %v3953 = vsub.f32 %v3895, %v3946
        %v3954 = vsub.f32 %v3900, %v3946
        %v3955 = vsub.f32 %v3905, %v3946
        %v3956 = vsub.f32 %v3910, %v3946
        %v3957 = vsub.f32 %v3915, %v3946
        %v3958 = vmul.f32 %v3950, 1.442695
        %v3959 = vpow.pop %v3958
        %v3960 = vmul.f32 %v3951, 1.442695
        %v3961 = vpow.pop %v3960
        %v3962 = vmul.f32 %v3952, 1.442695
        %v3963 = vpow.pop %v3962
        %v3964 = vmul.f32 %v3953, 1.442695
        %v3965 = vpow.pop %v3964
        %v3966 = vmul.f32 %v3954, 1.442695
        %v3967 = vpow.pop %v3966
        %v3968 = vmul.f32 %v3955, 1.442695
        %v3969 = vpow.pop %v3968
        %v3970 = vmul.f32 %v3956, 1.442695
        %v3971 = vpow.pop %v3970
        %v3972 = vmul.f32 %v3957, 1.442695
        %v3973 = vpow.pop %v3972
        %v3974 = vsel %vm3044, %v3949, 0.0
        %v3975 = vrot.slane %v3974, 4
        %v3976 = vadd.f32 %v3974, %v3975
        %v3977 = vrot.slane %v3976, 2
        %v3978 = vadd.f32 %v3976, %v3977
        %v3979 = vrot.slane %v3978, 1
        %v3980 = vadd.f32 %v3978, %v3979
        %v3981 = vsel %vm3044, %v3959, 0.0
        %v3982 = vsel %vm3044, %v3961, 0.0
        %v3983 = vadd.f32 %v3981, %v3982
        %v3984 = vsel %vm3044, %v3963, 0.0
        %v3985 = vadd.f32 %v3983, %v3984
        %v3986 = vsel %vm3044, %v3965, 0.0
        %v3987 = vadd.f32 %v3985, %v3986
        %v3988 = vsel %vm3044, %v3967, 0.0
        %v3989 = vadd.f32 %v3987, %v3988
        %v3990 = vsel %vm3044, %v3969, 0.0
        %v3991 = vadd.f32 %v3989, %v3990
        %v3992 = vsel %vm3044, %v3971, 0.0
        %v3993 = vadd.f32 %v3991, %v3992
        %v3994 = vsel %vm3044, %v3973, 0.0
        %v3995 = vadd.f32 %v3993, %v3994
        %v3996 = vrot.slane %v3995, 4
        %v3997 = vadd.f32 %v3995, %v3996
        %v3998 = vrot.slane %v3997, 2
        %v3999 = vadd.f32 %v3997, %v3998
        %v4000 = vrot.slane %v3999, 1
        %v4001 = vadd.f32 %v3999, %v4000
        %v4002 = vadd.f32 %v3980, %v4001
        %v4003 = vrcp.pop %v4002
        %v4004 = vmul.f32 %v4002, %v4003
        %v4005 = vsub.f32 2.0, %v4004
        %v4006 = vmul.f32 %v4003, %v4005
        %v4007 = vld [vmem:[#allocation4] sm:$0xff]
        %v4008 = vld [vmem:[#allocation4 + $0x8] sm:$0xff]
        %v4009 = vld [vmem:[#allocation4 + $0x10] sm:$0xff]
        %v4010 = vld [vmem:[#allocation4 + $0x18] sm:$0xff]
        %v4011 = vld [vmem:[#allocation4 + $0x20] sm:$0xff]
        %v4012 = vld [vmem:[#allocation4 + $0x28] sm:$0xff]
        %v4013 = vld [vmem:[#allocation4 + $0x30] sm:$0xff]
        %v4014 = vld [vmem:[#allocation4 + $0x38] sm:$0xff]
        %v4015 = vld [vmem:[#allocation4 + $0x40] sm:$0xff]
        %v4016 = vld [vmem:[#allocation4 + $0x48] sm:$0xff]
        %v4017 = vld [vmem:[#allocation4 + $0x50] sm:$0xff]
        %v4018 = vld [vmem:[#allocation4 + $0x58] sm:$0xff]
        %v4019 = vld [vmem:[#allocation4 + $0x60] sm:$0xff]
        %v4020 = vld [vmem:[#allocation4 + $0x68] sm:$0xff]
        %v4021 = vld [vmem:[#allocation4 + $0x70] sm:$0xff]
        %v4022 = vld [vmem:[#allocation4 + $0x78] sm:$0xff]
        %v4023 = vmul.f32 %v3949, %v4007
        %v4024 = vmul.f32 %v3949, %v4008
        %v4025 = vmul.f32 %v3949, %v4009
        %v4026 = vmul.f32 %v3949, %v4010
        %v4027 = vmul.f32 %v3949, %v4011
        %v4028 = vmul.f32 %v3949, %v4012
        %v4029 = vmul.f32 %v3949, %v4013
        %v4030 = vmul.f32 %v3949, %v4014
        %v4031 = vmul.f32 %v3949, %v4015
        %v4032 = vmul.f32 %v3949, %v4016
        %v4033 = vmul.f32 %v3949, %v4017
        %v4034 = vmul.f32 %v3949, %v4018
        %v4035 = vmul.f32 %v3949, %v4019
        %v4036 = vmul.f32 %v3949, %v4020
        %v4037 = vmul.f32 %v3949, %v4021
        %v4038 = vmul.f32 %v3949, %v4022
        %v4039 = vsel %vm3044, %v4023, 0.0
        %v4040 = vrot.slane %v4039, 4
        %v4041 = vadd.f32 %v4039, %v4040
        %v4042 = vrot.slane %v4041, 2
        %v4043 = vadd.f32 %v4041, %v4042
        %v4044 = vrot.slane %v4043, 1
        %v4045 = vadd.f32 %v4043, %v4044
        %v4046 = vsel %vm3044, %v4024, 0.0
        %v4047 = vrot.slane %v4046, 4
        %v4048 = vadd.f32 %v4046, %v4047
        %v4049 = vrot.slane %v4048, 2
        %v4050 = vadd.f32 %v4048, %v4049
        %v4051 = vrot.slane %v4050, 1
        %v4052 = vadd.f32 %v4050, %v4051
        %v4053 = vsel %vm3044, %v4025, 0.0
        %v4054 = vrot.slane %v4053, 4
        %v4055 = vadd.f32 %v4053, %v4054
        %v4056 = vrot.slane %v4055, 2
        %v4057 = vadd.f32 %v4055, %v4056
        %v4058 = vrot.slane %v4057, 1
        %v4059 = vadd.f32 %v4057, %v4058
        %v4060 = vsel %vm3044, %v4026, 0.0
        %v4061 = vrot.slane %v4060, 4
        %v4062 = vadd.f32 %v4060, %v4061
        %v4063 = vrot.slane %v4062, 2
        %v4064 = vadd.f32 %v4062, %v4063
        %v4065 = vrot.slane %v4064, 1
        %v4066 = vadd.f32 %v4064, %v4065
        %v4067 = vsel %vm3044, %v4027, 0.0
        %v4068 = vrot.slane %v4067, 4
        %v4069 = vadd.f32 %v4067, %v4068
        %v4070 = vrot.slane %v4069, 2
        %v4071 = vadd.f32 %v4069, %v4070
        %v4072 = vrot.slane %v4071, 1
        %v4073 = vadd.f32 %v4071, %v4072
        %v4074 = vsel %vm3044, %v4028, 0.0
        %v4075 = vrot.slane %v4074, 4
        %v4076 = vadd.f32 %v4074, %v4075
        %v4077 = vrot.slane %v4076, 2
        %v4078 = vadd.f32 %v4076, %v4077
        %v4079 = vrot.slane %v4078, 1
        %v4080 = vadd.f32 %v4078, %v4079
        %v4081 = vsel %vm3044, %v4029, 0.0
        %v4082 = vrot.slane %v4081, 4
        %v4083 = vadd.f32 %v4081, %v4082
        %v4084 = vrot.slane %v4083, 2
        %v4085 = vadd.f32 %v4083, %v4084
        %v4086 = vrot.slane %v4085, 1
        %v4087 = vadd.f32 %v4085, %v4086
        %v4088 = vsel %vm3044, %v4030, 0.0
        %v4089 = vrot.slane %v4088, 4
        %v4090 = vadd.f32 %v4088, %v4089
        %v4091 = vrot.slane %v4090, 2
        %v4092 = vadd.f32 %v4090, %v4091
        %v4093 = vrot.slane %v4092, 1
        %v4094 = vadd.f32 %v4092, %v4093
        %v4095 = vsel %vm3044, %v4031, 0.0
        %v4096 = vrot.slane %v4095, 4
        %v4097 = vadd.f32 %v4095, %v4096
        %v4098 = vrot.slane %v4097, 2
        %v4099 = vadd.f32 %v4097, %v4098
        %v4100 = vrot.slane %v4099, 1
        %v4101 = vadd.f32 %v4099, %v4100
        %v4102 = vsel %vm3044, %v4032, 0.0
        %v4103 = vrot.slane %v4102, 4
        %v4104 = vadd.f32 %v4102, %v4103
        %v4105 = vrot.slane %v4104, 2
        %v4106 = vadd.f32 %v4104, %v4105
        %v4107 = vrot.slane %v4106, 1
        %v4108 = vadd.f32 %v4106, %v4107
        %v4109 = vsel %vm3044, %v4033, 0.0
        %v4110 = vrot.slane %v4109, 4
        %v4111 = vadd.f32 %v4109, %v4110
        %v4112 = vrot.slane %v4111, 2
        %v4113 = vadd.f32 %v4111, %v4112
        %v4114 = vrot.slane %v4113, 1
        %v4115 = vadd.f32 %v4113, %v4114
        %v4116 = vsel %vm3044, %v4034, 0.0
        %v4117 = vrot.slane %v4116, 4
        %v4118 = vadd.f32 %v4116, %v4117
        %v4119 = vrot.slane %v4118, 2
        %v4120 = vadd.f32 %v4118, %v4119
        %v4121 = vrot.slane %v4120, 1
        %v4122 = vadd.f32 %v4120, %v4121
        %v4123 = vsel %vm3044, %v4035, 0.0
        %v4124 = vrot.slane %v4123, 4
        %v4125 = vadd.f32 %v4123, %v4124
        %v4126 = vrot.slane %v4125, 2
        %v4127 = vadd.f32 %v4125, %v4126
        %v4128 = vrot.slane %v4127, 1
        %v4129 = vadd.f32 %v4127, %v4128
        %v4130 = vsel %vm3044, %v4036, 0.0
        %v4131 = vrot.slane %v4130, 4
        %v4132 = vadd.f32 %v4130, %v4131
        %v4133 = vrot.slane %v4132, 2
        %v4134 = vadd.f32 %v4132, %v4133
        %v4135 = vrot.slane %v4134, 1
        %v4136 = vadd.f32 %v4134, %v4135
        %v4137 = vsel %vm3044, %v4037, 0.0
        %v4138 = vrot.slane %v4137, 4
        %v4139 = vadd.f32 %v4137, %v4138
        %v4140 = vrot.slane %v4139, 2
        %v4141 = vadd.f32 %v4139, %v4140
        %v4142 = vrot.slane %v4141, 1
        %v4143 = vadd.f32 %v4141, %v4142
        %v4144 = vsel %vm3044, %v4038, 0.0
        %v4145 = vrot.slane %v4144, 4
        %v4146 = vadd.f32 %v4144, %v4145
        %v4147 = vrot.slane %v4146, 2
        %v4148 = vadd.f32 %v4146, %v4147
        %v4149 = vrot.slane %v4148, 1
        %v4150 = vadd.f32 %v4148, %v4149
        %v4167 = vrot.slane %v3714, 7
        %v4168 = vsel %vm349, %v4167, %v3713
        %v4169 = vrot.slane %v3715, 6
        %v4170 = vsel %vm352, %v4169, %v4168
        %v4171 = vrot.slane %v3716, 5
        %v4172 = vsel %vm355, %v4171, %v4170
        %v4173 = vrot.slane %v3717, 4
        %v4174 = vsel %vm358, %v4173, %v4172
        %v4175 = vrot.slane %v3718, 3
        %v4176 = vsel %vm361, %v4175, %v4174
        %v4177 = vrot.slane %v3719, 2
        %v4178 = vsel %vm364, %v4177, %v4176
        %v4179 = vrot.slane %v3720, 1
        %v4180 = vsel %vm367, %v4179, %v4178
        %v4181 = vrot.slane %v3722, 7
        %v4182 = vsel %vm349, %v4181, %v3721
        %v4183 = vrot.slane %v3723, 6
        %v4184 = vsel %vm352, %v4183, %v4182
        %v4185 = vrot.slane %v3724, 5
        %v4186 = vsel %vm355, %v4185, %v4184
        %v4187 = vrot.slane %v3725, 4
        %v4188 = vsel %vm358, %v4187, %v4186
        %v4189 = vrot.slane %v3726, 3
        %v4190 = vsel %vm361, %v4189, %v4188
        %v4191 = vrot.slane %v3727, 2
        %v4192 = vsel %vm364, %v4191, %v4190
        %v4193 = vrot.slane %v3728, 1
        %v4194 = vsel %vm367, %v4193, %v4192
        %v4195 = vsel %vm3044, %v4180, 0
        %v4197 = vsel %vm3044, %v4194, 0
        %4199 = vmatprep.subr.mxu0 0.0
        %4200 = vmatpush1.msra.mxu0 %v3959
        %4201 = vmatprep.subr.mxu0 0.0
        %4202 = vmatpush1.msra.mxu0 %v3961
        %4203 = vmatprep.subr.mxu0 0.0
        %4204 = vmatpush1.msra.mxu0 %v3963
        %4205 = vmatprep.subr.mxu0 0.0
        %4206 = vmatpush1.msra.mxu0 %v3965
        %4207 = vmatprep.subr.mxu0 0.0
        %4208 = vmatpush1.msra.mxu0 %v3967
        %4209 = vmatprep.subr.mxu0 0.0
        %4210 = vmatpush1.msra.mxu0 %v3969
        %4211 = vmatprep.subr.mxu0 0.0
        %4212 = vmatpush1.msra.mxu0 %v3971
        %4213 = vmatprep.subr.mxu0 0.0
        %4214 = vmatpush1.msra.mxu0 %v3973
        %4215 = vmatprep.subr.mxu0 0.0
        %4216 = vmatpush1.msra.mxu0 0.0
        %4217 = vmatprep.subr.mxu0 0.0
        %4218 = vmatpush1.msra.mxu0 0.0
        %4219 = vmatprep.subr.mxu0 0.0
        %4220 = vmatpush1.msra.mxu0 0.0
        %4221 = vmatprep.subr.mxu0 0.0
        %4222 = vmatpush1.msra.mxu0 0.0
        %4223 = vmatprep.subr.mxu0 0.0
        %4224 = vmatpush1.msra.mxu0 0.0
        %4225 = vmatprep.subr.mxu0 0.0
        %4226 = vmatpush1.msra.mxu0 0.0
        %4227 = vmatprep.subr.mxu0 0.0
        %4228 = vmatpush1.msra.mxu0 0.0
        %4229 = vmatprep.subr.mxu0 0.0
        %4230 = vmatpush1.msra.mxu0 0.0
        %4231 = vmatprep.subr.mxu0 0.0
        %4232 = vmatpush1.msra.mxu0 0.0
        %4233 = vmatprep.subr.mxu0 0.0
        %4234 = vmatpush1.msra.mxu0 0.0
        %4235 = vmatprep.subr.mxu0 0.0
        %4236 = vmatpush1.msra.mxu0 0.0
        %4237 = vmatprep.subr.mxu0 0.0
        %4238 = vmatpush1.msra.mxu0 0.0
        %4239 = vmatprep.subr.mxu0 0.0
        %4240 = vmatpush1.msra.mxu0 0.0
        %4241 = vmatprep.subr.mxu0 0.0
        %4242 = vmatpush1.msra.mxu0 0.0
        %4243 = vmatprep.subr.mxu0 0.0
        %4244 = vmatpush1.msra.mxu0 0.0
        %4245 = vmatprep.subr.mxu0 0.0
        %4246 = vmatpush1.msra.mxu0 0.0
        %4247 = vmatprep.subr.mxu0 0.0
        %4248 = vmatpush1.msra.mxu0 0.0
        %4249 = vmatprep.subr.mxu0 0.0
        %4250 = vmatpush1.msra.mxu0 0.0
        %4251 = vmatprep.subr.mxu0 0.0
        %4252 = vmatpush1.msra.mxu0 0.0
        %4253 = vmatprep.subr.mxu0 0.0
        %4254 = vmatpush1.msra.mxu0 0.0
        %4255 = vmatprep.subr.mxu0 0.0
        %4256 = vmatpush1.msra.mxu0 0.0
        %4257 = vmatprep.subr.mxu0 0.0
        %4258 = vmatpush1.msra.mxu0 0.0
        %4259 = vmatprep.subr.mxu0 0.0
        %4260 = vmatpush1.msra.mxu0 0.0
        %4261 = vmatprep.subr.mxu0 0.0
        %4262 = vmatpush1.msra.mxu0 0.0
        %4263 = vmatprep.mubr.f32.mxu0 0.0
        %4264 = vmatmul.mubr.f32.gmra.mrb[0].mxu0 %v4195
        %v4265 = vpop.f32.mrb[0].mxu0
        %v4266 = vadd.f32 0.0, %v4265
        %v4267 = vpop.f32.mrb[0].mxu0
        %4268 = vmatprep.mubr.f32.mxu0 0.0
        %4269 = vmatmul.mubr.f32.gmra.mrb[0].mxu0 %v4197
        %v4270 = vpop.f32.mrb[0].mxu0
        %v4271 = vadd.f32 0.0, %v4270
        %v4272 = vpop.f32.mrb[0].mxu0
        %4273 = vdwg.mxu0
        %v4276 = vrot.slane %v4266, 1
        %v4277 = vrot.slane %v4266, 2
        %v4278 = vrot.slane %v4266, 3
        %v4279 = vrot.slane %v4266, 4
        %v4280 = vrot.slane %v4266, 5
        %v4281 = vrot.slane %v4266, 6
        %v4282 = vrot.slane %v4266, 7
        %v4283 = vrot.slane %v4271, 1
        %v4284 = vrot.slane %v4271, 2
        %v4285 = vrot.slane %v4271, 3
        %v4286 = vrot.slane %v4271, 4
        %v4287 = vrot.slane %v4271, 5
        %v4288 = vrot.slane %v4271, 6
        %v4289 = vrot.slane %v4271, 7
        %v4306 = vadd.f32 %v4045, %v4266
        %v4307 = vadd.f32 %v4052, %v4276
        %v4308 = vadd.f32 %v4059, %v4277
        %v4309 = vadd.f32 %v4066, %v4278
        %v4310 = vadd.f32 %v4073, %v4279
        %v4311 = vadd.f32 %v4080, %v4280
        %v4312 = vadd.f32 %v4087, %v4281
        %v4313 = vadd.f32 %v4094, %v4282
        %v4314 = vadd.f32 %v4101, %v4271
        %v4315 = vadd.f32 %v4108, %v4283
        %v4316 = vadd.f32 %v4115, %v4284
        %v4317 = vadd.f32 %v4122, %v4285
        %v4318 = vadd.f32 %v4129, %v4286
        %v4319 = vadd.f32 %v4136, %v4287
        %v4320 = vadd.f32 %v4143, %v4288
        %v4321 = vadd.f32 %v4150, %v4289
        %v4322 = vmul.f32 %v4306, %v4006
        %v4323 = vmul.f32 %v4307, %v4006
        %v4324 = vmul.f32 %v4308, %v4006
        %v4325 = vmul.f32 %v4309, %v4006
        %v4326 = vmul.f32 %v4310, %v4006
        %v4327 = vmul.f32 %v4311, %v4006
        %v4328 = vmul.f32 %v4312, %v4006
        %v4329 = vmul.f32 %v4313, %v4006
        %v4330 = vmul.f32 %v4314, %v4006
        %v4331 = vmul.f32 %v4315, %v4006
        %v4332 = vmul.f32 %v4316, %v4006
        %v4333 = vmul.f32 %v4317, %v4006
        %v4334 = vmul.f32 %v4318, %v4006
        %v4335 = vmul.f32 %v4319, %v4006
        %v4336 = vmul.f32 %v4320, %v4006
        %v4337 = vmul.f32 %v4321, %v4006
        %v4338 = vmul.f32 %v3644, %v4322
        %v4339 = vmul.f32 %v3644, %v4323
        %v4340 = vmul.f32 %v3644, %v4324
        %v4341 = vmul.f32 %v3644, %v4325
        %v4342 = vmul.f32 %v3644, %v4326
        %v4343 = vmul.f32 %v3644, %v4327
        %v4344 = vmul.f32 %v3644, %v4328
        %v4345 = vmul.f32 %v3644, %v4329
        %v4346 = vmul.f32 %v3644, %v4330
        %v4347 = vmul.f32 %v3644, %v4331
        %v4348 = vmul.f32 %v3644, %v4332
        %v4349 = vmul.f32 %v3644, %v4333
        %v4350 = vmul.f32 %v3644, %v4334
        %v4351 = vmul.f32 %v3644, %v4335
        %v4352 = vmul.f32 %v3644, %v4336
        %v4353 = vmul.f32 %v3644, %v4337
        %v4354 = vld [vmem:[%s249 + $0x1] sm:$0x1]
        %v4355 = vld [vmem:[%s249 + $0x9] sm:$0x1]
        %v4356 = vld [vmem:[%s249 + $0x11] sm:$0x1]
        %v4357 = vld [vmem:[%s249 + $0x19] sm:$0x1]
        %v4358 = vld [vmem:[%s249 + $0x21] sm:$0x1]
        %v4359 = vld [vmem:[%s249 + $0x29] sm:$0x1]
        %v4360 = vld [vmem:[%s249 + $0x31] sm:$0x1]
        %v4361 = vld [vmem:[%s249 + $0x39] sm:$0x1]
        %v4362 = vld [vmem:[%s249 + $0x41] sm:$0x1]
        %v4363 = vld [vmem:[%s249 + $0x49] sm:$0x1]
        %v4364 = vld [vmem:[%s249 + $0x51] sm:$0x1]
        %v4365 = vld [vmem:[%s249 + $0x59] sm:$0x1]
        %v4366 = vld [vmem:[%s249 + $0x61] sm:$0x1]
        %v4367 = vld [vmem:[%s249 + $0x69] sm:$0x1]
        %v4368 = vld [vmem:[%s249 + $0x71] sm:$0x1]
        %v4369 = vld [vmem:[%s249 + $0x79] sm:$0x1]
        %v4370 = vadd.f32 %v4338, %v4354
        %v4371 = vadd.f32 %v4339, %v4355
        %v4372 = vadd.f32 %v4340, %v4356
        %v4373 = vadd.f32 %v4341, %v4357
        %v4374 = vadd.f32 %v4342, %v4358
        %v4375 = vadd.f32 %v4343, %v4359
        %v4376 = vadd.f32 %v4344, %v4360
        %v4377 = vadd.f32 %v4345, %v4361
        %v4378 = vadd.f32 %v4346, %v4362
        %v4379 = vadd.f32 %v4347, %v4363
        %v4380 = vadd.f32 %v4348, %v4364
        %v4381 = vadd.f32 %v4349, %v4365
        %v4382 = vadd.f32 %v4350, %v4366
        %v4383 = vadd.f32 %v4351, %v4367
        %v4384 = vadd.f32 %v4352, %v4368
        %v4385 = vadd.f32 %v4353, %v4369
        %4386 = vst.msk [vmem:[%s287 + $0x1] sm:$0x1] %vm508, %v4370
        %4387 = vst.msk [vmem:[%s287 + $0x9] sm:$0x1] %vm508, %v4371
        %4388 = vst.msk [vmem:[%s287 + $0x11] sm:$0x1] %vm508, %v4372
        %4389 = vst.msk [vmem:[%s287 + $0x19] sm:$0x1] %vm508, %v4373
        %4390 = vst.msk [vmem:[%s287 + $0x21] sm:$0x1] %vm508, %v4374
        %4391 = vst.msk [vmem:[%s287 + $0x29] sm:$0x1] %vm508, %v4375
        %4392 = vst.msk [vmem:[%s287 + $0x31] sm:$0x1] %vm508, %v4376
        %4393 = vst.msk [vmem:[%s287 + $0x39] sm:$0x1] %vm508, %v4377
        %4394 = vst.msk [vmem:[%s287 + $0x41] sm:$0x1] %vm508, %v4378
        %4395 = vst.msk [vmem:[%s287 + $0x49] sm:$0x1] %vm508, %v4379
        %4396 = vst.msk [vmem:[%s287 + $0x51] sm:$0x1] %vm508, %v4380
        %4397 = vst.msk [vmem:[%s287 + $0x59] sm:$0x1] %vm508, %v4381
        %4398 = vst.msk [vmem:[%s287 + $0x61] sm:$0x1] %vm508, %v4382
        %4399 = vst.msk [vmem:[%s287 + $0x69] sm:$0x1] %vm508, %v4383
        %4400 = vst.msk [vmem:[%s287 + $0x71] sm:$0x1] %vm508, %v4384
        %4401 = vst.msk [vmem:[%s287 + $0x79] sm:$0x1] %vm508, %v4385
        %v4402 = vld [vmem:[#allocation2 + $0x2] sm:$0x1]
        %v4403 = vld [vmem:[#allocation2 + $0xa] sm:$0x1]
        %v4404 = vld [vmem:[#allocation3 + $0x2] sm:$0x1]
        %v4405 = vld [vmem:[#allocation3 + $0xa] sm:$0x1]
        %v4406 = vld [vmem:[#allocation4 + $0x2] sm:$0x1]
        %v4407 = vld [vmem:[#allocation4 + $0xa] sm:$0x1]
        %v4408 = vld [vmem:[#allocation4 + $0x12] sm:$0x1]
        %v4409 = vld [vmem:[#allocation4 + $0x1a] sm:$0x1]
        %v4410 = vld [vmem:[#allocation4 + $0x22] sm:$0x1]
        %v4411 = vld [vmem:[#allocation4 + $0x2a] sm:$0x1]
        %v4412 = vld [vmem:[#allocation4 + $0x32] sm:$0x1]
        %v4413 = vld [vmem:[#allocation4 + $0x3a] sm:$0x1]
        %v4414 = vld [vmem:[#allocation4 + $0x42] sm:$0x1]
        %v4415 = vld [vmem:[#allocation4 + $0x4a] sm:$0x1]
        %v4416 = vld [vmem:[#allocation4 + $0x52] sm:$0x1]
        %v4417 = vld [vmem:[#allocation4 + $0x5a] sm:$0x1]
        %v4418 = vld [vmem:[#allocation4 + $0x62] sm:$0x1]
        %v4419 = vld [vmem:[#allocation4 + $0x6a] sm:$0x1]
        %v4420 = vld [vmem:[#allocation4 + $0x72] sm:$0x1]
        %v4421 = vld [vmem:[#allocation4 + $0x7a] sm:$0x1]
        %v4422 = vld [vmem:[#allocation3] sm:$0xff]
        %v4423 = vld [vmem:[#allocation3 + $0x8] sm:$0xff]
        %v4424 = vlaneseq
        %v4425 = vshrl.u32 %v4424, 7
        %v4426 = vsub.s32 0, %v4425
        %v4427 = vrot.slane %v4402, %v4426
        %v4428 = vlaneseq
        %v4429 = vshrl.u32 %v4428, 7
        %v4430 = vsub.s32 0, %v4429
        %v4431 = vrot.slane %v4403, %v4430
        %v4432 = vmul.f32 %v4427, %v4422
        %v4433 = vmul.f32 %v4431, %v4423
        %v4434 = vsel %vm3044, %v4432, 0.0
        %v4435 = vsel %vm3044, %v4433, 0.0
        %v4436 = vadd.f32 %v4434, %v4435
        %vm4437 = vcmp.eq.s32.totalorder %v3011, 2
        %v4438 = vsel %vm4437, -1e+30, %v4436
        %v4441 = vrot.slane %v4405, 7
        %v4442 = vsel %vm349, %v4441, %v4404
        %4444 = vxpose.xlu0.b32.start [1/16] %v4442, 128
        %4445 = vxpose.xlu0.b32.cont [2/16] 0.0, 128
        %4446 = vxpose.xlu0.b32.cont [3/16] 0.0, 128
        %4447 = vxpose.xlu0.b32.cont [4/16] 0.0, 128
        %4448 = vxpose.xlu0.b32.cont [5/16] 0.0, 128
        %4449 = vxpose.xlu0.b32.cont [6/16] 0.0, 128
        %4450 = vxpose.xlu0.b32.cont [7/16] 0.0, 128
        %4451 = vxpose.xlu0.b32.cont [8/16] 0.0, 128
        %4452 = vxpose.xlu0.b32.cont [9/16] 0.0, 128
        %4453 = vxpose.xlu0.b32.cont [10/16] 0.0, 128
        %4454 = vxpose.xlu0.b32.cont [11/16] 0.0, 128
        %4455 = vxpose.xlu0.b32.cont [12/16] 0.0, 128
        %4456 = vxpose.xlu0.b32.cont [13/16] 0.0, 128
        %4457 = vxpose.xlu0.b32.cont [14/16] 0.0, 128
        %4458 = vxpose.xlu0.b32.cont [15/16] 0.0, 128
        %4459 = vxpose.xlu0.b32.end [16/16] 0.0, 128
        %v4460 = vpop.trf.xlu0
        %v4461 = vpop.trf.xlu0
        %v4462 = vpop.trf.xlu0
        %v4463 = vpop.trf.xlu0
        %v4464 = vpop.trf.xlu0
        %v4465 = vpop.trf.xlu0
        %v4466 = vpop.trf.xlu0
        %v4467 = vpop.trf.xlu0
        %v4468 = vpop.trf.xlu0
        %v4469 = vpop.trf.xlu0
        %v4470 = vpop.trf.xlu0
        %v4471 = vpop.trf.xlu0
        %v4472 = vpop.trf.xlu0
        %v4473 = vpop.trf.xlu0
        %v4474 = vpop.trf.xlu0
        %v4475 = vpop.trf.xlu0
        %v4478 = vrot.slane %v4403, 7
        %v4479 = vsel %vm349, %v4478, %v4402
        %v4481 = vsel %vm3091, %v4460, 0
        %v4484 = vsel %vm3091, %v4461, 0
        %v4487 = vsel %vm3091, %v4462, 0
        %v4490 = vsel %vm3091, %v4463, 0
        %v4493 = vsel %vm3091, %v4464, 0
        %v4496 = vsel %vm3091, %v4465, 0
        %v4499 = vsel %vm3091, %v4466, 0
        %v4502 = vsel %vm3091, %v4467, 0
        %v4504 = vsel %vm3116, %v4479, 0
        %4506 = vmatprep.subr.mxu0 0.0
        %4507 = vmatpush1.msra.mxu0 %v4504
        %4508 = vmatprep.subr.mxu0 0.0
        %4509 = vmatpush1.msra.mxu0 0.0
        %4510 = vmatprep.subr.mxu0 0.0
        %4511 = vmatpush1.msra.mxu0 0.0
        %4512 = vmatprep.subr.mxu0 0.0
        %4513 = vmatpush1.msra.mxu0 0.0
        %4514 = vmatprep.subr.mxu0 0.0
        %4515 = vmatpush1.msra.mxu0 0.0
        %4516 = vmatprep.subr.mxu0 0.0
        %4517 = vmatpush1.msra.mxu0 0.0
        %4518 = vmatprep.subr.mxu0 0.0
        %4519 = vmatpush1.msra.mxu0 0.0
        %4520 = vmatprep.subr.mxu0 0.0
        %4521 = vmatpush1.msra.mxu0 0.0
        %4522 = vmatprep.subr.mxu0 0.0
        %4523 = vmatpush1.msra.mxu0 0.0
        %4524 = vmatprep.subr.mxu0 0.0
        %4525 = vmatpush1.msra.mxu0 0.0
        %4526 = vmatprep.subr.mxu0 0.0
        %4527 = vmatpush1.msra.mxu0 0.0
        %4528 = vmatprep.subr.mxu0 0.0
        %4529 = vmatpush1.msra.mxu0 0.0
        %4530 = vmatprep.subr.mxu0 0.0
        %4531 = vmatpush1.msra.mxu0 0.0
        %4532 = vmatprep.subr.mxu0 0.0
        %4533 = vmatpush1.msra.mxu0 0.0
        %4534 = vmatprep.subr.mxu0 0.0
        %4535 = vmatpush1.msra.mxu0 0.0
        %4536 = vmatprep.subr.mxu0 0.0
        %4537 = vmatpush1.msra.mxu0 0.0
        %4538 = vmatprep.subr.mxu0 0.0
        %4539 = vmatpush1.msra.mxu0 0.0
        %4540 = vmatprep.subr.mxu0 0.0
        %4541 = vmatpush1.msra.mxu0 0.0
        %4542 = vmatprep.subr.mxu0 0.0
        %4543 = vmatpush1.msra.mxu0 0.0
        %4544 = vmatprep.subr.mxu0 0.0
        %4545 = vmatpush1.msra.mxu0 0.0
        %4546 = vmatprep.subr.mxu0 0.0
        %4547 = vmatpush1.msra.mxu0 0.0
        %4548 = vmatprep.subr.mxu0 0.0
        %4549 = vmatpush1.msra.mxu0 0.0
        %4550 = vmatprep.subr.mxu0 0.0
        %4551 = vmatpush1.msra.mxu0 0.0
        %4552 = vmatprep.subr.mxu0 0.0
        %4553 = vmatpush1.msra.mxu0 0.0
        %4554 = vmatprep.subr.mxu0 0.0
        %4555 = vmatpush1.msra.mxu0 0.0
        %4556 = vmatprep.subr.mxu0 0.0
        %4557 = vmatpush1.msra.mxu0 0.0
        %4558 = vmatprep.subr.mxu0 0.0
        %4559 = vmatpush1.msra.mxu0 0.0
        %4560 = vmatprep.subr.mxu0 0.0
        %4561 = vmatpush1.msra.mxu0 0.0
        %4562 = vmatprep.subr.mxu0 0.0
        %4563 = vmatpush1.msra.mxu0 0.0
        %4564 = vmatprep.subr.mxu0 0.0
        %4565 = vmatpush1.msra.mxu0 0.0
        %4566 = vmatprep.subr.mxu0 0.0
        %4567 = vmatpush1.msra.mxu0 0.0
        %4568 = vmatprep.subr.mxu0 0.0
        %4569 = vmatpush1.msra.mxu0 0.0
        %4570 = vmatprep.mubr.f32.mxu0 0.0
        %4571 = vmatmul.mubr.f32.gmra.mrb[0].mxu0 %v4481
        %v4572 = vpop.f32.mrb[0].mxu0
        %v4573 = vadd.f32 %v3002, %v4572
        %v4574 = vpop.f32.mrb[0].mxu0
        %4575 = vmatprep.mubr.f32.mxu0 0.0
        %4576 = vmatmul.mubr.f32.gmra.mrb[0].mxu0 %v4484
        %v4577 = vpop.f32.mrb[0].mxu0
        %v4578 = vadd.f32 %v3003, %v4577
        %v4579 = vpop.f32.mrb[0].mxu0
        %4580 = vmatprep.mubr.f32.mxu0 0.0
        %4581 = vmatmul.mubr.f32.gmra.mrb[0].mxu0 %v4487
        %v4582 = vpop.f32.mrb[0].mxu0
        %v4583 = vadd.f32 %v3004, %v4582
        %v4584 = vpop.f32.mrb[0].mxu0
        %4585 = vmatprep.mubr.f32.mxu0 0.0
        %4586 = vmatmul.mubr.f32.gmra.mrb[0].mxu0 %v4490
        %v4587 = vpop.f32.mrb[0].mxu0
        %v4588 = vadd.f32 %v3005, %v4587
        %v4589 = vpop.f32.mrb[0].mxu0
        %4590 = vmatprep.mubr.f32.mxu0 0.0
        %4591 = vmatmul.mubr.f32.gmra.mrb[0].mxu0 %v4493
        %v4592 = vpop.f32.mrb[0].mxu0
        %v4593 = vadd.f32 %v3006, %v4592
        %v4594 = vpop.f32.mrb[0].mxu0
        %4595 = vmatprep.mubr.f32.mxu0 0.0
        %4596 = vmatmul.mubr.f32.gmra.mrb[0].mxu0 %v4496
        %v4597 = vpop.f32.mrb[0].mxu0
        %v4598 = vadd.f32 %v3007, %v4597
        %v4599 = vpop.f32.mrb[0].mxu0
        %4600 = vmatprep.mubr.f32.mxu0 0.0
        %4601 = vmatmul.mubr.f32.gmra.mrb[0].mxu0 %v4499
        %v4602 = vpop.f32.mrb[0].mxu0
        %v4603 = vadd.f32 %v3008, %v4602
        %v4604 = vpop.f32.mrb[0].mxu0
        %4605 = vmatprep.mubr.f32.mxu0 0.0
        %4606 = vmatmul.mubr.f32.gmra.mrb[0].mxu0 %v4502
        %v4607 = vpop.f32.mrb[0].mxu0
        %v4608 = vadd.f32 %v3009, %v4607
        %v4609 = vpop.f32.mrb[0].mxu0
        %4610 = vdwg.mxu0
        %v4611 = vsel %vm3044, %v4438, -inf
        %v4612 = vrot.slane %v4611, 4
        %v4613 = vmax.f32 %v4611, %v4612
        %v4614 = vrot.slane %v4613, 2
        %v4615 = vmax.f32 %v4613, %v4614
        %v4616 = vrot.slane %v4615, 1
        %v4617 = vmax.f32 %v4615, %v4616
        %v4618 = vsel %vm3044, %v4573, -inf
        %v4619 = vsel %vm3044, %v4578, -inf
        %v4620 = vsel %vm3044, %v4583, -inf
        %v4621 = vsel %vm3044, %v4588, -inf
        %v4622 = vsel %vm3044, %v4593, -inf
        %v4623 = vmax.f32 %v4618, %v4622
        %v4624 = vsel %vm3044, %v4598, -inf
        %v4625 = vmax.f32 %v4619, %v4624
        %v4626 = vsel %vm3044, %v4603, -inf
        %v4627 = vmax.f32 %v4620, %v4626
        %v4628 = vsel %vm3044, %v4608, -inf
        %v4629 = vmax.f32 %v4621, %v4628
        %v4630 = vmax.f32 %v4623, %v4625
        %v4631 = vmax.f32 %v4627, %v4629
        %v4632 = vmax.f32 %v4630, %v4631
        %v4633 = vrot.slane %v4632, 4
        %v4634 = vmax.f32 %v4632, %v4633
        %v4635 = vrot.slane %v4634, 2
        %v4636 = vmax.f32 %v4634, %v4635
        %v4637 = vrot.slane %v4636, 1
        %v4638 = vmax.f32 %v4636, %v4637
        %v4639 = vmax.f32 %v4617, %v4638
        %v4640 = vsub.f32 %v4438, %v4639
        %v4641 = vmul.f32 %v4640, 1.442695
        %v4642 = vpow.pop %v4641
        %v4643 = vsub.f32 %v4573, %v4639
        %v4644 = vsub.f32 %v4578, %v4639
        %v4645 = vsub.f32 %v4583, %v4639
        %v4646 = vsub.f32 %v4588, %v4639
        %v4647 = vsub.f32 %v4593, %v4639
        %v4648 = vsub.f32 %v4598, %v4639
        %v4649 = vsub.f32 %v4603, %v4639
        %v4650 = vsub.f32 %v4608, %v4639
        %v4651 = vmul.f32 %v4643, 1.442695
        %v4652 = vpow.pop %v4651
        %v4653 = vmul.f32 %v4644, 1.442695
        %v4654 = vpow.pop %v4653
        %v4655 = vmul.f32 %v4645, 1.442695
        %v4656 = vpow.pop %v4655
        %v4657 = vmul.f32 %v4646, 1.442695
        %v4658 = vpow.pop %v4657
        %v4659 = vmul.f32 %v4647, 1.442695
        %v4660 = vpow.pop %v4659
        %v4661 = vmul.f32 %v4648, 1.442695
        %v4662 = vpow.pop %v4661
        %v4663 = vmul.f32 %v4649, 1.442695
        %v4664 = vpow.pop %v4663
        %v4665 = vmul.f32 %v4650, 1.442695
        %v4666 = vpow.pop %v4665
        %v4667 = vsel %vm3044, %v4642, 0.0
        %v4668 = vrot.slane %v4667, 4
        %v4669 = vadd.f32 %v4667, %v4668
        %v4670 = vrot.slane %v4669, 2
        %v4671 = vadd.f32 %v4669, %v4670
        %v4672 = vrot.slane %v4671, 1
        %v4673 = vadd.f32 %v4671, %v4672
        %v4674 = vsel %vm3044, %v4652, 0.0
        %v4675 = vsel %vm3044, %v4654, 0.0
        %v4676 = vadd.f32 %v4674, %v4675
        %v4677 = vsel %vm3044, %v4656, 0.0
        %v4678 = vadd.f32 %v4676, %v4677
        %v4679 = vsel %vm3044, %v4658, 0.0
        %v4680 = vadd.f32 %v4678, %v4679
        %v4681 = vsel %vm3044, %v4660, 0.0
        %v4682 = vadd.f32 %v4680, %v4681
        %v4683 = vsel %vm3044, %v4662, 0.0
        %v4684 = vadd.f32 %v4682, %v4683
        %v4685 = vsel %vm3044, %v4664, 0.0
        %v4686 = vadd.f32 %v4684, %v4685
        %v4687 = vsel %vm3044, %v4666, 0.0
        %v4688 = vadd.f32 %v4686, %v4687
        %v4689 = vrot.slane %v4688, 4
        %v4690 = vadd.f32 %v4688, %v4689
        %v4691 = vrot.slane %v4690, 2
        %v4692 = vadd.f32 %v4690, %v4691
        %v4693 = vrot.slane %v4692, 1
        %v4694 = vadd.f32 %v4692, %v4693
        %v4695 = vadd.f32 %v4673, %v4694
        %v4696 = vrcp.pop %v4695
        %v4697 = vmul.f32 %v4695, %v4696
        %v4698 = vsub.f32 2.0, %v4697
        %v4699 = vmul.f32 %v4696, %v4698
        %v4700 = vld [vmem:[#allocation4] sm:$0xff]
        %v4701 = vld [vmem:[#allocation4 + $0x8] sm:$0xff]
        %v4702 = vld [vmem:[#allocation4 + $0x10] sm:$0xff]
        %v4703 = vld [vmem:[#allocation4 + $0x18] sm:$0xff]
        %v4704 = vld [vmem:[#allocation4 + $0x20] sm:$0xff]
        %v4705 = vld [vmem:[#allocation4 + $0x28] sm:$0xff]
        %v4706 = vld [vmem:[#allocation4 + $0x30] sm:$0xff]
        %v4707 = vld [vmem:[#allocation4 + $0x38] sm:$0xff]
        %v4708 = vld [vmem:[#allocation4 + $0x40] sm:$0xff]
        %v4709 = vld [vmem:[#allocation4 + $0x48] sm:$0xff]
        %v4710 = vld [vmem:[#allocation4 + $0x50] sm:$0xff]
        %v4711 = vld [vmem:[#allocation4 + $0x58] sm:$0xff]
        %v4712 = vld [vmem:[#allocation4 + $0x60] sm:$0xff]
        %v4713 = vld [vmem:[#allocation4 + $0x68] sm:$0xff]
        %v4714 = vld [vmem:[#allocation4 + $0x70] sm:$0xff]
        %v4715 = vld [vmem:[#allocation4 + $0x78] sm:$0xff]
        %v4716 = vmul.f32 %v4642, %v4700
        %v4717 = vmul.f32 %v4642, %v4701
        %v4718 = vmul.f32 %v4642, %v4702
        %v4719 = vmul.f32 %v4642, %v4703
        %v4720 = vmul.f32 %v4642, %v4704
        %v4721 = vmul.f32 %v4642, %v4705
        %v4722 = vmul.f32 %v4642, %v4706
        %v4723 = vmul.f32 %v4642, %v4707
        %v4724 = vmul.f32 %v4642, %v4708
        %v4725 = vmul.f32 %v4642, %v4709
        %v4726 = vmul.f32 %v4642, %v4710
        %v4727 = vmul.f32 %v4642, %v4711
        %v4728 = vmul.f32 %v4642, %v4712
        %v4729 = vmul.f32 %v4642, %v4713
        %v4730 = vmul.f32 %v4642, %v4714
        %v4731 = vmul.f32 %v4642, %v4715
        %v4732 = vsel %vm3044, %v4716, 0.0
        %v4733 = vrot.slane %v4732, 4
        %v4734 = vadd.f32 %v4732, %v4733
        %v4735 = vrot.slane %v4734, 2
        %v4736 = vadd.f32 %v4734, %v4735
        %v4737 = vrot.slane %v4736, 1
        %v4738 = vadd.f32 %v4736, %v4737
        %v4739 = vsel %vm3044, %v4717, 0.0
        %v4740 = vrot.slane %v4739, 4
        %v4741 = vadd.f32 %v4739, %v4740
        %v4742 = vrot.slane %v4741, 2
        %v4743 = vadd.f32 %v4741, %v4742
        %v4744 = vrot.slane %v4743, 1
        %v4745 = vadd.f32 %v4743, %v4744
        %v4746 = vsel %vm3044, %v4718, 0.0
        %v4747 = vrot.slane %v4746, 4
        %v4748 = vadd.f32 %v4746, %v4747
        %v4749 = vrot.slane %v4748, 2
        %v4750 = vadd.f32 %v4748, %v4749
        %v4751 = vrot.slane %v4750, 1
        %v4752 = vadd.f32 %v4750, %v4751
        %v4753 = vsel %vm3044, %v4719, 0.0
        %v4754 = vrot.slane %v4753, 4
        %v4755 = vadd.f32 %v4753, %v4754
        %v4756 = vrot.slane %v4755, 2
        %v4757 = vadd.f32 %v4755, %v4756
        %v4758 = vrot.slane %v4757, 1
        %v4759 = vadd.f32 %v4757, %v4758
        %v4760 = vsel %vm3044, %v4720, 0.0
        %v4761 = vrot.slane %v4760, 4
        %v4762 = vadd.f32 %v4760, %v4761
        %v4763 = vrot.slane %v4762, 2
        %v4764 = vadd.f32 %v4762, %v4763
        %v4765 = vrot.slane %v4764, 1
        %v4766 = vadd.f32 %v4764, %v4765
        %v4767 = vsel %vm3044, %v4721, 0.0
        %v4768 = vrot.slane %v4767, 4
        %v4769 = vadd.f32 %v4767, %v4768
        %v4770 = vrot.slane %v4769, 2
        %v4771 = vadd.f32 %v4769, %v4770
        %v4772 = vrot.slane %v4771, 1
        %v4773 = vadd.f32 %v4771, %v4772
        %v4774 = vsel %vm3044, %v4722, 0.0
        %v4775 = vrot.slane %v4774, 4
        %v4776 = vadd.f32 %v4774, %v4775
        %v4777 = vrot.slane %v4776, 2
        %v4778 = vadd.f32 %v4776, %v4777
        %v4779 = vrot.slane %v4778, 1
        %v4780 = vadd.f32 %v4778, %v4779
        %v4781 = vsel %vm3044, %v4723, 0.0
        %v4782 = vrot.slane %v4781, 4
        %v4783 = vadd.f32 %v4781, %v4782
        %v4784 = vrot.slane %v4783, 2
        %v4785 = vadd.f32 %v4783, %v4784
        %v4786 = vrot.slane %v4785, 1
        %v4787 = vadd.f32 %v4785, %v4786
        %v4788 = vsel %vm3044, %v4724, 0.0
        %v4789 = vrot.slane %v4788, 4
        %v4790 = vadd.f32 %v4788, %v4789
        %v4791 = vrot.slane %v4790, 2
        %v4792 = vadd.f32 %v4790, %v4791
        %v4793 = vrot.slane %v4792, 1
        %v4794 = vadd.f32 %v4792, %v4793
        %v4795 = vsel %vm3044, %v4725, 0.0
        %v4796 = vrot.slane %v4795, 4
        %v4797 = vadd.f32 %v4795, %v4796
        %v4798 = vrot.slane %v4797, 2
        %v4799 = vadd.f32 %v4797, %v4798
        %v4800 = vrot.slane %v4799, 1
        %v4801 = vadd.f32 %v4799, %v4800
        %v4802 = vsel %vm3044, %v4726, 0.0
        %v4803 = vrot.slane %v4802, 4
        %v4804 = vadd.f32 %v4802, %v4803
        %v4805 = vrot.slane %v4804, 2
        %v4806 = vadd.f32 %v4804, %v4805
        %v4807 = vrot.slane %v4806, 1
        %v4808 = vadd.f32 %v4806, %v4807
        %v4809 = vsel %vm3044, %v4727, 0.0
        %v4810 = vrot.slane %v4809, 4
        %v4811 = vadd.f32 %v4809, %v4810
        %v4812 = vrot.slane %v4811, 2
        %v4813 = vadd.f32 %v4811, %v4812
        %v4814 = vrot.slane %v4813, 1
        %v4815 = vadd.f32 %v4813, %v4814
        %v4816 = vsel %vm3044, %v4728, 0.0
        %v4817 = vrot.slane %v4816, 4
        %v4818 = vadd.f32 %v4816, %v4817
        %v4819 = vrot.slane %v4818, 2
        %v4820 = vadd.f32 %v4818, %v4819
        %v4821 = vrot.slane %v4820, 1
        %v4822 = vadd.f32 %v4820, %v4821
        %v4823 = vsel %vm3044, %v4729, 0.0
        %v4824 = vrot.slane %v4823, 4
        %v4825 = vadd.f32 %v4823, %v4824
        %v4826 = vrot.slane %v4825, 2
        %v4827 = vadd.f32 %v4825, %v4826
        %v4828 = vrot.slane %v4827, 1
        %v4829 = vadd.f32 %v4827, %v4828
        %v4830 = vsel %vm3044, %v4730, 0.0
        %v4831 = vrot.slane %v4830, 4
        %v4832 = vadd.f32 %v4830, %v4831
        %v4833 = vrot.slane %v4832, 2
        %v4834 = vadd.f32 %v4832, %v4833
        %v4835 = vrot.slane %v4834, 1
        %v4836 = vadd.f32 %v4834, %v4835
        %v4837 = vsel %vm3044, %v4731, 0.0
        %v4838 = vrot.slane %v4837, 4
        %v4839 = vadd.f32 %v4837, %v4838
        %v4840 = vrot.slane %v4839, 2
        %v4841 = vadd.f32 %v4839, %v4840
        %v4842 = vrot.slane %v4841, 1
        %v4843 = vadd.f32 %v4841, %v4842
        %v4860 = vrot.slane %v4407, 7
        %v4861 = vsel %vm349, %v4860, %v4406
        %v4862 = vrot.slane %v4408, 6
        %v4863 = vsel %vm352, %v4862, %v4861
        %v4864 = vrot.slane %v4409, 5
        %v4865 = vsel %vm355, %v4864, %v4863
        %v4866 = vrot.slane %v4410, 4
        %v4867 = vsel %vm358, %v4866, %v4865
        %v4868 = vrot.slane %v4411, 3
        %v4869 = vsel %vm361, %v4868, %v4867
        %v4870 = vrot.slane %v4412, 2
        %v4871 = vsel %vm364, %v4870, %v4869
        %v4872 = vrot.slane %v4413, 1
        %v4873 = vsel %vm367, %v4872, %v4871
        %v4874 = vrot.slane %v4415, 7
        %v4875 = vsel %vm349, %v4874, %v4414
        %v4876 = vrot.slane %v4416, 6
        %v4877 = vsel %vm352, %v4876, %v4875
        %v4878 = vrot.slane %v4417, 5
        %v4879 = vsel %vm355, %v4878, %v4877
        %v4880 = vrot.slane %v4418, 4
        %v4881 = vsel %vm358, %v4880, %v4879
        %v4882 = vrot.slane %v4419, 3
        %v4883 = vsel %vm361, %v4882, %v4881
        %v4884 = vrot.slane %v4420, 2
        %v4885 = vsel %vm364, %v4884, %v4883
        %v4886 = vrot.slane %v4421, 1
        %v4887 = vsel %vm367, %v4886, %v4885
        %v4888 = vsel %vm3044, %v4873, 0
        %v4890 = vsel %vm3044, %v4887, 0
        %4892 = vmatprep.subr.mxu0 0.0
        %4893 = vmatpush1.msra.mxu0 %v4652
        %4894 = vmatprep.subr.mxu0 0.0
        %4895 = vmatpush1.msra.mxu0 %v4654
        %4896 = vmatprep.subr.mxu0 0.0
        %4897 = vmatpush1.msra.mxu0 %v4656
        %4898 = vmatprep.subr.mxu0 0.0
        %4899 = vmatpush1.msra.mxu0 %v4658
        %4900 = vmatprep.subr.mxu0 0.0
        %4901 = vmatpush1.msra.mxu0 %v4660
        %4902 = vmatprep.subr.mxu0 0.0
        %4903 = vmatpush1.msra.mxu0 %v4662
        %4904 = vmatprep.subr.mxu0 0.0
        %4905 = vmatpush1.msra.mxu0 %v4664
        %4906 = vmatprep.subr.mxu0 0.0
        %4907 = vmatpush1.msra.mxu0 %v4666
        %4908 = vmatprep.subr.mxu0 0.0
        %4909 = vmatpush1.msra.mxu0 0.0
        %4910 = vmatprep.subr.mxu0 0.0
        %4911 = vmatpush1.msra.mxu0 0.0
        %4912 = vmatprep.subr.mxu0 0.0
        %4913 = vmatpush1.msra.mxu0 0.0
        %4914 = vmatprep.subr.mxu0 0.0
        %4915 = vmatpush1.msra.mxu0 0.0
        %4916 = vmatprep.subr.mxu0 0.0
        %4917 = vmatpush1.msra.mxu0 0.0
        %4918 = vmatprep.subr.mxu0 0.0
        %4919 = vmatpush1.msra.mxu0 0.0
        %4920 = vmatprep.subr.mxu0 0.0
        %4921 = vmatpush1.msra.mxu0 0.0
        %4922 = vmatprep.subr.mxu0 0.0
        %4923 = vmatpush1.msra.mxu0 0.0
        %4924 = vmatprep.subr.mxu0 0.0
        %4925 = vmatpush1.msra.mxu0 0.0
        %4926 = vmatprep.subr.mxu0 0.0
        %4927 = vmatpush1.msra.mxu0 0.0
        %4928 = vmatprep.subr.mxu0 0.0
        %4929 = vmatpush1.msra.mxu0 0.0
        %4930 = vmatprep.subr.mxu0 0.0
        %4931 = vmatpush1.msra.mxu0 0.0
        %4932 = vmatprep.subr.mxu0 0.0
        %4933 = vmatpush1.msra.mxu0 0.0
        %4934 = vmatprep.subr.mxu0 0.0
        %4935 = vmatpush1.msra.mxu0 0.0
        %4936 = vmatprep.subr.mxu0 0.0
        %4937 = vmatpush1.msra.mxu0 0.0
        %4938 = vmatprep.subr.mxu0 0.0
        %4939 = vmatpush1.msra.mxu0 0.0
        %4940 = vmatprep.subr.mxu0 0.0
        %4941 = vmatpush1.msra.mxu0 0.0
        %4942 = vmatprep.subr.mxu0 0.0
        %4943 = vmatpush1.msra.mxu0 0.0
        %4944 = vmatprep.subr.mxu0 0.0
        %4945 = vmatpush1.msra.mxu0 0.0
        %4946 = vmatprep.subr.mxu0 0.0
        %4947 = vmatpush1.msra.mxu0 0.0
        %4948 = vmatprep.subr.mxu0 0.0
        %4949 = vmatpush1.msra.mxu0 0.0
        %4950 = vmatprep.subr.mxu0 0.0
        %4951 = vmatpush1.msra.mxu0 0.0
        %4952 = vmatprep.subr.mxu0 0.0
        %4953 = vmatpush1.msra.mxu0 0.0
        %4954 = vmatprep.subr.mxu0 0.0
        %4955 = vmatpush1.msra.mxu0 0.0
        %4956 = vmatprep.mubr.f32.mxu0 0.0
        %4957 = vmatmul.mubr.f32.gmra.mrb[0].mxu0 %v4888
        %v4958 = vpop.f32.mrb[0].mxu0
        %v4959 = vadd.f32 0.0, %v4958
        %v4960 = vpop.f32.mrb[0].mxu0
        %4961 = vmatprep.mubr.f32.mxu0 0.0
        %4962 = vmatmul.mubr.f32.gmra.mrb[0].mxu0 %v4890
        %v4963 = vpop.f32.mrb[0].mxu0
        %v4964 = vadd.f32 0.0, %v4963
        %v4965 = vpop.f32.mrb[0].mxu0
        %4966 = vdwg.mxu0
        %v4969 = vrot.slane %v4959, 1
        %v4970 = vrot.slane %v4959, 2
        %v4971 = vrot.slane %v4959, 3
        %v4972 = vrot.slane %v4959, 4
        %v4973 = vrot.slane %v4959, 5
        %v4974 = vrot.slane %v4959, 6
        %v4975 = vrot.slane %v4959, 7
        %v4976 = vrot.slane %v4964, 1
        %v4977 = vrot.slane %v4964, 2
        %v4978 = vrot.slane %v4964, 3
        %v4979 = vrot.slane %v4964, 4
        %v4980 = vrot.slane %v4964, 5
        %v4981 = vrot.slane %v4964, 6
        %v4982 = vrot.slane %v4964, 7
        %v4999 = vadd.f32 %v4738, %v4959
        %v5000 = vadd.f32 %v4745, %v4969
        %v5001 = vadd.f32 %v4752, %v4970
        %v5002 = vadd.f32 %v4759, %v4971
        %v5003 = vadd.f32 %v4766, %v4972
        %v5004 = vadd.f32 %v4773, %v4973
        %v5005 = vadd.f32 %v4780, %v4974
        %v5006 = vadd.f32 %v4787, %v4975
        %v5007 = vadd.f32 %v4794, %v4964
        %v5008 = vadd.f32 %v4801, %v4976
        %v5009 = vadd.f32 %v4808, %v4977
        %v5010 = vadd.f32 %v4815, %v4978
        %v5011 = vadd.f32 %v4822, %v4979
        %v5012 = vadd.f32 %v4829, %v4980
        %v5013 = vadd.f32 %v4836, %v4981
        %v5014 = vadd.f32 %v4843, %v4982
        %v5015 = vmul.f32 %v4999, %v4699
        %v5016 = vmul.f32 %v5000, %v4699
        %v5017 = vmul.f32 %v5001, %v4699
        %v5018 = vmul.f32 %v5002, %v4699
        %v5019 = vmul.f32 %v5003, %v4699
        %v5020 = vmul.f32 %v5004, %v4699
        %v5021 = vmul.f32 %v5005, %v4699
        %v5022 = vmul.f32 %v5006, %v4699
        %v5023 = vmul.f32 %v5007, %v4699
        %v5024 = vmul.f32 %v5008, %v4699
        %v5025 = vmul.f32 %v5009, %v4699
        %v5026 = vmul.f32 %v5010, %v4699
        %v5027 = vmul.f32 %v5011, %v4699
        %v5028 = vmul.f32 %v5012, %v4699
        %v5029 = vmul.f32 %v5013, %v4699
        %v5030 = vmul.f32 %v5014, %v4699
        %v5031 = vmul.f32 %v3644, %v5015
        %v5032 = vmul.f32 %v3644, %v5016
        %v5033 = vmul.f32 %v3644, %v5017
        %v5034 = vmul.f32 %v3644, %v5018
        %v5035 = vmul.f32 %v3644, %v5019
        %v5036 = vmul.f32 %v3644, %v5020
        %v5037 = vmul.f32 %v3644, %v5021
        %v5038 = vmul.f32 %v3644, %v5022
        %v5039 = vmul.f32 %v3644, %v5023
        %v5040 = vmul.f32 %v3644, %v5024
        %v5041 = vmul.f32 %v3644, %v5025
        %v5042 = vmul.f32 %v3644, %v5026
        %v5043 = vmul.f32 %v3644, %v5027
        %v5044 = vmul.f32 %v3644, %v5028
        %v5045 = vmul.f32 %v3644, %v5029
        %v5046 = vmul.f32 %v3644, %v5030
        %v5047 = vld [vmem:[%s249 + $0x2] sm:$0x1]
        %v5048 = vld [vmem:[%s249 + $0xa] sm:$0x1]
        %v5049 = vld [vmem:[%s249 + $0x12] sm:$0x1]
        %v5050 = vld [vmem:[%s249 + $0x1a] sm:$0x1]
        %v5051 = vld [vmem:[%s249 + $0x22] sm:$0x1]
        %v5052 = vld [vmem:[%s249 + $0x2a] sm:$0x1]
        %v5053 = vld [vmem:[%s249 + $0x32] sm:$0x1]
        %v5054 = vld [vmem:[%s249 + $0x3a] sm:$0x1]
        %v5055 = vld [vmem:[%s249 + $0x42] sm:$0x1]
        %v5056 = vld [vmem:[%s249 + $0x4a] sm:$0x1]
        %v5057 = vld [vmem:[%s249 + $0x52] sm:$0x1]
        %v5058 = vld [vmem:[%s249 + $0x5a] sm:$0x1]
        %v5059 = vld [vmem:[%s249 + $0x62] sm:$0x1]
        %v5060 = vld [vmem:[%s249 + $0x6a] sm:$0x1]
        %v5061 = vld [vmem:[%s249 + $0x72] sm:$0x1]
        %v5062 = vld [vmem:[%s249 + $0x7a] sm:$0x1]
        %v5063 = vadd.f32 %v5031, %v5047
        %v5064 = vadd.f32 %v5032, %v5048
        %v5065 = vadd.f32 %v5033, %v5049
        %v5066 = vadd.f32 %v5034, %v5050
        %v5067 = vadd.f32 %v5035, %v5051
        %v5068 = vadd.f32 %v5036, %v5052
        %v5069 = vadd.f32 %v5037, %v5053
        %v5070 = vadd.f32 %v5038, %v5054
        %v5071 = vadd.f32 %v5039, %v5055
        %v5072 = vadd.f32 %v5040, %v5056
        %v5073 = vadd.f32 %v5041, %v5057
        %v5074 = vadd.f32 %v5042, %v5058
        %v5075 = vadd.f32 %v5043, %v5059
        %v5076 = vadd.f32 %v5044, %v5060
        %v5077 = vadd.f32 %v5045, %v5061
        %v5078 = vadd.f32 %v5046, %v5062
        %5079 = vst.msk [vmem:[%s287 + $0x2] sm:$0x1] %vm508, %v5063
        %5080 = vst.msk [vmem:[%s287 + $0xa] sm:$0x1] %vm508, %v5064
        %5081 = vst.msk [vmem:[%s287 + $0x12] sm:$0x1] %vm508, %v5065
        %5082 = vst.msk [vmem:[%s287 + $0x1a] sm:$0x1] %vm508, %v5066
        %5083 = vst.msk [vmem:[%s287 + $0x22] sm:$0x1] %vm508, %v5067
        %5084 = vst.msk [vmem:[%s287 + $0x2a] sm:$0x1] %vm508, %v5068
        %5085 = vst.msk [vmem:[%s287 + $0x32] sm:$0x1] %vm508, %v5069
        %5086 = vst.msk [vmem:[%s287 + $0x3a] sm:$0x1] %vm508, %v5070
        %5087 = vst.msk [vmem:[%s287 + $0x42] sm:$0x1] %vm508, %v5071
        %5088 = vst.msk [vmem:[%s287 + $0x4a] sm:$0x1] %vm508, %v5072
        %5089 = vst.msk [vmem:[%s287 + $0x52] sm:$0x1] %vm508, %v5073
        %5090 = vst.msk [vmem:[%s287 + $0x5a] sm:$0x1] %vm508, %v5074
        %5091 = vst.msk [vmem:[%s287 + $0x62] sm:$0x1] %vm508, %v5075
        %5092 = vst.msk [vmem:[%s287 + $0x6a] sm:$0x1] %vm508, %v5076
        %5093 = vst.msk [vmem:[%s287 + $0x72] sm:$0x1] %vm508, %v5077
        %5094 = vst.msk [vmem:[%s287 + $0x7a] sm:$0x1] %vm508, %v5078
        %v5095 = vld [vmem:[#allocation2 + $0x3] sm:$0x1]
        %v5096 = vld [vmem:[#allocation2 + $0xb] sm:$0x1]
        %v5097 = vld [vmem:[#allocation3 + $0x3] sm:$0x1]
        %v5098 = vld [vmem:[#allocation3 + $0xb] sm:$0x1]
        %v5099 = vld [vmem:[#allocation4 + $0x3] sm:$0x1]
        %v5100 = vld [vmem:[#allocation4 + $0xb] sm:$0x1]
        %v5101 = vld [vmem:[#allocation4 + $0x13] sm:$0x1]
        %v5102 = vld [vmem:[#allocation4 + $0x1b] sm:$0x1]
        %v5103 = vld [vmem:[#allocation4 + $0x23] sm:$0x1]
        %v5104 = vld [vmem:[#allocation4 + $0x2b] sm:$0x1]
        %v5105 = vld [vmem:[#allocation4 + $0x33] sm:$0x1]
        %v5106 = vld [vmem:[#allocation4 + $0x3b] sm:$0x1]
        %v5107 = vld [vmem:[#allocation4 + $0x43] sm:$0x1]
        %v5108 = vld [vmem:[#allocation4 + $0x4b] sm:$0x1]
        %v5109 = vld [vmem:[#allocation4 + $0x53] sm:$0x1]
        %v5110 = vld [vmem:[#allocation4 + $0x5b] sm:$0x1]
        %v5111 = vld [vmem:[#allocation4 + $0x63] sm:$0x1]
        %v5112 = vld [vmem:[#allocation4 + $0x6b] sm:$0x1]
        %v5113 = vld [vmem:[#allocation4 + $0x73] sm:$0x1]
        %v5114 = vld [vmem:[#allocation4 + $0x7b] sm:$0x1]
        %v5115 = vld [vmem:[#allocation3] sm:$0xff]
        %v5116 = vld [vmem:[#allocation3 + $0x8] sm:$0xff]
        %v5117 = vlaneseq
        %v5118 = vshrl.u32 %v5117, 7
        %v5119 = vsub.s32 0, %v5118
        %v5120 = vrot.slane %v5095, %v5119
        %v5121 = vlaneseq
        %v5122 = vshrl.u32 %v5121, 7
        %v5123 = vsub.s32 0, %v5122
        %v5124 = vrot.slane %v5096, %v5123
        %v5125 = vmul.f32 %v5120, %v5115
        %v5126 = vmul.f32 %v5124, %v5116
        %v5127 = vsel %vm3044, %v5125, 0.0
        %v5128 = vsel %vm3044, %v5126, 0.0
        %v5129 = vadd.f32 %v5127, %v5128
        %vm5130 = vcmp.eq.s32.totalorder %v3011, 3
        %v5131 = vsel %vm5130, -1e+30, %v5129
        %v5134 = vrot.slane %v5098, 7
        %v5135 = vsel %vm349, %v5134, %v5097
        %5137 = vxpose.xlu0.b32.start [1/16] %v5135, 128
        %5138 = vxpose.xlu0.b32.cont [2/16] 0.0, 128
        %5139 = vxpose.xlu0.b32.cont [3/16] 0.0, 128
        %5140 = vxpose.xlu0.b32.cont [4/16] 0.0, 128
        %5141 = vxpose.xlu0.b32.cont [5/16] 0.0, 128
        %5142 = vxpose.xlu0.b32.cont [6/16] 0.0, 128
        %5143 = vxpose.xlu0.b32.cont [7/16] 0.0, 128
        %5144 = vxpose.xlu0.b32.cont [8/16] 0.0, 128
        %5145 = vxpose.xlu0.b32.cont [9/16] 0.0, 128
        %5146 = vxpose.xlu0.b32.cont [10/16] 0.0, 128
        %5147 = vxpose.xlu0.b32.cont [11/16] 0.0, 128
        %5148 = vxpose.xlu0.b32.cont [12/16] 0.0, 128
        %5149 = vxpose.xlu0.b32.cont [13/16] 0.0, 128
        %5150 = vxpose.xlu0.b32.cont [14/16] 0.0, 128
        %5151 = vxpose.xlu0.b32.cont [15/16] 0.0, 128
        %5152 = vxpose.xlu0.b32.end [16/16] 0.0, 128
        %v5153 = vpop.trf.xlu0
        %v5154 = vpop.trf.xlu0
        %v5155 = vpop.trf.xlu0
        %v5156 = vpop.trf.xlu0
        %v5157 = vpop.trf.xlu0
        %v5158 = vpop.trf.xlu0
        %v5159 = vpop.trf.xlu0
        %v5160 = vpop.trf.xlu0
        %v5161 = vpop.trf.xlu0
        %v5162 = vpop.trf.xlu0
        %v5163 = vpop.trf.xlu0
        %v5164 = vpop.trf.xlu0
        %v5165 = vpop.trf.xlu0
        %v5166 = vpop.trf.xlu0
        %v5167 = vpop.trf.xlu0
        %v5168 = vpop.trf.xlu0
        %v5171 = vrot.slane %v5096, 7
        %v5172 = vsel %vm349, %v5171, %v5095
        %v5174 = vsel %vm3091, %v5153, 0
        %v5177 = vsel %vm3091, %v5154, 0
        %v5180 = vsel %vm3091, %v5155, 0
        %v5183 = vsel %vm3091, %v5156, 0
        %v5186 = vsel %vm3091, %v5157, 0
        %v5189 = vsel %vm3091, %v5158, 0
        %v5192 = vsel %vm3091, %v5159, 0
        %v5195 = vsel %vm3091, %v5160, 0
        %v5197 = vsel %vm3116, %v5172, 0
        %5199 = vmatprep.subr.mxu0 0.0
        %5200 = vmatpush1.msra.mxu0 %v5197
        %5201 = vmatprep.subr.mxu0 0.0
        %5202 = vmatpush1.msra.mxu0 0.0
        %5203 = vmatprep.subr.mxu0 0.0
        %5204 = vmatpush1.msra.mxu0 0.0
        %5205 = vmatprep.subr.mxu0 0.0
        %5206 = vmatpush1.msra.mxu0 0.0
        %5207 = vmatprep.subr.mxu0 0.0
        %5208 = vmatpush1.msra.mxu0 0.0
        %5209 = vmatprep.subr.mxu0 0.0
        %5210 = vmatpush1.msra.mxu0 0.0
        %5211 = vmatprep.subr.mxu0 0.0
        %5212 = vmatpush1.msra.mxu0 0.0
        %5213 = vmatprep.subr.mxu0 0.0
        %5214 = vmatpush1.msra.mxu0 0.0
        %5215 = vmatprep.subr.mxu0 0.0
        %5216 = vmatpush1.msra.mxu0 0.0
        %5217 = vmatprep.subr.mxu0 0.0
        %5218 = vmatpush1.msra.mxu0 0.0
        %5219 = vmatprep.subr.mxu0 0.0
        %5220 = vmatpush1.msra.mxu0 0.0
        %5221 = vmatprep.subr.mxu0 0.0
        %5222 = vmatpush1.msra.mxu0 0.0
        %5223 = vmatprep.subr.mxu0 0.0
        %5224 = vmatpush1.msra.mxu0 0.0
        %5225 = vmatprep.subr.mxu0 0.0
        %5226 = vmatpush1.msra.mxu0 0.0
        %5227 = vmatprep.subr.mxu0 0.0
        %5228 = vmatpush1.msra.mxu0 0.0
        %5229 = vmatprep.subr.mxu0 0.0
        %5230 = vmatpush1.msra.mxu0 0.0
        %5231 = vmatprep.subr.mxu0 0.0
        %5232 = vmatpush1.msra.mxu0 0.0
        %5233 = vmatprep.subr.mxu0 0.0
        %5234 = vmatpush1.msra.mxu0 0.0
        %5235 = vmatprep.subr.mxu0 0.0
        %5236 = vmatpush1.msra.mxu0 0.0
        %5237 = vmatprep.subr.mxu0 0.0
        %5238 = vmatpush1.msra.mxu0 0.0
        %5239 = vmatprep.subr.mxu0 0.0
        %5240 = vmatpush1.msra.mxu0 0.0
        %5241 = vmatprep.subr.mxu0 0.0
        %5242 = vmatpush1.msra.mxu0 0.0
        %5243 = vmatprep.subr.mxu0 0.0
        %5244 = vmatpush1.msra.mxu0 0.0
        %5245 = vmatprep.subr.mxu0 0.0
        %5246 = vmatpush1.msra.mxu0 0.0
        %5247 = vmatprep.subr.mxu0 0.0
        %5248 = vmatpush1.msra.mxu0 0.0
        %5249 = vmatprep.subr.mxu0 0.0
        %5250 = vmatpush1.msra.mxu0 0.0
        %5251 = vmatprep.subr.mxu0 0.0
        %5252 = vmatpush1.msra.mxu0 0.0
        %5253 = vmatprep.subr.mxu0 0.0
        %5254 = vmatpush1.msra.mxu0 0.0
        %5255 = vmatprep.subr.mxu0 0.0
        %5256 = vmatpush1.msra.mxu0 0.0
        %5257 = vmatprep.subr.mxu0 0.0
        %5258 = vmatpush1.msra.mxu0 0.0
        %5259 = vmatprep.subr.mxu0 0.0
        %5260 = vmatpush1.msra.mxu0 0.0
        %5261 = vmatprep.subr.mxu0 0.0
        %5262 = vmatpush1.msra.mxu0 0.0
        %5263 = vmatprep.mubr.f32.mxu0 0.0
        %5264 = vmatmul.mubr.f32.gmra.mrb[0].mxu0 %v5174
        %v5265 = vpop.f32.mrb[0].mxu0
        %v5266 = vadd.f32 %v3002, %v5265
        %v5267 = vpop.f32.mrb[0].mxu0
        %5268 = vmatprep.mubr.f32.mxu0 0.0
        %5269 = vmatmul.mubr.f32.gmra.mrb[0].mxu0 %v5177
        %v5270 = vpop.f32.mrb[0].mxu0
        %v5271 = vadd.f32 %v3003, %v5270
        %v5272 = vpop.f32.mrb[0].mxu0
        %5273 = vmatprep.mubr.f32.mxu0 0.0
        %5274 = vmatmul.mubr.f32.gmra.mrb[0].mxu0 %v5180
        %v5275 = vpop.f32.mrb[0].mxu0
        %v5276 = vadd.f32 %v3004, %v5275
        %v5277 = vpop.f32.mrb[0].mxu0
        %5278 = vmatprep.mubr.f32.mxu0 0.0
        %5279 = vmatmul.mubr.f32.gmra.mrb[0].mxu0 %v5183
        %v5280 = vpop.f32.mrb[0].mxu0
        %v5281 = vadd.f32 %v3005, %v5280
        %v5282 = vpop.f32.mrb[0].mxu0
        %5283 = vmatprep.mubr.f32.mxu0 0.0
        %5284 = vmatmul.mubr.f32.gmra.mrb[0].mxu0 %v5186
        %v5285 = vpop.f32.mrb[0].mxu0
        %v5286 = vadd.f32 %v3006, %v5285
        %v5287 = vpop.f32.mrb[0].mxu0
        %5288 = vmatprep.mubr.f32.mxu0 0.0
        %5289 = vmatmul.mubr.f32.gmra.mrb[0].mxu0 %v5189
        %v5290 = vpop.f32.mrb[0].mxu0
        %v5291 = vadd.f32 %v3007, %v5290
        %v5292 = vpop.f32.mrb[0].mxu0
        %5293 = vmatprep.mubr.f32.mxu0 0.0
        %5294 = vmatmul.mubr.f32.gmra.mrb[0].mxu0 %v5192
        %v5295 = vpop.f32.mrb[0].mxu0
        %v5296 = vadd.f32 %v3008, %v5295
        %v5297 = vpop.f32.mrb[0].mxu0
        %5298 = vmatprep.mubr.f32.mxu0 0.0
        %5299 = vmatmul.mubr.f32.gmra.mrb[0].mxu0 %v5195
        %v5300 = vpop.f32.mrb[0].mxu0
        %v5301 = vadd.f32 %v3009, %v5300
        %v5302 = vpop.f32.mrb[0].mxu0
        %5303 = vdwg.mxu0
        %v5304 = vsel %vm3044, %v5131, -inf
        %v5305 = vrot.slane %v5304, 4
        %v5306 = vmax.f32 %v5304, %v5305
        %v5307 = vrot.slane %v5306, 2
        %v5308 = vmax.f32 %v5306, %v5307
        %v5309 = vrot.slane %v5308, 1
        %v5310 = vmax.f32 %v5308, %v5309
        %v5311 = vsel %vm3044, %v5266, -inf
        %v5312 = vsel %vm3044, %v5271, -inf
        %v5313 = vsel %vm3044, %v5276, -inf
        %v5314 = vsel %vm3044, %v5281, -inf
        %v5315 = vsel %vm3044, %v5286, -inf
        %v5316 = vmax.f32 %v5311, %v5315
        %v5317 = vsel %vm3044, %v5291, -inf
        %v5318 = vmax.f32 %v5312, %v5317
        %v5319 = vsel %vm3044, %v5296, -inf
        %v5320 = vmax.f32 %v5313, %v5319
        %v5321 = vsel %vm3044, %v5301, -inf
        %v5322 = vmax.f32 %v5314, %v5321
        %v5323 = vmax.f32 %v5316, %v5318
        %v5324 = vmax.f32 %v5320, %v5322
        %v5325 = vmax.f32 %v5323, %v5324
        %v5326 = vrot.slane %v5325, 4
        %v5327 = vmax.f32 %v5325, %v5326
        %v5328 = vrot.slane %v5327, 2
        %v5329 = vmax.f32 %v5327, %v5328
        %v5330 = vrot.slane %v5329, 1
        %v5331 = vmax.f32 %v5329, %v5330
        %v5332 = vmax.f32 %v5310, %v5331
        %v5333 = vsub.f32 %v5131, %v5332
        %v5334 = vmul.f32 %v5333, 1.442695
        %v5335 = vpow.pop %v5334
        %v5336 = vsub.f32 %v5266, %v5332
        %v5337 = vsub.f32 %v5271, %v5332
        %v5338 = vsub.f32 %v5276, %v5332
        %v5339 = vsub.f32 %v5281, %v5332
        %v5340 = vsub.f32 %v5286, %v5332
        %v5341 = vsub.f32 %v5291, %v5332
        %v5342 = vsub.f32 %v5296, %v5332
        %v5343 = vsub.f32 %v5301, %v5332
        %v5344 = vmul.f32 %v5336, 1.442695
        %v5345 = vpow.pop %v5344
        %v5346 = vmul.f32 %v5337, 1.442695
        %v5347 = vpow.pop %v5346
        %v5348 = vmul.f32 %v5338, 1.442695
        %v5349 = vpow.pop %v5348
        %v5350 = vmul.f32 %v5339, 1.442695
        %v5351 = vpow.pop %v5350
        %v5352 = vmul.f32 %v5340, 1.442695
        %v5353 = vpow.pop %v5352
        %v5354 = vmul.f32 %v5341, 1.442695
        %v5355 = vpow.pop %v5354
        %v5356 = vmul.f32 %v5342, 1.442695
        %v5357 = vpow.pop %v5356
        %v5358 = vmul.f32 %v5343, 1.442695
        %v5359 = vpow.pop %v5358
        %v5360 = vsel %vm3044, %v5335, 0.0
        %v5361 = vrot.slane %v5360, 4
        %v5362 = vadd.f32 %v5360, %v5361
        %v5363 = vrot.slane %v5362, 2
        %v5364 = vadd.f32 %v5362, %v5363
        %v5365 = vrot.slane %v5364, 1
        %v5366 = vadd.f32 %v5364, %v5365
        %v5367 = vsel %vm3044, %v5345, 0.0
        %v5368 = vsel %vm3044, %v5347, 0.0
        %v5369 = vadd.f32 %v5367, %v5368
        %v5370 = vsel %vm3044, %v5349, 0.0
        %v5371 = vadd.f32 %v5369, %v5370
        %v5372 = vsel %vm3044, %v5351, 0.0
        %v5373 = vadd.f32 %v5371, %v5372
        %v5374 = vsel %vm3044, %v5353, 0.0
        %v5375 = vadd.f32 %v5373, %v5374
        %v5376 = vsel %vm3044, %v5355, 0.0
        %v5377 = vadd.f32 %v5375, %v5376
        %v5378 = vsel %vm3044, %v5357, 0.0
        %v5379 = vadd.f32 %v5377, %v5378
        %v5380 = vsel %vm3044, %v5359, 0.0
        %v5381 = vadd.f32 %v5379, %v5380
        %v5382 = vrot.slane %v5381, 4
        %v5383 = vadd.f32 %v5381, %v5382
        %v5384 = vrot.slane %v5383, 2
        %v5385 = vadd.f32 %v5383, %v5384
        %v5386 = vrot.slane %v5385, 1
        %v5387 = vadd.f32 %v5385, %v5386
        %v5388 = vadd.f32 %v5366, %v5387
        %v5389 = vrcp.pop %v5388
        %v5390 = vmul.f32 %v5388, %v5389
        %v5391 = vsub.f32 2.0, %v5390
        %v5392 = vmul.f32 %v5389, %v5391
        %v5393 = vld [vmem:[#allocation4] sm:$0xff]
        %v5394 = vld [vmem:[#allocation4 + $0x8] sm:$0xff]
        %v5395 = vld [vmem:[#allocation4 + $0x10] sm:$0xff]
        %v5396 = vld [vmem:[#allocation4 + $0x18] sm:$0xff]
        %v5397 = vld [vmem:[#allocation4 + $0x20] sm:$0xff]
        %v5398 = vld [vmem:[#allocation4 + $0x28] sm:$0xff]
        %v5399 = vld [vmem:[#allocation4 + $0x30] sm:$0xff]
        %v5400 = vld [vmem:[#allocation4 + $0x38] sm:$0xff]
        %v5401 = vld [vmem:[#allocation4 + $0x40] sm:$0xff]
        %v5402 = vld [vmem:[#allocation4 + $0x48] sm:$0xff]
        %v5403 = vld [vmem:[#allocation4 + $0x50] sm:$0xff]
        %v5404 = vld [vmem:[#allocation4 + $0x58] sm:$0xff]
        %v5405 = vld [vmem:[#allocation4 + $0x60] sm:$0xff]
        %v5406 = vld [vmem:[#allocation4 + $0x68] sm:$0xff]
        %v5407 = vld [vmem:[#allocation4 + $0x70] sm:$0xff]
        %v5408 = vld [vmem:[#allocation4 + $0x78] sm:$0xff]
        %v5409 = vmul.f32 %v5335, %v5393
        %v5410 = vmul.f32 %v5335, %v5394
        %v5411 = vmul.f32 %v5335, %v5395
        %v5412 = vmul.f32 %v5335, %v5396
        %v5413 = vmul.f32 %v5335, %v5397
        %v5414 = vmul.f32 %v5335, %v5398
        %v5415 = vmul.f32 %v5335, %v5399
        %v5416 = vmul.f32 %v5335, %v5400
        %v5417 = vmul.f32 %v5335, %v5401
        %v5418 = vmul.f32 %v5335, %v5402
        %v5419 = vmul.f32 %v5335, %v5403
        %v5420 = vmul.f32 %v5335, %v5404
        %v5421 = vmul.f32 %v5335, %v5405
        %v5422 = vmul.f32 %v5335, %v5406
        %v5423 = vmul.f32 %v5335, %v5407
        %v5424 = vmul.f32 %v5335, %v5408
        %v5425 = vsel %vm3044, %v5409, 0.0
        %v5426 = vrot.slane %v5425, 4
        %v5427 = vadd.f32 %v5425, %v5426
        %v5428 = vrot.slane %v5427, 2
        %v5429 = vadd.f32 %v5427, %v5428
        %v5430 = vrot.slane %v5429, 1
        %v5431 = vadd.f32 %v5429, %v5430
        %v5432 = vsel %vm3044, %v5410, 0.0
        %v5433 = vrot.slane %v5432, 4
        %v5434 = vadd.f32 %v5432, %v5433
        %v5435 = vrot.slane %v5434, 2
        %v5436 = vadd.f32 %v5434, %v5435
        %v5437 = vrot.slane %v5436, 1
        %v5438 = vadd.f32 %v5436, %v5437
        %v5439 = vsel %vm3044, %v5411, 0.0
        %v5440 = vrot.slane %v5439, 4
        %v5441 = vadd.f32 %v5439, %v5440
        %v5442 = vrot.slane %v5441, 2
        %v5443 = vadd.f32 %v5441, %v5442
        %v5444 = vrot.slane %v5443, 1
        %v5445 = vadd.f32 %v5443, %v5444
        %v5446 = vsel %vm3044, %v5412, 0.0
        %v5447 = vrot.slane %v5446, 4
        %v5448 = vadd.f32 %v5446, %v5447
        %v5449 = vrot.slane %v5448, 2
        %v5450 = vadd.f32 %v5448, %v5449
        %v5451 = vrot.slane %v5450, 1
        %v5452 = vadd.f32 %v5450, %v5451
        %v5453 = vsel %vm3044, %v5413, 0.0
        %v5454 = vrot.slane %v5453, 4
        %v5455 = vadd.f32 %v5453, %v5454
        %v5456 = vrot.slane %v5455, 2
        %v5457 = vadd.f32 %v5455, %v5456
        %v5458 = vrot.slane %v5457, 1
        %v5459 = vadd.f32 %v5457, %v5458
        %v5460 = vsel %vm3044, %v5414, 0.0
        %v5461 = vrot.slane %v5460, 4
        %v5462 = vadd.f32 %v5460, %v5461
        %v5463 = vrot.slane %v5462, 2
        %v5464 = vadd.f32 %v5462, %v5463
        %v5465 = vrot.slane %v5464, 1
        %v5466 = vadd.f32 %v5464, %v5465
        %v5467 = vsel %vm3044, %v5415, 0.0
        %v5468 = vrot.slane %v5467, 4
        %v5469 = vadd.f32 %v5467, %v5468
        %v5470 = vrot.slane %v5469, 2
        %v5471 = vadd.f32 %v5469, %v5470
        %v5472 = vrot.slane %v5471, 1
        %v5473 = vadd.f32 %v5471, %v5472
        %v5474 = vsel %vm3044, %v5416, 0.0
        %v5475 = vrot.slane %v5474, 4
        %v5476 = vadd.f32 %v5474, %v5475
        %v5477 = vrot.slane %v5476, 2
        %v5478 = vadd.f32 %v5476, %v5477
        %v5479 = vrot.slane %v5478, 1
        %v5480 = vadd.f32 %v5478, %v5479
        %v5481 = vsel %vm3044, %v5417, 0.0
        %v5482 = vrot.slane %v5481, 4
        %v5483 = vadd.f32 %v5481, %v5482
        %v5484 = vrot.slane %v5483, 2
        %v5485 = vadd.f32 %v5483, %v5484
        %v5486 = vrot.slane %v5485, 1
        %v5487 = vadd.f32 %v5485, %v5486
        %v5488 = vsel %vm3044, %v5418, 0.0
        %v5489 = vrot.slane %v5488, 4
        %v5490 = vadd.f32 %v5488, %v5489
        %v5491 = vrot.slane %v5490, 2
        %v5492 = vadd.f32 %v5490, %v5491
        %v5493 = vrot.slane %v5492, 1
        %v5494 = vadd.f32 %v5492, %v5493
        %v5495 = vsel %vm3044, %v5419, 0.0
        %v5496 = vrot.slane %v5495, 4
        %v5497 = vadd.f32 %v5495, %v5496
        %v5498 = vrot.slane %v5497, 2
        %v5499 = vadd.f32 %v5497, %v5498
        %v5500 = vrot.slane %v5499, 1
        %v5501 = vadd.f32 %v5499, %v5500
        %v5502 = vsel %vm3044, %v5420, 0.0
        %v5503 = vrot.slane %v5502, 4
        %v5504 = vadd.f32 %v5502, %v5503
        %v5505 = vrot.slane %v5504, 2
        %v5506 = vadd.f32 %v5504, %v5505
        %v5507 = vrot.slane %v5506, 1
        %v5508 = vadd.f32 %v5506, %v5507
        %v5509 = vsel %vm3044, %v5421, 0.0
        %v5510 = vrot.slane %v5509, 4
        %v5511 = vadd.f32 %v5509, %v5510
        %v5512 = vrot.slane %v5511, 2
        %v5513 = vadd.f32 %v5511, %v5512
        %v5514 = vrot.slane %v5513, 1
        %v5515 = vadd.f32 %v5513, %v5514
        %v5516 = vsel %vm3044, %v5422, 0.0
        %v5517 = vrot.slane %v5516, 4
        %v5518 = vadd.f32 %v5516, %v5517
        %v5519 = vrot.slane %v5518, 2
        %v5520 = vadd.f32 %v5518, %v5519
        %v5521 = vrot.slane %v5520, 1
        %v5522 = vadd.f32 %v5520, %v5521
        %v5523 = vsel %vm3044, %v5423, 0.0
        %v5524 = vrot.slane %v5523, 4
        %v5525 = vadd.f32 %v5523, %v5524
        %v5526 = vrot.slane %v5525, 2
        %v5527 = vadd.f32 %v5525, %v5526
        %v5528 = vrot.slane %v5527, 1
        %v5529 = vadd.f32 %v5527, %v5528
        %v5530 = vsel %vm3044, %v5424, 0.0
        %v5531 = vrot.slane %v5530, 4
        %v5532 = vadd.f32 %v5530, %v5531
        %v5533 = vrot.slane %v5532, 2
        %v5534 = vadd.f32 %v5532, %v5533
        %v5535 = vrot.slane %v5534, 1
        %v5536 = vadd.f32 %v5534, %v5535
        %v5553 = vrot.slane %v5100, 7
        %v5554 = vsel %vm349, %v5553, %v5099
        %v5555 = vrot.slane %v5101, 6
        %v5556 = vsel %vm352, %v5555, %v5554
        %v5557 = vrot.slane %v5102, 5
        %v5558 = vsel %vm355, %v5557, %v5556
        %v5559 = vrot.slane %v5103, 4
        %v5560 = vsel %vm358, %v5559, %v5558
        %v5561 = vrot.slane %v5104, 3
        %v5562 = vsel %vm361, %v5561, %v5560
        %v5563 = vrot.slane %v5105, 2
        %v5564 = vsel %vm364, %v5563, %v5562
        %v5565 = vrot.slane %v5106, 1
        %v5566 = vsel %vm367, %v5565, %v5564
        %v5567 = vrot.slane %v5108, 7
        %v5568 = vsel %vm349, %v5567, %v5107
        %v5569 = vrot.slane %v5109, 6
        %v5570 = vsel %vm352, %v5569, %v5568
        %v5571 = vrot.slane %v5110, 5
        %v5572 = vsel %vm355, %v5571, %v5570
        %v5573 = vrot.slane %v5111, 4
        %v5574 = vsel %vm358, %v5573, %v5572
        %v5575 = vrot.slane %v5112, 3
        %v5576 = vsel %vm361, %v5575, %v5574
        %v5577 = vrot.slane %v5113, 2
        %v5578 = vsel %vm364, %v5577, %v5576
        %v5579 = vrot.slane %v5114, 1
        %v5580 = vsel %vm367, %v5579, %v5578
        %v5581 = vsel %vm3044, %v5566, 0
        %v5583 = vsel %vm3044, %v5580, 0
        %5585 = vmatprep.subr.mxu0 0.0
        %5586 = vmatpush1.msra.mxu0 %v5345
        %5587 = vmatprep.subr.mxu0 0.0
        %5588 = vmatpush1.msra.mxu0 %v5347
        %5589 = vmatprep.subr.mxu0 0.0
        %5590 = vmatpush1.msra.mxu0 %v5349
        %5591 = vmatprep.subr.mxu0 0.0
        %5592 = vmatpush1.msra.mxu0 %v5351
        %5593 = vmatprep.subr.mxu0 0.0
        %5594 = vmatpush1.msra.mxu0 %v5353
        %5595 = vmatprep.subr.mxu0 0.0
        %5596 = vmatpush1.msra.mxu0 %v5355
        %5597 = vmatprep.subr.mxu0 0.0
        %5598 = vmatpush1.msra.mxu0 %v5357
        %5599 = vmatprep.subr.mxu0 0.0
        %5600 = vmatpush1.msra.mxu0 %v5359
        %5601 = vmatprep.subr.mxu0 0.0
        %5602 = vmatpush1.msra.mxu0 0.0
        %5603 = vmatprep.subr.mxu0 0.0
        %5604 = vmatpush1.msra.mxu0 0.0
        %5605 = vmatprep.subr.mxu0 0.0
        %5606 = vmatpush1.msra.mxu0 0.0
        %5607 = vmatprep.subr.mxu0 0.0
        %5608 = vmatpush1.msra.mxu0 0.0
        %5609 = vmatprep.subr.mxu0 0.0
        %5610 = vmatpush1.msra.mxu0 0.0
        %5611 = vmatprep.subr.mxu0 0.0
        %5612 = vmatpush1.msra.mxu0 0.0
        %5613 = vmatprep.subr.mxu0 0.0
        %5614 = vmatpush1.msra.mxu0 0.0
        %5615 = vmatprep.subr.mxu0 0.0
        %5616 = vmatpush1.msra.mxu0 0.0
        %5617 = vmatprep.subr.mxu0 0.0
        %5618 = vmatpush1.msra.mxu0 0.0
        %5619 = vmatprep.subr.mxu0 0.0
        %5620 = vmatpush1.msra.mxu0 0.0
        %5621 = vmatprep.subr.mxu0 0.0
        %5622 = vmatpush1.msra.mxu0 0.0
        %5623 = vmatprep.subr.mxu0 0.0
        %5624 = vmatpush1.msra.mxu0 0.0
        %5625 = vmatprep.subr.mxu0 0.0
        %5626 = vmatpush1.msra.mxu0 0.0
        %5627 = vmatprep.subr.mxu0 0.0
        %5628 = vmatpush1.msra.mxu0 0.0
        %5629 = vmatprep.subr.mxu0 0.0
        %5630 = vmatpush1.msra.mxu0 0.0
        %5631 = vmatprep.subr.mxu0 0.0
        %5632 = vmatpush1.msra.mxu0 0.0
        %5633 = vmatprep.subr.mxu0 0.0
        %5634 = vmatpush1.msra.mxu0 0.0
        %5635 = vmatprep.subr.mxu0 0.0
        %5636 = vmatpush1.msra.mxu0 0.0
        %5637 = vmatprep.subr.mxu0 0.0
        %5638 = vmatpush1.msra.mxu0 0.0
        %5639 = vmatprep.subr.mxu0 0.0
        %5640 = vmatpush1.msra.mxu0 0.0
        %5641 = vmatprep.subr.mxu0 0.0
        %5642 = vmatpush1.msra.mxu0 0.0
        %5643 = vmatprep.subr.mxu0 0.0
        %5644 = vmatpush1.msra.mxu0 0.0
        %5645 = vmatprep.subr.mxu0 0.0
        %5646 = vmatpush1.msra.mxu0 0.0
        %5647 = vmatprep.subr.mxu0 0.0
        %5648 = vmatpush1.msra.mxu0 0.0
        %5649 = vmatprep.mubr.f32.mxu0 0.0
        %5650 = vmatmul.mubr.f32.gmra.mrb[0].mxu0 %v5581
        %v5651 = vpop.f32.mrb[0].mxu0
        %v5652 = vadd.f32 0.0, %v5651
        %v5653 = vpop.f32.mrb[0].mxu0
        %5654 = vmatprep.mubr.f32.mxu0 0.0
        %5655 = vmatmul.mubr.f32.gmra.mrb[0].mxu0 %v5583
        %v5656 = vpop.f32.mrb[0].mxu0
        %v5657 = vadd.f32 0.0, %v5656
        %v5658 = vpop.f32.mrb[0].mxu0
        %5659 = vdwg.mxu0
        %v5662 = vrot.slane %v5652, 1
        %v5663 = vrot.slane %v5652, 2
        %v5664 = vrot.slane %v5652, 3
        %v5665 = vrot.slane %v5652, 4
        %v5666 = vrot.slane %v5652, 5
        %v5667 = vrot.slane %v5652, 6
        %v5668 = vrot.slane %v5652, 7
        %v5669 = vrot.slane %v5657, 1
        %v5670 = vrot.slane %v5657, 2
        %v5671 = vrot.slane %v5657, 3
        %v5672 = vrot.slane %v5657, 4
        %v5673 = vrot.slane %v5657, 5
        %v5674 = vrot.slane %v5657, 6
        %v5675 = vrot.slane %v5657, 7
        %v5692 = vadd.f32 %v5431, %v5652
        %v5693 = vadd.f32 %v5438, %v5662
        %v5694 = vadd.f32 %v5445, %v5663
        %v5695 = vadd.f32 %v5452, %v5664
        %v5696 = vadd.f32 %v5459, %v5665
        %v5697 = vadd.f32 %v5466, %v5666
        %v5698 = vadd.f32 %v5473, %v5667
        %v5699 = vadd.f32 %v5480, %v5668
        %v5700 = vadd.f32 %v5487, %v5657
        %v5701 = vadd.f32 %v5494, %v5669
        %v5702 = vadd.f32 %v5501, %v5670
        %v5703 = vadd.f32 %v5508, %v5671
        %v5704 = vadd.f32 %v5515, %v5672
        %v5705 = vadd.f32 %v5522, %v5673
        %v5706 = vadd.f32 %v5529, %v5674
        %v5707 = vadd.f32 %v5536, %v5675
        %v5708 = vmul.f32 %v5692, %v5392
        %v5709 = vmul.f32 %v5693, %v5392
        %v5710 = vmul.f32 %v5694, %v5392
        %v5711 = vmul.f32 %v5695, %v5392
        %v5712 = vmul.f32 %v5696, %v5392
        %v5713 = vmul.f32 %v5697, %v5392
        %v5714 = vmul.f32 %v5698, %v5392
        %v5715 = vmul.f32 %v5699, %v5392
        %v5716 = vmul.f32 %v5700, %v5392
        %v5717 = vmul.f32 %v5701, %v5392
        %v5718 = vmul.f32 %v5702, %v5392
        %v5719 = vmul.f32 %v5703, %v5392
        %v5720 = vmul.f32 %v5704, %v5392
        %v5721 = vmul.f32 %v5705, %v5392
        %v5722 = vmul.f32 %v5706, %v5392
        %v5723 = vmul.f32 %v5707, %v5392
        %v5724 = vmul.f32 %v3644, %v5708
        %v5725 = vmul.f32 %v3644, %v5709
        %v5726 = vmul.f32 %v3644, %v5710
        %v5727 = vmul.f32 %v3644, %v5711
        %v5728 = vmul.f32 %v3644, %v5712
        %v5729 = vmul.f32 %v3644, %v5713
        %v5730 = vmul.f32 %v3644, %v5714
        %v5731 = vmul.f32 %v3644, %v5715
        %v5732 = vmul.f32 %v3644, %v5716
        %v5733 = vmul.f32 %v3644, %v5717
        %v5734 = vmul.f32 %v3644, %v5718
        %v5735 = vmul.f32 %v3644, %v5719
        %v5736 = vmul.f32 %v3644, %v5720
        %v5737 = vmul.f32 %v3644, %v5721
        %v5738 = vmul.f32 %v3644, %v5722
        %v5739 = vmul.f32 %v3644, %v5723
        %v5740 = vld [vmem:[%s249 + $0x3] sm:$0x1]
        %v5741 = vld [vmem:[%s249 + $0xb] sm:$0x1]
        %v5742 = vld [vmem:[%s249 + $0x13] sm:$0x1]
        %v5743 = vld [vmem:[%s249 + $0x1b] sm:$0x1]
        %v5744 = vld [vmem:[%s249 + $0x23] sm:$0x1]
        %v5745 = vld [vmem:[%s249 + $0x2b] sm:$0x1]
        %v5746 = vld [vmem:[%s249 + $0x33] sm:$0x1]
        %v5747 = vld [vmem:[%s249 + $0x3b] sm:$0x1]
        %v5748 = vld [vmem:[%s249 + $0x43] sm:$0x1]
        %v5749 = vld [vmem:[%s249 + $0x4b] sm:$0x1]
        %v5750 = vld [vmem:[%s249 + $0x53] sm:$0x1]
        %v5751 = vld [vmem:[%s249 + $0x5b] sm:$0x1]
        %v5752 = vld [vmem:[%s249 + $0x63] sm:$0x1]
        %v5753 = vld [vmem:[%s249 + $0x6b] sm:$0x1]
        %v5754 = vld [vmem:[%s249 + $0x73] sm:$0x1]
        %v5755 = vld [vmem:[%s249 + $0x7b] sm:$0x1]
        %v5756 = vadd.f32 %v5724, %v5740
        %v5757 = vadd.f32 %v5725, %v5741
        %v5758 = vadd.f32 %v5726, %v5742
        %v5759 = vadd.f32 %v5727, %v5743
        %v5760 = vadd.f32 %v5728, %v5744
        %v5761 = vadd.f32 %v5729, %v5745
        %v5762 = vadd.f32 %v5730, %v5746
        %v5763 = vadd.f32 %v5731, %v5747
        %v5764 = vadd.f32 %v5732, %v5748
        %v5765 = vadd.f32 %v5733, %v5749
        %v5766 = vadd.f32 %v5734, %v5750
        %v5767 = vadd.f32 %v5735, %v5751
        %v5768 = vadd.f32 %v5736, %v5752
        %v5769 = vadd.f32 %v5737, %v5753
        %v5770 = vadd.f32 %v5738, %v5754
        %v5771 = vadd.f32 %v5739, %v5755
        %5772 = vst.msk [vmem:[%s287 + $0x3] sm:$0x1] %vm508, %v5756
        %5773 = vst.msk [vmem:[%s287 + $0xb] sm:$0x1] %vm508, %v5757
        %5774 = vst.msk [vmem:[%s287 + $0x13] sm:$0x1] %vm508, %v5758
        %5775 = vst.msk [vmem:[%s287 + $0x1b] sm:$0x1] %vm508, %v5759
        %5776 = vst.msk [vmem:[%s287 + $0x23] sm:$0x1] %vm508, %v5760
        %5777 = vst.msk [vmem:[%s287 + $0x2b] sm:$0x1] %vm508, %v5761
        %5778 = vst.msk [vmem:[%s287 + $0x33] sm:$0x1] %vm508, %v5762
        %5779 = vst.msk [vmem:[%s287 + $0x3b] sm:$0x1] %vm508, %v5763
        %5780 = vst.msk [vmem:[%s287 + $0x43] sm:$0x1] %vm508, %v5764
        %5781 = vst.msk [vmem:[%s287 + $0x4b] sm:$0x1] %vm508, %v5765
        %5782 = vst.msk [vmem:[%s287 + $0x53] sm:$0x1] %vm508, %v5766
        %5783 = vst.msk [vmem:[%s287 + $0x5b] sm:$0x1] %vm508, %v5767
        %5784 = vst.msk [vmem:[%s287 + $0x63] sm:$0x1] %vm508, %v5768
        %5785 = vst.msk [vmem:[%s287 + $0x6b] sm:$0x1] %vm508, %v5769
        %5786 = vst.msk [vmem:[%s287 + $0x73] sm:$0x1] %vm508, %v5770
        %5787 = vst.msk [vmem:[%s287 + $0x7b] sm:$0x1] %vm508, %v5771
        %v5788 = vld [vmem:[#allocation2 + $0x4] sm:$0x1]
        %v5789 = vld [vmem:[#allocation2 + $0xc] sm:$0x1]
        %v5790 = vld [vmem:[#allocation3 + $0x4] sm:$0x1]
        %v5791 = vld [vmem:[#allocation3 + $0xc] sm:$0x1]
        %v5792 = vld [vmem:[#allocation4 + $0x4] sm:$0x1]
        %v5793 = vld [vmem:[#allocation4 + $0xc] sm:$0x1]
        %v5794 = vld [vmem:[#allocation4 + $0x14] sm:$0x1]
        %v5795 = vld [vmem:[#allocation4 + $0x1c] sm:$0x1]
        %v5796 = vld [vmem:[#allocation4 + $0x24] sm:$0x1]
        %v5797 = vld [vmem:[#allocation4 + $0x2c] sm:$0x1]
        %v5798 = vld [vmem:[#allocation4 + $0x34] sm:$0x1]
        %v5799 = vld [vmem:[#allocation4 + $0x3c] sm:$0x1]
        %v5800 = vld [vmem:[#allocation4 + $0x44] sm:$0x1]
        %v5801 = vld [vmem:[#allocation4 + $0x4c] sm:$0x1]
        %v5802 = vld [vmem:[#allocation4 + $0x54] sm:$0x1]
        %v5803 = vld [vmem:[#allocation4 + $0x5c] sm:$0x1]
        %v5804 = vld [vmem:[#allocation4 + $0x64] sm:$0x1]
        %v5805 = vld [vmem:[#allocation4 + $0x6c] sm:$0x1]
        %v5806 = vld [vmem:[#allocation4 + $0x74] sm:$0x1]
        %v5807 = vld [vmem:[#allocation4 + $0x7c] sm:$0x1]
        %v5808 = vld [vmem:[#allocation3] sm:$0xff]
        %v5809 = vld [vmem:[#allocation3 + $0x8] sm:$0xff]
        %v5810 = vlaneseq
        %v5811 = vshrl.u32 %v5810, 7
        %v5812 = vsub.s32 0, %v5811
        %v5813 = vrot.slane %v5788, %v5812
        %v5814 = vlaneseq
        %v5815 = vshrl.u32 %v5814, 7
        %v5816 = vsub.s32 0, %v5815
        %v5817 = vrot.slane %v5789, %v5816
        %v5818 = vmul.f32 %v5813, %v5808
        %v5819 = vmul.f32 %v5817, %v5809
        %v5820 = vsel %vm3044, %v5818, 0.0
        %v5821 = vsel %vm3044, %v5819, 0.0
        %v5822 = vadd.f32 %v5820, %v5821
        %vm5823 = vcmp.eq.s32.totalorder %v3011, 4
        %v5824 = vsel %vm5823, -1e+30, %v5822
        %v5827 = vrot.slane %v5791, 7
        %v5828 = vsel %vm349, %v5827, %v5790
        %5830 = vxpose.xlu0.b32.start [1/16] %v5828, 128
        %5831 = vxpose.xlu0.b32.cont [2/16] 0.0, 128
        %5832 = vxpose.xlu0.b32.cont [3/16] 0.0, 128
        %5833 = vxpose.xlu0.b32.cont [4/16] 0.0, 128
        %5834 = vxpose.xlu0.b32.cont [5/16] 0.0, 128
        %5835 = vxpose.xlu0.b32.cont [6/16] 0.0, 128
        %5836 = vxpose.xlu0.b32.cont [7/16] 0.0, 128
        %5837 = vxpose.xlu0.b32.cont [8/16] 0.0, 128
        %5838 = vxpose.xlu0.b32.cont [9/16] 0.0, 128
        %5839 = vxpose.xlu0.b32.cont [10/16] 0.0, 128
        %5840 = vxpose.xlu0.b32.cont [11/16] 0.0, 128
        %5841 = vxpose.xlu0.b32.cont [12/16] 0.0, 128
        %5842 = vxpose.xlu0.b32.cont [13/16] 0.0, 128
        %5843 = vxpose.xlu0.b32.cont [14/16] 0.0, 128
        %5844 = vxpose.xlu0.b32.cont [15/16] 0.0, 128
        %5845 = vxpose.xlu0.b32.end [16/16] 0.0, 128
        %v5846 = vpop.trf.xlu0
        %v5847 = vpop.trf.xlu0
        %v5848 = vpop.trf.xlu0
        %v5849 = vpop.trf.xlu0
        %v5850 = vpop.trf.xlu0
        %v5851 = vpop.trf.xlu0
        %v5852 = vpop.trf.xlu0
        %v5853 = vpop.trf.xlu0
        %v5854 = vpop.trf.xlu0
        %v5855 = vpop.trf.xlu0
        %v5856 = vpop.trf.xlu0
        %v5857 = vpop.trf.xlu0
        %v5858 = vpop.trf.xlu0
        %v5859 = vpop.trf.xlu0
        %v5860 = vpop.trf.xlu0
        %v5861 = vpop.trf.xlu0
        %v5864 = vrot.slane %v5789, 7
        %v5865 = vsel %vm349, %v5864, %v5788
        %v5867 = vsel %vm3091, %v5846, 0
        %v5870 = vsel %vm3091, %v5847, 0
        %v5873 = vsel %vm3091, %v5848, 0
        %v5876 = vsel %vm3091, %v5849, 0
        %v5879 = vsel %vm3091, %v5850, 0
        %v5882 = vsel %vm3091, %v5851, 0
        %v5885 = vsel %vm3091, %v5852, 0
        %v5888 = vsel %vm3091, %v5853, 0
        %v5890 = vsel %vm3116, %v5865, 0
        %5892 = vmatprep.subr.mxu0 0.0
        %5893 = vmatpush1.msra.mxu0 %v5890
        %5894 = vmatprep.subr.mxu0 0.0
        %5895 = vmatpush1.msra.mxu0 0.0
        %5896 = vmatprep.subr.mxu0 0.0
        %5897 = vmatpush1.msra.mxu0 0.0
        %5898 = vmatprep.subr.mxu0 0.0
        %5899 = vmatpush1.msra.mxu0 0.0
        %5900 = vmatprep.subr.mxu0 0.0
        %5901 = vmatpush1.msra.mxu0 0.0
        %5902 = vmatprep.subr.mxu0 0.0
        %5903 = vmatpush1.msra.mxu0 0.0
        %5904 = vmatprep.subr.mxu0 0.0
        %5905 = vmatpush1.msra.mxu0 0.0
        %5906 = vmatprep.subr.mxu0 0.0
        %5907 = vmatpush1.msra.mxu0 0.0
        %5908 = vmatprep.subr.mxu0 0.0
        %5909 = vmatpush1.msra.mxu0 0.0
        %5910 = vmatprep.subr.mxu0 0.0
        %5911 = vmatpush1.msra.mxu0 0.0
        %5912 = vmatprep.subr.mxu0 0.0
        %5913 = vmatpush1.msra.mxu0 0.0
        %5914 = vmatprep.subr.mxu0 0.0
        %5915 = vmatpush1.msra.mxu0 0.0
        %5916 = vmatprep.subr.mxu0 0.0
        %5917 = vmatpush1.msra.mxu0 0.0
        %5918 = vmatprep.subr.mxu0 0.0
        %5919 = vmatpush1.msra.mxu0 0.0
        %5920 = vmatprep.subr.mxu0 0.0
        %5921 = vmatpush1.msra.mxu0 0.0
        %5922 = vmatprep.subr.mxu0 0.0
        %5923 = vmatpush1.msra.mxu0 0.0
        %5924 = vmatprep.subr.mxu0 0.0
        %5925 = vmatpush1.msra.mxu0 0.0
        %5926 = vmatprep.subr.mxu0 0.0
        %5927 = vmatpush1.msra.mxu0 0.0
        %5928 = vmatprep.subr.mxu0 0.0
        %5929 = vmatpush1.msra.mxu0 0.0
        %5930 = vmatprep.subr.mxu0 0.0
        %5931 = vmatpush1.msra.mxu0 0.0
        %5932 = vmatprep.subr.mxu0 0.0
        %5933 = vmatpush1.msra.mxu0 0.0
        %5934 = vmatprep.subr.mxu0 0.0
        %5935 = vmatpush1.msra.mxu0 0.0
        %5936 = vmatprep.subr.mxu0 0.0
        %5937 = vmatpush1.msra.mxu0 0.0
        %5938 = vmatprep.subr.mxu0 0.0
        %5939 = vmatpush1.msra.mxu0 0.0
        %5940 = vmatprep.subr.mxu0 0.0
        %5941 = vmatpush1.msra.mxu0 0.0
        %5942 = vmatprep.subr.mxu0 0.0
        %5943 = vmatpush1.msra.mxu0 0.0
        %5944 = vmatprep.subr.mxu0 0.0
        %5945 = vmatpush1.msra.mxu0 0.0
        %5946 = vmatprep.subr.mxu0 0.0
        %5947 = vmatpush1.msra.mxu0 0.0
        %5948 = vmatprep.subr.mxu0 0.0
        %5949 = vmatpush1.msra.mxu0 0.0
        %5950 = vmatprep.subr.mxu0 0.0
        %5951 = vmatpush1.msra.mxu0 0.0
        %5952 = vmatprep.subr.mxu0 0.0
        %5953 = vmatpush1.msra.mxu0 0.0
        %5954 = vmatprep.subr.mxu0 0.0
        %5955 = vmatpush1.msra.mxu0 0.0
        %5956 = vmatprep.mubr.f32.mxu0 0.0
        %5957 = vmatmul.mubr.f32.gmra.mrb[0].mxu0 %v5867
        %v5958 = vpop.f32.mrb[0].mxu0
        %v5959 = vadd.f32 %v3002, %v5958
        %v5960 = vpop.f32.mrb[0].mxu0
        %5961 = vmatprep.mubr.f32.mxu0 0.0
        %5962 = vmatmul.mubr.f32.gmra.mrb[0].mxu0 %v5870
        %v5963 = vpop.f32.mrb[0].mxu0
        %v5964 = vadd.f32 %v3003, %v5963
        %v5965 = vpop.f32.mrb[0].mxu0
        %5966 = vmatprep.mubr.f32.mxu0 0.0
        %5967 = vmatmul.mubr.f32.gmra.mrb[0].mxu0 %v5873
        %v5968 = vpop.f32.mrb[0].mxu0
        %v5969 = vadd.f32 %v3004, %v5968
        %v5970 = vpop.f32.mrb[0].mxu0
        %5971 = vmatprep.mubr.f32.mxu0 0.0
        %5972 = vmatmul.mubr.f32.gmra.mrb[0].mxu0 %v5876
        %v5973 = vpop.f32.mrb[0].mxu0
        %v5974 = vadd.f32 %v3005, %v5973
        %v5975 = vpop.f32.mrb[0].mxu0
        %5976 = vmatprep.mubr.f32.mxu0 0.0
        %5977 = vmatmul.mubr.f32.gmra.mrb[0].mxu0 %v5879
        %v5978 = vpop.f32.mrb[0].mxu0
        %v5979 = vadd.f32 %v3006, %v5978
        %v5980 = vpop.f32.mrb[0].mxu0
        %5981 = vmatprep.mubr.f32.mxu0 0.0
        %5982 = vmatmul.mubr.f32.gmra.mrb[0].mxu0 %v5882
        %v5983 = vpop.f32.mrb[0].mxu0
        %v5984 = vadd.f32 %v3007, %v5983
        %v5985 = vpop.f32.mrb[0].mxu0
        %5986 = vmatprep.mubr.f32.mxu0 0.0
        %5987 = vmatmul.mubr.f32.gmra.mrb[0].mxu0 %v5885
        %v5988 = vpop.f32.mrb[0].mxu0
        %v5989 = vadd.f32 %v3008, %v5988
        %v5990 = vpop.f32.mrb[0].mxu0
        %5991 = vmatprep.mubr.f32.mxu0 0.0
        %5992 = vmatmul.mubr.f32.gmra.mrb[0].mxu0 %v5888
        %v5993 = vpop.f32.mrb[0].mxu0
        %v5994 = vadd.f32 %v3009, %v5993
        %v5995 = vpop.f32.mrb[0].mxu0
        %5996 = vdwg.mxu0
        %v5997 = vsel %vm3044, %v5824, -inf
        %v5998 = vrot.slane %v5997, 4
        %v5999 = vmax.f32 %v5997, %v5998
        %v6000 = vrot.slane %v5999, 2
        %v6001 = vmax.f32 %v5999, %v6000
        %v6002 = vrot.slane %v6001, 1
        %v6003 = vmax.f32 %v6001, %v6002
        %v6004 = vsel %vm3044, %v5959, -inf
        %v6005 = vsel %vm3044, %v5964, -inf
        %v6006 = vsel %vm3044, %v5969, -inf
        %v6007 = vsel %vm3044, %v5974, -inf
        %v6008 = vsel %vm3044, %v5979, -inf
        %v6009 = vmax.f32 %v6004, %v6008
        %v6010 = vsel %vm3044, %v5984, -inf
        %v6011 = vmax.f32 %v6005, %v6010
        %v6012 = vsel %vm3044, %v5989, -inf
        %v6013 = vmax.f32 %v6006, %v6012
        %v6014 = vsel %vm3044, %v5994, -inf
        %v6015 = vmax.f32 %v6007, %v6014
        %v6016 = vmax.f32 %v6009, %v6011
        %v6017 = vmax.f32 %v6013, %v6015
        %v6018 = vmax.f32 %v6016, %v6017
        %v6019 = vrot.slane %v6018, 4
        %v6020 = vmax.f32 %v6018, %v6019
        %v6021 = vrot.slane %v6020, 2
        %v6022 = vmax.f32 %v6020, %v6021
        %v6023 = vrot.slane %v6022, 1
        %v6024 = vmax.f32 %v6022, %v6023
        %v6025 = vmax.f32 %v6003, %v6024
        %v6026 = vsub.f32 %v5824, %v6025
        %v6027 = vmul.f32 %v6026, 1.442695
        %v6028 = vpow.pop %v6027
        %v6029 = vsub.f32 %v5959, %v6025
        %v6030 = vsub.f32 %v5964, %v6025
        %v6031 = vsub.f32 %v5969, %v6025
        %v6032 = vsub.f32 %v5974, %v6025
        %v6033 = vsub.f32 %v5979, %v6025
        %v6034 = vsub.f32 %v5984, %v6025
        %v6035 = vsub.f32 %v5989, %v6025
        %v6036 = vsub.f32 %v5994, %v6025
        %v6037 = vmul.f32 %v6029, 1.442695
        %v6038 = vpow.pop %v6037
        %v6039 = vmul.f32 %v6030, 1.442695
        %v6040 = vpow.pop %v6039
        %v6041 = vmul.f32 %v6031, 1.442695
        %v6042 = vpow.pop %v6041
        %v6043 = vmul.f32 %v6032, 1.442695
        %v6044 = vpow.pop %v6043
        %v6045 = vmul.f32 %v6033, 1.442695
        %v6046 = vpow.pop %v6045
        %v6047 = vmul.f32 %v6034, 1.442695
        %v6048 = vpow.pop %v6047
        %v6049 = vmul.f32 %v6035, 1.442695
        %v6050 = vpow.pop %v6049
        %v6051 = vmul.f32 %v6036, 1.442695
        %v6052 = vpow.pop %v6051
        %v6053 = vsel %vm3044, %v6028, 0.0
        %v6054 = vrot.slane %v6053, 4
        %v6055 = vadd.f32 %v6053, %v6054
        %v6056 = vrot.slane %v6055, 2
        %v6057 = vadd.f32 %v6055, %v6056
        %v6058 = vrot.slane %v6057, 1
        %v6059 = vadd.f32 %v6057, %v6058
        %v6060 = vsel %vm3044, %v6038, 0.0
        %v6061 = vsel %vm3044, %v6040, 0.0
        %v6062 = vadd.f32 %v6060, %v6061
        %v6063 = vsel %vm3044, %v6042, 0.0
        %v6064 = vadd.f32 %v6062, %v6063
        %v6065 = vsel %vm3044, %v6044, 0.0
        %v6066 = vadd.f32 %v6064, %v6065
        %v6067 = vsel %vm3044, %v6046, 0.0
        %v6068 = vadd.f32 %v6066, %v6067
        %v6069 = vsel %vm3044, %v6048, 0.0
        %v6070 = vadd.f32 %v6068, %v6069
        %v6071 = vsel %vm3044, %v6050, 0.0
        %v6072 = vadd.f32 %v6070, %v6071
        %v6073 = vsel %vm3044, %v6052, 0.0
        %v6074 = vadd.f32 %v6072, %v6073
        %v6075 = vrot.slane %v6074, 4
        %v6076 = vadd.f32 %v6074, %v6075
        %v6077 = vrot.slane %v6076, 2
        %v6078 = vadd.f32 %v6076, %v6077
        %v6079 = vrot.slane %v6078, 1
        %v6080 = vadd.f32 %v6078, %v6079
        %v6081 = vadd.f32 %v6059, %v6080
        %v6082 = vrcp.pop %v6081
        %v6083 = vmul.f32 %v6081, %v6082
        %v6084 = vsub.f32 2.0, %v6083
        %v6085 = vmul.f32 %v6082, %v6084
        %v6086 = vld [vmem:[#allocation4] sm:$0xff]
        %v6087 = vld [vmem:[#allocation4 + $0x8] sm:$0xff]
        %v6088 = vld [vmem:[#allocation4 + $0x10] sm:$0xff]
        %v6089 = vld [vmem:[#allocation4 + $0x18] sm:$0xff]
        %v6090 = vld [vmem:[#allocation4 + $0x20] sm:$0xff]
        %v6091 = vld [vmem:[#allocation4 + $0x28] sm:$0xff]
        %v6092 = vld [vmem:[#allocation4 + $0x30] sm:$0xff]
        %v6093 = vld [vmem:[#allocation4 + $0x38] sm:$0xff]
        %v6094 = vld [vmem:[#allocation4 + $0x40] sm:$0xff]
        %v6095 = vld [vmem:[#allocation4 + $0x48] sm:$0xff]
        %v6096 = vld [vmem:[#allocation4 + $0x50] sm:$0xff]
        %v6097 = vld [vmem:[#allocation4 + $0x58] sm:$0xff]
        %v6098 = vld [vmem:[#allocation4 + $0x60] sm:$0xff]
        %v6099 = vld [vmem:[#allocation4 + $0x68] sm:$0xff]
        %v6100 = vld [vmem:[#allocation4 + $0x70] sm:$0xff]
        %v6101 = vld [vmem:[#allocation4 + $0x78] sm:$0xff]
        %v6102 = vmul.f32 %v6028, %v6086
        %v6103 = vmul.f32 %v6028, %v6087
        %v6104 = vmul.f32 %v6028, %v6088
        %v6105 = vmul.f32 %v6028, %v6089
        %v6106 = vmul.f32 %v6028, %v6090
        %v6107 = vmul.f32 %v6028, %v6091
        %v6108 = vmul.f32 %v6028, %v6092
        %v6109 = vmul.f32 %v6028, %v6093
        %v6110 = vmul.f32 %v6028, %v6094
        %v6111 = vmul.f32 %v6028, %v6095
        %v6112 = vmul.f32 %v6028, %v6096
        %v6113 = vmul.f32 %v6028, %v6097
        %v6114 = vmul.f32 %v6028, %v6098
        %v6115 = vmul.f32 %v6028, %v6099
        %v6116 = vmul.f32 %v6028, %v6100
        %v6117 = vmul.f32 %v6028, %v6101
        %v6118 = vsel %vm3044, %v6102, 0.0
        %v6119 = vrot.slane %v6118, 4
        %v6120 = vadd.f32 %v6118, %v6119
        %v6121 = vrot.slane %v6120, 2
        %v6122 = vadd.f32 %v6120, %v6121
        %v6123 = vrot.slane %v6122, 1
        %v6124 = vadd.f32 %v6122, %v6123
        %v6125 = vsel %vm3044, %v6103, 0.0
        %v6126 = vrot.slane %v6125, 4
        %v6127 = vadd.f32 %v6125, %v6126
        %v6128 = vrot.slane %v6127, 2
        %v6129 = vadd.f32 %v6127, %v6128
        %v6130 = vrot.slane %v6129, 1
        %v6131 = vadd.f32 %v6129, %v6130
        %v6132 = vsel %vm3044, %v6104, 0.0
        %v6133 = vrot.slane %v6132, 4
        %v6134 = vadd.f32 %v6132, %v6133
        %v6135 = vrot.slane %v6134, 2
        %v6136 = vadd.f32 %v6134, %v6135
        %v6137 = vrot.slane %v6136, 1
        %v6138 = vadd.f32 %v6136, %v6137
        %v6139 = vsel %vm3044, %v6105, 0.0
        %v6140 = vrot.slane %v6139, 4
        %v6141 = vadd.f32 %v6139, %v6140
        %v6142 = vrot.slane %v6141, 2
        %v6143 = vadd.f32 %v6141, %v6142
        %v6144 = vrot.slane %v6143, 1
        %v6145 = vadd.f32 %v6143, %v6144
        %v6146 = vsel %vm3044, %v6106, 0.0
        %v6147 = vrot.slane %v6146, 4
        %v6148 = vadd.f32 %v6146, %v6147
        %v6149 = vrot.slane %v6148, 2
        %v6150 = vadd.f32 %v6148, %v6149
        %v6151 = vrot.slane %v6150, 1
        %v6152 = vadd.f32 %v6150, %v6151
        %v6153 = vsel %vm3044, %v6107, 0.0
        %v6154 = vrot.slane %v6153, 4
        %v6155 = vadd.f32 %v6153, %v6154
        %v6156 = vrot.slane %v6155, 2
        %v6157 = vadd.f32 %v6155, %v6156
        %v6158 = vrot.slane %v6157, 1
        %v6159 = vadd.f32 %v6157, %v6158
        %v6160 = vsel %vm3044, %v6108, 0.0
        %v6161 = vrot.slane %v6160, 4
        %v6162 = vadd.f32 %v6160, %v6161
        %v6163 = vrot.slane %v6162, 2
        %v6164 = vadd.f32 %v6162, %v6163
        %v6165 = vrot.slane %v6164, 1
        %v6166 = vadd.f32 %v6164, %v6165
        %v6167 = vsel %vm3044, %v6109, 0.0
        %v6168 = vrot.slane %v6167, 4
        %v6169 = vadd.f32 %v6167, %v6168
        %v6170 = vrot.slane %v6169, 2
        %v6171 = vadd.f32 %v6169, %v6170
        %v6172 = vrot.slane %v6171, 1
        %v6173 = vadd.f32 %v6171, %v6172
        %v6174 = vsel %vm3044, %v6110, 0.0
        %v6175 = vrot.slane %v6174, 4
        %v6176 = vadd.f32 %v6174, %v6175
        %v6177 = vrot.slane %v6176, 2
        %v6178 = vadd.f32 %v6176, %v6177
        %v6179 = vrot.slane %v6178, 1
        %v6180 = vadd.f32 %v6178, %v6179
        %v6181 = vsel %vm3044, %v6111, 0.0
        %v6182 = vrot.slane %v6181, 4
        %v6183 = vadd.f32 %v6181, %v6182
        %v6184 = vrot.slane %v6183, 2
        %v6185 = vadd.f32 %v6183, %v6184
        %v6186 = vrot.slane %v6185, 1
        %v6187 = vadd.f32 %v6185, %v6186
        %v6188 = vsel %vm3044, %v6112, 0.0
        %v6189 = vrot.slane %v6188, 4
        %v6190 = vadd.f32 %v6188, %v6189
        %v6191 = vrot.slane %v6190, 2
        %v6192 = vadd.f32 %v6190, %v6191
        %v6193 = vrot.slane %v6192, 1
        %v6194 = vadd.f32 %v6192, %v6193
        %v6195 = vsel %vm3044, %v6113, 0.0
        %v6196 = vrot.slane %v6195, 4
        %v6197 = vadd.f32 %v6195, %v6196
        %v6198 = vrot.slane %v6197, 2
        %v6199 = vadd.f32 %v6197, %v6198
        %v6200 = vrot.slane %v6199, 1
        %v6201 = vadd.f32 %v6199, %v6200
        %v6202 = vsel %vm3044, %v6114, 0.0
        %v6203 = vrot.slane %v6202, 4
        %v6204 = vadd.f32 %v6202, %v6203
        %v6205 = vrot.slane %v6204, 2
        %v6206 = vadd.f32 %v6204, %v6205
        %v6207 = vrot.slane %v6206, 1
        %v6208 = vadd.f32 %v6206, %v6207
        %v6209 = vsel %vm3044, %v6115, 0.0
        %v6210 = vrot.slane %v6209, 4
        %v6211 = vadd.f32 %v6209, %v6210
        %v6212 = vrot.slane %v6211, 2
        %v6213 = vadd.f32 %v6211, %v6212
        %v6214 = vrot.slane %v6213, 1
        %v6215 = vadd.f32 %v6213, %v6214
        %v6216 = vsel %vm3044, %v6116, 0.0
        %v6217 = vrot.slane %v6216, 4
        %v6218 = vadd.f32 %v6216, %v6217
        %v6219 = vrot.slane %v6218, 2
        %v6220 = vadd.f32 %v6218, %v6219
        %v6221 = vrot.slane %v6220, 1
        %v6222 = vadd.f32 %v6220, %v6221
        %v6223 = vsel %vm3044, %v6117, 0.0
        %v6224 = vrot.slane %v6223, 4
        %v6225 = vadd.f32 %v6223, %v6224
        %v6226 = vrot.slane %v6225, 2
        %v6227 = vadd.f32 %v6225, %v6226
        %v6228 = vrot.slane %v6227, 1
        %v6229 = vadd.f32 %v6227, %v6228
        %v6246 = vrot.slane %v5793, 7
        %v6247 = vsel %vm349, %v6246, %v5792
        %v6248 = vrot.slane %v5794, 6
        %v6249 = vsel %vm352, %v6248, %v6247
        %v6250 = vrot.slane %v5795, 5
        %v6251 = vsel %vm355, %v6250, %v6249
        %v6252 = vrot.slane %v5796, 4
        %v6253 = vsel %vm358, %v6252, %v6251
        %v6254 = vrot.slane %v5797, 3
        %v6255 = vsel %vm361, %v6254, %v6253
        %v6256 = vrot.slane %v5798, 2
        %v6257 = vsel %vm364, %v6256, %v6255
        %v6258 = vrot.slane %v5799, 1
        %v6259 = vsel %vm367, %v6258, %v6257
        %v6260 = vrot.slane %v5801, 7
        %v6261 = vsel %vm349, %v6260, %v5800
        %v6262 = vrot.slane %v5802, 6
        %v6263 = vsel %vm352, %v6262, %v6261
        %v6264 = vrot.slane %v5803, 5
        %v6265 = vsel %vm355, %v6264, %v6263
        %v6266 = vrot.slane %v5804, 4
        %v6267 = vsel %vm358, %v6266, %v6265
        %v6268 = vrot.slane %v5805, 3
        %v6269 = vsel %vm361, %v6268, %v6267
        %v6270 = vrot.slane %v5806, 2
        %v6271 = vsel %vm364, %v6270, %v6269
        %v6272 = vrot.slane %v5807, 1
        %v6273 = vsel %vm367, %v6272, %v6271
        %v6274 = vsel %vm3044, %v6259, 0
        %v6276 = vsel %vm3044, %v6273, 0
        %6278 = vmatprep.subr.mxu0 0.0
        %6279 = vmatpush1.msra.mxu0 %v6038
        %6280 = vmatprep.subr.mxu0 0.0
        %6281 = vmatpush1.msra.mxu0 %v6040
        %6282 = vmatprep.subr.mxu0 0.0
        %6283 = vmatpush1.msra.mxu0 %v6042
        %6284 = vmatprep.subr.mxu0 0.0
        %6285 = vmatpush1.msra.mxu0 %v6044
        %6286 = vmatprep.subr.mxu0 0.0
        %6287 = vmatpush1.msra.mxu0 %v6046
        %6288 = vmatprep.subr.mxu0 0.0
        %6289 = vmatpush1.msra.mxu0 %v6048
        %6290 = vmatprep.subr.mxu0 0.0
        %6291 = vmatpush1.msra.mxu0 %v6050
        %6292 = vmatprep.subr.mxu0 0.0
        %6293 = vmatpush1.msra.mxu0 %v6052
        %6294 = vmatprep.subr.mxu0 0.0
        %6295 = vmatpush1.msra.mxu0 0.0
        %6296 = vmatprep.subr.mxu0 0.0
        %6297 = vmatpush1.msra.mxu0 0.0
        %6298 = vmatprep.subr.mxu0 0.0
        %6299 = vmatpush1.msra.mxu0 0.0
        %6300 = vmatprep.subr.mxu0 0.0
        %6301 = vmatpush1.msra.mxu0 0.0
        %6302 = vmatprep.subr.mxu0 0.0
        %6303 = vmatpush1.msra.mxu0 0.0
        %6304 = vmatprep.subr.mxu0 0.0
        %6305 = vmatpush1.msra.mxu0 0.0
        %6306 = vmatprep.subr.mxu0 0.0
        %6307 = vmatpush1.msra.mxu0 0.0
        %6308 = vmatprep.subr.mxu0 0.0
        %6309 = vmatpush1.msra.mxu0 0.0
        %6310 = vmatprep.subr.mxu0 0.0
        %6311 = vmatpush1.msra.mxu0 0.0
        %6312 = vmatprep.subr.mxu0 0.0
        %6313 = vmatpush1.msra.mxu0 0.0
        %6314 = vmatprep.subr.mxu0 0.0
        %6315 = vmatpush1.msra.mxu0 0.0
        %6316 = vmatprep.subr.mxu0 0.0
        %6317 = vmatpush1.msra.mxu0 0.0
        %6318 = vmatprep.subr.mxu0 0.0
        %6319 = vmatpush1.msra.mxu0 0.0
        %6320 = vmatprep.subr.mxu0 0.0
        %6321 = vmatpush1.msra.mxu0 0.0
        %6322 = vmatprep.subr.mxu0 0.0
        %6323 = vmatpush1.msra.mxu0 0.0
        %6324 = vmatprep.subr.mxu0 0.0
        %6325 = vmatpush1.msra.mxu0 0.0
        %6326 = vmatprep.subr.mxu0 0.0
        %6327 = vmatpush1.msra.mxu0 0.0
        %6328 = vmatprep.subr.mxu0 0.0
        %6329 = vmatpush1.msra.mxu0 0.0
        %6330 = vmatprep.subr.mxu0 0.0
        %6331 = vmatpush1.msra.mxu0 0.0
        %6332 = vmatprep.subr.mxu0 0.0
        %6333 = vmatpush1.msra.mxu0 0.0
        %6334 = vmatprep.subr.mxu0 0.0
        %6335 = vmatpush1.msra.mxu0 0.0
        %6336 = vmatprep.subr.mxu0 0.0
        %6337 = vmatpush1.msra.mxu0 0.0
        %6338 = vmatprep.subr.mxu0 0.0
        %6339 = vmatpush1.msra.mxu0 0.0
        %6340 = vmatprep.subr.mxu0 0.0
        %6341 = vmatpush1.msra.mxu0 0.0
        %6342 = vmatprep.mubr.f32.mxu0 0.0
        %6343 = vmatmul.mubr.f32.gmra.mrb[0].mxu0 %v6274
        %v6344 = vpop.f32.mrb[0].mxu0
        %v6345 = vadd.f32 0.0, %v6344
        %v6346 = vpop.f32.mrb[0].mxu0
        %6347 = vmatprep.mubr.f32.mxu0 0.0
        %6348 = vmatmul.mubr.f32.gmra.mrb[0].mxu0 %v6276
        %v6349 = vpop.f32.mrb[0].mxu0
        %v6350 = vadd.f32 0.0, %v6349
        %v6351 = vpop.f32.mrb[0].mxu0
        %6352 = vdwg.mxu0
        %v6355 = vrot.slane %v6345, 1
        %v6356 = vrot.slane %v6345, 2
        %v6357 = vrot.slane %v6345, 3
        %v6358 = vrot.slane %v6345, 4
        %v6359 = vrot.slane %v6345, 5
        %v6360 = vrot.slane %v6345, 6
        %v6361 = vrot.slane %v6345, 7
        %v6362 = vrot.slane %v6350, 1
        %v6363 = vrot.slane %v6350, 2
        %v6364 = vrot.slane %v6350, 3
        %v6365 = vrot.slane %v6350, 4
        %v6366 = vrot.slane %v6350, 5
        %v6367 = vrot.slane %v6350, 6
        %v6368 = vrot.slane %v6350, 7
        %v6385 = vadd.f32 %v6124, %v6345
        %v6386 = vadd.f32 %v6131, %v6355
        %v6387 = vadd.f32 %v6138, %v6356
        %v6388 = vadd.f32 %v6145, %v6357
        %v6389 = vadd.f32 %v6152, %v6358
        %v6390 = vadd.f32 %v6159, %v6359
        %v6391 = vadd.f32 %v6166, %v6360
        %v6392 = vadd.f32 %v6173, %v6361
        %v6393 = vadd.f32 %v6180, %v6350
        %v6394 = vadd.f32 %v6187, %v6362
        %v6395 = vadd.f32 %v6194, %v6363
        %v6396 = vadd.f32 %v6201, %v6364
        %v6397 = vadd.f32 %v6208, %v6365
        %v6398 = vadd.f32 %v6215, %v6366
        %v6399 = vadd.f32 %v6222, %v6367
        %v6400 = vadd.f32 %v6229, %v6368
        %v6401 = vmul.f32 %v6385, %v6085
        %v6402 = vmul.f32 %v6386, %v6085
        %v6403 = vmul.f32 %v6387, %v6085
        %v6404 = vmul.f32 %v6388, %v6085
        %v6405 = vmul.f32 %v6389, %v6085
        %v6406 = vmul.f32 %v6390, %v6085
        %v6407 = vmul.f32 %v6391, %v6085
        %v6408 = vmul.f32 %v6392, %v6085
        %v6409 = vmul.f32 %v6393, %v6085
        %v6410 = vmul.f32 %v6394, %v6085
        %v6411 = vmul.f32 %v6395, %v6085
        %v6412 = vmul.f32 %v6396, %v6085
        %v6413 = vmul.f32 %v6397, %v6085
        %v6414 = vmul.f32 %v6398, %v6085
        %v6415 = vmul.f32 %v6399, %v6085
        %v6416 = vmul.f32 %v6400, %v6085
        %v6417 = vmul.f32 %v3644, %v6401
        %v6418 = vmul.f32 %v3644, %v6402
        %v6419 = vmul.f32 %v3644, %v6403
        %v6420 = vmul.f32 %v3644, %v6404
        %v6421 = vmul.f32 %v3644, %v6405
        %v6422 = vmul.f32 %v3644, %v6406
        %v6423 = vmul.f32 %v3644, %v6407
        %v6424 = vmul.f32 %v3644, %v6408
        %v6425 = vmul.f32 %v3644, %v6409
        %v6426 = vmul.f32 %v3644, %v6410
        %v6427 = vmul.f32 %v3644, %v6411
        %v6428 = vmul.f32 %v3644, %v6412
        %v6429 = vmul.f32 %v3644, %v6413
        %v6430 = vmul.f32 %v3644, %v6414
        %v6431 = vmul.f32 %v3644, %v6415
        %v6432 = vmul.f32 %v3644, %v6416
        %v6433 = vld [vmem:[%s249 + $0x4] sm:$0x1]
        %v6434 = vld [vmem:[%s249 + $0xc] sm:$0x1]
        %v6435 = vld [vmem:[%s249 + $0x14] sm:$0x1]
        %v6436 = vld [vmem:[%s249 + $0x1c] sm:$0x1]
        %v6437 = vld [vmem:[%s249 + $0x24] sm:$0x1]
        %v6438 = vld [vmem:[%s249 + $0x2c] sm:$0x1]
        %v6439 = vld [vmem:[%s249 + $0x34] sm:$0x1]
        %v6440 = vld [vmem:[%s249 + $0x3c] sm:$0x1]
        %v6441 = vld [vmem:[%s249 + $0x44] sm:$0x1]
        %v6442 = vld [vmem:[%s249 + $0x4c] sm:$0x1]
        %v6443 = vld [vmem:[%s249 + $0x54] sm:$0x1]
        %v6444 = vld [vmem:[%s249 + $0x5c] sm:$0x1]
        %v6445 = vld [vmem:[%s249 + $0x64] sm:$0x1]
        %v6446 = vld [vmem:[%s249 + $0x6c] sm:$0x1]
        %v6447 = vld [vmem:[%s249 + $0x74] sm:$0x1]
        %v6448 = vld [vmem:[%s249 + $0x7c] sm:$0x1]
        %v6449 = vadd.f32 %v6417, %v6433
        %v6450 = vadd.f32 %v6418, %v6434
        %v6451 = vadd.f32 %v6419, %v6435
        %v6452 = vadd.f32 %v6420, %v6436
        %v6453 = vadd.f32 %v6421, %v6437
        %v6454 = vadd.f32 %v6422, %v6438
        %v6455 = vadd.f32 %v6423, %v6439
        %v6456 = vadd.f32 %v6424, %v6440
        %v6457 = vadd.f32 %v6425, %v6441
        %v6458 = vadd.f32 %v6426, %v6442
        %v6459 = vadd.f32 %v6427, %v6443
        %v6460 = vadd.f32 %v6428, %v6444
        %v6461 = vadd.f32 %v6429, %v6445
        %v6462 = vadd.f32 %v6430, %v6446
        %v6463 = vadd.f32 %v6431, %v6447
        %v6464 = vadd.f32 %v6432, %v6448
        %6465 = vst.msk [vmem:[%s287 + $0x4] sm:$0x1] %vm508, %v6449
        %6466 = vst.msk [vmem:[%s287 + $0xc] sm:$0x1] %vm508, %v6450
        %6467 = vst.msk [vmem:[%s287 + $0x14] sm:$0x1] %vm508, %v6451
        %6468 = vst.msk [vmem:[%s287 + $0x1c] sm:$0x1] %vm508, %v6452
        %6469 = vst.msk [vmem:[%s287 + $0x24] sm:$0x1] %vm508, %v6453
        %6470 = vst.msk [vmem:[%s287 + $0x2c] sm:$0x1] %vm508, %v6454
        %6471 = vst.msk [vmem:[%s287 + $0x34] sm:$0x1] %vm508, %v6455
        %6472 = vst.msk [vmem:[%s287 + $0x3c] sm:$0x1] %vm508, %v6456
        %6473 = vst.msk [vmem:[%s287 + $0x44] sm:$0x1] %vm508, %v6457
        %6474 = vst.msk [vmem:[%s287 + $0x4c] sm:$0x1] %vm508, %v6458
        %6475 = vst.msk [vmem:[%s287 + $0x54] sm:$0x1] %vm508, %v6459
        %6476 = vst.msk [vmem:[%s287 + $0x5c] sm:$0x1] %vm508, %v6460
        %6477 = vst.msk [vmem:[%s287 + $0x64] sm:$0x1] %vm508, %v6461
        %6478 = vst.msk [vmem:[%s287 + $0x6c] sm:$0x1] %vm508, %v6462
        %6479 = vst.msk [vmem:[%s287 + $0x74] sm:$0x1] %vm508, %v6463
        %6480 = vst.msk [vmem:[%s287 + $0x7c] sm:$0x1] %vm508, %v6464
        %v6481 = vld [vmem:[#allocation2 + $0x5] sm:$0x1]
        %v6482 = vld [vmem:[#allocation2 + $0xd] sm:$0x1]
        %v6483 = vld [vmem:[#allocation3 + $0x5] sm:$0x1]
        %v6484 = vld [vmem:[#allocation3 + $0xd] sm:$0x1]
        %v6485 = vld [vmem:[#allocation4 + $0x5] sm:$0x1]
        %v6486 = vld [vmem:[#allocation4 + $0xd] sm:$0x1]
        %v6487 = vld [vmem:[#allocation4 + $0x15] sm:$0x1]
        %v6488 = vld [vmem:[#allocation4 + $0x1d] sm:$0x1]
        %v6489 = vld [vmem:[#allocation4 + $0x25] sm:$0x1]
        %v6490 = vld [vmem:[#allocation4 + $0x2d] sm:$0x1]
        %v6491 = vld [vmem:[#allocation4 + $0x35] sm:$0x1]
        %v6492 = vld [vmem:[#allocation4 + $0x3d] sm:$0x1]
        %v6493 = vld [vmem:[#allocation4 + $0x45] sm:$0x1]
        %v6494 = vld [vmem:[#allocation4 + $0x4d] sm:$0x1]
        %v6495 = vld [vmem:[#allocation4 + $0x55] sm:$0x1]
        %v6496 = vld [vmem:[#allocation4 + $0x5d] sm:$0x1]
        %v6497 = vld [vmem:[#allocation4 + $0x65] sm:$0x1]
        %v6498 = vld [vmem:[#allocation4 + $0x6d] sm:$0x1]
        %v6499 = vld [vmem:[#allocation4 + $0x75] sm:$0x1]
        %v6500 = vld [vmem:[#allocation4 + $0x7d] sm:$0x1]
        %v6501 = vld [vmem:[#allocation3] sm:$0xff]
        %v6502 = vld [vmem:[#allocation3 + $0x8] sm:$0xff]
        %v6503 = vlaneseq
        %v6504 = vshrl.u32 %v6503, 7
        %v6505 = vsub.s32 0, %v6504
        %v6506 = vrot.slane %v6481, %v6505
        %v6507 = vlaneseq
        %v6508 = vshrl.u32 %v6507, 7
        %v6509 = vsub.s32 0, %v6508
        %v6510 = vrot.slane %v6482, %v6509
        %v6511 = vmul.f32 %v6506, %v6501
        %v6512 = vmul.f32 %v6510, %v6502
        %v6513 = vsel %vm3044, %v6511, 0.0
        %v6514 = vsel %vm3044, %v6512, 0.0
        %v6515 = vadd.f32 %v6513, %v6514
        %vm6516 = vcmp.eq.s32.totalorder %v3011, 5
        %v6517 = vsel %vm6516, -1e+30, %v6515
        %v6520 = vrot.slane %v6484, 7
        %v6521 = vsel %vm349, %v6520, %v6483
        %6523 = vxpose.xlu0.b32.start [1/16] %v6521, 128
        %6524 = vxpose.xlu0.b32.cont [2/16] 0.0, 128
        %6525 = vxpose.xlu0.b32.cont [3/16] 0.0, 128
        %6526 = vxpose.xlu0.b32.cont [4/16] 0.0, 128
        %6527 = vxpose.xlu0.b32.cont [5/16] 0.0, 128
        %6528 = vxpose.xlu0.b32.cont [6/16] 0.0, 128
        %6529 = vxpose.xlu0.b32.cont [7/16] 0.0, 128
        %6530 = vxpose.xlu0.b32.cont [8/16] 0.0, 128
        %6531 = vxpose.xlu0.b32.cont [9/16] 0.0, 128
        %6532 = vxpose.xlu0.b32.cont [10/16] 0.0, 128
        %6533 = vxpose.xlu0.b32.cont [11/16] 0.0, 128
        %6534 = vxpose.xlu0.b32.cont [12/16] 0.0, 128
        %6535 = vxpose.xlu0.b32.cont [13/16] 0.0, 128
        %6536 = vxpose.xlu0.b32.cont [14/16] 0.0, 128
        %6537 = vxpose.xlu0.b32.cont [15/16] 0.0, 128
        %6538 = vxpose.xlu0.b32.end [16/16] 0.0, 128
        %v6539 = vpop.trf.xlu0
        %v6540 = vpop.trf.xlu0
        %v6541 = vpop.trf.xlu0
        %v6542 = vpop.trf.xlu0
        %v6543 = vpop.trf.xlu0
        %v6544 = vpop.trf.xlu0
        %v6545 = vpop.trf.xlu0
        %v6546 = vpop.trf.xlu0
        %v6547 = vpop.trf.xlu0
        %v6548 = vpop.trf.xlu0
        %v6549 = vpop.trf.xlu0
        %v6550 = vpop.trf.xlu0
        %v6551 = vpop.trf.xlu0
        %v6552 = vpop.trf.xlu0
        %v6553 = vpop.trf.xlu0
        %v6554 = vpop.trf.xlu0
        %v6557 = vrot.slane %v6482, 7
        %v6558 = vsel %vm349, %v6557, %v6481
        %v6560 = vsel %vm3091, %v6539, 0
        %v6563 = vsel %vm3091, %v6540, 0
        %v6566 = vsel %vm3091, %v6541, 0
        %v6569 = vsel %vm3091, %v6542, 0
        %v6572 = vsel %vm3091, %v6543, 0
        %v6575 = vsel %vm3091, %v6544, 0
        %v6578 = vsel %vm3091, %v6545, 0
        %v6581 = vsel %vm3091, %v6546, 0
        %v6583 = vsel %vm3116, %v6558, 0
        %6585 = vmatprep.subr.mxu0 0.0
        %6586 = vmatpush1.msra.mxu0 %v6583
        %6587 = vmatprep.subr.mxu0 0.0
        %6588 = vmatpush1.msra.mxu0 0.0
        %6589 = vmatprep.subr.mxu0 0.0
        %6590 = vmatpush1.msra.mxu0 0.0
        %6591 = vmatprep.subr.mxu0 0.0
        %6592 = vmatpush1.msra.mxu0 0.0
        %6593 = vmatprep.subr.mxu0 0.0
        %6594 = vmatpush1.msra.mxu0 0.0
        %6595 = vmatprep.subr.mxu0 0.0
        %6596 = vmatpush1.msra.mxu0 0.0
        %6597 = vmatprep.subr.mxu0 0.0
        %6598 = vmatpush1.msra.mxu0 0.0
        %6599 = vmatprep.subr.mxu0 0.0
        %6600 = vmatpush1.msra.mxu0 0.0
        %6601 = vmatprep.subr.mxu0 0.0
        %6602 = vmatpush1.msra.mxu0 0.0
        %6603 = vmatprep.subr.mxu0 0.0
        %6604 = vmatpush1.msra.mxu0 0.0
        %6605 = vmatprep.subr.mxu0 0.0
        %6606 = vmatpush1.msra.mxu0 0.0
        %6607 = vmatprep.subr.mxu0 0.0
        %6608 = vmatpush1.msra.mxu0 0.0
        %6609 = vmatprep.subr.mxu0 0.0
        %6610 = vmatpush1.msra.mxu0 0.0
        %6611 = vmatprep.subr.mxu0 0.0
        %6612 = vmatpush1.msra.mxu0 0.0
        %6613 = vmatprep.subr.mxu0 0.0
        %6614 = vmatpush1.msra.mxu0 0.0
        %6615 = vmatprep.subr.mxu0 0.0
        %6616 = vmatpush1.msra.mxu0 0.0
        %6617 = vmatprep.subr.mxu0 0.0
        %6618 = vmatpush1.msra.mxu0 0.0
        %6619 = vmatprep.subr.mxu0 0.0
        %6620 = vmatpush1.msra.mxu0 0.0
        %6621 = vmatprep.subr.mxu0 0.0
        %6622 = vmatpush1.msra.mxu0 0.0
        %6623 = vmatprep.subr.mxu0 0.0
        %6624 = vmatpush1.msra.mxu0 0.0
        %6625 = vmatprep.subr.mxu0 0.0
        %6626 = vmatpush1.msra.mxu0 0.0
        %6627 = vmatprep.subr.mxu0 0.0
        %6628 = vmatpush1.msra.mxu0 0.0
        %6629 = vmatprep.subr.mxu0 0.0
        %6630 = vmatpush1.msra.mxu0 0.0
        %6631 = vmatprep.subr.mxu0 0.0
        %6632 = vmatpush1.msra.mxu0 0.0
        %6633 = vmatprep.subr.mxu0 0.0
        %6634 = vmatpush1.msra.mxu0 0.0
        %6635 = vmatprep.subr.mxu0 0.0
        %6636 = vmatpush1.msra.mxu0 0.0
        %6637 = vmatprep.subr.mxu0 0.0
        %6638 = vmatpush1.msra.mxu0 0.0
        %6639 = vmatprep.subr.mxu0 0.0
        %6640 = vmatpush1.msra.mxu0 0.0
        %6641 = vmatprep.subr.mxu0 0.0
        %6642 = vmatpush1.msra.mxu0 0.0
        %6643 = vmatprep.subr.mxu0 0.0
        %6644 = vmatpush1.msra.mxu0 0.0
        %6645 = vmatprep.subr.mxu0 0.0
        %6646 = vmatpush1.msra.mxu0 0.0
        %6647 = vmatprep.subr.mxu0 0.0
        %6648 = vmatpush1.msra.mxu0 0.0
        %6649 = vmatprep.mubr.f32.mxu0 0.0
        %6650 = vmatmul.mubr.f32.gmra.mrb[0].mxu0 %v6560
        %v6651 = vpop.f32.mrb[0].mxu0
        %v6652 = vadd.f32 %v3002, %v6651
        %v6653 = vpop.f32.mrb[0].mxu0
        %6654 = vmatprep.mubr.f32.mxu0 0.0
        %6655 = vmatmul.mubr.f32.gmra.mrb[0].mxu0 %v6563
        %v6656 = vpop.f32.mrb[0].mxu0
        %v6657 = vadd.f32 %v3003, %v6656
        %v6658 = vpop.f32.mrb[0].mxu0
        %6659 = vmatprep.mubr.f32.mxu0 0.0
        %6660 = vmatmul.mubr.f32.gmra.mrb[0].mxu0 %v6566
        %v6661 = vpop.f32.mrb[0].mxu0
        %v6662 = vadd.f32 %v3004, %v6661
        %v6663 = vpop.f32.mrb[0].mxu0
        %6664 = vmatprep.mubr.f32.mxu0 0.0
        %6665 = vmatmul.mubr.f32.gmra.mrb[0].mxu0 %v6569
        %v6666 = vpop.f32.mrb[0].mxu0
        %v6667 = vadd.f32 %v3005, %v6666
        %v6668 = vpop.f32.mrb[0].mxu0
        %6669 = vmatprep.mubr.f32.mxu0 0.0
        %6670 = vmatmul.mubr.f32.gmra.mrb[0].mxu0 %v6572
        %v6671 = vpop.f32.mrb[0].mxu0
        %v6672 = vadd.f32 %v3006, %v6671
        %v6673 = vpop.f32.mrb[0].mxu0
        %6674 = vmatprep.mubr.f32.mxu0 0.0
        %6675 = vmatmul.mubr.f32.gmra.mrb[0].mxu0 %v6575
        %v6676 = vpop.f32.mrb[0].mxu0
        %v6677 = vadd.f32 %v3007, %v6676
        %v6678 = vpop.f32.mrb[0].mxu0
        %6679 = vmatprep.mubr.f32.mxu0 0.0
        %6680 = vmatmul.mubr.f32.gmra.mrb[0].mxu0 %v6578
        %v6681 = vpop.f32.mrb[0].mxu0
        %v6682 = vadd.f32 %v3008, %v6681
        %v6683 = vpop.f32.mrb[0].mxu0
        %6684 = vmatprep.mubr.f32.mxu0 0.0
        %6685 = vmatmul.mubr.f32.gmra.mrb[0].mxu0 %v6581
        %v6686 = vpop.f32.mrb[0].mxu0
        %v6687 = vadd.f32 %v3009, %v6686
        %v6688 = vpop.f32.mrb[0].mxu0
        %6689 = vdwg.mxu0
        %v6690 = vsel %vm3044, %v6517, -inf
        %v6691 = vrot.slane %v6690, 4
        %v6692 = vmax.f32 %v6690, %v6691
        %v6693 = vrot.slane %v6692, 2
        %v6694 = vmax.f32 %v6692, %v6693
        %v6695 = vrot.slane %v6694, 1
        %v6696 = vmax.f32 %v6694, %v6695
        %v6697 = vsel %vm3044, %v6652, -inf
        %v6698 = vsel %vm3044, %v6657, -inf
        %v6699 = vsel %vm3044, %v6662, -inf
        %v6700 = vsel %vm3044, %v6667, -inf
        %v6701 = vsel %vm3044, %v6672, -inf
        %v6702 = vmax.f32 %v6697, %v6701
        %v6703 = vsel %vm3044, %v6677, -inf
        %v6704 = vmax.f32 %v6698, %v6703
        %v6705 = vsel %vm3044, %v6682, -inf
        %v6706 = vmax.f32 %v6699, %v6705
        %v6707 = vsel %vm3044, %v6687, -inf
        %v6708 = vmax.f32 %v6700, %v6707
        %v6709 = vmax.f32 %v6702, %v6704
        %v6710 = vmax.f32 %v6706, %v6708
        %v6711 = vmax.f32 %v6709, %v6710
        %v6712 = vrot.slane %v6711, 4
        %v6713 = vmax.f32 %v6711, %v6712
        %v6714 = vrot.slane %v6713, 2
        %v6715 = vmax.f32 %v6713, %v6714
        %v6716 = vrot.slane %v6715, 1
        %v6717 = vmax.f32 %v6715, %v6716
        %v6718 = vmax.f32 %v6696, %v6717
        %v6719 = vsub.f32 %v6517, %v6718
        %v6720 = vmul.f32 %v6719, 1.442695
        %v6721 = vpow.pop %v6720
        %v6722 = vsub.f32 %v6652, %v6718
        %v6723 = vsub.f32 %v6657, %v6718
        %v6724 = vsub.f32 %v6662, %v6718
        %v6725 = vsub.f32 %v6667, %v6718
        %v6726 = vsub.f32 %v6672, %v6718
        %v6727 = vsub.f32 %v6677, %v6718
        %v6728 = vsub.f32 %v6682, %v6718
        %v6729 = vsub.f32 %v6687, %v6718
        %v6730 = vmul.f32 %v6722, 1.442695
        %v6731 = vpow.pop %v6730
        %v6732 = vmul.f32 %v6723, 1.442695
        %v6733 = vpow.pop %v6732
        %v6734 = vmul.f32 %v6724, 1.442695
        %v6735 = vpow.pop %v6734
        %v6736 = vmul.f32 %v6725, 1.442695
        %v6737 = vpow.pop %v6736
        %v6738 = vmul.f32 %v6726, 1.442695
        %v6739 = vpow.pop %v6738
        %v6740 = vmul.f32 %v6727, 1.442695
        %v6741 = vpow.pop %v6740
        %v6742 = vmul.f32 %v6728, 1.442695
        %v6743 = vpow.pop %v6742
        %v6744 = vmul.f32 %v6729, 1.442695
        %v6745 = vpow.pop %v6744
        %v6746 = vsel %vm3044, %v6721, 0.0
        %v6747 = vrot.slane %v6746, 4
        %v6748 = vadd.f32 %v6746, %v6747
        %v6749 = vrot.slane %v6748, 2
        %v6750 = vadd.f32 %v6748, %v6749
        %v6751 = vrot.slane %v6750, 1
        %v6752 = vadd.f32 %v6750, %v6751
        %v6753 = vsel %vm3044, %v6731, 0.0
        %v6754 = vsel %vm3044, %v6733, 0.0
        %v6755 = vadd.f32 %v6753, %v6754
        %v6756 = vsel %vm3044, %v6735, 0.0
        %v6757 = vadd.f32 %v6755, %v6756
        %v6758 = vsel %vm3044, %v6737, 0.0
        %v6759 = vadd.f32 %v6757, %v6758
        %v6760 = vsel %vm3044, %v6739, 0.0
        %v6761 = vadd.f32 %v6759, %v6760
        %v6762 = vsel %vm3044, %v6741, 0.0
        %v6763 = vadd.f32 %v6761, %v6762
        %v6764 = vsel %vm3044, %v6743, 0.0
        %v6765 = vadd.f32 %v6763, %v6764
        %v6766 = vsel %vm3044, %v6745, 0.0
        %v6767 = vadd.f32 %v6765, %v6766
        %v6768 = vrot.slane %v6767, 4
        %v6769 = vadd.f32 %v6767, %v6768
        %v6770 = vrot.slane %v6769, 2
        %v6771 = vadd.f32 %v6769, %v6770
        %v6772 = vrot.slane %v6771, 1
        %v6773 = vadd.f32 %v6771, %v6772
        %v6774 = vadd.f32 %v6752, %v6773
        %v6775 = vrcp.pop %v6774
        %v6776 = vmul.f32 %v6774, %v6775
        %v6777 = vsub.f32 2.0, %v6776
        %v6778 = vmul.f32 %v6775, %v6777
        %v6779 = vld [vmem:[#allocation4] sm:$0xff]
        %v6780 = vld [vmem:[#allocation4 + $0x8] sm:$0xff]
        %v6781 = vld [vmem:[#allocation4 + $0x10] sm:$0xff]
        %v6782 = vld [vmem:[#allocation4 + $0x18] sm:$0xff]
        %v6783 = vld [vmem:[#allocation4 + $0x20] sm:$0xff]
        %v6784 = vld [vmem:[#allocation4 + $0x28] sm:$0xff]
        %v6785 = vld [vmem:[#allocation4 + $0x30] sm:$0xff]
        %v6786 = vld [vmem:[#allocation4 + $0x38] sm:$0xff]
        %v6787 = vld [vmem:[#allocation4 + $0x40] sm:$0xff]
        %v6788 = vld [vmem:[#allocation4 + $0x48] sm:$0xff]
        %v6789 = vld [vmem:[#allocation4 + $0x50] sm:$0xff]
        %v6790 = vld [vmem:[#allocation4 + $0x58] sm:$0xff]
        %v6791 = vld [vmem:[#allocation4 + $0x60] sm:$0xff]
        %v6792 = vld [vmem:[#allocation4 + $0x68] sm:$0xff]
        %v6793 = vld [vmem:[#allocation4 + $0x70] sm:$0xff]
        %v6794 = vld [vmem:[#allocation4 + $0x78] sm:$0xff]
        %v6795 = vmul.f32 %v6721, %v6779
        %v6796 = vmul.f32 %v6721, %v6780
        %v6797 = vmul.f32 %v6721, %v6781
        %v6798 = vmul.f32 %v6721, %v6782
        %v6799 = vmul.f32 %v6721, %v6783
        %v6800 = vmul.f32 %v6721, %v6784
        %v6801 = vmul.f32 %v6721, %v6785
        %v6802 = vmul.f32 %v6721, %v6786
        %v6803 = vmul.f32 %v6721, %v6787
        %v6804 = vmul.f32 %v6721, %v6788
        %v6805 = vmul.f32 %v6721, %v6789
        %v6806 = vmul.f32 %v6721, %v6790
        %v6807 = vmul.f32 %v6721, %v6791
        %v6808 = vmul.f32 %v6721, %v6792
        %v6809 = vmul.f32 %v6721, %v6793
        %v6810 = vmul.f32 %v6721, %v6794
        %v6811 = vsel %vm3044, %v6795, 0.0
        %v6812 = vrot.slane %v6811, 4
        %v6813 = vadd.f32 %v6811, %v6812
        %v6814 = vrot.slane %v6813, 2
        %v6815 = vadd.f32 %v6813, %v6814
        %v6816 = vrot.slane %v6815, 1
        %v6817 = vadd.f32 %v6815, %v6816
        %v6818 = vsel %vm3044, %v6796, 0.0
        %v6819 = vrot.slane %v6818, 4
        %v6820 = vadd.f32 %v6818, %v6819
        %v6821 = vrot.slane %v6820, 2
        %v6822 = vadd.f32 %v6820, %v6821
        %v6823 = vrot.slane %v6822, 1
        %v6824 = vadd.f32 %v6822, %v6823
        %v6825 = vsel %vm3044, %v6797, 0.0
        %v6826 = vrot.slane %v6825, 4
        %v6827 = vadd.f32 %v6825, %v6826
        %v6828 = vrot.slane %v6827, 2
        %v6829 = vadd.f32 %v6827, %v6828
        %v6830 = vrot.slane %v6829, 1
        %v6831 = vadd.f32 %v6829, %v6830
        %v6832 = vsel %vm3044, %v6798, 0.0
        %v6833 = vrot.slane %v6832, 4
        %v6834 = vadd.f32 %v6832, %v6833
        %v6835 = vrot.slane %v6834, 2
        %v6836 = vadd.f32 %v6834, %v6835
        %v6837 = vrot.slane %v6836, 1
        %v6838 = vadd.f32 %v6836, %v6837
        %v6839 = vsel %vm3044, %v6799, 0.0
        %v6840 = vrot.slane %v6839, 4
        %v6841 = vadd.f32 %v6839, %v6840
        %v6842 = vrot.slane %v6841, 2
        %v6843 = vadd.f32 %v6841, %v6842
        %v6844 = vrot.slane %v6843, 1
        %v6845 = vadd.f32 %v6843, %v6844
        %v6846 = vsel %vm3044, %v6800, 0.0
        %v6847 = vrot.slane %v6846, 4
        %v6848 = vadd.f32 %v6846, %v6847
        %v6849 = vrot.slane %v6848, 2
        %v6850 = vadd.f32 %v6848, %v6849
        %v6851 = vrot.slane %v6850, 1
        %v6852 = vadd.f32 %v6850, %v6851
        %v6853 = vsel %vm3044, %v6801, 0.0
        %v6854 = vrot.slane %v6853, 4
        %v6855 = vadd.f32 %v6853, %v6854
        %v6856 = vrot.slane %v6855, 2
        %v6857 = vadd.f32 %v6855, %v6856
        %v6858 = vrot.slane %v6857, 1
        %v6859 = vadd.f32 %v6857, %v6858
        %v6860 = vsel %vm3044, %v6802, 0.0
        %v6861 = vrot.slane %v6860, 4
        %v6862 = vadd.f32 %v6860, %v6861
        %v6863 = vrot.slane %v6862, 2
        %v6864 = vadd.f32 %v6862, %v6863
        %v6865 = vrot.slane %v6864, 1
        %v6866 = vadd.f32 %v6864, %v6865
        %v6867 = vsel %vm3044, %v6803, 0.0
        %v6868 = vrot.slane %v6867, 4
        %v6869 = vadd.f32 %v6867, %v6868
        %v6870 = vrot.slane %v6869, 2
        %v6871 = vadd.f32 %v6869, %v6870
        %v6872 = vrot.slane %v6871, 1
        %v6873 = vadd.f32 %v6871, %v6872
        %v6874 = vsel %vm3044, %v6804, 0.0
        %v6875 = vrot.slane %v6874, 4
        %v6876 = vadd.f32 %v6874, %v6875
        %v6877 = vrot.slane %v6876, 2
        %v6878 = vadd.f32 %v6876, %v6877
        %v6879 = vrot.slane %v6878, 1
        %v6880 = vadd.f32 %v6878, %v6879
        %v6881 = vsel %vm3044, %v6805, 0.0
        %v6882 = vrot.slane %v6881, 4
        %v6883 = vadd.f32 %v6881, %v6882
        %v6884 = vrot.slane %v6883, 2
        %v6885 = vadd.f32 %v6883, %v6884
        %v6886 = vrot.slane %v6885, 1
        %v6887 = vadd.f32 %v6885, %v6886
        %v6888 = vsel %vm3044, %v6806, 0.0
        %v6889 = vrot.slane %v6888, 4
        %v6890 = vadd.f32 %v6888, %v6889
        %v6891 = vrot.slane %v6890, 2
        %v6892 = vadd.f32 %v6890, %v6891
        %v6893 = vrot.slane %v6892, 1
        %v6894 = vadd.f32 %v6892, %v6893
        %v6895 = vsel %vm3044, %v6807, 0.0
        %v6896 = vrot.slane %v6895, 4
        %v6897 = vadd.f32 %v6895, %v6896
        %v6898 = vrot.slane %v6897, 2
        %v6899 = vadd.f32 %v6897, %v6898
        %v6900 = vrot.slane %v6899, 1
        %v6901 = vadd.f32 %v6899, %v6900
        %v6902 = vsel %vm3044, %v6808, 0.0
        %v6903 = vrot.slane %v6902, 4
        %v6904 = vadd.f32 %v6902, %v6903
        %v6905 = vrot.slane %v6904, 2
        %v6906 = vadd.f32 %v6904, %v6905
        %v6907 = vrot.slane %v6906, 1
        %v6908 = vadd.f32 %v6906, %v6907
        %v6909 = vsel %vm3044, %v6809, 0.0
        %v6910 = vrot.slane %v6909, 4
        %v6911 = vadd.f32 %v6909, %v6910
        %v6912 = vrot.slane %v6911, 2
        %v6913 = vadd.f32 %v6911, %v6912
        %v6914 = vrot.slane %v6913, 1
        %v6915 = vadd.f32 %v6913, %v6914
        %v6916 = vsel %vm3044, %v6810, 0.0
        %v6917 = vrot.slane %v6916, 4
        %v6918 = vadd.f32 %v6916, %v6917
        %v6919 = vrot.slane %v6918, 2
        %v6920 = vadd.f32 %v6918, %v6919
        %v6921 = vrot.slane %v6920, 1
        %v6922 = vadd.f32 %v6920, %v6921
        %v6939 = vrot.slane %v6486, 7
        %v6940 = vsel %vm349, %v6939, %v6485
        %v6941 = vrot.slane %v6487, 6
        %v6942 = vsel %vm352, %v6941, %v6940
        %v6943 = vrot.slane %v6488, 5
        %v6944 = vsel %vm355, %v6943, %v6942
        %v6945 = vrot.slane %v6489, 4
        %v6946 = vsel %vm358, %v6945, %v6944
        %v6947 = vrot.slane %v6490, 3
        %v6948 = vsel %vm361, %v6947, %v6946
        %v6949 = vrot.slane %v6491, 2
        %v6950 = vsel %vm364, %v6949, %v6948
        %v6951 = vrot.slane %v6492, 1
        %v6952 = vsel %vm367, %v6951, %v6950
        %v6953 = vrot.slane %v6494, 7
        %v6954 = vsel %vm349, %v6953, %v6493
        %v6955 = vrot.slane %v6495, 6
        %v6956 = vsel %vm352, %v6955, %v6954
        %v6957 = vrot.slane %v6496, 5
        %v6958 = vsel %vm355, %v6957, %v6956
        %v6959 = vrot.slane %v6497, 4
        %v6960 = vsel %vm358, %v6959, %v6958
        %v6961 = vrot.slane %v6498, 3
        %v6962 = vsel %vm361, %v6961, %v6960
        %v6963 = vrot.slane %v6499, 2
        %v6964 = vsel %vm364, %v6963, %v6962
        %v6965 = vrot.slane %v6500, 1
        %v6966 = vsel %vm367, %v6965, %v6964
        %v6967 = vsel %vm3044, %v6952, 0
        %v6969 = vsel %vm3044, %v6966, 0
        %6971 = vmatprep.subr.mxu0 0.0
        %6972 = vmatpush1.msra.mxu0 %v6731
        %6973 = vmatprep.subr.mxu0 0.0
        %6974 = vmatpush1.msra.mxu0 %v6733
        %6975 = vmatprep.subr.mxu0 0.0
        %6976 = vmatpush1.msra.mxu0 %v6735
        %6977 = vmatprep.subr.mxu0 0.0
        %6978 = vmatpush1.msra.mxu0 %v6737
        %6979 = vmatprep.subr.mxu0 0.0
        %6980 = vmatpush1.msra.mxu0 %v6739
        %6981 = vmatprep.subr.mxu0 0.0
        %6982 = vmatpush1.msra.mxu0 %v6741
        %6983 = vmatprep.subr.mxu0 0.0
        %6984 = vmatpush1.msra.mxu0 %v6743
        %6985 = vmatprep.subr.mxu0 0.0
        %6986 = vmatpush1.msra.mxu0 %v6745
        %6987 = vmatprep.subr.mxu0 0.0
        %6988 = vmatpush1.msra.mxu0 0.0
        %6989 = vmatprep.subr.mxu0 0.0
        %6990 = vmatpush1.msra.mxu0 0.0
        %6991 = vmatprep.subr.mxu0 0.0
        %6992 = vmatpush1.msra.mxu0 0.0
        %6993 = vmatprep.subr.mxu0 0.0
        %6994 = vmatpush1.msra.mxu0 0.0
        %6995 = vmatprep.subr.mxu0 0.0
        %6996 = vmatpush1.msra.mxu0 0.0
        %6997 = vmatprep.subr.mxu0 0.0
        %6998 = vmatpush1.msra.mxu0 0.0
        %6999 = vmatprep.subr.mxu0 0.0
        %7000 = vmatpush1.msra.mxu0 0.0
        %7001 = vmatprep.subr.mxu0 0.0
        %7002 = vmatpush1.msra.mxu0 0.0
        %7003 = vmatprep.subr.mxu0 0.0
        %7004 = vmatpush1.msra.mxu0 0.0
        %7005 = vmatprep.subr.mxu0 0.0
        %7006 = vmatpush1.msra.mxu0 0.0
        %7007 = vmatprep.subr.mxu0 0.0
        %7008 = vmatpush1.msra.mxu0 0.0
        %7009 = vmatprep.subr.mxu0 0.0
        %7010 = vmatpush1.msra.mxu0 0.0
        %7011 = vmatprep.subr.mxu0 0.0
        %7012 = vmatpush1.msra.mxu0 0.0
        %7013 = vmatprep.subr.mxu0 0.0
        %7014 = vmatpush1.msra.mxu0 0.0
        %7015 = vmatprep.subr.mxu0 0.0
        %7016 = vmatpush1.msra.mxu0 0.0
        %7017 = vmatprep.subr.mxu0 0.0
        %7018 = vmatpush1.msra.mxu0 0.0
        %7019 = vmatprep.subr.mxu0 0.0
        %7020 = vmatpush1.msra.mxu0 0.0
        %7021 = vmatprep.subr.mxu0 0.0
        %7022 = vmatpush1.msra.mxu0 0.0
        %7023 = vmatprep.subr.mxu0 0.0
        %7024 = vmatpush1.msra.mxu0 0.0
        %7025 = vmatprep.subr.mxu0 0.0
        %7026 = vmatpush1.msra.mxu0 0.0
        %7027 = vmatprep.subr.mxu0 0.0
        %7028 = vmatpush1.msra.mxu0 0.0
        %7029 = vmatprep.subr.mxu0 0.0
        %7030 = vmatpush1.msra.mxu0 0.0
        %7031 = vmatprep.subr.mxu0 0.0
        %7032 = vmatpush1.msra.mxu0 0.0
        %7033 = vmatprep.subr.mxu0 0.0
        %7034 = vmatpush1.msra.mxu0 0.0
        %7035 = vmatprep.mubr.f32.mxu0 0.0
        %7036 = vmatmul.mubr.f32.gmra.mrb[0].mxu0 %v6967
        %v7037 = vpop.f32.mrb[0].mxu0
        %v7038 = vadd.f32 0.0, %v7037
        %v7039 = vpop.f32.mrb[0].mxu0
        %7040 = vmatprep.mubr.f32.mxu0 0.0
        %7041 = vmatmul.mubr.f32.gmra.mrb[0].mxu0 %v6969
        %v7042 = vpop.f32.mrb[0].mxu0
        %v7043 = vadd.f32 0.0, %v7042
        %v7044 = vpop.f32.mrb[0].mxu0
        %7045 = vdwg.mxu0
        %v7048 = vrot.slane %v7038, 1
        %v7049 = vrot.slane %v7038, 2
        %v7050 = vrot.slane %v7038, 3
        %v7051 = vrot.slane %v7038, 4
        %v7052 = vrot.slane %v7038, 5
        %v7053 = vrot.slane %v7038, 6
        %v7054 = vrot.slane %v7038, 7
        %v7055 = vrot.slane %v7043, 1
        %v7056 = vrot.slane %v7043, 2
        %v7057 = vrot.slane %v7043, 3
        %v7058 = vrot.slane %v7043, 4
        %v7059 = vrot.slane %v7043, 5
        %v7060 = vrot.slane %v7043, 6
        %v7061 = vrot.slane %v7043, 7
        %v7078 = vadd.f32 %v6817, %v7038
        %v7079 = vadd.f32 %v6824, %v7048
        %v7080 = vadd.f32 %v6831, %v7049
        %v7081 = vadd.f32 %v6838, %v7050
        %v7082 = vadd.f32 %v6845, %v7051
        %v7083 = vadd.f32 %v6852, %v7052
        %v7084 = vadd.f32 %v6859, %v7053
        %v7085 = vadd.f32 %v6866, %v7054
        %v7086 = vadd.f32 %v6873, %v7043
        %v7087 = vadd.f32 %v6880, %v7055
        %v7088 = vadd.f32 %v6887, %v7056
        %v7089 = vadd.f32 %v6894, %v7057
        %v7090 = vadd.f32 %v6901, %v7058
        %v7091 = vadd.f32 %v6908, %v7059
        %v7092 = vadd.f32 %v6915, %v7060
        %v7093 = vadd.f32 %v6922, %v7061
        %v7094 = vmul.f32 %v7078, %v6778
        %v7095 = vmul.f32 %v7079, %v6778
        %v7096 = vmul.f32 %v7080, %v6778
        %v7097 = vmul.f32 %v7081, %v6778
        %v7098 = vmul.f32 %v7082, %v6778
        %v7099 = vmul.f32 %v7083, %v6778
        %v7100 = vmul.f32 %v7084, %v6778
        %v7101 = vmul.f32 %v7085, %v6778
        %v7102 = vmul.f32 %v7086, %v6778
        %v7103 = vmul.f32 %v7087, %v6778
        %v7104 = vmul.f32 %v7088, %v6778
        %v7105 = vmul.f32 %v7089, %v6778
        %v7106 = vmul.f32 %v7090, %v6778
        %v7107 = vmul.f32 %v7091, %v6778
        %v7108 = vmul.f32 %v7092, %v6778
        %v7109 = vmul.f32 %v7093, %v6778
        %v7110 = vmul.f32 %v3644, %v7094
        %v7111 = vmul.f32 %v3644, %v7095
        %v7112 = vmul.f32 %v3644, %v7096
        %v7113 = vmul.f32 %v3644, %v7097
        %v7114 = vmul.f32 %v3644, %v7098
        %v7115 = vmul.f32 %v3644, %v7099
        %v7116 = vmul.f32 %v3644, %v7100
        %v7117 = vmul.f32 %v3644, %v7101
        %v7118 = vmul.f32 %v3644, %v7102
        %v7119 = vmul.f32 %v3644, %v7103
        %v7120 = vmul.f32 %v3644, %v7104
        %v7121 = vmul.f32 %v3644, %v7105
        %v7122 = vmul.f32 %v3644, %v7106
        %v7123 = vmul.f32 %v3644, %v7107
        %v7124 = vmul.f32 %v3644, %v7108
        %v7125 = vmul.f32 %v3644, %v7109
        %v7126 = vld [vmem:[%s249 + $0x5] sm:$0x1]
        %v7127 = vld [vmem:[%s249 + $0xd] sm:$0x1]
        %v7128 = vld [vmem:[%s249 + $0x15] sm:$0x1]
        %v7129 = vld [vmem:[%s249 + $0x1d] sm:$0x1]
        %v7130 = vld [vmem:[%s249 + $0x25] sm:$0x1]
        %v7131 = vld [vmem:[%s249 + $0x2d] sm:$0x1]
        %v7132 = vld [vmem:[%s249 + $0x35] sm:$0x1]
        %v7133 = vld [vmem:[%s249 + $0x3d] sm:$0x1]
        %v7134 = vld [vmem:[%s249 + $0x45] sm:$0x1]
        %v7135 = vld [vmem:[%s249 + $0x4d] sm:$0x1]
        %v7136 = vld [vmem:[%s249 + $0x55] sm:$0x1]
        %v7137 = vld [vmem:[%s249 + $0x5d] sm:$0x1]
        %v7138 = vld [vmem:[%s249 + $0x65] sm:$0x1]
        %v7139 = vld [vmem:[%s249 + $0x6d] sm:$0x1]
        %v7140 = vld [vmem:[%s249 + $0x75] sm:$0x1]
        %v7141 = vld [vmem:[%s249 + $0x7d] sm:$0x1]
        %v7142 = vadd.f32 %v7110, %v7126
        %v7143 = vadd.f32 %v7111, %v7127
        %v7144 = vadd.f32 %v7112, %v7128
        %v7145 = vadd.f32 %v7113, %v7129
        %v7146 = vadd.f32 %v7114, %v7130
        %v7147 = vadd.f32 %v7115, %v7131
        %v7148 = vadd.f32 %v7116, %v7132
        %v7149 = vadd.f32 %v7117, %v7133
        %v7150 = vadd.f32 %v7118, %v7134
        %v7151 = vadd.f32 %v7119, %v7135
        %v7152 = vadd.f32 %v7120, %v7136
        %v7153 = vadd.f32 %v7121, %v7137
        %v7154 = vadd.f32 %v7122, %v7138
        %v7155 = vadd.f32 %v7123, %v7139
        %v7156 = vadd.f32 %v7124, %v7140
        %v7157 = vadd.f32 %v7125, %v7141
        %7158 = vst.msk [vmem:[%s287 + $0x5] sm:$0x1] %vm508, %v7142
        %7159 = vst.msk [vmem:[%s287 + $0xd] sm:$0x1] %vm508, %v7143
        %7160 = vst.msk [vmem:[%s287 + $0x15] sm:$0x1] %vm508, %v7144
        %7161 = vst.msk [vmem:[%s287 + $0x1d] sm:$0x1] %vm508, %v7145
        %7162 = vst.msk [vmem:[%s287 + $0x25] sm:$0x1] %vm508, %v7146
        %7163 = vst.msk [vmem:[%s287 + $0x2d] sm:$0x1] %vm508, %v7147
        %7164 = vst.msk [vmem:[%s287 + $0x35] sm:$0x1] %vm508, %v7148
        %7165 = vst.msk [vmem:[%s287 + $0x3d] sm:$0x1] %vm508, %v7149
        %7166 = vst.msk [vmem:[%s287 + $0x45] sm:$0x1] %vm508, %v7150
        %7167 = vst.msk [vmem:[%s287 + $0x4d] sm:$0x1] %vm508, %v7151
        %7168 = vst.msk [vmem:[%s287 + $0x55] sm:$0x1] %vm508, %v7152
        %7169 = vst.msk [vmem:[%s287 + $0x5d] sm:$0x1] %vm508, %v7153
        %7170 = vst.msk [vmem:[%s287 + $0x65] sm:$0x1] %vm508, %v7154
        %7171 = vst.msk [vmem:[%s287 + $0x6d] sm:$0x1] %vm508, %v7155
        %7172 = vst.msk [vmem:[%s287 + $0x75] sm:$0x1] %vm508, %v7156
        %7173 = vst.msk [vmem:[%s287 + $0x7d] sm:$0x1] %vm508, %v7157
        %v7174 = vld [vmem:[#allocation2 + $0x6] sm:$0x1]
        %v7175 = vld [vmem:[#allocation2 + $0xe] sm:$0x1]
        %v7176 = vld [vmem:[#allocation3 + $0x6] sm:$0x1]
        %v7177 = vld [vmem:[#allocation3 + $0xe] sm:$0x1]
        %v7178 = vld [vmem:[#allocation4 + $0x6] sm:$0x1]
        %v7179 = vld [vmem:[#allocation4 + $0xe] sm:$0x1]
        %v7180 = vld [vmem:[#allocation4 + $0x16] sm:$0x1]
        %v7181 = vld [vmem:[#allocation4 + $0x1e] sm:$0x1]
        %v7182 = vld [vmem:[#allocation4 + $0x26] sm:$0x1]
        %v7183 = vld [vmem:[#allocation4 + $0x2e] sm:$0x1]
        %v7184 = vld [vmem:[#allocation4 + $0x36] sm:$0x1]
        %v7185 = vld [vmem:[#allocation4 + $0x3e] sm:$0x1]
        %v7186 = vld [vmem:[#allocation4 + $0x46] sm:$0x1]
        %v7187 = vld [vmem:[#allocation4 + $0x4e] sm:$0x1]
        %v7188 = vld [vmem:[#allocation4 + $0x56] sm:$0x1]
        %v7189 = vld [vmem:[#allocation4 + $0x5e] sm:$0x1]
        %v7190 = vld [vmem:[#allocation4 + $0x66] sm:$0x1]
        %v7191 = vld [vmem:[#allocation4 + $0x6e] sm:$0x1]
        %v7192 = vld [vmem:[#allocation4 + $0x76] sm:$0x1]
        %v7193 = vld [vmem:[#allocation4 + $0x7e] sm:$0x1]
        %v7194 = vld [vmem:[#allocation3] sm:$0xff]
        %v7195 = vld [vmem:[#allocation3 + $0x8] sm:$0xff]
        %v7196 = vlaneseq
        %v7197 = vshrl.u32 %v7196, 7
        %v7198 = vsub.s32 0, %v7197
        %v7199 = vrot.slane %v7174, %v7198
        %v7200 = vlaneseq
        %v7201 = vshrl.u32 %v7200, 7
        %v7202 = vsub.s32 0, %v7201
        %v7203 = vrot.slane %v7175, %v7202
        %v7204 = vmul.f32 %v7199, %v7194
        %v7205 = vmul.f32 %v7203, %v7195
        %v7206 = vsel %vm3044, %v7204, 0.0
        %v7207 = vsel %vm3044, %v7205, 0.0
        %v7208 = vadd.f32 %v7206, %v7207
        %vm7209 = vcmp.eq.s32.totalorder %v3011, 6
        %v7210 = vsel %vm7209, -1e+30, %v7208
        %v7213 = vrot.slane %v7177, 7
        %v7214 = vsel %vm349, %v7213, %v7176
        %7216 = vxpose.xlu0.b32.start [1/16] %v7214, 128
        %7217 = vxpose.xlu0.b32.cont [2/16] 0.0, 128
        %7218 = vxpose.xlu0.b32.cont [3/16] 0.0, 128
        %7219 = vxpose.xlu0.b32.cont [4/16] 0.0, 128
        %7220 = vxpose.xlu0.b32.cont [5/16] 0.0, 128
        %7221 = vxpose.xlu0.b32.cont [6/16] 0.0, 128
        %7222 = vxpose.xlu0.b32.cont [7/16] 0.0, 128
        %7223 = vxpose.xlu0.b32.cont [8/16] 0.0, 128
        %7224 = vxpose.xlu0.b32.cont [9/16] 0.0, 128
        %7225 = vxpose.xlu0.b32.cont [10/16] 0.0, 128
        %7226 = vxpose.xlu0.b32.cont [11/16] 0.0, 128
        %7227 = vxpose.xlu0.b32.cont [12/16] 0.0, 128
        %7228 = vxpose.xlu0.b32.cont [13/16] 0.0, 128
        %7229 = vxpose.xlu0.b32.cont [14/16] 0.0, 128
        %7230 = vxpose.xlu0.b32.cont [15/16] 0.0, 128
        %7231 = vxpose.xlu0.b32.end [16/16] 0.0, 128
        %v7232 = vpop.trf.xlu0
        %v7233 = vpop.trf.xlu0
        %v7234 = vpop.trf.xlu0
        %v7235 = vpop.trf.xlu0
        %v7236 = vpop.trf.xlu0
        %v7237 = vpop.trf.xlu0
        %v7238 = vpop.trf.xlu0
        %v7239 = vpop.trf.xlu0
        %v7240 = vpop.trf.xlu0
        %v7241 = vpop.trf.xlu0
        %v7242 = vpop.trf.xlu0
        %v7243 = vpop.trf.xlu0
        %v7244 = vpop.trf.xlu0
        %v7245 = vpop.trf.xlu0
        %v7246 = vpop.trf.xlu0
        %v7247 = vpop.trf.xlu0
        %v7250 = vrot.slane %v7175, 7
        %v7251 = vsel %vm349, %v7250, %v7174
        %v7253 = vsel %vm3091, %v7232, 0
        %v7256 = vsel %vm3091, %v7233, 0
        %v7259 = vsel %vm3091, %v7234, 0
        %v7262 = vsel %vm3091, %v7235, 0
        %v7265 = vsel %vm3091, %v7236, 0
        %v7268 = vsel %vm3091, %v7237, 0
        %v7271 = vsel %vm3091, %v7238, 0
        %v7274 = vsel %vm3091, %v7239, 0
        %v7276 = vsel %vm3116, %v7251, 0
        %7278 = vmatprep.subr.mxu0 0.0
        %7279 = vmatpush1.msra.mxu0 %v7276
        %7280 = vmatprep.subr.mxu0 0.0
        %7281 = vmatpush1.msra.mxu0 0.0
        %7282 = vmatprep.subr.mxu0 0.0
        %7283 = vmatpush1.msra.mxu0 0.0
        %7284 = vmatprep.subr.mxu0 0.0
        %7285 = vmatpush1.msra.mxu0 0.0
        %7286 = vmatprep.subr.mxu0 0.0
        %7287 = vmatpush1.msra.mxu0 0.0
        %7288 = vmatprep.subr.mxu0 0.0
        %7289 = vmatpush1.msra.mxu0 0.0
        %7290 = vmatprep.subr.mxu0 0.0
        %7291 = vmatpush1.msra.mxu0 0.0
        %7292 = vmatprep.subr.mxu0 0.0
        %7293 = vmatpush1.msra.mxu0 0.0
        %7294 = vmatprep.subr.mxu0 0.0
        %7295 = vmatpush1.msra.mxu0 0.0
        %7296 = vmatprep.subr.mxu0 0.0
        %7297 = vmatpush1.msra.mxu0 0.0
        %7298 = vmatprep.subr.mxu0 0.0
        %7299 = vmatpush1.msra.mxu0 0.0
        %7300 = vmatprep.subr.mxu0 0.0
        %7301 = vmatpush1.msra.mxu0 0.0
        %7302 = vmatprep.subr.mxu0 0.0
        %7303 = vmatpush1.msra.mxu0 0.0
        %7304 = vmatprep.subr.mxu0 0.0
        %7305 = vmatpush1.msra.mxu0 0.0
        %7306 = vmatprep.subr.mxu0 0.0
        %7307 = vmatpush1.msra.mxu0 0.0
        %7308 = vmatprep.subr.mxu0 0.0
        %7309 = vmatpush1.msra.mxu0 0.0
        %7310 = vmatprep.subr.mxu0 0.0
        %7311 = vmatpush1.msra.mxu0 0.0
        %7312 = vmatprep.subr.mxu0 0.0
        %7313 = vmatpush1.msra.mxu0 0.0
        %7314 = vmatprep.subr.mxu0 0.0
        %7315 = vmatpush1.msra.mxu0 0.0
        %7316 = vmatprep.subr.mxu0 0.0
        %7317 = vmatpush1.msra.mxu0 0.0
        %7318 = vmatprep.subr.mxu0 0.0
        %7319 = vmatpush1.msra.mxu0 0.0
        %7320 = vmatprep.subr.mxu0 0.0
        %7321 = vmatpush1.msra.mxu0 0.0
        %7322 = vmatprep.subr.mxu0 0.0
        %7323 = vmatpush1.msra.mxu0 0.0
        %7324 = vmatprep.subr.mxu0 0.0
        %7325 = vmatpush1.msra.mxu0 0.0
        %7326 = vmatprep.subr.mxu0 0.0
        %7327 = vmatpush1.msra.mxu0 0.0
        %7328 = vmatprep.subr.mxu0 0.0
        %7329 = vmatpush1.msra.mxu0 0.0
        %7330 = vmatprep.subr.mxu0 0.0
        %7331 = vmatpush1.msra.mxu0 0.0
        %7332 = vmatprep.subr.mxu0 0.0
        %7333 = vmatpush1.msra.mxu0 0.0
        %7334 = vmatprep.subr.mxu0 0.0
        %7335 = vmatpush1.msra.mxu0 0.0
        %7336 = vmatprep.subr.mxu0 0.0
        %7337 = vmatpush1.msra.mxu0 0.0
        %7338 = vmatprep.subr.mxu0 0.0
        %7339 = vmatpush1.msra.mxu0 0.0
        %7340 = vmatprep.subr.mxu0 0.0
        %7341 = vmatpush1.msra.mxu0 0.0
        %7342 = vmatprep.mubr.f32.mxu0 0.0
        %7343 = vmatmul.mubr.f32.gmra.mrb[0].mxu0 %v7253
        %v7344 = vpop.f32.mrb[0].mxu0
        %v7345 = vadd.f32 %v3002, %v7344
        %v7346 = vpop.f32.mrb[0].mxu0
        %7347 = vmatprep.mubr.f32.mxu0 0.0
        %7348 = vmatmul.mubr.f32.gmra.mrb[0].mxu0 %v7256
        %v7349 = vpop.f32.mrb[0].mxu0
        %v7350 = vadd.f32 %v3003, %v7349
        %v7351 = vpop.f32.mrb[0].mxu0
        %7352 = vmatprep.mubr.f32.mxu0 0.0
        %7353 = vmatmul.mubr.f32.gmra.mrb[0].mxu0 %v7259
        %v7354 = vpop.f32.mrb[0].mxu0
        %v7355 = vadd.f32 %v3004, %v7354
        %v7356 = vpop.f32.mrb[0].mxu0
        %7357 = vmatprep.mubr.f32.mxu0 0.0
        %7358 = vmatmul.mubr.f32.gmra.mrb[0].mxu0 %v7262
        %v7359 = vpop.f32.mrb[0].mxu0
        %v7360 = vadd.f32 %v3005, %v7359
        %v7361 = vpop.f32.mrb[0].mxu0
        %7362 = vmatprep.mubr.f32.mxu0 0.0
        %7363 = vmatmul.mubr.f32.gmra.mrb[0].mxu0 %v7265
        %v7364 = vpop.f32.mrb[0].mxu0
        %v7365 = vadd.f32 %v3006, %v7364
        %v7366 = vpop.f32.mrb[0].mxu0
        %7367 = vmatprep.mubr.f32.mxu0 0.0
        %7368 = vmatmul.mubr.f32.gmra.mrb[0].mxu0 %v7268
        %v7369 = vpop.f32.mrb[0].mxu0
        %v7370 = vadd.f32 %v3007, %v7369
        %v7371 = vpop.f32.mrb[0].mxu0
        %7372 = vmatprep.mubr.f32.mxu0 0.0
        %7373 = vmatmul.mubr.f32.gmra.mrb[0].mxu0 %v7271
        %v7374 = vpop.f32.mrb[0].mxu0
        %v7375 = vadd.f32 %v3008, %v7374
        %v7376 = vpop.f32.mrb[0].mxu0
        %7377 = vmatprep.mubr.f32.mxu0 0.0
        %7378 = vmatmul.mubr.f32.gmra.mrb[0].mxu0 %v7274
        %v7379 = vpop.f32.mrb[0].mxu0
        %v7380 = vadd.f32 %v3009, %v7379
        %v7381 = vpop.f32.mrb[0].mxu0
        %7382 = vdwg.mxu0
        %v7383 = vsel %vm3044, %v7210, -inf
        %v7384 = vrot.slane %v7383, 4
        %v7385 = vmax.f32 %v7383, %v7384
        %v7386 = vrot.slane %v7385, 2
        %v7387 = vmax.f32 %v7385, %v7386
        %v7388 = vrot.slane %v7387, 1
        %v7389 = vmax.f32 %v7387, %v7388
        %v7390 = vsel %vm3044, %v7345, -inf
        %v7391 = vsel %vm3044, %v7350, -inf
        %v7392 = vsel %vm3044, %v7355, -inf
        %v7393 = vsel %vm3044, %v7360, -inf
        %v7394 = vsel %vm3044, %v7365, -inf
        %v7395 = vmax.f32 %v7390, %v7394
        %v7396 = vsel %vm3044, %v7370, -inf
        %v7397 = vmax.f32 %v7391, %v7396
        %v7398 = vsel %vm3044, %v7375, -inf
        %v7399 = vmax.f32 %v7392, %v7398
        %v7400 = vsel %vm3044, %v7380, -inf
        %v7401 = vmax.f32 %v7393, %v7400
        %v7402 = vmax.f32 %v7395, %v7397
        %v7403 = vmax.f32 %v7399, %v7401
        %v7404 = vmax.f32 %v7402, %v7403
        %v7405 = vrot.slane %v7404, 4
        %v7406 = vmax.f32 %v7404, %v7405
        %v7407 = vrot.slane %v7406, 2
        %v7408 = vmax.f32 %v7406, %v7407
        %v7409 = vrot.slane %v7408, 1
        %v7410 = vmax.f32 %v7408, %v7409
        %v7411 = vmax.f32 %v7389, %v7410
        %v7412 = vsub.f32 %v7210, %v7411
        %v7413 = vmul.f32 %v7412, 1.442695
        %v7414 = vpow.pop %v7413
        %v7415 = vsub.f32 %v7345, %v7411
        %v7416 = vsub.f32 %v7350, %v7411
        %v7417 = vsub.f32 %v7355, %v7411
        %v7418 = vsub.f32 %v7360, %v7411
        %v7419 = vsub.f32 %v7365, %v7411
        %v7420 = vsub.f32 %v7370, %v7411
        %v7421 = vsub.f32 %v7375, %v7411
        %v7422 = vsub.f32 %v7380, %v7411
        %v7423 = vmul.f32 %v7415, 1.442695
        %v7424 = vpow.pop %v7423
        %v7425 = vmul.f32 %v7416, 1.442695
        %v7426 = vpow.pop %v7425
        %v7427 = vmul.f32 %v7417, 1.442695
        %v7428 = vpow.pop %v7427
        %v7429 = vmul.f32 %v7418, 1.442695
        %v7430 = vpow.pop %v7429
        %v7431 = vmul.f32 %v7419, 1.442695
        %v7432 = vpow.pop %v7431
        %v7433 = vmul.f32 %v7420, 1.442695
        %v7434 = vpow.pop %v7433
        %v7435 = vmul.f32 %v7421, 1.442695
        %v7436 = vpow.pop %v7435
        %v7437 = vmul.f32 %v7422, 1.442695
        %v7438 = vpow.pop %v7437
        %v7439 = vsel %vm3044, %v7414, 0.0
        %v7440 = vrot.slane %v7439, 4
        %v7441 = vadd.f32 %v7439, %v7440
        %v7442 = vrot.slane %v7441, 2
        %v7443 = vadd.f32 %v7441, %v7442
        %v7444 = vrot.slane %v7443, 1
        %v7445 = vadd.f32 %v7443, %v7444
        %v7446 = vsel %vm3044, %v7424, 0.0
        %v7447 = vsel %vm3044, %v7426, 0.0
        %v7448 = vadd.f32 %v7446, %v7447
        %v7449 = vsel %vm3044, %v7428, 0.0
        %v7450 = vadd.f32 %v7448, %v7449
        %v7451 = vsel %vm3044, %v7430, 0.0
        %v7452 = vadd.f32 %v7450, %v7451
        %v7453 = vsel %vm3044, %v7432, 0.0
        %v7454 = vadd.f32 %v7452, %v7453
        %v7455 = vsel %vm3044, %v7434, 0.0
        %v7456 = vadd.f32 %v7454, %v7455
        %v7457 = vsel %vm3044, %v7436, 0.0
        %v7458 = vadd.f32 %v7456, %v7457
        %v7459 = vsel %vm3044, %v7438, 0.0
        %v7460 = vadd.f32 %v7458, %v7459
        %v7461 = vrot.slane %v7460, 4
        %v7462 = vadd.f32 %v7460, %v7461
        %v7463 = vrot.slane %v7462, 2
        %v7464 = vadd.f32 %v7462, %v7463
        %v7465 = vrot.slane %v7464, 1
        %v7466 = vadd.f32 %v7464, %v7465
        %v7467 = vadd.f32 %v7445, %v7466
        %v7468 = vrcp.pop %v7467
        %v7469 = vmul.f32 %v7467, %v7468
        %v7470 = vsub.f32 2.0, %v7469
        %v7471 = vmul.f32 %v7468, %v7470
        %v7472 = vld [vmem:[#allocation4] sm:$0xff]
        %v7473 = vld [vmem:[#allocation4 + $0x8] sm:$0xff]
        %v7474 = vld [vmem:[#allocation4 + $0x10] sm:$0xff]
        %v7475 = vld [vmem:[#allocation4 + $0x18] sm:$0xff]
        %v7476 = vld [vmem:[#allocation4 + $0x20] sm:$0xff]
        %v7477 = vld [vmem:[#allocation4 + $0x28] sm:$0xff]
        %v7478 = vld [vmem:[#allocation4 + $0x30] sm:$0xff]
        %v7479 = vld [vmem:[#allocation4 + $0x38] sm:$0xff]
        %v7480 = vld [vmem:[#allocation4 + $0x40] sm:$0xff]
        %v7481 = vld [vmem:[#allocation4 + $0x48] sm:$0xff]
        %v7482 = vld [vmem:[#allocation4 + $0x50] sm:$0xff]
        %v7483 = vld [vmem:[#allocation4 + $0x58] sm:$0xff]
        %v7484 = vld [vmem:[#allocation4 + $0x60] sm:$0xff]
        %v7485 = vld [vmem:[#allocation4 + $0x68] sm:$0xff]
        %v7486 = vld [vmem:[#allocation4 + $0x70] sm:$0xff]
        %v7487 = vld [vmem:[#allocation4 + $0x78] sm:$0xff]
        %v7488 = vmul.f32 %v7414, %v7472
        %v7489 = vmul.f32 %v7414, %v7473
        %v7490 = vmul.f32 %v7414, %v7474
        %v7491 = vmul.f32 %v7414, %v7475
        %v7492 = vmul.f32 %v7414, %v7476
        %v7493 = vmul.f32 %v7414, %v7477
        %v7494 = vmul.f32 %v7414, %v7478
        %v7495 = vmul.f32 %v7414, %v7479
        %v7496 = vmul.f32 %v7414, %v7480
        %v7497 = vmul.f32 %v7414, %v7481
        %v7498 = vmul.f32 %v7414, %v7482
        %v7499 = vmul.f32 %v7414, %v7483
        %v7500 = vmul.f32 %v7414, %v7484
        %v7501 = vmul.f32 %v7414, %v7485
        %v7502 = vmul.f32 %v7414, %v7486
        %v7503 = vmul.f32 %v7414, %v7487
        %v7504 = vsel %vm3044, %v7488, 0.0
        %v7505 = vrot.slane %v7504, 4
        %v7506 = vadd.f32 %v7504, %v7505
        %v7507 = vrot.slane %v7506, 2
        %v7508 = vadd.f32 %v7506, %v7507
        %v7509 = vrot.slane %v7508, 1
        %v7510 = vadd.f32 %v7508, %v7509
        %v7511 = vsel %vm3044, %v7489, 0.0
        %v7512 = vrot.slane %v7511, 4
        %v7513 = vadd.f32 %v7511, %v7512
        %v7514 = vrot.slane %v7513, 2
        %v7515 = vadd.f32 %v7513, %v7514
        %v7516 = vrot.slane %v7515, 1
        %v7517 = vadd.f32 %v7515, %v7516
        %v7518 = vsel %vm3044, %v7490, 0.0
        %v7519 = vrot.slane %v7518, 4
        %v7520 = vadd.f32 %v7518, %v7519
        %v7521 = vrot.slane %v7520, 2
        %v7522 = vadd.f32 %v7520, %v7521
        %v7523 = vrot.slane %v7522, 1
        %v7524 = vadd.f32 %v7522, %v7523
        %v7525 = vsel %vm3044, %v7491, 0.0
        %v7526 = vrot.slane %v7525, 4
        %v7527 = vadd.f32 %v7525, %v7526
        %v7528 = vrot.slane %v7527, 2
        %v7529 = vadd.f32 %v7527, %v7528
        %v7530 = vrot.slane %v7529, 1
        %v7531 = vadd.f32 %v7529, %v7530
        %v7532 = vsel %vm3044, %v7492, 0.0
        %v7533 = vrot.slane %v7532, 4
        %v7534 = vadd.f32 %v7532, %v7533
        %v7535 = vrot.slane %v7534, 2
        %v7536 = vadd.f32 %v7534, %v7535
        %v7537 = vrot.slane %v7536, 1
        %v7538 = vadd.f32 %v7536, %v7537
        %v7539 = vsel %vm3044, %v7493, 0.0
        %v7540 = vrot.slane %v7539, 4
        %v7541 = vadd.f32 %v7539, %v7540
        %v7542 = vrot.slane %v7541, 2
        %v7543 = vadd.f32 %v7541, %v7542
        %v7544 = vrot.slane %v7543, 1
        %v7545 = vadd.f32 %v7543, %v7544
        %v7546 = vsel %vm3044, %v7494, 0.0
        %v7547 = vrot.slane %v7546, 4
        %v7548 = vadd.f32 %v7546, %v7547
        %v7549 = vrot.slane %v7548, 2
        %v7550 = vadd.f32 %v7548, %v7549
        %v7551 = vrot.slane %v7550, 1
        %v7552 = vadd.f32 %v7550, %v7551
        %v7553 = vsel %vm3044, %v7495, 0.0
        %v7554 = vrot.slane %v7553, 4
        %v7555 = vadd.f32 %v7553, %v7554
        %v7556 = vrot.slane %v7555, 2
        %v7557 = vadd.f32 %v7555, %v7556
        %v7558 = vrot.slane %v7557, 1
        %v7559 = vadd.f32 %v7557, %v7558
        %v7560 = vsel %vm3044, %v7496, 0.0
        %v7561 = vrot.slane %v7560, 4
        %v7562 = vadd.f32 %v7560, %v7561
        %v7563 = vrot.slane %v7562, 2
        %v7564 = vadd.f32 %v7562, %v7563
        %v7565 = vrot.slane %v7564, 1
        %v7566 = vadd.f32 %v7564, %v7565
        %v7567 = vsel %vm3044, %v7497, 0.0
        %v7568 = vrot.slane %v7567, 4
        %v7569 = vadd.f32 %v7567, %v7568
        %v7570 = vrot.slane %v7569, 2
        %v7571 = vadd.f32 %v7569, %v7570
        %v7572 = vrot.slane %v7571, 1
        %v7573 = vadd.f32 %v7571, %v7572
        %v7574 = vsel %vm3044, %v7498, 0.0
        %v7575 = vrot.slane %v7574, 4
        %v7576 = vadd.f32 %v7574, %v7575
        %v7577 = vrot.slane %v7576, 2
        %v7578 = vadd.f32 %v7576, %v7577
        %v7579 = vrot.slane %v7578, 1
        %v7580 = vadd.f32 %v7578, %v7579
        %v7581 = vsel %vm3044, %v7499, 0.0
        %v7582 = vrot.slane %v7581, 4
        %v7583 = vadd.f32 %v7581, %v7582
        %v7584 = vrot.slane %v7583, 2
        %v7585 = vadd.f32 %v7583, %v7584
        %v7586 = vrot.slane %v7585, 1
        %v7587 = vadd.f32 %v7585, %v7586
        %v7588 = vsel %vm3044, %v7500, 0.0
        %v7589 = vrot.slane %v7588, 4
        %v7590 = vadd.f32 %v7588, %v7589
        %v7591 = vrot.slane %v7590, 2
        %v7592 = vadd.f32 %v7590, %v7591
        %v7593 = vrot.slane %v7592, 1
        %v7594 = vadd.f32 %v7592, %v7593
        %v7595 = vsel %vm3044, %v7501, 0.0
        %v7596 = vrot.slane %v7595, 4
        %v7597 = vadd.f32 %v7595, %v7596
        %v7598 = vrot.slane %v7597, 2
        %v7599 = vadd.f32 %v7597, %v7598
        %v7600 = vrot.slane %v7599, 1
        %v7601 = vadd.f32 %v7599, %v7600
        %v7602 = vsel %vm3044, %v7502, 0.0
        %v7603 = vrot.slane %v7602, 4
        %v7604 = vadd.f32 %v7602, %v7603
        %v7605 = vrot.slane %v7604, 2
        %v7606 = vadd.f32 %v7604, %v7605
        %v7607 = vrot.slane %v7606, 1
        %v7608 = vadd.f32 %v7606, %v7607
        %v7609 = vsel %vm3044, %v7503, 0.0
        %v7610 = vrot.slane %v7609, 4
        %v7611 = vadd.f32 %v7609, %v7610
        %v7612 = vrot.slane %v7611, 2
        %v7613 = vadd.f32 %v7611, %v7612
        %v7614 = vrot.slane %v7613, 1
        %v7615 = vadd.f32 %v7613, %v7614
        %v7632 = vrot.slane %v7179, 7
        %v7633 = vsel %vm349, %v7632, %v7178
        %v7634 = vrot.slane %v7180, 6
        %v7635 = vsel %vm352, %v7634, %v7633
        %v7636 = vrot.slane %v7181, 5
        %v7637 = vsel %vm355, %v7636, %v7635
        %v7638 = vrot.slane %v7182, 4
        %v7639 = vsel %vm358, %v7638, %v7637
        %v7640 = vrot.slane %v7183, 3
        %v7641 = vsel %vm361, %v7640, %v7639
        %v7642 = vrot.slane %v7184, 2
        %v7643 = vsel %vm364, %v7642, %v7641
        %v7644 = vrot.slane %v7185, 1
        %v7645 = vsel %vm367, %v7644, %v7643
        %v7646 = vrot.slane %v7187, 7
        %v7647 = vsel %vm349, %v7646, %v7186
        %v7648 = vrot.slane %v7188, 6
        %v7649 = vsel %vm352, %v7648, %v7647
        %v7650 = vrot.slane %v7189, 5
        %v7651 = vsel %vm355, %v7650, %v7649
        %v7652 = vrot.slane %v7190, 4
        %v7653 = vsel %vm358, %v7652, %v7651
        %v7654 = vrot.slane %v7191, 3
        %v7655 = vsel %vm361, %v7654, %v7653
        %v7656 = vrot.slane %v7192, 2
        %v7657 = vsel %vm364, %v7656, %v7655
        %v7658 = vrot.slane %v7193, 1
        %v7659 = vsel %vm367, %v7658, %v7657
        %v7660 = vsel %vm3044, %v7645, 0
        %v7662 = vsel %vm3044, %v7659, 0
        %7664 = vmatprep.subr.mxu0 0.0
        %7665 = vmatpush1.msra.mxu0 %v7424
        %7666 = vmatprep.subr.mxu0 0.0
        %7667 = vmatpush1.msra.mxu0 %v7426
        %7668 = vmatprep.subr.mxu0 0.0
        %7669 = vmatpush1.msra.mxu0 %v7428
        %7670 = vmatprep.subr.mxu0 0.0
        %7671 = vmatpush1.msra.mxu0 %v7430
        %7672 = vmatprep.subr.mxu0 0.0
        %7673 = vmatpush1.msra.mxu0 %v7432
        %7674 = vmatprep.subr.mxu0 0.0
        %7675 = vmatpush1.msra.mxu0 %v7434
        %7676 = vmatprep.subr.mxu0 0.0
        %7677 = vmatpush1.msra.mxu0 %v7436
        %7678 = vmatprep.subr.mxu0 0.0
        %7679 = vmatpush1.msra.mxu0 %v7438
        %7680 = vmatprep.subr.mxu0 0.0
        %7681 = vmatpush1.msra.mxu0 0.0
        %7682 = vmatprep.subr.mxu0 0.0
        %7683 = vmatpush1.msra.mxu0 0.0
        %7684 = vmatprep.subr.mxu0 0.0
        %7685 = vmatpush1.msra.mxu0 0.0
        %7686 = vmatprep.subr.mxu0 0.0
        %7687 = vmatpush1.msra.mxu0 0.0
        %7688 = vmatprep.subr.mxu0 0.0
        %7689 = vmatpush1.msra.mxu0 0.0
        %7690 = vmatprep.subr.mxu0 0.0
        %7691 = vmatpush1.msra.mxu0 0.0
        %7692 = vmatprep.subr.mxu0 0.0
        %7693 = vmatpush1.msra.mxu0 0.0
        %7694 = vmatprep.subr.mxu0 0.0
        %7695 = vmatpush1.msra.mxu0 0.0
        %7696 = vmatprep.subr.mxu0 0.0
        %7697 = vmatpush1.msra.mxu0 0.0
        %7698 = vmatprep.subr.mxu0 0.0
        %7699 = vmatpush1.msra.mxu0 0.0
        %7700 = vmatprep.subr.mxu0 0.0
        %7701 = vmatpush1.msra.mxu0 0.0
        %7702 = vmatprep.subr.mxu0 0.0
        %7703 = vmatpush1.msra.mxu0 0.0
        %7704 = vmatprep.subr.mxu0 0.0
        %7705 = vmatpush1.msra.mxu0 0.0
        %7706 = vmatprep.subr.mxu0 0.0
        %7707 = vmatpush1.msra.mxu0 0.0
        %7708 = vmatprep.subr.mxu0 0.0
        %7709 = vmatpush1.msra.mxu0 0.0
        %7710 = vmatprep.subr.mxu0 0.0
        %7711 = vmatpush1.msra.mxu0 0.0
        %7712 = vmatprep.subr.mxu0 0.0
        %7713 = vmatpush1.msra.mxu0 0.0
        %7714 = vmatprep.subr.mxu0 0.0
        %7715 = vmatpush1.msra.mxu0 0.0
        %7716 = vmatprep.subr.mxu0 0.0
        %7717 = vmatpush1.msra.mxu0 0.0
        %7718 = vmatprep.subr.mxu0 0.0
        %7719 = vmatpush1.msra.mxu0 0.0
        %7720 = vmatprep.subr.mxu0 0.0
        %7721 = vmatpush1.msra.mxu0 0.0
        %7722 = vmatprep.subr.mxu0 0.0
        %7723 = vmatpush1.msra.mxu0 0.0
        %7724 = vmatprep.subr.mxu0 0.0
        %7725 = vmatpush1.msra.mxu0 0.0
        %7726 = vmatprep.subr.mxu0 0.0
        %7727 = vmatpush1.msra.mxu0 0.0
        %7728 = vmatprep.mubr.f32.mxu0 0.0
        %7729 = vmatmul.mubr.f32.gmra.mrb[0].mxu0 %v7660
        %v7730 = vpop.f32.mrb[0].mxu0
        %v7731 = vadd.f32 0.0, %v7730
        %v7732 = vpop.f32.mrb[0].mxu0
        %7733 = vmatprep.mubr.f32.mxu0 0.0
        %7734 = vmatmul.mubr.f32.gmra.mrb[0].mxu0 %v7662
        %v7735 = vpop.f32.mrb[0].mxu0
        %v7736 = vadd.f32 0.0, %v7735
        %v7737 = vpop.f32.mrb[0].mxu0
        %7738 = vdwg.mxu0
        %v7741 = vrot.slane %v7731, 1
        %v7742 = vrot.slane %v7731, 2
        %v7743 = vrot.slane %v7731, 3
        %v7744 = vrot.slane %v7731, 4
        %v7745 = vrot.slane %v7731, 5
        %v7746 = vrot.slane %v7731, 6
        %v7747 = vrot.slane %v7731, 7
        %v7748 = vrot.slane %v7736, 1
        %v7749 = vrot.slane %v7736, 2
        %v7750 = vrot.slane %v7736, 3
        %v7751 = vrot.slane %v7736, 4
        %v7752 = vrot.slane %v7736, 5
        %v7753 = vrot.slane %v7736, 6
        %v7754 = vrot.slane %v7736, 7
        %v7771 = vadd.f32 %v7510, %v7731
        %v7772 = vadd.f32 %v7517, %v7741
        %v7773 = vadd.f32 %v7524, %v7742
        %v7774 = vadd.f32 %v7531, %v7743
        %v7775 = vadd.f32 %v7538, %v7744
        %v7776 = vadd.f32 %v7545, %v7745
        %v7777 = vadd.f32 %v7552, %v7746
        %v7778 = vadd.f32 %v7559, %v7747
        %v7779 = vadd.f32 %v7566, %v7736
        %v7780 = vadd.f32 %v7573, %v7748
        %v7781 = vadd.f32 %v7580, %v7749
        %v7782 = vadd.f32 %v7587, %v7750
        %v7783 = vadd.f32 %v7594, %v7751
        %v7784 = vadd.f32 %v7601, %v7752
        %v7785 = vadd.f32 %v7608, %v7753
        %v7786 = vadd.f32 %v7615, %v7754
        %v7787 = vmul.f32 %v7771, %v7471
        %v7788 = vmul.f32 %v7772, %v7471
        %v7789 = vmul.f32 %v7773, %v7471
        %v7790 = vmul.f32 %v7774, %v7471
        %v7791 = vmul.f32 %v7775, %v7471
        %v7792 = vmul.f32 %v7776, %v7471
        %v7793 = vmul.f32 %v7777, %v7471
        %v7794 = vmul.f32 %v7778, %v7471
        %v7795 = vmul.f32 %v7779, %v7471
        %v7796 = vmul.f32 %v7780, %v7471
        %v7797 = vmul.f32 %v7781, %v7471
        %v7798 = vmul.f32 %v7782, %v7471
        %v7799 = vmul.f32 %v7783, %v7471
        %v7800 = vmul.f32 %v7784, %v7471
        %v7801 = vmul.f32 %v7785, %v7471
        %v7802 = vmul.f32 %v7786, %v7471
        %v7803 = vmul.f32 %v3644, %v7787
        %v7804 = vmul.f32 %v3644, %v7788
        %v7805 = vmul.f32 %v3644, %v7789
        %v7806 = vmul.f32 %v3644, %v7790
        %v7807 = vmul.f32 %v3644, %v7791
        %v7808 = vmul.f32 %v3644, %v7792
        %v7809 = vmul.f32 %v3644, %v7793
        %v7810 = vmul.f32 %v3644, %v7794
        %v7811 = vmul.f32 %v3644, %v7795
        %v7812 = vmul.f32 %v3644, %v7796
        %v7813 = vmul.f32 %v3644, %v7797
        %v7814 = vmul.f32 %v3644, %v7798
        %v7815 = vmul.f32 %v3644, %v7799
        %v7816 = vmul.f32 %v3644, %v7800
        %v7817 = vmul.f32 %v3644, %v7801
        %v7818 = vmul.f32 %v3644, %v7802
        %v7819 = vld [vmem:[%s249 + $0x6] sm:$0x1]
        %v7820 = vld [vmem:[%s249 + $0xe] sm:$0x1]
        %v7821 = vld [vmem:[%s249 + $0x16] sm:$0x1]
        %v7822 = vld [vmem:[%s249 + $0x1e] sm:$0x1]
        %v7823 = vld [vmem:[%s249 + $0x26] sm:$0x1]
        %v7824 = vld [vmem:[%s249 + $0x2e] sm:$0x1]
        %v7825 = vld [vmem:[%s249 + $0x36] sm:$0x1]
        %v7826 = vld [vmem:[%s249 + $0x3e] sm:$0x1]
        %v7827 = vld [vmem:[%s249 + $0x46] sm:$0x1]
        %v7828 = vld [vmem:[%s249 + $0x4e] sm:$0x1]
        %v7829 = vld [vmem:[%s249 + $0x56] sm:$0x1]
        %v7830 = vld [vmem:[%s249 + $0x5e] sm:$0x1]
        %v7831 = vld [vmem:[%s249 + $0x66] sm:$0x1]
        %v7832 = vld [vmem:[%s249 + $0x6e] sm:$0x1]
        %v7833 = vld [vmem:[%s249 + $0x76] sm:$0x1]
        %v7834 = vld [vmem:[%s249 + $0x7e] sm:$0x1]
        %v7835 = vadd.f32 %v7803, %v7819
        %v7836 = vadd.f32 %v7804, %v7820
        %v7837 = vadd.f32 %v7805, %v7821
        %v7838 = vadd.f32 %v7806, %v7822
        %v7839 = vadd.f32 %v7807, %v7823
        %v7840 = vadd.f32 %v7808, %v7824
        %v7841 = vadd.f32 %v7809, %v7825
        %v7842 = vadd.f32 %v7810, %v7826
        %v7843 = vadd.f32 %v7811, %v7827
        %v7844 = vadd.f32 %v7812, %v7828
        %v7845 = vadd.f32 %v7813, %v7829
        %v7846 = vadd.f32 %v7814, %v7830
        %v7847 = vadd.f32 %v7815, %v7831
        %v7848 = vadd.f32 %v7816, %v7832
        %v7849 = vadd.f32 %v7817, %v7833
        %v7850 = vadd.f32 %v7818, %v7834
        %7851 = vst.msk [vmem:[%s287 + $0x6] sm:$0x1] %vm508, %v7835
        %7852 = vst.msk [vmem:[%s287 + $0xe] sm:$0x1] %vm508, %v7836
        %7853 = vst.msk [vmem:[%s287 + $0x16] sm:$0x1] %vm508, %v7837
        %7854 = vst.msk [vmem:[%s287 + $0x1e] sm:$0x1] %vm508, %v7838
        %7855 = vst.msk [vmem:[%s287 + $0x26] sm:$0x1] %vm508, %v7839
        %7856 = vst.msk [vmem:[%s287 + $0x2e] sm:$0x1] %vm508, %v7840
        %7857 = vst.msk [vmem:[%s287 + $0x36] sm:$0x1] %vm508, %v7841
        %7858 = vst.msk [vmem:[%s287 + $0x3e] sm:$0x1] %vm508, %v7842
        %7859 = vst.msk [vmem:[%s287 + $0x46] sm:$0x1] %vm508, %v7843
        %7860 = vst.msk [vmem:[%s287 + $0x4e] sm:$0x1] %vm508, %v7844
        %7861 = vst.msk [vmem:[%s287 + $0x56] sm:$0x1] %vm508, %v7845
        %7862 = vst.msk [vmem:[%s287 + $0x5e] sm:$0x1] %vm508, %v7846
        %7863 = vst.msk [vmem:[%s287 + $0x66] sm:$0x1] %vm508, %v7847
        %7864 = vst.msk [vmem:[%s287 + $0x6e] sm:$0x1] %vm508, %v7848
        %7865 = vst.msk [vmem:[%s287 + $0x76] sm:$0x1] %vm508, %v7849
        %7866 = vst.msk [vmem:[%s287 + $0x7e] sm:$0x1] %vm508, %v7850
        %v7867 = vld [vmem:[#allocation2 + $0x7] sm:$0x1]
        %v7868 = vld [vmem:[#allocation2 + $0xf] sm:$0x1]
        %v7869 = vld [vmem:[#allocation3 + $0x7] sm:$0x1]
        %v7870 = vld [vmem:[#allocation3 + $0xf] sm:$0x1]
        %v7871 = vld [vmem:[#allocation4 + $0x7] sm:$0x1]
        %v7872 = vld [vmem:[#allocation4 + $0xf] sm:$0x1]
        %v7873 = vld [vmem:[#allocation4 + $0x17] sm:$0x1]
        %v7874 = vld [vmem:[#allocation4 + $0x1f] sm:$0x1]
        %v7875 = vld [vmem:[#allocation4 + $0x27] sm:$0x1]
        %v7876 = vld [vmem:[#allocation4 + $0x2f] sm:$0x1]
        %v7877 = vld [vmem:[#allocation4 + $0x37] sm:$0x1]
        %v7878 = vld [vmem:[#allocation4 + $0x3f] sm:$0x1]
        %v7879 = vld [vmem:[#allocation4 + $0x47] sm:$0x1]
        %v7880 = vld [vmem:[#allocation4 + $0x4f] sm:$0x1]
        %v7881 = vld [vmem:[#allocation4 + $0x57] sm:$0x1]
        %v7882 = vld [vmem:[#allocation4 + $0x5f] sm:$0x1]
        %v7883 = vld [vmem:[#allocation4 + $0x67] sm:$0x1]
        %v7884 = vld [vmem:[#allocation4 + $0x6f] sm:$0x1]
        %v7885 = vld [vmem:[#allocation4 + $0x77] sm:$0x1]
        %v7886 = vld [vmem:[#allocation4 + $0x7f] sm:$0x1]
        %v7887 = vld [vmem:[#allocation3] sm:$0xff]
        %v7888 = vld [vmem:[#allocation3 + $0x8] sm:$0xff]
        %v7889 = vlaneseq
        %v7890 = vshrl.u32 %v7889, 7
        %v7891 = vsub.s32 0, %v7890
        %v7892 = vrot.slane %v7867, %v7891
        %v7893 = vlaneseq
        %v7894 = vshrl.u32 %v7893, 7
        %v7895 = vsub.s32 0, %v7894
        %v7896 = vrot.slane %v7868, %v7895
        %v7897 = vmul.f32 %v7892, %v7887
        %v7898 = vmul.f32 %v7896, %v7888
        %v7899 = vsel %vm3044, %v7897, 0.0
        %v7900 = vsel %vm3044, %v7898, 0.0
        %v7901 = vadd.f32 %v7899, %v7900
        %vm7902 = vcmp.eq.s32.totalorder %v3011, 7
        %v7903 = vsel %vm7902, -1e+30, %v7901
        %v7906 = vrot.slane %v7870, 7
        %v7907 = vsel %vm349, %v7906, %v7869
        %7909 = vxpose.xlu0.b32.start [1/16] %v7907, 128
        %7910 = vxpose.xlu0.b32.cont [2/16] 0.0, 128
        %7911 = vxpose.xlu0.b32.cont [3/16] 0.0, 128
        %7912 = vxpose.xlu0.b32.cont [4/16] 0.0, 128
        %7913 = vxpose.xlu0.b32.cont [5/16] 0.0, 128
        %7914 = vxpose.xlu0.b32.cont [6/16] 0.0, 128
        %7915 = vxpose.xlu0.b32.cont [7/16] 0.0, 128
        %7916 = vxpose.xlu0.b32.cont [8/16] 0.0, 128
        %7917 = vxpose.xlu0.b32.cont [9/16] 0.0, 128
        %7918 = vxpose.xlu0.b32.cont [10/16] 0.0, 128
        %7919 = vxpose.xlu0.b32.cont [11/16] 0.0, 128
        %7920 = vxpose.xlu0.b32.cont [12/16] 0.0, 128
        %7921 = vxpose.xlu0.b32.cont [13/16] 0.0, 128
        %7922 = vxpose.xlu0.b32.cont [14/16] 0.0, 128
        %7923 = vxpose.xlu0.b32.cont [15/16] 0.0, 128
        %7924 = vxpose.xlu0.b32.end [16/16] 0.0, 128
        %v7925 = vpop.trf.xlu0
        %v7926 = vpop.trf.xlu0
        %v7927 = vpop.trf.xlu0
        %v7928 = vpop.trf.xlu0
        %v7929 = vpop.trf.xlu0
        %v7930 = vpop.trf.xlu0
        %v7931 = vpop.trf.xlu0
        %v7932 = vpop.trf.xlu0
        %v7933 = vpop.trf.xlu0
        %v7934 = vpop.trf.xlu0
        %v7935 = vpop.trf.xlu0
        %v7936 = vpop.trf.xlu0
        %v7937 = vpop.trf.xlu0
        %v7938 = vpop.trf.xlu0
        %v7939 = vpop.trf.xlu0
        %v7940 = vpop.trf.xlu0
        %v7943 = vrot.slane %v7868, 7
        %v7944 = vsel %vm349, %v7943, %v7867
        %v7946 = vsel %vm3091, %v7925, 0
        %v7949 = vsel %vm3091, %v7926, 0
        %v7952 = vsel %vm3091, %v7927, 0
        %v7955 = vsel %vm3091, %v7928, 0
        %v7958 = vsel %vm3091, %v7929, 0
        %v7961 = vsel %vm3091, %v7930, 0
        %v7964 = vsel %vm3091, %v7931, 0
        %v7967 = vsel %vm3091, %v7932, 0
        %v7969 = vsel %vm3116, %v7944, 0
        %7971 = vmatprep.subr.mxu0 0.0
        %7972 = vmatpush1.msra.mxu0 %v7969
        %7973 = vmatprep.subr.mxu0 0.0
        %7974 = vmatpush1.msra.mxu0 0.0
        %7975 = vmatprep.subr.mxu0 0.0
        %7976 = vmatpush1.msra.mxu0 0.0
        %7977 = vmatprep.subr.mxu0 0.0
        %7978 = vmatpush1.msra.mxu0 0.0
        %7979 = vmatprep.subr.mxu0 0.0
        %7980 = vmatpush1.msra.mxu0 0.0
        %7981 = vmatprep.subr.mxu0 0.0
        %7982 = vmatpush1.msra.mxu0 0.0
        %7983 = vmatprep.subr.mxu0 0.0
        %7984 = vmatpush1.msra.mxu0 0.0
        %7985 = vmatprep.subr.mxu0 0.0
        %7986 = vmatpush1.msra.mxu0 0.0
        %7987 = vmatprep.subr.mxu0 0.0
        %7988 = vmatpush1.msra.mxu0 0.0
        %7989 = vmatprep.subr.mxu0 0.0
        %7990 = vmatpush1.msra.mxu0 0.0
        %7991 = vmatprep.subr.mxu0 0.0
        %7992 = vmatpush1.msra.mxu0 0.0
        %7993 = vmatprep.subr.mxu0 0.0
        %7994 = vmatpush1.msra.mxu0 0.0
        %7995 = vmatprep.subr.mxu0 0.0
        %7996 = vmatpush1.msra.mxu0 0.0
        %7997 = vmatprep.subr.mxu0 0.0
        %7998 = vmatpush1.msra.mxu0 0.0
        %7999 = vmatprep.subr.mxu0 0.0
        %8000 = vmatpush1.msra.mxu0 0.0
        %8001 = vmatprep.subr.mxu0 0.0
        %8002 = vmatpush1.msra.mxu0 0.0
        %8003 = vmatprep.subr.mxu0 0.0
        %8004 = vmatpush1.msra.mxu0 0.0
        %8005 = vmatprep.subr.mxu0 0.0
        %8006 = vmatpush1.msra.mxu0 0.0
        %8007 = vmatprep.subr.mxu0 0.0
        %8008 = vmatpush1.msra.mxu0 0.0
        %8009 = vmatprep.subr.mxu0 0.0
        %8010 = vmatpush1.msra.mxu0 0.0
        %8011 = vmatprep.subr.mxu0 0.0
        %8012 = vmatpush1.msra.mxu0 0.0
        %8013 = vmatprep.subr.mxu0 0.0
        %8014 = vmatpush1.msra.mxu0 0.0
        %8015 = vmatprep.subr.mxu0 0.0
        %8016 = vmatpush1.msra.mxu0 0.0
        %8017 = vmatprep.subr.mxu0 0.0
        %8018 = vmatpush1.msra.mxu0 0.0
        %8019 = vmatprep.subr.mxu0 0.0
        %8020 = vmatpush1.msra.mxu0 0.0
        %8021 = vmatprep.subr.mxu0 0.0
        %8022 = vmatpush1.msra.mxu0 0.0
        %8023 = vmatprep.subr.mxu0 0.0
        %8024 = vmatpush1.msra.mxu0 0.0
        %8025 = vmatprep.subr.mxu0 0.0
        %8026 = vmatpush1.msra.mxu0 0.0
        %8027 = vmatprep.subr.mxu0 0.0
        %8028 = vmatpush1.msra.mxu0 0.0
        %8029 = vmatprep.subr.mxu0 0.0
        %8030 = vmatpush1.msra.mxu0 0.0
        %8031 = vmatprep.subr.mxu0 0.0
        %8032 = vmatpush1.msra.mxu0 0.0
        %8033 = vmatprep.subr.mxu0 0.0
        %8034 = vmatpush1.msra.mxu0 0.0
        %8035 = vmatprep.mubr.f32.mxu0 0.0
        %8036 = vmatmul.mubr.f32.gmra.mrb[0].mxu0 %v7946
        %v8037 = vpop.f32.mrb[0].mxu0
        %v8038 = vadd.f32 %v3002, %v8037
        %v8039 = vpop.f32.mrb[0].mxu0
        %8040 = vmatprep.mubr.f32.mxu0 0.0
        %8041 = vmatmul.mubr.f32.gmra.mrb[0].mxu0 %v7949
        %v8042 = vpop.f32.mrb[0].mxu0
        %v8043 = vadd.f32 %v3003, %v8042
        %v8044 = vpop.f32.mrb[0].mxu0
        %8045 = vmatprep.mubr.f32.mxu0 0.0
        %8046 = vmatmul.mubr.f32.gmra.mrb[0].mxu0 %v7952
        %v8047 = vpop.f32.mrb[0].mxu0
        %v8048 = vadd.f32 %v3004, %v8047
        %v8049 = vpop.f32.mrb[0].mxu0
        %8050 = vmatprep.mubr.f32.mxu0 0.0
        %8051 = vmatmul.mubr.f32.gmra.mrb[0].mxu0 %v7955
        %v8052 = vpop.f32.mrb[0].mxu0
        %v8053 = vadd.f32 %v3005, %v8052
        %v8054 = vpop.f32.mrb[0].mxu0
        %8055 = vmatprep.mubr.f32.mxu0 0.0
        %8056 = vmatmul.mubr.f32.gmra.mrb[0].mxu0 %v7958
        %v8057 = vpop.f32.mrb[0].mxu0
        %v8058 = vadd.f32 %v3006, %v8057
        %v8059 = vpop.f32.mrb[0].mxu0
        %8060 = vmatprep.mubr.f32.mxu0 0.0
        %8061 = vmatmul.mubr.f32.gmra.mrb[0].mxu0 %v7961
        %v8062 = vpop.f32.mrb[0].mxu0
        %v8063 = vadd.f32 %v3007, %v8062
        %v8064 = vpop.f32.mrb[0].mxu0
        %8065 = vmatprep.mubr.f32.mxu0 0.0
        %8066 = vmatmul.mubr.f32.gmra.mrb[0].mxu0 %v7964
        %v8067 = vpop.f32.mrb[0].mxu0
        %v8068 = vadd.f32 %v3008, %v8067
        %v8069 = vpop.f32.mrb[0].mxu0
        %8070 = vmatprep.mubr.f32.mxu0 0.0
        %8071 = vmatmul.mubr.f32.gmra.mrb[0].mxu0 %v7967
        %v8072 = vpop.f32.mrb[0].mxu0
        %v8073 = vadd.f32 %v3009, %v8072
        %v8074 = vpop.f32.mrb[0].mxu0
        %8075 = vdwg.mxu0
        %v8076 = vsel %vm3044, %v7903, -inf
        %v8077 = vrot.slane %v8076, 4
        %v8078 = vmax.f32 %v8076, %v8077
        %v8079 = vrot.slane %v8078, 2
        %v8080 = vmax.f32 %v8078, %v8079
        %v8081 = vrot.slane %v8080, 1
        %v8082 = vmax.f32 %v8080, %v8081
        %v8083 = vsel %vm3044, %v8038, -inf
        %v8084 = vsel %vm3044, %v8043, -inf
        %v8085 = vsel %vm3044, %v8048, -inf
        %v8086 = vsel %vm3044, %v8053, -inf
        %v8087 = vsel %vm3044, %v8058, -inf
        %v8088 = vmax.f32 %v8083, %v8087
        %v8089 = vsel %vm3044, %v8063, -inf
        %v8090 = vmax.f32 %v8084, %v8089
        %v8091 = vsel %vm3044, %v8068, -inf
        %v8092 = vmax.f32 %v8085, %v8091
        %v8093 = vsel %vm3044, %v8073, -inf
        %v8094 = vmax.f32 %v8086, %v8093
        %v8095 = vmax.f32 %v8088, %v8090
        %v8096 = vmax.f32 %v8092, %v8094
        %v8097 = vmax.f32 %v8095, %v8096
        %v8098 = vrot.slane %v8097, 4
        %v8099 = vmax.f32 %v8097, %v8098
        %v8100 = vrot.slane %v8099, 2
        %v8101 = vmax.f32 %v8099, %v8100
        %v8102 = vrot.slane %v8101, 1
        %v8103 = vmax.f32 %v8101, %v8102
        %v8104 = vmax.f32 %v8082, %v8103
        %v8105 = vsub.f32 %v7903, %v8104
        %v8106 = vmul.f32 %v8105, 1.442695
        %v8107 = vpow.pop %v8106
        %v8108 = vsub.f32 %v8038, %v8104
        %v8109 = vsub.f32 %v8043, %v8104
        %v8110 = vsub.f32 %v8048, %v8104
        %v8111 = vsub.f32 %v8053, %v8104
        %v8112 = vsub.f32 %v8058, %v8104
        %v8113 = vsub.f32 %v8063, %v8104
        %v8114 = vsub.f32 %v8068, %v8104
        %v8115 = vsub.f32 %v8073, %v8104
        %v8116 = vmul.f32 %v8108, 1.442695
        %v8117 = vpow.pop %v8116
        %v8118 = vmul.f32 %v8109, 1.442695
        %v8119 = vpow.pop %v8118
        %v8120 = vmul.f32 %v8110, 1.442695
        %v8121 = vpow.pop %v8120
        %v8122 = vmul.f32 %v8111, 1.442695
        %v8123 = vpow.pop %v8122
        %v8124 = vmul.f32 %v8112, 1.442695
        %v8125 = vpow.pop %v8124
        %v8126 = vmul.f32 %v8113, 1.442695
        %v8127 = vpow.pop %v8126
        %v8128 = vmul.f32 %v8114, 1.442695
        %v8129 = vpow.pop %v8128
        %v8130 = vmul.f32 %v8115, 1.442695
        %v8131 = vpow.pop %v8130
        %v8132 = vsel %vm3044, %v8107, 0.0
        %v8133 = vrot.slane %v8132, 4
        %v8134 = vadd.f32 %v8132, %v8133
        %v8135 = vrot.slane %v8134, 2
        %v8136 = vadd.f32 %v8134, %v8135
        %v8137 = vrot.slane %v8136, 1
        %v8138 = vadd.f32 %v8136, %v8137
        %v8139 = vsel %vm3044, %v8117, 0.0
        %v8140 = vsel %vm3044, %v8119, 0.0
        %v8141 = vadd.f32 %v8139, %v8140
        %v8142 = vsel %vm3044, %v8121, 0.0
        %v8143 = vadd.f32 %v8141, %v8142
        %v8144 = vsel %vm3044, %v8123, 0.0
        %v8145 = vadd.f32 %v8143, %v8144
        %v8146 = vsel %vm3044, %v8125, 0.0
        %v8147 = vadd.f32 %v8145, %v8146
        %v8148 = vsel %vm3044, %v8127, 0.0
        %v8149 = vadd.f32 %v8147, %v8148
        %v8150 = vsel %vm3044, %v8129, 0.0
        %v8151 = vadd.f32 %v8149, %v8150
        %v8152 = vsel %vm3044, %v8131, 0.0
        %v8153 = vadd.f32 %v8151, %v8152
        %v8154 = vrot.slane %v8153, 4
        %v8155 = vadd.f32 %v8153, %v8154
        %v8156 = vrot.slane %v8155, 2
        %v8157 = vadd.f32 %v8155, %v8156
        %v8158 = vrot.slane %v8157, 1
        %v8159 = vadd.f32 %v8157, %v8158
        %v8160 = vadd.f32 %v8138, %v8159
        %v8161 = vrcp.pop %v8160
        %v8162 = vmul.f32 %v8160, %v8161
        %v8163 = vsub.f32 2.0, %v8162
        %v8164 = vmul.f32 %v8161, %v8163
        %v8165 = vld [vmem:[#allocation4] sm:$0xff]
        %v8166 = vld [vmem:[#allocation4 + $0x8] sm:$0xff]
        %v8167 = vld [vmem:[#allocation4 + $0x10] sm:$0xff]
        %v8168 = vld [vmem:[#allocation4 + $0x18] sm:$0xff]
        %v8169 = vld [vmem:[#allocation4 + $0x20] sm:$0xff]
        %v8170 = vld [vmem:[#allocation4 + $0x28] sm:$0xff]
        %v8171 = vld [vmem:[#allocation4 + $0x30] sm:$0xff]
        %v8172 = vld [vmem:[#allocation4 + $0x38] sm:$0xff]
        %v8173 = vld [vmem:[#allocation4 + $0x40] sm:$0xff]
        %v8174 = vld [vmem:[#allocation4 + $0x48] sm:$0xff]
        %v8175 = vld [vmem:[#allocation4 + $0x50] sm:$0xff]
        %v8176 = vld [vmem:[#allocation4 + $0x58] sm:$0xff]
        %v8177 = vld [vmem:[#allocation4 + $0x60] sm:$0xff]
        %v8178 = vld [vmem:[#allocation4 + $0x68] sm:$0xff]
        %v8179 = vld [vmem:[#allocation4 + $0x70] sm:$0xff]
        %v8180 = vld [vmem:[#allocation4 + $0x78] sm:$0xff]
        %v8181 = vmul.f32 %v8107, %v8165
        %v8182 = vmul.f32 %v8107, %v8166
        %v8183 = vmul.f32 %v8107, %v8167
        %v8184 = vmul.f32 %v8107, %v8168
        %v8185 = vmul.f32 %v8107, %v8169
        %v8186 = vmul.f32 %v8107, %v8170
        %v8187 = vmul.f32 %v8107, %v8171
        %v8188 = vmul.f32 %v8107, %v8172
        %v8189 = vmul.f32 %v8107, %v8173
        %v8190 = vmul.f32 %v8107, %v8174
        %v8191 = vmul.f32 %v8107, %v8175
        %v8192 = vmul.f32 %v8107, %v8176
        %v8193 = vmul.f32 %v8107, %v8177
        %v8194 = vmul.f32 %v8107, %v8178
        %v8195 = vmul.f32 %v8107, %v8179
        %v8196 = vmul.f32 %v8107, %v8180
        %v8197 = vsel %vm3044, %v8181, 0.0
        %v8198 = vrot.slane %v8197, 4
        %v8199 = vadd.f32 %v8197, %v8198
        %v8200 = vrot.slane %v8199, 2
        %v8201 = vadd.f32 %v8199, %v8200
        %v8202 = vrot.slane %v8201, 1
        %v8203 = vadd.f32 %v8201, %v8202
        %v8204 = vsel %vm3044, %v8182, 0.0
        %v8205 = vrot.slane %v8204, 4
        %v8206 = vadd.f32 %v8204, %v8205
        %v8207 = vrot.slane %v8206, 2
        %v8208 = vadd.f32 %v8206, %v8207
        %v8209 = vrot.slane %v8208, 1
        %v8210 = vadd.f32 %v8208, %v8209
        %v8211 = vsel %vm3044, %v8183, 0.0
        %v8212 = vrot.slane %v8211, 4
        %v8213 = vadd.f32 %v8211, %v8212
        %v8214 = vrot.slane %v8213, 2
        %v8215 = vadd.f32 %v8213, %v8214
        %v8216 = vrot.slane %v8215, 1
        %v8217 = vadd.f32 %v8215, %v8216
        %v8218 = vsel %vm3044, %v8184, 0.0
        %v8219 = vrot.slane %v8218, 4
        %v8220 = vadd.f32 %v8218, %v8219
        %v8221 = vrot.slane %v8220, 2
        %v8222 = vadd.f32 %v8220, %v8221
        %v8223 = vrot.slane %v8222, 1
        %v8224 = vadd.f32 %v8222, %v8223
        %v8225 = vsel %vm3044, %v8185, 0.0
        %v8226 = vrot.slane %v8225, 4
        %v8227 = vadd.f32 %v8225, %v8226
        %v8228 = vrot.slane %v8227, 2
        %v8229 = vadd.f32 %v8227, %v8228
        %v8230 = vrot.slane %v8229, 1
        %v8231 = vadd.f32 %v8229, %v8230
        %v8232 = vsel %vm3044, %v8186, 0.0
        %v8233 = vrot.slane %v8232, 4
        %v8234 = vadd.f32 %v8232, %v8233
        %v8235 = vrot.slane %v8234, 2
        %v8236 = vadd.f32 %v8234, %v8235
        %v8237 = vrot.slane %v8236, 1
        %v8238 = vadd.f32 %v8236, %v8237
        %v8239 = vsel %vm3044, %v8187, 0.0
        %v8240 = vrot.slane %v8239, 4
        %v8241 = vadd.f32 %v8239, %v8240
        %v8242 = vrot.slane %v8241, 2
        %v8243 = vadd.f32 %v8241, %v8242
        %v8244 = vrot.slane %v8243, 1
        %v8245 = vadd.f32 %v8243, %v8244
        %v8246 = vsel %vm3044, %v8188, 0.0
        %v8247 = vrot.slane %v8246, 4
        %v8248 = vadd.f32 %v8246, %v8247
        %v8249 = vrot.slane %v8248, 2
        %v8250 = vadd.f32 %v8248, %v8249
        %v8251 = vrot.slane %v8250, 1
        %v8252 = vadd.f32 %v8250, %v8251
        %v8253 = vsel %vm3044, %v8189, 0.0
        %v8254 = vrot.slane %v8253, 4
        %v8255 = vadd.f32 %v8253, %v8254
        %v8256 = vrot.slane %v8255, 2
        %v8257 = vadd.f32 %v8255, %v8256
        %v8258 = vrot.slane %v8257, 1
        %v8259 = vadd.f32 %v8257, %v8258
        %v8260 = vsel %vm3044, %v8190, 0.0
        %v8261 = vrot.slane %v8260, 4
        %v8262 = vadd.f32 %v8260, %v8261
        %v8263 = vrot.slane %v8262, 2
        %v8264 = vadd.f32 %v8262, %v8263
        %v8265 = vrot.slane %v8264, 1
        %v8266 = vadd.f32 %v8264, %v8265
        %v8267 = vsel %vm3044, %v8191, 0.0
        %v8268 = vrot.slane %v8267, 4
        %v8269 = vadd.f32 %v8267, %v8268
        %v8270 = vrot.slane %v8269, 2
        %v8271 = vadd.f32 %v8269, %v8270
        %v8272 = vrot.slane %v8271, 1
        %v8273 = vadd.f32 %v8271, %v8272
        %v8274 = vsel %vm3044, %v8192, 0.0
        %v8275 = vrot.slane %v8274, 4
        %v8276 = vadd.f32 %v8274, %v8275
        %v8277 = vrot.slane %v8276, 2
        %v8278 = vadd.f32 %v8276, %v8277
        %v8279 = vrot.slane %v8278, 1
        %v8280 = vadd.f32 %v8278, %v8279
        %v8281 = vsel %vm3044, %v8193, 0.0
        %v8282 = vrot.slane %v8281, 4
        %v8283 = vadd.f32 %v8281, %v8282
        %v8284 = vrot.slane %v8283, 2
        %v8285 = vadd.f32 %v8283, %v8284
        %v8286 = vrot.slane %v8285, 1
        %v8287 = vadd.f32 %v8285, %v8286
        %v8288 = vsel %vm3044, %v8194, 0.0
        %v8289 = vrot.slane %v8288, 4
        %v8290 = vadd.f32 %v8288, %v8289
        %v8291 = vrot.slane %v8290, 2
        %v8292 = vadd.f32 %v8290, %v8291
        %v8293 = vrot.slane %v8292, 1
        %v8294 = vadd.f32 %v8292, %v8293
        %v8295 = vsel %vm3044, %v8195, 0.0
        %v8296 = vrot.slane %v8295, 4
        %v8297 = vadd.f32 %v8295, %v8296
        %v8298 = vrot.slane %v8297, 2
        %v8299 = vadd.f32 %v8297, %v8298
        %v8300 = vrot.slane %v8299, 1
        %v8301 = vadd.f32 %v8299, %v8300
        %v8302 = vsel %vm3044, %v8196, 0.0
        %v8303 = vrot.slane %v8302, 4
        %v8304 = vadd.f32 %v8302, %v8303
        %v8305 = vrot.slane %v8304, 2
        %v8306 = vadd.f32 %v8304, %v8305
        %v8307 = vrot.slane %v8306, 1
        %v8308 = vadd.f32 %v8306, %v8307
        %v8325 = vrot.slane %v7872, 7
        %v8326 = vsel %vm349, %v8325, %v7871
        %v8327 = vrot.slane %v7873, 6
        %v8328 = vsel %vm352, %v8327, %v8326
        %v8329 = vrot.slane %v7874, 5
        %v8330 = vsel %vm355, %v8329, %v8328
        %v8331 = vrot.slane %v7875, 4
        %v8332 = vsel %vm358, %v8331, %v8330
        %v8333 = vrot.slane %v7876, 3
        %v8334 = vsel %vm361, %v8333, %v8332
        %v8335 = vrot.slane %v7877, 2
        %v8336 = vsel %vm364, %v8335, %v8334
        %v8337 = vrot.slane %v7878, 1
        %v8338 = vsel %vm367, %v8337, %v8336
        %v8339 = vrot.slane %v7880, 7
        %v8340 = vsel %vm349, %v8339, %v7879
        %v8341 = vrot.slane %v7881, 6
        %v8342 = vsel %vm352, %v8341, %v8340
        %v8343 = vrot.slane %v7882, 5
        %v8344 = vsel %vm355, %v8343, %v8342
        %v8345 = vrot.slane %v7883, 4
        %v8346 = vsel %vm358, %v8345, %v8344
        %v8347 = vrot.slane %v7884, 3
        %v8348 = vsel %vm361, %v8347, %v8346
        %v8349 = vrot.slane %v7885, 2
        %v8350 = vsel %vm364, %v8349, %v8348
        %v8351 = vrot.slane %v7886, 1
        %v8352 = vsel %vm367, %v8351, %v8350
        %v8353 = vsel %vm3044, %v8338, 0
        %v8355 = vsel %vm3044, %v8352, 0
        %8357 = vmatprep.subr.mxu0 0.0
        %8358 = vmatpush1.msra.mxu0 %v8117
        %8359 = vmatprep.subr.mxu0 0.0
        %8360 = vmatpush1.msra.mxu0 %v8119
        %8361 = vmatprep.subr.mxu0 0.0
        %8362 = vmatpush1.msra.mxu0 %v8121
        %8363 = vmatprep.subr.mxu0 0.0
        %8364 = vmatpush1.msra.mxu0 %v8123
        %8365 = vmatprep.subr.mxu0 0.0
        %8366 = vmatpush1.msra.mxu0 %v8125
        %8367 = vmatprep.subr.mxu0 0.0
        %8368 = vmatpush1.msra.mxu0 %v8127
        %8369 = vmatprep.subr.mxu0 0.0
        %8370 = vmatpush1.msra.mxu0 %v8129
        %8371 = vmatprep.subr.mxu0 0.0
        %8372 = vmatpush1.msra.mxu0 %v8131
        %8373 = vmatprep.subr.mxu0 0.0
        %8374 = vmatpush1.msra.mxu0 0.0
        %8375 = vmatprep.subr.mxu0 0.0
        %8376 = vmatpush1.msra.mxu0 0.0
        %8377 = vmatprep.subr.mxu0 0.0
        %8378 = vmatpush1.msra.mxu0 0.0
        %8379 = vmatprep.subr.mxu0 0.0
        %8380 = vmatpush1.msra.mxu0 0.0
        %8381 = vmatprep.subr.mxu0 0.0
        %8382 = vmatpush1.msra.mxu0 0.0
        %8383 = vmatprep.subr.mxu0 0.0
        %8384 = vmatpush1.msra.mxu0 0.0
        %8385 = vmatprep.subr.mxu0 0.0
        %8386 = vmatpush1.msra.mxu0 0.0
        %8387 = vmatprep.subr.mxu0 0.0
        %8388 = vmatpush1.msra.mxu0 0.0
        %8389 = vmatprep.subr.mxu0 0.0
        %8390 = vmatpush1.msra.mxu0 0.0
        %8391 = vmatprep.subr.mxu0 0.0
        %8392 = vmatpush1.msra.mxu0 0.0
        %8393 = vmatprep.subr.mxu0 0.0
        %8394 = vmatpush1.msra.mxu0 0.0
        %8395 = vmatprep.subr.mxu0 0.0
        %8396 = vmatpush1.msra.mxu0 0.0
        %8397 = vmatprep.subr.mxu0 0.0
        %8398 = vmatpush1.msra.mxu0 0.0
        %8399 = vmatprep.subr.mxu0 0.0
        %8400 = vmatpush1.msra.mxu0 0.0
        %8401 = vmatprep.subr.mxu0 0.0
        %8402 = vmatpush1.msra.mxu0 0.0
        %8403 = vmatprep.subr.mxu0 0.0
        %8404 = vmatpush1.msra.mxu0 0.0
        %8405 = vmatprep.subr.mxu0 0.0
        %8406 = vmatpush1.msra.mxu0 0.0
        %8407 = vmatprep.subr.mxu0 0.0
        %8408 = vmatpush1.msra.mxu0 0.0
        %8409 = vmatprep.subr.mxu0 0.0
        %8410 = vmatpush1.msra.mxu0 0.0
        %8411 = vmatprep.subr.mxu0 0.0
        %8412 = vmatpush1.msra.mxu0 0.0
        %8413 = vmatprep.subr.mxu0 0.0
        %8414 = vmatpush1.msra.mxu0 0.0
        %8415 = vmatprep.subr.mxu0 0.0
        %8416 = vmatpush1.msra.mxu0 0.0
        %8417 = vmatprep.subr.mxu0 0.0
        %8418 = vmatpush1.msra.mxu0 0.0
        %8419 = vmatprep.subr.mxu0 0.0
        %8420 = vmatpush1.msra.mxu0 0.0
        %8421 = vmatprep.mubr.f32.mxu0 0.0
        %8422 = vmatmul.mubr.f32.gmra.mrb[0].mxu0 %v8353
        %v8423 = vpop.f32.mrb[0].mxu0
        %v8424 = vadd.f32 0.0, %v8423
        %v8425 = vpop.f32.mrb[0].mxu0
        %8426 = vmatprep.mubr.f32.mxu0 0.0
        %8427 = vmatmul.mubr.f32.gmra.mrb[0].mxu0 %v8355
        %v8428 = vpop.f32.mrb[0].mxu0
        %v8429 = vadd.f32 0.0, %v8428
        %v8430 = vpop.f32.mrb[0].mxu0
        %8431 = vdwg.mxu0
        %v8434 = vrot.slane %v8424, 1
        %v8435 = vrot.slane %v8424, 2
        %v8436 = vrot.slane %v8424, 3
        %v8437 = vrot.slane %v8424, 4
        %v8438 = vrot.slane %v8424, 5
        %v8439 = vrot.slane %v8424, 6
        %v8440 = vrot.slane %v8424, 7
        %v8441 = vrot.slane %v8429, 1
        %v8442 = vrot.slane %v8429, 2
        %v8443 = vrot.slane %v8429, 3
        %v8444 = vrot.slane %v8429, 4
        %v8445 = vrot.slane %v8429, 5
        %v8446 = vrot.slane %v8429, 6
        %v8447 = vrot.slane %v8429, 7
        %v8464 = vadd.f32 %v8203, %v8424
        %v8465 = vadd.f32 %v8210, %v8434
        %v8466 = vadd.f32 %v8217, %v8435
        %v8467 = vadd.f32 %v8224, %v8436
        %v8468 = vadd.f32 %v8231, %v8437
        %v8469 = vadd.f32 %v8238, %v8438
        %v8470 = vadd.f32 %v8245, %v8439
        %v8471 = vadd.f32 %v8252, %v8440
        %v8472 = vadd.f32 %v8259, %v8429
        %v8473 = vadd.f32 %v8266, %v8441
        %v8474 = vadd.f32 %v8273, %v8442
        %v8475 = vadd.f32 %v8280, %v8443
        %v8476 = vadd.f32 %v8287, %v8444
        %v8477 = vadd.f32 %v8294, %v8445
        %v8478 = vadd.f32 %v8301, %v8446
        %v8479 = vadd.f32 %v8308, %v8447
        %v8480 = vmul.f32 %v8464, %v8164
        %v8481 = vmul.f32 %v8465, %v8164
        %v8482 = vmul.f32 %v8466, %v8164
        %v8483 = vmul.f32 %v8467, %v8164
        %v8484 = vmul.f32 %v8468, %v8164
        %v8485 = vmul.f32 %v8469, %v8164
        %v8486 = vmul.f32 %v8470, %v8164
        %v8487 = vmul.f32 %v8471, %v8164
        %v8488 = vmul.f32 %v8472, %v8164
        %v8489 = vmul.f32 %v8473, %v8164
        %v8490 = vmul.f32 %v8474, %v8164
        %v8491 = vmul.f32 %v8475, %v8164
        %v8492 = vmul.f32 %v8476, %v8164
        %v8493 = vmul.f32 %v8477, %v8164
        %v8494 = vmul.f32 %v8478, %v8164
        %v8495 = vmul.f32 %v8479, %v8164
        %v8496 = vmul.f32 %v3644, %v8480
        %v8497 = vmul.f32 %v3644, %v8481
        %v8498 = vmul.f32 %v3644, %v8482
        %v8499 = vmul.f32 %v3644, %v8483
        %v8500 = vmul.f32 %v3644, %v8484
        %v8501 = vmul.f32 %v3644, %v8485
        %v8502 = vmul.f32 %v3644, %v8486
        %v8503 = vmul.f32 %v3644, %v8487
        %v8504 = vmul.f32 %v3644, %v8488
        %v8505 = vmul.f32 %v3644, %v8489
        %v8506 = vmul.f32 %v3644, %v8490
        %v8507 = vmul.f32 %v3644, %v8491
        %v8508 = vmul.f32 %v3644, %v8492
        %v8509 = vmul.f32 %v3644, %v8493
        %v8510 = vmul.f32 %v3644, %v8494
        %v8511 = vmul.f32 %v3644, %v8495
        %v8512 = vld [vmem:[%s249 + $0x7] sm:$0x1]
        %v8513 = vld [vmem:[%s249 + $0xf] sm:$0x1]
        %v8514 = vld [vmem:[%s249 + $0x17] sm:$0x1]
        %v8515 = vld [vmem:[%s249 + $0x1f] sm:$0x1]
        %v8516 = vld [vmem:[%s249 + $0x27] sm:$0x1]
        %v8517 = vld [vmem:[%s249 + $0x2f] sm:$0x1]
        %v8518 = vld [vmem:[%s249 + $0x37] sm:$0x1]
        %v8519 = vld [vmem:[%s249 + $0x3f] sm:$0x1]
        %v8520 = vld [vmem:[%s249 + $0x47] sm:$0x1]
        %v8521 = vld [vmem:[%s249 + $0x4f] sm:$0x1]
        %v8522 = vld [vmem:[%s249 + $0x57] sm:$0x1]
        %v8523 = vld [vmem:[%s249 + $0x5f] sm:$0x1]
        %v8524 = vld [vmem:[%s249 + $0x67] sm:$0x1]
        %v8525 = vld [vmem:[%s249 + $0x6f] sm:$0x1]
        %v8526 = vld [vmem:[%s249 + $0x77] sm:$0x1]
        %v8527 = vld [vmem:[%s249 + $0x7f] sm:$0x1]
        %v8528 = vadd.f32 %v8496, %v8512
        %v8529 = vadd.f32 %v8497, %v8513
        %v8530 = vadd.f32 %v8498, %v8514
        %v8531 = vadd.f32 %v8499, %v8515
        %v8532 = vadd.f32 %v8500, %v8516
        %v8533 = vadd.f32 %v8501, %v8517
        %v8534 = vadd.f32 %v8502, %v8518
        %v8535 = vadd.f32 %v8503, %v8519
        %v8536 = vadd.f32 %v8504, %v8520
        %v8537 = vadd.f32 %v8505, %v8521
        %v8538 = vadd.f32 %v8506, %v8522
        %v8539 = vadd.f32 %v8507, %v8523
        %v8540 = vadd.f32 %v8508, %v8524
        %v8541 = vadd.f32 %v8509, %v8525
        %v8542 = vadd.f32 %v8510, %v8526
        %v8543 = vadd.f32 %v8511, %v8527
        %8544 = vst.msk [vmem:[%s287 + $0x7] sm:$0x1] %vm508, %v8528
        %8545 = vst.msk [vmem:[%s287 + $0xf] sm:$0x1] %vm508, %v8529
        %8546 = vst.msk [vmem:[%s287 + $0x17] sm:$0x1] %vm508, %v8530
        %8547 = vst.msk [vmem:[%s287 + $0x1f] sm:$0x1] %vm508, %v8531
        %8548 = vst.msk [vmem:[%s287 + $0x27] sm:$0x1] %vm508, %v8532
        %8549 = vst.msk [vmem:[%s287 + $0x2f] sm:$0x1] %vm508, %v8533
        %8550 = vst.msk [vmem:[%s287 + $0x37] sm:$0x1] %vm508, %v8534
        %8551 = vst.msk [vmem:[%s287 + $0x3f] sm:$0x1] %vm508, %v8535
        %8552 = vst.msk [vmem:[%s287 + $0x47] sm:$0x1] %vm508, %v8536
        %8553 = vst.msk [vmem:[%s287 + $0x4f] sm:$0x1] %vm508, %v8537
        %8554 = vst.msk [vmem:[%s287 + $0x57] sm:$0x1] %vm508, %v8538
        %8555 = vst.msk [vmem:[%s287 + $0x5f] sm:$0x1] %vm508, %v8539
        %8556 = vst.msk [vmem:[%s287 + $0x67] sm:$0x1] %vm508, %v8540
        %8557 = vst.msk [vmem:[%s287 + $0x6f] sm:$0x1] %vm508, %v8541
        %8558 = vst.msk [vmem:[%s287 + $0x77] sm:$0x1] %vm508, %v8542
        %8559 = vst.msk [vmem:[%s287 + $0x7f] sm:$0x1] %vm508, %v8543
        %s8560 = sand.u32 %s143, 1
        %s8561 = scalar_lea.sflag [#allocation8], %s8560
        %s8562 = sand.u32 %s143, 1
        %s8563 = smul.addr %s8562, 128
        %s8564 = scalar_lea.vmem [#allocation14], %s8563
        // Predicated region
        $region57: #{tpu_custom_call.1} parent=39 // pred_check
          %p8565 = pneg %p153
        $region58: #{tpu_custom_call.1} parent=39 // pred_check_branch
          %8567 = sbr.rel (%p8565) target = $region60
        $region59: #{tpu_custom_call.1} parent=39 // pred_region
          %s8569 = ssub.s32 2048, 2048
          %8570 = vsyncadd %s8561, %s8569
          %s8571 = smul.addr %s25, 16
          %s8572 = smul.addr %s8571, 128
          %s8573 = scalar_lea.hbm %s5, %s8572
          %s8574 = sshll.u32 %s8564, 4
          %s8575 = int_to_ptr.vmem [resolvable:$true] %s8574
          %8580 = dma.vmem_to_hbm [thread:$0]  %s8575, 2048, %s8573, %s8561, 128, 128, 8
        $region60: #{tpu_custom_call.1} parent=39 // pred_fallthru
          _
      $region40: #{tpu_custom_call.1} parent=5 // pred_fallthru
        _
      %p8581 = scmp.le.s32.totalorder 2, %s20
      // Predicated region
      $region61: #{tpu_custom_call.1} parent=5 // pred_check
        %p8582 = pneg %p8581
      $region62: #{tpu_custom_call.1} parent=5 // pred_check_branch
        %8584 = sbr.rel (%p8582) target = $region64
      $region63: #{tpu_custom_call.1} parent=5 // pred_region
        %s8585 = ssub.s32 %s20, 2
        // Predicated region
        $region65: #{tpu_custom_call.1} parent=63 // pred_check
          %p8586 = pneg %p159
        $region66: #{tpu_custom_call.1} parent=63 // pred_check_branch
          %8588 = sbr.rel (%p8586) target = $region68
        $region67: #{tpu_custom_call.1} parent=63 // pred_region
          %s8589 = sand.u32 %s144, 1
          %s8590 = scalar_lea.sflag [#allocation8], %s8589
          %s8591 = sand.u32 %s144, 1
          %s8592 = smul.addr %s8591, 128
          %s8593 = scalar_lea.vmem [#allocation14], %s8592
          %8594 = dma.done %s8590, 2048
        $region68: #{tpu_custom_call.1} parent=63 // pred_fallthru
          _
      $region64: #{tpu_custom_call.1} parent=5 // pred_fallthru
        _
    $region6: #{tpu_custom_call.1} parent=1 // loop_footer
      %s24 = sadd.s32 1, %s20
    $region7: #{tpu_custom_call.1} parent=1 // loop_footer_branch
      %19 = sbr.rel target = $region3
    $region8: #{tpu_custom_call.1} parent=1 // loop_exit
      _
    %8595 = vsyncpa [#allocation7], 1
    %s8596 = scalar_lea.sflag [#allocation7], 1
    %8597 = vsyncpa %s8596, 1
    %8598 = vsyncpa [#allocation10], 1
    %8599 = vsyncpa [#allocation13], 1
    %8600 = vsyncpa [#allocation8], 1
    %s8601 = scalar_lea.sflag [#allocation8], 1
    %8602 = vsyncpa %s8601, 1

</llo_original>
